<compile_context>
chip_gen: v7x
topology: tpu7x:2x2x1
jax: 0.10.0
libtpu: 0.0.40
codegen_flags: <defaults>
</compile_context>

<pallas_src>
import jax
import jax.numpy as jnp
import numpy as np
from jax.experimental import pallas as pl
from jax.experimental.pallas import tpu as pltpu

CODE_DIM = 1536
LN_EPS = 1e-5

D1, D2, D3 = 768, 384, 192      # feature-extractor widths
D3P = 256                       # 192 padded to a lane multiple
DC1, DC1P = 192, 256            # comparison layer 1 width (real / padded)
DC2, DC2P = 64, 128             # comparison layer 2 width (real / padded)

MAX_BATCH_TILE = 256            # rows of x1 (and x2) per grid step; stacked LHS = 512 rows


def _layernorm(x, gamma, beta, d_real, eps=LN_EPS):
    """Single-pass LayerNorm over the real feature width.

    Padded lanes of `x` are exactly zero (zero-padded weights/biases), so summing over
    the padded width and dividing by the *real* width reproduces PyTorch LayerNorm;
    gamma/beta pads are zero so padded output lanes stay zero.
    """
    inv_d = 1.0 / d_real
    s1 = jnp.sum(x, axis=-1, keepdims=True)
    s2 = jnp.sum(x * x, axis=-1, keepdims=True)
    mean = s1 * inv_d
    var = jnp.maximum(s2 * inv_d - mean * mean, 0.0)
    return (x - mean) * jax.lax.rsqrt(var + eps) * gamma + beta


def _predictor_kernel(
    x1_ref, x2_ref,
    # feature_extractor params (shared between x1 and x2)
    w1_ref, b1_ref, g1_ref, bb1_ref,
    w2_ref, b2_ref, g2_ref, bb2_ref,
    w3_ref, b3_ref, g3_ref, bb3_ref,
    # comparison params (first Linear split into two halves to avoid an in-kernel
    # concat along the feature axis)
    wc1a_ref, wc1b_ref, bc1_ref, gc1_ref, bbc1_ref,
    wc2_ref, bc2_ref, gc2_ref, bbc2_ref,
    wc3_ref, bc3_ref,
    out_ref,
):
    tb = x1_ref.shape[0]
    # Stack the two already-bf16 input tiles so the shared-weight feature extractor
    # runs ONCE with M = 2*tb (half the MXU issues / weight reloads of two passes).
    x = jnp.concatenate([x1_ref[...], x2_ref[...]], axis=0)   # (2*tb, code_dim) bf16

    def lin_ln_relu(h_bf16, w_ref, b_ref, g_ref, bb_ref, d_real):
        h = jnp.dot(h_bf16, w_ref[...], preferred_element_type=jnp.float32) + b_ref[...]
        return jnp.maximum(_layernorm(h, g_ref[...], bb_ref[...], d_real), 0.0)

    h = lin_ln_relu(x, w1_ref, b1_ref, g1_ref, bb1_ref, D1)
    # Dropout(0.1) -> identity in eval mode.
    h = lin_ln_relu(h.astype(jnp.bfloat16), w2_ref, b2_ref, g2_ref, bb2_ref, D2)
    feats = lin_ln_relu(h.astype(jnp.bfloat16), w3_ref, b3_ref, g3_ref, bb3_ref, D3)

    feats_bf = feats.astype(jnp.bfloat16)       # (2*tb, 256), padded lanes are 0
    f1 = feats_bf[:tb]
    f2 = feats_bf[tb:]

    # torch.cat([f1, f2], dim=1) @ Wc1  ==  f1 @ Wc1[:192] + f2 @ Wc1[192:]
    h = (jnp.dot(f1, wc1a_ref[...], preferred_element_type=jnp.float32)
         + jnp.dot(f2, wc1b_ref[...], preferred_element_type=jnp.float32)
         + bc1_ref[...])
    h = jnp.maximum(_layernorm(h, gc1_ref[...], bbc1_ref[...], DC1), 0.0)
    # Dropout(0.1) -> identity in eval mode.
    h = jnp.dot(h.astype(jnp.bfloat16), wc2_ref[...],
                preferred_element_type=jnp.float32) + bc2_ref[...]
    h = jnp.maximum(_layernorm(h, gc2_ref[...], bbc2_ref[...], DC2), 0.0)
    # Final Linear has N=1: do it on the VPU/XLU (multiply + lane reduction) instead of
    # filling 1 of 256 MXU output lanes.  wc3 is an f32 (1, 128) row, zero padded lanes.
    y = jnp.sum(h * wc3_ref[...], axis=-1, keepdims=True) + bc3_ref[...]
    out_ref[...] = jnp.tanh(y)


def _round_up(n, m):
    return ((n + m - 1) // m) * m


def _pad2(a, rows, cols):
    return jnp.pad(a, ((0, rows - a.shape[0]), (0, cols - a.shape[1])))


def pack_params(params):
    """Pack weights ONCE: bf16 matmul weights, zero-padded head dims (192->256,
    64->128), concat-layer split, f32 row for the final VPU reduction.  Call this once
    and reuse the result across predictions (hoisted out of the per-call path)."""
    bf = jnp.bfloat16
    wc1 = params["wc1"]
    return (
        params["w1"].astype(bf), params["b1"], params["g1"], params["bb1"],
        params["w2"].astype(bf), params["b2"], params["g2"], params["bb2"],
        _pad2(params["w3"], D2, D3P).astype(bf),
        _pad2(params["b3"], 1, D3P), _pad2(params["g3"], 1, D3P), _pad2(params["bb3"], 1, D3P),
        _pad2(wc1[:D3, :], D3P, DC1P).astype(bf),
        _pad2(wc1[D3:, :], D3P, DC1P).astype(bf),
        _pad2(params["bc1"], 1, DC1P), _pad2(params["gc1"], 1, DC1P), _pad2(params["bbc1"], 1, DC1P),
        _pad2(params["wc2"], DC1P, DC2P).astype(bf),
        _pad2(params["bc2"], 1, DC2P), _pad2(params["gc2"], 1, DC2P), _pad2(params["bbc2"], 1, DC2P),
        _pad2(params["wc3"].reshape(1, DC2), 1, DC2P),   # f32 row for the VPU finale
        params["bc3"],
    )


def _pick_tile(B):
    """Choose the per-step batch tile.

    B <= MAX_BATCH_TILE : split into ~2 steps (multiple of 8 rows) so the "parallel"
                          grid axis can shard across both v7x TensorCores.
    B  > MAX_BATCH_TILE : prefer a tile that divides B exactly so the wrapper never
                          has to jnp.pad the inputs (extra HBM read+write); otherwise
                          pick the near-minimal pad for ceil(B/MAX) steps.
    """
    if B <= MAX_BATCH_TILE:
        return _round_up(max(-(-B // 2), 1), 8)
    for tb in range(MAX_BATCH_TILE, 127, -8):
        if B % tb == 0:
            return tb
    nsteps = -(-B // MAX_BATCH_TILE)
    return _round_up(-(-B // nsteps), 8)


@jax.jit
def _predict_impl(x1, x2, *packed):
    B = x1.shape[0]
    # Prefer bf16 inputs produced upstream (halves the kernel's input DMA); cast here
    # otherwise.  Every in-kernel dot already runs in bf16, so numerics are unchanged.
    x1 = x1.astype(jnp.bfloat16)
    x2 = x2.astype(jnp.bfloat16)

    TB = _pick_tile(B)
    Bp = _round_up(B, TB)
    if Bp != B:
        # Padded rows are garbage-free zeros; every op is strictly row-wise and the
        # pad rows are sliced off below, so this is safe.
        pad = ((0, Bp - B), (0, 0))
        x1 = jnp.pad(x1, pad)
        x2 = jnp.pad(x2, pad)

    x_spec = pl.BlockSpec((TB, CODE_DIM), lambda i: (i, 0))
    # Weights/biases: full-array blocks with constant index maps -> fetched once and
    # kept VMEM-resident across grid steps.
    w_specs = [pl.BlockSpec(p.shape, lambda i: (0, 0)) for p in packed]
    out_spec = pl.BlockSpec((TB, 1), lambda i: (i, 0))

    out = pl.pallas_call(
        _predictor_kernel,
        out_shape=jax.ShapeDtypeStruct((Bp, 1), jnp.float32),
        grid_spec=pltpu.PrefetchScalarGridSpec(
            num_scalar_prefetch=0,
            grid=(Bp // TB,),
            in_specs=[x_spec, x_spec] + w_specs,
            out_specs=out_spec,
        ),
        compiler_params=pltpu.CompilerParams(
            dimension_semantics=("parallel",),
            # > v5e's 16 MiB default scoped limit, < v7x's 64 MiB physical VMEM,
            # ample for TB=256 with double-buffered bf16 inputs + resident weights.
            vmem_limit_bytes=48 << 20,
        ),
    )(x1, x2, *packed)
    return out[:B]


def performance_predictor(x1, x2, packed_params):
    """Forward pass.  `packed_params` must come from pack_params() (computed once)."""
    return _predict_impl(x1, x2, *packed_params)


def init_params(key, code_dim=CODE_DIM):
    """Deterministic PyTorch-like init: Linear ~ U(-1/sqrt(fan_in), 1/sqrt(fan_in)),
    LayerNorm gamma=1, beta=0. Weights stored as (in, out); biases as (1, out)."""
    dims_feat = [(code_dim, D1), (D1, D2), (D2, D3)]
    dims_comp = [(2 * D3, DC1), (DC1, DC2), (DC2, 1)]
    params = {}
    keys = jax.random.split(key, 2 * (len(dims_feat) + len(dims_comp)))
    ki = 0

    def linear(din, dout):
        nonlocal ki
        bound = 1.0 / np.sqrt(din)
        w = jax.random.uniform(keys[ki], (din, dout), jnp.float32, -bound, bound); ki += 1
        b = jax.random.uniform(keys[ki], (1, dout), jnp.float32, -bound, bound); ki += 1
        return w, b

    for i, (din, dout) in enumerate(dims_feat, start=1):
        w, b = linear(din, dout)
        params[f"w{i}"], params[f"b{i}"] = w, b
        params[f"g{i}"] = jnp.ones((1, dout), jnp.float32)
        params[f"bb{i}"] = jnp.zeros((1, dout), jnp.float32)

    for i, (din, dout) in enumerate(dims_comp, start=1):
        w, b = linear(din, dout)
        params[f"wc{i}"], params[f"bc{i}"] = w, b
        if i < 3:  # last comparison Linear has no LayerNorm after it
            params[f"gc{i}"] = jnp.ones((1, dout), jnp.float32)
            params[f"bbc{i}"] = jnp.zeros((1, dout), jnp.float32)
    return params


# ----------------------------- references ---------------------------------

def _ln_ref(x, g, b):
    m = jnp.mean(x, -1, keepdims=True)
    v = jnp.mean((x - m) ** 2, -1, keepdims=True)
    return (x - m) / jnp.sqrt(v + LN_EPS) * g + b


def _reference_f32(x1, x2, params):
    """Pure-JAX f32 reference of the PyTorch forward (eval mode)."""
    def feat(x):
        h = jnp.maximum(_ln_ref(x @ params["w1"] + params["b1"], params["g1"], params["bb1"]), 0.0)
        h = jnp.maximum(_ln_ref(h @ params["w2"] + params["b2"], params["g2"], params["bb2"]), 0.0)
        h = jnp.maximum(_ln_ref(h @ params["w3"] + params["b3"], params["g3"], params["bb3"]), 0.0)
        return h
    combined = jnp.concatenate([feat(x1), feat(x2)], axis=1)
    h = jnp.maximum(_ln_ref(combined @ params["wc1"] + params["bc1"], params["gc1"], params["bbc1"]), 0.0)
    h = jnp.maximum(_ln_ref(h @ params["wc2"] + params["bc2"], params["gc2"], params["bbc2"]), 0.0)
    return jnp.tanh(h @ params["wc3"] + params["bc3"])


def _reference_bf16(x1, x2, params):
    """Same forward with bf16 matmul inputs / f32 accumulation (kernel's precision);
    the final N=1 layer stays f32 like the kernel's VPU reduction."""
    def dot(h, w):
        return jnp.dot(h.astype(jnp.bfloat16), w.astype(jnp.bfloat16),
                       preferred_element_type=jnp.float32)
    def feat(x):
        h = jnp.maximum(_ln_ref(dot(x, params["w1"]) + params["b1"], params["g1"], params["bb1"]), 0.0)
        h = jnp.maximum(_ln_ref(dot(h, params["w2"]) + params["b2"], params["g2"], params["bb2"]), 0.0)
        h = jnp.maximum(_ln_ref(dot(h, params["w3"]) + params["b3"], params["g3"], params["bb3"]), 0.0)
        return h
    combined = jnp.concatenate([feat(x1), feat(x2)], axis=1)
    h = jnp.maximum(_ln_ref(dot(combined, params["wc1"]) + params["bc1"], params["gc1"], params["bbc1"]), 0.0)
    h = jnp.maximum(_ln_ref(dot(h, params["wc2"]) + params["bc2"], params["gc2"], params["bbc2"]), 0.0)
    return jnp.tanh(h @ params["wc3"] + params["bc3"])


if __name__ == "__main__":
    key = jax.random.PRNGKey(0)
    kx1, kx2, kp = jax.random.split(key, 3)
    B = 2
    x1 = jax.random.normal(kx1, (B, CODE_DIM), jnp.float32)
    x2 = jax.random.normal(kx2, (B, CODE_DIM), jnp.float32)
    params = init_params(kp, CODE_DIM)

    packed = pack_params(params)                 # packed/cast ONCE, reused per call
    out = performance_predictor(x1, x2, packed)
    jax.block_until_ready(out)
    assert out.shape == (B, 1)

    # Tight check against a reference using the same (bf16-matmul) precision.
    ref_bf16 = _reference_bf16(x1, x2, params)
    np.testing.assert_allclose(np.asarray(out), np.asarray(ref_bf16), atol=5e-3, rtol=0)

    # Loose sanity check against the full-f32 PyTorch-equivalent reference
    # (bf16 weights/activations introduce <~1% deviation; semantics unchanged).
    ref_f32 = _reference_f32(x1, x2, params)
    np.testing.assert_allclose(np.asarray(out), np.asarray(ref_f32), atol=5e-2, rtol=0)

    print("KERNEL_OK")
</pallas_src>

<mosaic_0001>
module attributes {stable_mosaic.version = 11 : i64} {
  func.func @_predictor_kernel(%arg0: i32, %arg1: memref<8x1536xbf16, #tpu.memory_space<vmem>>, %arg2: memref<8x1536xbf16, #tpu.memory_space<vmem>>, %arg3: memref<1536x768xbf16, #tpu.memory_space<vmem>>, %arg4: memref<1x768xf32, #tpu.memory_space<vmem>>, %arg5: memref<1x768xf32, #tpu.memory_space<vmem>>, %arg6: memref<1x768xf32, #tpu.memory_space<vmem>>, %arg7: memref<768x384xbf16, #tpu.memory_space<vmem>>, %arg8: memref<1x384xf32, #tpu.memory_space<vmem>>, %arg9: memref<1x384xf32, #tpu.memory_space<vmem>>, %arg10: memref<1x384xf32, #tpu.memory_space<vmem>>, %arg11: memref<384x256xbf16, #tpu.memory_space<vmem>>, %arg12: memref<1x256xf32, #tpu.memory_space<vmem>>, %arg13: memref<1x256xf32, #tpu.memory_space<vmem>>, %arg14: memref<1x256xf32, #tpu.memory_space<vmem>>, %arg15: memref<256x256xbf16, #tpu.memory_space<vmem>>, %arg16: memref<256x256xbf16, #tpu.memory_space<vmem>>, %arg17: memref<1x256xf32, #tpu.memory_space<vmem>>, %arg18: memref<1x256xf32, #tpu.memory_space<vmem>>, %arg19: memref<1x256xf32, #tpu.memory_space<vmem>>, %arg20: memref<256x128xbf16, #tpu.memory_space<vmem>>, %arg21: memref<1x128xf32, #tpu.memory_space<vmem>>, %arg22: memref<1x128xf32, #tpu.memory_space<vmem>>, %arg23: memref<1x128xf32, #tpu.memory_space<vmem>>, %arg24: memref<1x128xf32, #tpu.memory_space<vmem>>, %arg25: memref<1x1xf32, #tpu.memory_space<vmem>>, %arg26: memref<8x1xf32, #tpu.memory_space<vmem>>) attributes {dimension_semantics = [#tpu.dimension_semantics<parallel>], iteration_bounds = array<i64: 1>, scalar_prefetch = 0 : i64, scratch_operands = 0 : i64, tpu.core_type = #tpu.core_type<tc>, window_params = [{transform_indices = @transform_0, window_bounds = array<i64: 8, 1536>}, {transform_indices = @transform_1, window_bounds = array<i64: 8, 1536>}, {pipeline_mode = #tpu.pipeline_mode<synchronous>, transform_indices = @transform_2, window_bounds = array<i64: 1536, 768>}, {pipeline_mode = #tpu.pipeline_mode<synchronous>, transform_indices = @transform_3, window_bounds = array<i64: 1, 768>}, {pipeline_mode = #tpu.pipeline_mode<synchronous>, transform_indices = @transform_4, window_bounds = array<i64: 1, 768>}, {pipeline_mode = #tpu.pipeline_mode<synchronous>, transform_indices = @transform_5, window_bounds = array<i64: 1, 768>}, {pipeline_mode = #tpu.pipeline_mode<synchronous>, transform_indices = @transform_6, window_bounds = array<i64: 768, 384>}, {pipeline_mode = #tpu.pipeline_mode<synchronous>, transform_indices = @transform_7, window_bounds = array<i64: 1, 384>}, {pipeline_mode = #tpu.pipeline_mode<synchronous>, transform_indices = @transform_8, window_bounds = array<i64: 1, 384>}, {pipeline_mode = #tpu.pipeline_mode<synchronous>, transform_indices = @transform_9, window_bounds = array<i64: 1, 384>}, {pipeline_mode = #tpu.pipeline_mode<synchronous>, transform_indices = @transform_10, window_bounds = array<i64: 384, 256>}, {pipeline_mode = #tpu.pipeline_mode<synchronous>, transform_indices = @transform_11, window_bounds = array<i64: 1, 256>}, {pipeline_mode = #tpu.pipeline_mode<synchronous>, transform_indices = @transform_12, window_bounds = array<i64: 1, 256>}, {pipeline_mode = #tpu.pipeline_mode<synchronous>, transform_indices = @transform_13, window_bounds = array<i64: 1, 256>}, {pipeline_mode = #tpu.pipeline_mode<synchronous>, transform_indices = @transform_14, window_bounds = array<i64: 256, 256>}, {pipeline_mode = #tpu.pipeline_mode<synchronous>, transform_indices = @transform_15, window_bounds = array<i64: 256, 256>}, {pipeline_mode = #tpu.pipeline_mode<synchronous>, transform_indices = @transform_16, window_bounds = array<i64: 1, 256>}, {pipeline_mode = #tpu.pipeline_mode<synchronous>, transform_indices = @transform_17, window_bounds = array<i64: 1, 256>}, {pipeline_mode = #tpu.pipeline_mode<synchronous>, transform_indices = @transform_18, window_bounds = array<i64: 1, 256>}, {pipeline_mode = #tpu.pipeline_mode<synchronous>, transform_indices = @transform_19, window_bounds = array<i64: 256, 128>}, {pipeline_mode = #tpu.pipeline_mode<synchronous>, transform_indices = @transform_20, window_bounds = array<i64: 1, 128>}, {pipeline_mode = #tpu.pipeline_mode<synchronous>, transform_indices = @transform_21, window_bounds = array<i64: 1, 128>}, {pipeline_mode = #tpu.pipeline_mode<synchronous>, transform_indices = @transform_22, window_bounds = array<i64: 1, 128>}, {pipeline_mode = #tpu.pipeline_mode<synchronous>, transform_indices = @transform_23, window_bounds = array<i64: 1, 128>}, {pipeline_mode = #tpu.pipeline_mode<synchronous>, transform_indices = @transform_24, window_bounds = array<i64: 1, 1>}, {transform_indices = @transform_25, window_bounds = array<i64: 8, 1>}]} {
    %c0 = arith.constant 0 : index
    %c0_0 = arith.constant 0 : index
    %0 = vector.load %arg1[%c0, %c0_0] : memref<8x1536xbf16, #tpu.memory_space<vmem>>, vector<8x1536xbf16>
    %c0_1 = arith.constant 0 : index
    %c0_2 = arith.constant 0 : index
    %1 = vector.load %arg2[%c0_1, %c0_2] : memref<8x1536xbf16, #tpu.memory_space<vmem>>, vector<8x1536xbf16>
    %2 = tpu.concatenate %0, %1 in 0 : vector<8x1536xbf16>, vector<8x1536xbf16> -> vector<16x1536xbf16>
    %c0_3 = arith.constant 0 : index
    %c0_4 = arith.constant 0 : index
    %3 = vector.load %arg3[%c0_3, %c0_4] : memref<1536x768xbf16, #tpu.memory_space<vmem>>, vector<1536x768xbf16>
    %cst = arith.constant dense<0.000000e+00> : vector<16x768xf32>
    %4 = tpu.matmul %2, %3, %cst {dimension_numbers = #tpu.dot_dimension_numbers<[1], [0], [0], [1], [0, 0, 1, 1], [], []>} : vector<16x1536xbf16>, vector<1536x768xbf16>, vector<16x768xf32> -> vector<16x768xf32>
    %c0_5 = arith.constant 0 : index
    %c0_6 = arith.constant 0 : index
    %5 = vector.load %arg4[%c0_5, %c0_6] : memref<1x768xf32, #tpu.memory_space<vmem>>, vector<1x768xf32>
    %6 = vector.broadcast %5 : vector<1x768xf32> to vector<16x768xf32>
    %7 = arith.addf %4, %6 : vector<16x768xf32>
    %c0_7 = arith.constant 0 : index
    %c0_8 = arith.constant 0 : index
    %8 = vector.load %arg5[%c0_7, %c0_8] : memref<1x768xf32, #tpu.memory_space<vmem>>, vector<1x768xf32>
    %c0_9 = arith.constant 0 : index
    %c0_10 = arith.constant 0 : index
    %9 = vector.load %arg6[%c0_9, %c0_10] : memref<1x768xf32, #tpu.memory_space<vmem>>, vector<1x768xf32>
    %cst_11 = arith.constant dense<0.000000e+00> : vector<16xf32>
    %10 = vector.multi_reduction <add>, %7, %cst_11 [1] : vector<16x768xf32> to vector<16xf32>
    %11 = vector.shape_cast %10 : vector<16xf32> to vector<16x1xf32>
    %12 = arith.mulf %7, %7 : vector<16x768xf32>
    %cst_12 = arith.constant dense<0.000000e+00> : vector<16xf32>
    %13 = vector.multi_reduction <add>, %12, %cst_12 [1] : vector<16x768xf32> to vector<16xf32>
    %14 = vector.shape_cast %13 : vector<16xf32> to vector<16x1xf32>
    %cst_13 = arith.constant 0.00130208337 : f32
    %15 = vector.broadcast %cst_13 : f32 to vector<16x1xf32>
    %16 = arith.mulf %11, %15 : vector<16x1xf32>
    %cst_14 = arith.constant 0.00130208337 : f32
    %17 = vector.broadcast %cst_14 : f32 to vector<16x1xf32>
    %18 = arith.mulf %14, %17 : vector<16x1xf32>
    %19 = arith.mulf %16, %16 : vector<16x1xf32>
    %20 = arith.subf %18, %19 : vector<16x1xf32>
    %cst_15 = arith.constant 0.000000e+00 : f32
    %21 = vector.broadcast %cst_15 : f32 to vector<16x1xf32>
    %22 = arith.maximumf %20, %21 : vector<16x1xf32>
    %23 = vector.broadcast %16 : vector<16x1xf32> to vector<16x768xf32>
    %24 = arith.subf %7, %23 : vector<16x768xf32>
    %cst_16 = arith.constant 9.99999974E-6 : f32
    %25 = vector.broadcast %cst_16 : f32 to vector<16x1xf32>
    %26 = arith.addf %22, %25 : vector<16x1xf32>
    %27 = math.rsqrt %26 : vector<16x1xf32>
    %28 = vector.broadcast %27 : vector<16x1xf32> to vector<16x768xf32>
    %29 = arith.mulf %24, %28 : vector<16x768xf32>
    %30 = vector.broadcast %8 : vector<1x768xf32> to vector<16x768xf32>
    %31 = arith.mulf %29, %30 : vector<16x768xf32>
    %32 = vector.broadcast %9 : vector<1x768xf32> to vector<16x768xf32>
    %33 = arith.addf %31, %32 : vector<16x768xf32>
    %cst_17 = arith.constant 0.000000e+00 : f32
    %34 = vector.broadcast %cst_17 : f32 to vector<16x768xf32>
    %35 = arith.maximumf %33, %34 : vector<16x768xf32>
    %36 = arith.truncf %35 : vector<16x768xf32> to vector<16x768xbf16>
    %c0_18 = arith.constant 0 : index
    %c0_19 = arith.constant 0 : index
    %37 = vector.load %arg7[%c0_18, %c0_19] : memref<768x384xbf16, #tpu.memory_space<vmem>>, vector<768x384xbf16>
    %cst_20 = arith.constant dense<0.000000e+00> : vector<16x384xf32>
    %38 = tpu.matmul %36, %37, %cst_20 {dimension_numbers = #tpu.dot_dimension_numbers<[1], [0], [0], [1], [0, 0, 1, 1], [], []>} : vector<16x768xbf16>, vector<768x384xbf16>, vector<16x384xf32> -> vector<16x384xf32>
    %c0_21 = arith.constant 0 : index
    %c0_22 = arith.constant 0 : index
    %39 = vector.load %arg8[%c0_21, %c0_22] : memref<1x384xf32, #tpu.memory_space<vmem>>, vector<1x384xf32>
    %40 = vector.broadcast %39 : vector<1x384xf32> to vector<16x384xf32>
    %41 = arith.addf %38, %40 : vector<16x384xf32>
    %c0_23 = arith.constant 0 : index
    %c0_24 = arith.constant 0 : index
    %42 = vector.load %arg9[%c0_23, %c0_24] : memref<1x384xf32, #tpu.memory_space<vmem>>, vector<1x384xf32>
    %c0_25 = arith.constant 0 : index
    %c0_26 = arith.constant 0 : index
    %43 = vector.load %arg10[%c0_25, %c0_26] : memref<1x384xf32, #tpu.memory_space<vmem>>, vector<1x384xf32>
    %cst_27 = arith.constant dense<0.000000e+00> : vector<16xf32>
    %44 = vector.multi_reduction <add>, %41, %cst_27 [1] : vector<16x384xf32> to vector<16xf32>
    %45 = vector.shape_cast %44 : vector<16xf32> to vector<16x1xf32>
    %46 = arith.mulf %41, %41 : vector<16x384xf32>
    %cst_28 = arith.constant dense<0.000000e+00> : vector<16xf32>
    %47 = vector.multi_reduction <add>, %46, %cst_28 [1] : vector<16x384xf32> to vector<16xf32>
    %48 = vector.shape_cast %47 : vector<16xf32> to vector<16x1xf32>
    %cst_29 = arith.constant 0.00260416674 : f32
    %49 = vector.broadcast %cst_29 : f32 to vector<16x1xf32>
    %50 = arith.mulf %45, %49 : vector<16x1xf32>
    %cst_30 = arith.constant 0.00260416674 : f32
    %51 = vector.broadcast %cst_30 : f32 to vector<16x1xf32>
    %52 = arith.mulf %48, %51 : vector<16x1xf32>
    %53 = arith.mulf %50, %50 : vector<16x1xf32>
    %54 = arith.subf %52, %53 : vector<16x1xf32>
    %cst_31 = arith.constant 0.000000e+00 : f32
    %55 = vector.broadcast %cst_31 : f32 to vector<16x1xf32>
    %56 = arith.maximumf %54, %55 : vector<16x1xf32>
    %57 = vector.broadcast %50 : vector<16x1xf32> to vector<16x384xf32>
    %58 = arith.subf %41, %57 : vector<16x384xf32>
    %cst_32 = arith.constant 9.99999974E-6 : f32
    %59 = vector.broadcast %cst_32 : f32 to vector<16x1xf32>
    %60 = arith.addf %56, %59 : vector<16x1xf32>
    %61 = math.rsqrt %60 : vector<16x1xf32>
    %62 = vector.broadcast %61 : vector<16x1xf32> to vector<16x384xf32>
    %63 = arith.mulf %58, %62 : vector<16x384xf32>
    %64 = vector.broadcast %42 : vector<1x384xf32> to vector<16x384xf32>
    %65 = arith.mulf %63, %64 : vector<16x384xf32>
    %66 = vector.broadcast %43 : vector<1x384xf32> to vector<16x384xf32>
    %67 = arith.addf %65, %66 : vector<16x384xf32>
    %cst_33 = arith.constant 0.000000e+00 : f32
    %68 = vector.broadcast %cst_33 : f32 to vector<16x384xf32>
    %69 = arith.maximumf %67, %68 : vector<16x384xf32>
    %70 = arith.truncf %69 : vector<16x384xf32> to vector<16x384xbf16>
    %c0_34 = arith.constant 0 : index
    %c0_35 = arith.constant 0 : index
    %71 = vector.load %arg11[%c0_34, %c0_35] : memref<384x256xbf16, #tpu.memory_space<vmem>>, vector<384x256xbf16>
    %cst_36 = arith.constant dense<0.000000e+00> : vector<16x256xf32>
    %72 = tpu.matmul %70, %71, %cst_36 {dimension_numbers = #tpu.dot_dimension_numbers<[1], [0], [0], [1], [0, 0, 1, 1], [], []>} : vector<16x384xbf16>, vector<384x256xbf16>, vector<16x256xf32> -> vector<16x256xf32>
    %c0_37 = arith.constant 0 : index
    %c0_38 = arith.constant 0 : index
    %73 = vector.load %arg12[%c0_37, %c0_38] : memref<1x256xf32, #tpu.memory_space<vmem>>, vector<1x256xf32>
    %74 = vector.broadcast %73 : vector<1x256xf32> to vector<16x256xf32>
    %75 = arith.addf %72, %74 : vector<16x256xf32>
    %c0_39 = arith.constant 0 : index
    %c0_40 = arith.constant 0 : index
    %76 = vector.load %arg13[%c0_39, %c0_40] : memref<1x256xf32, #tpu.memory_space<vmem>>, vector<1x256xf32>
    %c0_41 = arith.constant 0 : index
    %c0_42 = arith.constant 0 : index
    %77 = vector.load %arg14[%c0_41, %c0_42] : memref<1x256xf32, #tpu.memory_space<vmem>>, vector<1x256xf32>
    %cst_43 = arith.constant dense<0.000000e+00> : vector<16xf32>
    %78 = vector.multi_reduction <add>, %75, %cst_43 [1] : vector<16x256xf32> to vector<16xf32>
    %79 = vector.shape_cast %78 : vector<16xf32> to vector<16x1xf32>
    %80 = arith.mulf %75, %75 : vector<16x256xf32>
    %cst_44 = arith.constant dense<0.000000e+00> : vector<16xf32>
    %81 = vector.multi_reduction <add>, %80, %cst_44 [1] : vector<16x256xf32> to vector<16xf32>
    %82 = vector.shape_cast %81 : vector<16xf32> to vector<16x1xf32>
    %cst_45 = arith.constant 0.00520833349 : f32
    %83 = vector.broadcast %cst_45 : f32 to vector<16x1xf32>
    %84 = arith.mulf %79, %83 : vector<16x1xf32>
    %cst_46 = arith.constant 0.00520833349 : f32
    %85 = vector.broadcast %cst_46 : f32 to vector<16x1xf32>
    %86 = arith.mulf %82, %85 : vector<16x1xf32>
    %87 = arith.mulf %84, %84 : vector<16x1xf32>
    %88 = arith.subf %86, %87 : vector<16x1xf32>
    %cst_47 = arith.constant 0.000000e+00 : f32
    %89 = vector.broadcast %cst_47 : f32 to vector<16x1xf32>
    %90 = arith.maximumf %88, %89 : vector<16x1xf32>
    %91 = vector.broadcast %84 : vector<16x1xf32> to vector<16x256xf32>
    %92 = arith.subf %75, %91 : vector<16x256xf32>
    %cst_48 = arith.constant 9.99999974E-6 : f32
    %93 = vector.broadcast %cst_48 : f32 to vector<16x1xf32>
    %94 = arith.addf %90, %93 : vector<16x1xf32>
    %95 = math.rsqrt %94 : vector<16x1xf32>
    %96 = vector.broadcast %95 : vector<16x1xf32> to vector<16x256xf32>
    %97 = arith.mulf %92, %96 : vector<16x256xf32>
    %98 = vector.broadcast %76 : vector<1x256xf32> to vector<16x256xf32>
    %99 = arith.mulf %97, %98 : vector<16x256xf32>
    %100 = vector.broadcast %77 : vector<1x256xf32> to vector<16x256xf32>
    %101 = arith.addf %99, %100 : vector<16x256xf32>
    %cst_49 = arith.constant 0.000000e+00 : f32
    %102 = vector.broadcast %cst_49 : f32 to vector<16x256xf32>
    %103 = arith.maximumf %101, %102 : vector<16x256xf32>
    %104 = arith.truncf %103 : vector<16x256xf32> to vector<16x256xbf16>
    %105 = vector.extract_strided_slice %104 {offsets = [0, 0], sizes = [8, 256], strides = [1, 1]} : vector<16x256xbf16> to vector<8x256xbf16>
    %106 = vector.extract_strided_slice %104 {offsets = [8, 0], sizes = [8, 256], strides = [1, 1]} : vector<16x256xbf16> to vector<8x256xbf16>
    %c0_50 = arith.constant 0 : index
    %c0_51 = arith.constant 0 : index
    %107 = vector.load %arg15[%c0_50, %c0_51] : memref<256x256xbf16, #tpu.memory_space<vmem>>, vector<256x256xbf16>
    %cst_52 = arith.constant dense<0.000000e+00> : vector<8x256xf32>
    %108 = tpu.matmul %105, %107, %cst_52 {dimension_numbers = #tpu.dot_dimension_numbers<[1], [0], [0], [1], [0, 0, 1, 1], [], []>} : vector<8x256xbf16>, vector<256x256xbf16>, vector<8x256xf32> -> vector<8x256xf32>
    %c0_53 = arith.constant 0 : index
    %c0_54 = arith.constant 0 : index
    %109 = vector.load %arg16[%c0_53, %c0_54] : memref<256x256xbf16, #tpu.memory_space<vmem>>, vector<256x256xbf16>
    %cst_55 = arith.constant dense<0.000000e+00> : vector<8x256xf32>
    %110 = tpu.matmul %106, %109, %cst_55 {dimension_numbers = #tpu.dot_dimension_numbers<[1], [0], [0], [1], [0, 0, 1, 1], [], []>} : vector<8x256xbf16>, vector<256x256xbf16>, vector<8x256xf32> -> vector<8x256xf32>
    %111 = arith.addf %108, %110 : vector<8x256xf32>
    %c0_56 = arith.constant 0 : index
    %c0_57 = arith.constant 0 : index
    %112 = vector.load %arg17[%c0_56, %c0_57] : memref<1x256xf32, #tpu.memory_space<vmem>>, vector<1x256xf32>
    %113 = vector.broadcast %112 : vector<1x256xf32> to vector<8x256xf32>
    %114 = arith.addf %111, %113 : vector<8x256xf32>
    %c0_58 = arith.constant 0 : index
    %c0_59 = arith.constant 0 : index
    %115 = vector.load %arg18[%c0_58, %c0_59] : memref<1x256xf32, #tpu.memory_space<vmem>>, vector<1x256xf32>
    %c0_60 = arith.constant 0 : index
    %c0_61 = arith.constant 0 : index
    %116 = vector.load %arg19[%c0_60, %c0_61] : memref<1x256xf32, #tpu.memory_space<vmem>>, vector<1x256xf32>
    %cst_62 = arith.constant dense<0.000000e+00> : vector<8xf32>
    %117 = vector.multi_reduction <add>, %114, %cst_62 [1] : vector<8x256xf32> to vector<8xf32>
    %118 = vector.shape_cast %117 : vector<8xf32> to vector<8x1xf32>
    %119 = arith.mulf %114, %114 : vector<8x256xf32>
    %cst_63 = arith.constant dense<0.000000e+00> : vector<8xf32>
    %120 = vector.multi_reduction <add>, %119, %cst_63 [1] : vector<8x256xf32> to vector<8xf32>
    %121 = vector.shape_cast %120 : vector<8xf32> to vector<8x1xf32>
    %cst_64 = arith.constant 0.00520833349 : f32
    %122 = vector.broadcast %cst_64 : f32 to vector<8x1xf32>
    %123 = arith.mulf %118, %122 : vector<8x1xf32>
    %cst_65 = arith.constant 0.00520833349 : f32
    %124 = vector.broadcast %cst_65 : f32 to vector<8x1xf32>
    %125 = arith.mulf %121, %124 : vector<8x1xf32>
    %126 = arith.mulf %123, %123 : vector<8x1xf32>
    %127 = arith.subf %125, %126 : vector<8x1xf32>
    %cst_66 = arith.constant 0.000000e+00 : f32
    %128 = vector.broadcast %cst_66 : f32 to vector<8x1xf32>
    %129 = arith.maximumf %127, %128 : vector<8x1xf32>
    %130 = vector.broadcast %123 : vector<8x1xf32> to vector<8x256xf32>
    %131 = arith.subf %114, %130 : vector<8x256xf32>
    %cst_67 = arith.constant 9.99999974E-6 : f32
    %132 = vector.broadcast %cst_67 : f32 to vector<8x1xf32>
    %133 = arith.addf %129, %132 : vector<8x1xf32>
    %134 = math.rsqrt %133 : vector<8x1xf32>
    %135 = vector.broadcast %134 : vector<8x1xf32> to vector<8x256xf32>
    %136 = arith.mulf %131, %135 : vector<8x256xf32>
    %137 = vector.broadcast %115 : vector<1x256xf32> to vector<8x256xf32>
    %138 = arith.mulf %136, %137 : vector<8x256xf32>
    %139 = vector.broadcast %116 : vector<1x256xf32> to vector<8x256xf32>
    %140 = arith.addf %138, %139 : vector<8x256xf32>
    %cst_68 = arith.constant 0.000000e+00 : f32
    %141 = vector.broadcast %cst_68 : f32 to vector<8x256xf32>
    %142 = arith.maximumf %140, %141 : vector<8x256xf32>
    %143 = arith.truncf %142 : vector<8x256xf32> to vector<8x256xbf16>
    %c0_69 = arith.constant 0 : index
    %c0_70 = arith.constant 0 : index
    %144 = vector.load %arg20[%c0_69, %c0_70] : memref<256x128xbf16, #tpu.memory_space<vmem>>, vector<256x128xbf16>
    %cst_71 = arith.constant dense<0.000000e+00> : vector<8x128xf32>
    %145 = tpu.matmul %143, %144, %cst_71 {dimension_numbers = #tpu.dot_dimension_numbers<[1], [0], [0], [1], [0, 0, 1, 1], [], []>} : vector<8x256xbf16>, vector<256x128xbf16>, vector<8x128xf32> -> vector<8x128xf32>
    %c0_72 = arith.constant 0 : index
    %c0_73 = arith.constant 0 : index
    %146 = vector.load %arg21[%c0_72, %c0_73] : memref<1x128xf32, #tpu.memory_space<vmem>>, vector<1x128xf32>
    %147 = vector.broadcast %146 : vector<1x128xf32> to vector<8x128xf32>
    %148 = arith.addf %145, %147 : vector<8x128xf32>
    %c0_74 = arith.constant 0 : index
    %c0_75 = arith.constant 0 : index
    %149 = vector.load %arg22[%c0_74, %c0_75] : memref<1x128xf32, #tpu.memory_space<vmem>>, vector<1x128xf32>
    %c0_76 = arith.constant 0 : index
    %c0_77 = arith.constant 0 : index
    %150 = vector.load %arg23[%c0_76, %c0_77] : memref<1x128xf32, #tpu.memory_space<vmem>>, vector<1x128xf32>
    %cst_78 = arith.constant dense<0.000000e+00> : vector<8xf32>
    %151 = vector.multi_reduction <add>, %148, %cst_78 [1] : vector<8x128xf32> to vector<8xf32>
    %152 = vector.shape_cast %151 : vector<8xf32> to vector<8x1xf32>
    %153 = arith.mulf %148, %148 : vector<8x128xf32>
    %cst_79 = arith.constant dense<0.000000e+00> : vector<8xf32>
    %154 = vector.multi_reduction <add>, %153, %cst_79 [1] : vector<8x128xf32> to vector<8xf32>
    %155 = vector.shape_cast %154 : vector<8xf32> to vector<8x1xf32>
    %cst_80 = arith.constant 1.562500e-02 : f32
    %156 = vector.broadcast %cst_80 : f32 to vector<8x1xf32>
    %157 = arith.mulf %152, %156 : vector<8x1xf32>
    %cst_81 = arith.constant 1.562500e-02 : f32
    %158 = vector.broadcast %cst_81 : f32 to vector<8x1xf32>
    %159 = arith.mulf %155, %158 : vector<8x1xf32>
    %160 = arith.mulf %157, %157 : vector<8x1xf32>
    %161 = arith.subf %159, %160 : vector<8x1xf32>
    %cst_82 = arith.constant 0.000000e+00 : f32
    %162 = vector.broadcast %cst_82 : f32 to vector<8x1xf32>
    %163 = arith.maximumf %161, %162 : vector<8x1xf32>
    %164 = vector.broadcast %157 : vector<8x1xf32> to vector<8x128xf32>
    %165 = arith.subf %148, %164 : vector<8x128xf32>
    %cst_83 = arith.constant 9.99999974E-6 : f32
    %166 = vector.broadcast %cst_83 : f32 to vector<8x1xf32>
    %167 = arith.addf %163, %166 : vector<8x1xf32>
    %168 = math.rsqrt %167 : vector<8x1xf32>
    %169 = vector.broadcast %168 : vector<8x1xf32> to vector<8x128xf32>
    %170 = arith.mulf %165, %169 : vector<8x128xf32>
    %171 = vector.broadcast %149 : vector<1x128xf32> to vector<8x128xf32>
    %172 = arith.mulf %170, %171 : vector<8x128xf32>
    %173 = vector.broadcast %150 : vector<1x128xf32> to vector<8x128xf32>
    %174 = arith.addf %172, %173 : vector<8x128xf32>
    %cst_84 = arith.constant 0.000000e+00 : f32
    %175 = vector.broadcast %cst_84 : f32 to vector<8x128xf32>
    %176 = arith.maximumf %174, %175 : vector<8x128xf32>
    %c0_85 = arith.constant 0 : index
    %c0_86 = arith.constant 0 : index
    %177 = vector.load %arg24[%c0_85, %c0_86] : memref<1x128xf32, #tpu.memory_space<vmem>>, vector<1x128xf32>
    %178 = vector.broadcast %177 : vector<1x128xf32> to vector<8x128xf32>
    %179 = arith.mulf %176, %178 : vector<8x128xf32>
    %cst_87 = arith.constant dense<0.000000e+00> : vector<8xf32>
    %180 = vector.multi_reduction <add>, %179, %cst_87 [1] : vector<8x128xf32> to vector<8xf32>
    %181 = vector.shape_cast %180 : vector<8xf32> to vector<8x1xf32>
    %c0_88 = arith.constant 0 : index
    %c0_89 = arith.constant 0 : index
    %182 = vector.load %arg25[%c0_88, %c0_89] : memref<1x1xf32, #tpu.memory_space<vmem>>, vector<1x1xf32>
    %183 = vector.broadcast %182 : vector<1x1xf32> to vector<8x1xf32>
    %184 = arith.addf %181, %183 : vector<8x1xf32>
    %185 = math.tanh %184 : vector<8x1xf32>
    %c0_90 = arith.constant 0 : index
    %c0_91 = arith.constant 0 : index
    %186 = vector.load %arg26[%c0_90, %c0_91] : memref<8x1xf32, #tpu.memory_space<vmem>>, vector<8x1xf32>
    tpu.vector_store %arg26[%c0_90, %c0_91], %185 {strides = array<i32>} : memref<8x1xf32, #tpu.memory_space<vmem>>, vector<8x1xf32>,
    return
  }
  func.func @transform_0(%arg0: i32) -> (i32, i32) {
    %c0_i32 = arith.constant 0 : i32
    %c0_i32_0 = arith.constant 0 : i32
    return %arg0, %c0_i32 : i32, i32
  }
  func.func @transform_1(%arg0: i32) -> (i32, i32) {
    %c0_i32 = arith.constant 0 : i32
    %c0_i32_0 = arith.constant 0 : i32
    return %arg0, %c0_i32 : i32, i32
  }
  func.func @transform_2(%arg0: i32) -> (i32, i32) {
    %c0_i32 = arith.constant 0 : i32
    %c0_i32_0 = arith.constant 0 : i32
    %c0_i32_1 = arith.constant 0 : i32
    return %c0_i32, %c0_i32_0 : i32, i32
  }
  func.func @transform_3(%arg0: i32) -> (i32, i32) {
    %c0_i32 = arith.constant 0 : i32
    %c0_i32_0 = arith.constant 0 : i32
    %c0_i32_1 = arith.constant 0 : i32
    return %c0_i32, %c0_i32_0 : i32, i32
  }
  func.func @transform_4(%arg0: i32) -> (i32, i32) {
    %c0_i32 = arith.constant 0 : i32
    %c0_i32_0 = arith.constant 0 : i32
    %c0_i32_1 = arith.constant 0 : i32
    return %c0_i32, %c0_i32_0 : i32, i32
  }
  func.func @transform_5(%arg0: i32) -> (i32, i32) {
    %c0_i32 = arith.constant 0 : i32
    %c0_i32_0 = arith.constant 0 : i32
    %c0_i32_1 = arith.constant 0 : i32
    return %c0_i32, %c0_i32_0 : i32, i32
  }
  func.func @transform_6(%arg0: i32) -> (i32, i32) {
    %c0_i32 = arith.constant 0 : i32
    %c0_i32_0 = arith.constant 0 : i32
    %c0_i32_1 = arith.constant 0 : i32
    return %c0_i32, %c0_i32_0 : i32, i32
  }
  func.func @transform_7(%arg0: i32) -> (i32, i32) {
    %c0_i32 = arith.constant 0 : i32
    %c0_i32_0 = arith.constant 0 : i32
    %c0_i32_1 = arith.constant 0 : i32
    return %c0_i32, %c0_i32_0 : i32, i32
  }
  func.func @transform_8(%arg0: i32) -> (i32, i32) {
    %c0_i32 = arith.constant 0 : i32
    %c0_i32_0 = arith.constant 0 : i32
    %c0_i32_1 = arith.constant 0 : i32
    return %c0_i32, %c0_i32_0 : i32, i32
  }
  func.func @transform_9(%arg0: i32) -> (i32, i32) {
    %c0_i32 = arith.constant 0 : i32
    %c0_i32_0 = arith.constant 0 : i32
    %c0_i32_1 = arith.constant 0 : i32
    return %c0_i32, %c0_i32_0 : i32, i32
  }
  func.func @transform_10(%arg0: i32) -> (i32, i32) {
    %c0_i32 = arith.constant 0 : i32
    %c0_i32_0 = arith.constant 0 : i32
    %c0_i32_1 = arith.constant 0 : i32
    return %c0_i32, %c0_i32_0 : i32, i32
  }
  func.func @transform_11(%arg0: i32) -> (i32, i32) {
    %c0_i32 = arith.constant 0 : i32
    %c0_i32_0 = arith.constant 0 : i32
    %c0_i32_1 = arith.constant 0 : i32
    return %c0_i32, %c0_i32_0 : i32, i32
  }
  func.func @transform_12(%arg0: i32) -> (i32, i32) {
    %c0_i32 = arith.constant 0 : i32
    %c0_i32_0 = arith.constant 0 : i32
    %c0_i32_1 = arith.constant 0 : i32
    return %c0_i32, %c0_i32_0 : i32, i32
  }
  func.func @transform_13(%arg0: i32) -> (i32, i32) {
    %c0_i32 = arith.constant 0 : i32
    %c0_i32_0 = arith.constant 0 : i32
    %c0_i32_1 = arith.constant 0 : i32
    return %c0_i32, %c0_i32_0 : i32, i32
  }
  func.func @transform_14(%arg0: i32) -> (i32, i32) {
    %c0_i32 = arith.constant 0 : i32
    %c0_i32_0 = arith.constant 0 : i32
    %c0_i32_1 = arith.constant 0 : i32
    return %c0_i32, %c0_i32_0 : i32, i32
  }
  func.func @transform_15(%arg0: i32) -> (i32, i32) {
    %c0_i32 = arith.constant 0 : i32
    %c0_i32_0 = arith.constant 0 : i32
    %c0_i32_1 = arith.constant 0 : i32
    return %c0_i32, %c0_i32_0 : i32, i32
  }
  func.func @transform_16(%arg0: i32) -> (i32, i32) {
    %c0_i32 = arith.constant 0 : i32
    %c0_i32_0 = arith.constant 0 : i32
    %c0_i32_1 = arith.constant 0 : i32
    return %c0_i32, %c0_i32_0 : i32, i32
  }
  func.func @transform_17(%arg0: i32) -> (i32, i32) {
    %c0_i32 = arith.constant 0 : i32
    %c0_i32_0 = arith.constant 0 : i32
    %c0_i32_1 = arith.constant 0 : i32
    return %c0_i32, %c0_i32_0 : i32, i32
  }
  func.func @transform_18(%arg0: i32) -> (i32, i32) {
    %c0_i32 = arith.constant 0 : i32
    %c0_i32_0 = arith.constant 0 : i32
    %c0_i32_1 = arith.constant 0 : i32
    return %c0_i32, %c0_i32_0 : i32, i32
  }
  func.func @transform_19(%arg0: i32) -> (i32, i32) {
    %c0_i32 = arith.constant 0 : i32
    %c0_i32_0 = arith.constant 0 : i32
    %c0_i32_1 = arith.constant 0 : i32
    return %c0_i32, %c0_i32_0 : i32, i32
  }
  func.func @transform_20(%arg0: i32) -> (i32, i32) {
    %c0_i32 = arith.constant 0 : i32
    %c0_i32_0 = arith.constant 0 : i32
    %c0_i32_1 = arith.constant 0 : i32
    return %c0_i32, %c0_i32_0 : i32, i32
  }
  func.func @transform_21(%arg0: i32) -> (i32, i32) {
    %c0_i32 = arith.constant 0 : i32
    %c0_i32_0 = arith.constant 0 : i32
    %c0_i32_1 = arith.constant 0 : i32
    return %c0_i32, %c0_i32_0 : i32, i32
  }
  func.func @transform_22(%arg0: i32) -> (i32, i32) {
    %c0_i32 = arith.constant 0 : i32
    %c0_i32_0 = arith.constant 0 : i32
    %c0_i32_1 = arith.constant 0 : i32
    return %c0_i32, %c0_i32_0 : i32, i32
  }
  func.func @transform_23(%arg0: i32) -> (i32, i32) {
    %c0_i32 = arith.constant 0 : i32
    %c0_i32_0 = arith.constant 0 : i32
    %c0_i32_1 = arith.constant 0 : i32
    return %c0_i32, %c0_i32_0 : i32, i32
  }
  func.func @transform_24(%arg0: i32) -> (i32, i32) {
    %c0_i32 = arith.constant 0 : i32
    %c0_i32_0 = arith.constant 0 : i32
    %c0_i32_1 = arith.constant 0 : i32
    return %c0_i32, %c0_i32_0 : i32, i32
  }
  func.func @transform_25(%arg0: i32) -> (i32, i32) {
    %c0_i32 = arith.constant 0 : i32
    %c0_i32_0 = arith.constant 0 : i32
    return %arg0, %c0_i32 : i32, i32
  }
}

</mosaic_0001>

<llo_original>
// kernel: _predict_impl.1
$region0: #{_predict_impl.1}
  #allocation0 [shape = 'u32[]', space=smem, size = 0x4, offset = 0x4, fixed_abs, tag = 'smem constant byte address 0x4 - core index']
  #allocation1 [shape = 'u32[144,128]{1,0:T(1,128)}', space=vmem, size = 0x12000, scoped, tag = 'internal scratch']
  #allocation2 [shape = 'f32[1,1]{1,0:T(1,128)S(1)}', space=vmem, size = 0x200, scoped, tag = 'scoped memory for _predict_impl.1']
  %s0 = inlined_call_operand.vmem [shape: bf16[8,1536], index: 0, kind: input, shape index: {}]
  %s1 = inlined_call_operand.vmem [shape: bf16[8,1536], index: 1, kind: input, shape index: {}]
  %s2 = inlined_call_operand.hbm [shape: bf16[1536,768], index: 2, kind: input, shape index: {}]
  %s3 = inlined_call_operand.hbm [shape: f32[1,768], index: 3, kind: input, shape index: {}]
  %s4 = inlined_call_operand.hbm [shape: f32[1,768], index: 4, kind: input, shape index: {}]
  %s5 = inlined_call_operand.hbm [shape: f32[1,768], index: 5, kind: input, shape index: {}]
  %s6 = inlined_call_operand.hbm [shape: bf16[768,384], index: 6, kind: input, shape index: {}]
  %s7 = inlined_call_operand.hbm [shape: f32[1,384], index: 7, kind: input, shape index: {}]
  %s8 = inlined_call_operand.hbm [shape: f32[1,384], index: 8, kind: input, shape index: {}]
  %s9 = inlined_call_operand.hbm [shape: f32[1,384], index: 9, kind: input, shape index: {}]
  %s10 = inlined_call_operand.hbm [shape: bf16[384,256], index: 10, kind: input, shape index: {}]
  %s11 = inlined_call_operand.hbm [shape: f32[1,256], index: 11, kind: input, shape index: {}]
  %s12 = inlined_call_operand.hbm [shape: f32[1,256], index: 12, kind: input, shape index: {}]
  %s13 = inlined_call_operand.hbm [shape: f32[1,256], index: 13, kind: input, shape index: {}]
  %s14 = inlined_call_operand.hbm [shape: bf16[256,256], index: 14, kind: input, shape index: {}]
  %s15 = inlined_call_operand.hbm [shape: bf16[256,256], index: 15, kind: input, shape index: {}]
  %s16 = inlined_call_operand.hbm [shape: f32[1,256], index: 16, kind: input, shape index: {}]
  %s17 = inlined_call_operand.hbm [shape: f32[1,256], index: 17, kind: input, shape index: {}]
  %s18 = inlined_call_operand.hbm [shape: f32[1,256], index: 18, kind: input, shape index: {}]
  %s19 = inlined_call_operand.hbm [shape: bf16[256,128], index: 19, kind: input, shape index: {}]
  %s20 = inlined_call_operand.hbm [shape: f32[1,128], index: 20, kind: input, shape index: {}]
  %s21 = inlined_call_operand.hbm [shape: f32[1,128], index: 21, kind: input, shape index: {}]
  %s22 = inlined_call_operand.hbm [shape: f32[1,128], index: 22, kind: input, shape index: {}]
  %s23 = inlined_call_operand.hbm [shape: f32[1,128], index: 23, kind: input, shape index: {}]
  %s24 = inlined_call_operand.<no memory space> [shape: f32[1,1], index: 24, kind: input, shape index: {}]
  %s25 = inlined_call_operand.vmem [shape: f32[8,1], index: 25, kind: output, shape index: {}]
  %s26 = sld [smem:[#allocation0]]
  $region198: #{_predict_impl.1} parent=0
    _
  %s28 = ssub.s32 1, %s26
  %s29 = scalar_select 0, %s28, %s26
  %v30 = vstv %s24
  %31 = vst [vmem:[#allocation2] sm:$0x1] %v30
  $region1: #{_predict_impl.1} parent=0
    #allocation3 [shape = 'u8[2359296]{0}', space=vmem, size = 0x240000, scoped, tag = 'input window, operand 2, single buffered']
    #allocation4 [shape = 's32[1]{0}', space=sflag, size = 0x4, scoped, tag = 'scoped memory for _predict_impl.1']
    #allocation5 [shape = 'u8[3072]{0}', space=vmem, size = 0xc00, scoped, tag = 'input window, operand 3, single buffered']
    #allocation6 [shape = 's32[1]{0}', space=sflag, size = 0x4, scoped, tag = 'scoped memory for _predict_impl.1']
    #allocation7 [shape = 'u8[3072]{0}', space=vmem, size = 0xc00, scoped, tag = 'input window, operand 4, single buffered']
    #allocation8 [shape = 'u8[3072]{0}', space=vmem, size = 0xc00, scoped, tag = 'input window, operand 5, single buffered']
    #allocation9 [shape = 's32[1]{0}', space=sflag, size = 0x4, scoped, tag = 'scoped memory for _predict_impl.1']
    #allocation10 [shape = 'u8[589824]{0}', space=vmem, size = 0x90000, scoped, tag = 'input window, operand 6, single buffered']
    #allocation11 [shape = 'u8[1536]{0}', space=vmem, size = 0x800, scoped, tag = 'input window, operand 7, single buffered']
    #allocation12 [shape = 's32[1]{0}', space=sflag, size = 0x4, scoped, tag = 'scoped memory for _predict_impl.1']
    #allocation13 [shape = 'u8[1536]{0}', space=vmem, size = 0x800, scoped, tag = 'input window, operand 8, single buffered']
    #allocation14 [shape = 'u8[1536]{0}', space=vmem, size = 0x800, scoped, tag = 'input window, operand 9, single buffered']
    #allocation15 [shape = 's32[1]{0}', space=sflag, size = 0x4, scoped, tag = 'scoped memory for _predict_impl.1']
    #allocation16 [shape = 'u8[196608]{0}', space=vmem, size = 0x30000, scoped, tag = 'input window, operand 10, single buffered']
    #allocation17 [shape = 'u8[1024]{0}', space=vmem, size = 0x400, scoped, tag = 'input window, operand 11, single buffered']
    #allocation18 [shape = 's32[1]{0}', space=sflag, size = 0x4, scoped, tag = 'scoped memory for _predict_impl.1']
    #allocation19 [shape = 'u8[1024]{0}', space=vmem, size = 0x400, scoped, tag = 'input window, operand 12, single buffered']
    #allocation20 [shape = 'u8[1024]{0}', space=vmem, size = 0x400, scoped, tag = 'input window, operand 13, single buffered']
    #allocation21 [shape = 's32[1]{0}', space=sflag, size = 0x4, scoped, tag = 'scoped memory for _predict_impl.1']
    #allocation22 [shape = 'u8[131072]{0}', space=vmem, size = 0x20000, scoped, tag = 'input window, operand 14, single buffered']
    #allocation23 [shape = 'u8[131072]{0}', space=vmem, size = 0x20000, scoped, tag = 'input window, operand 15, single buffered']
    #allocation24 [shape = 's32[1]{0}', space=sflag, size = 0x4, scoped, tag = 'scoped memory for _predict_impl.1']
    #allocation25 [shape = 'u8[1024]{0}', space=vmem, size = 0x400, scoped, tag = 'input window, operand 16, single buffered']
    #allocation26 [shape = 'u8[1024]{0}', space=vmem, size = 0x400, scoped, tag = 'input window, operand 17, single buffered']
    #allocation27 [shape = 's32[1]{0}', space=sflag, size = 0x4, scoped, tag = 'scoped memory for _predict_impl.1']
    #allocation28 [shape = 'u8[1024]{0}', space=vmem, size = 0x400, scoped, tag = 'input window, operand 18, single buffered']
    #allocation29 [shape = 'u8[65536]{0}', space=vmem, size = 0x10000, scoped, tag = 'input window, operand 19, single buffered']
    #allocation30 [shape = 's32[1]{0}', space=sflag, size = 0x4, scoped, tag = 'scoped memory for _predict_impl.1']
    #allocation31 [shape = 'u8[512]{0}', space=vmem, size = 0x400, scoped, tag = 'input window, operand 20, single buffered']
    #allocation32 [shape = 'u8[512]{0}', space=vmem, size = 0x400, scoped, tag = 'input window, operand 21, single buffered']
    #allocation33 [shape = 's32[1]{0}', space=sflag, size = 0x4, scoped, tag = 'scoped memory for _predict_impl.1']
    #allocation34 [shape = 'u8[512]{0}', space=vmem, size = 0x400, scoped, tag = 'input window, operand 22, single buffered']
    #allocation35 [shape = 'u8[512]{0}', space=vmem, size = 0x400, scoped, tag = 'input window, operand 23, single buffered']
    #allocation36 [shape = 's32[1]{0}', space=sflag, size = 0x4, scoped, tag = 'scoped memory for _predict_impl.1']
    %32 = vsyncpa [#allocation4], 0
    %33 = vsyncpa [#allocation6], 0
    %34 = vsyncpa [#allocation9], 0
    %35 = vsyncpa [#allocation12], 0
    %36 = vsyncpa [#allocation15], 0
    %37 = vsyncpa [#allocation18], 0
    %38 = vsyncpa [#allocation21], 0
    %39 = vsyncpa [#allocation24], 0
    %40 = vsyncpa [#allocation27], 0
    %41 = vsyncpa [#allocation30], 0
    %42 = vsyncpa [#allocation33], 0
    %43 = vsyncpa [#allocation36], 0
    // Predicated region
    $region2: #{_predict_impl.1} parent=1 // pred_check
      _
    $region3: #{_predict_impl.1} parent=1 // pred_check_branch
      %45 = sbr.rel (0) target = $region5
    $region4: #{_predict_impl.1} parent=1 // pred_region
      _
    $region5: #{_predict_impl.1} parent=1 // pred_fallthru
      _
    // Predicated region
    $region6: #{_predict_impl.1} parent=1 // pred_check
      _
    $region7: #{_predict_impl.1} parent=1 // pred_check_branch
      %47 = sbr.rel (0) target = $region9
    $region8: #{_predict_impl.1} parent=1 // pred_region
      _
    $region9: #{_predict_impl.1} parent=1 // pred_fallthru
      _
    // Predicated region
    $region10: #{_predict_impl.1} parent=1 // pred_check
      _
    $region11: #{_predict_impl.1} parent=1 // pred_check_branch
      %49 = sbr.rel (0) target = $region13
    $region12: #{_predict_impl.1} parent=1 // pred_region
      %s51 = ssub.s32 73728, 73728
      %52 = vsyncadd [#allocation4], %s51
      %s53 = sshll.u32 [#allocation3], 4
      %s54 = int_to_ptr.vmem [resolvable:$true] %s53
      %59 = dma.hbm_to_vmem [thread:$0]  %s2, 73728, %s54, [#allocation4], 384, 384, 24
    $region13: #{_predict_impl.1} parent=1 // pred_fallthru
      _
    // Predicated region
    $region14: #{_predict_impl.1} parent=1 // pred_check
      _
    $region15: #{_predict_impl.1} parent=1 // pred_check_branch
      %61 = sbr.rel (0) target = $region17
    $region16: #{_predict_impl.1} parent=1 // pred_region
      %s63 = ssub.s32 96, 96
      %64 = vsyncadd [#allocation6], %s63
      %s66 = sshll.u32 [#allocation5], 4
      %s67 = int_to_ptr.vmem [resolvable:$true] %s66
      %69 = dma.hbm_to_vmem [thread:$0]  %s3, 96, %s67, [#allocation6]
    $region17: #{_predict_impl.1} parent=1 // pred_fallthru
      _
    // Predicated region
    $region18: #{_predict_impl.1} parent=1 // pred_check
      _
    $region19: #{_predict_impl.1} parent=1 // pred_check_branch
      %71 = sbr.rel (0) target = $region21
    $region20: #{_predict_impl.1} parent=1 // pred_region
      %s73 = ssub.s32 96, 96
      %74 = vsyncadd [#allocation6], %s73
      %s76 = sshll.u32 [#allocation7], 4
      %s77 = int_to_ptr.vmem [resolvable:$true] %s76
      %79 = dma.hbm_to_vmem [thread:$0]  %s4, 96, %s77, [#allocation6]
    $region21: #{_predict_impl.1} parent=1 // pred_fallthru
      _
    // Predicated region
    $region22: #{_predict_impl.1} parent=1 // pred_check
      _
    $region23: #{_predict_impl.1} parent=1 // pred_check_branch
      %81 = sbr.rel (0) target = $region25
    $region24: #{_predict_impl.1} parent=1 // pred_region
      %s83 = ssub.s32 96, 96
      %84 = vsyncadd [#allocation9], %s83
      %s86 = sshll.u32 [#allocation8], 4
      %s87 = int_to_ptr.vmem [resolvable:$true] %s86
      %89 = dma.hbm_to_vmem [thread:$0]  %s5, 96, %s87, [#allocation9]
    $region25: #{_predict_impl.1} parent=1 // pred_fallthru
      _
    // Predicated region
    $region26: #{_predict_impl.1} parent=1 // pred_check
      _
    $region27: #{_predict_impl.1} parent=1 // pred_check_branch
      %91 = sbr.rel (0) target = $region29
    $region28: #{_predict_impl.1} parent=1 // pred_region
      %s93 = ssub.s32 18432, 18432
      %94 = vsyncadd [#allocation9], %s93
      %s95 = sshll.u32 [#allocation10], 4
      %s96 = int_to_ptr.vmem [resolvable:$true] %s95
      %101 = dma.hbm_to_vmem [thread:$0]  %s6, 18432, %s96, [#allocation9], 192, 192, 12
    $region29: #{_predict_impl.1} parent=1 // pred_fallthru
      _
    // Predicated region
    $region30: #{_predict_impl.1} parent=1 // pred_check
      _
    $region31: #{_predict_impl.1} parent=1 // pred_check_branch
      %103 = sbr.rel (0) target = $region33
    $region32: #{_predict_impl.1} parent=1 // pred_region
      %s105 = ssub.s32 48, 48
      %106 = vsyncadd [#allocation12], %s105
      %s108 = sshll.u32 [#allocation11], 4
      %s109 = int_to_ptr.vmem [resolvable:$true] %s108
      %111 = dma.hbm_to_vmem [thread:$0]  %s7, 48, %s109, [#allocation12]
    $region33: #{_predict_impl.1} parent=1 // pred_fallthru
      _
    // Predicated region
    $region34: #{_predict_impl.1} parent=1 // pred_check
      _
    $region35: #{_predict_impl.1} parent=1 // pred_check_branch
      %113 = sbr.rel (0) target = $region37
    $region36: #{_predict_impl.1} parent=1 // pred_region
      %s115 = ssub.s32 48, 48
      %116 = vsyncadd [#allocation12], %s115
      %s118 = sshll.u32 [#allocation13], 4
      %s119 = int_to_ptr.vmem [resolvable:$true] %s118
      %121 = dma.hbm_to_vmem [thread:$0]  %s8, 48, %s119, [#allocation12]
    $region37: #{_predict_impl.1} parent=1 // pred_fallthru
      _
    // Predicated region
    $region38: #{_predict_impl.1} parent=1 // pred_check
      _
    $region39: #{_predict_impl.1} parent=1 // pred_check_branch
      %123 = sbr.rel (0) target = $region41
    $region40: #{_predict_impl.1} parent=1 // pred_region
      %s125 = ssub.s32 48, 48
      %126 = vsyncadd [#allocation15], %s125
      %s128 = sshll.u32 [#allocation14], 4
      %s129 = int_to_ptr.vmem [resolvable:$true] %s128
      %131 = dma.hbm_to_vmem [thread:$0]  %s9, 48, %s129, [#allocation15]
    $region41: #{_predict_impl.1} parent=1 // pred_fallthru
      _
    // Predicated region
    $region42: #{_predict_impl.1} parent=1 // pred_check
      _
    $region43: #{_predict_impl.1} parent=1 // pred_check_branch
      %133 = sbr.rel (0) target = $region45
    $region44: #{_predict_impl.1} parent=1 // pred_region
      %s135 = ssub.s32 6144, 6144
      %136 = vsyncadd [#allocation15], %s135
      %s137 = sshll.u32 [#allocation16], 4
      %s138 = int_to_ptr.vmem [resolvable:$true] %s137
      %143 = dma.hbm_to_vmem [thread:$0]  %s10, 6144, %s138, [#allocation15], 128, 128, 8
    $region45: #{_predict_impl.1} parent=1 // pred_fallthru
      _
    // Predicated region
    $region46: #{_predict_impl.1} parent=1 // pred_check
      _
    $region47: #{_predict_impl.1} parent=1 // pred_check_branch
      %145 = sbr.rel (0) target = $region49
    $region48: #{_predict_impl.1} parent=1 // pred_region
      %s147 = ssub.s32 32, 32
      %148 = vsyncadd [#allocation18], %s147
      %s150 = sshll.u32 [#allocation17], 4
      %s151 = int_to_ptr.vmem [resolvable:$true] %s150
      %153 = dma.hbm_to_vmem [thread:$0]  %s11, 32, %s151, [#allocation18]
    $region49: #{_predict_impl.1} parent=1 // pred_fallthru
      _
    // Predicated region
    $region50: #{_predict_impl.1} parent=1 // pred_check
      _
    $region51: #{_predict_impl.1} parent=1 // pred_check_branch
      %155 = sbr.rel (0) target = $region53
    $region52: #{_predict_impl.1} parent=1 // pred_region
      %s157 = ssub.s32 32, 32
      %158 = vsyncadd [#allocation18], %s157
      %s160 = sshll.u32 [#allocation19], 4
      %s161 = int_to_ptr.vmem [resolvable:$true] %s160
      %163 = dma.hbm_to_vmem [thread:$0]  %s12, 32, %s161, [#allocation18]
    $region53: #{_predict_impl.1} parent=1 // pred_fallthru
      _
    // Predicated region
    $region54: #{_predict_impl.1} parent=1 // pred_check
      _
    $region55: #{_predict_impl.1} parent=1 // pred_check_branch
      %165 = sbr.rel (0) target = $region57
    $region56: #{_predict_impl.1} parent=1 // pred_region
      %s167 = ssub.s32 32, 32
      %168 = vsyncadd [#allocation21], %s167
      %s170 = sshll.u32 [#allocation20], 4
      %s171 = int_to_ptr.vmem [resolvable:$true] %s170
      %173 = dma.hbm_to_vmem [thread:$0]  %s13, 32, %s171, [#allocation21]
    $region57: #{_predict_impl.1} parent=1 // pred_fallthru
      _
    // Predicated region
    $region58: #{_predict_impl.1} parent=1 // pred_check
      _
    $region59: #{_predict_impl.1} parent=1 // pred_check_branch
      %175 = sbr.rel (0) target = $region61
    $region60: #{_predict_impl.1} parent=1 // pred_region
      %s177 = ssub.s32 4096, 4096
      %178 = vsyncadd [#allocation21], %s177
      %s179 = sshll.u32 [#allocation22], 4
      %s180 = int_to_ptr.vmem [resolvable:$true] %s179
      %185 = dma.hbm_to_vmem [thread:$0]  %s14, 4096, %s180, [#allocation21], 128, 128, 8
    $region61: #{_predict_impl.1} parent=1 // pred_fallthru
      _
    // Predicated region
    $region62: #{_predict_impl.1} parent=1 // pred_check
      _
    $region63: #{_predict_impl.1} parent=1 // pred_check_branch
      %187 = sbr.rel (0) target = $region65
    $region64: #{_predict_impl.1} parent=1 // pred_region
      %s189 = ssub.s32 4096, 4096
      %190 = vsyncadd [#allocation24], %s189
      %s191 = sshll.u32 [#allocation23], 4
      %s192 = int_to_ptr.vmem [resolvable:$true] %s191
      %197 = dma.hbm_to_vmem [thread:$0]  %s15, 4096, %s192, [#allocation24], 128, 128, 8
    $region65: #{_predict_impl.1} parent=1 // pred_fallthru
      _
    // Predicated region
    $region66: #{_predict_impl.1} parent=1 // pred_check
      _
    $region67: #{_predict_impl.1} parent=1 // pred_check_branch
      %199 = sbr.rel (0) target = $region69
    $region68: #{_predict_impl.1} parent=1 // pred_region
      %s201 = ssub.s32 32, 32
      %202 = vsyncadd [#allocation24], %s201
      %s204 = sshll.u32 [#allocation25], 4
      %s205 = int_to_ptr.vmem [resolvable:$true] %s204
      %207 = dma.hbm_to_vmem [thread:$0]  %s16, 32, %s205, [#allocation24]
    $region69: #{_predict_impl.1} parent=1 // pred_fallthru
      _
    // Predicated region
    $region70: #{_predict_impl.1} parent=1 // pred_check
      _
    $region71: #{_predict_impl.1} parent=1 // pred_check_branch
      %209 = sbr.rel (0) target = $region73
    $region72: #{_predict_impl.1} parent=1 // pred_region
      %s211 = ssub.s32 32, 32
      %212 = vsyncadd [#allocation27], %s211
      %s214 = sshll.u32 [#allocation26], 4
      %s215 = int_to_ptr.vmem [resolvable:$true] %s214
      %217 = dma.hbm_to_vmem [thread:$0]  %s17, 32, %s215, [#allocation27]
    $region73: #{_predict_impl.1} parent=1 // pred_fallthru
      _
    // Predicated region
    $region74: #{_predict_impl.1} parent=1 // pred_check
      _
    $region75: #{_predict_impl.1} parent=1 // pred_check_branch
      %219 = sbr.rel (0) target = $region77
    $region76: #{_predict_impl.1} parent=1 // pred_region
      %s221 = ssub.s32 32, 32
      %222 = vsyncadd [#allocation27], %s221
      %s224 = sshll.u32 [#allocation28], 4
      %s225 = int_to_ptr.vmem [resolvable:$true] %s224
      %227 = dma.hbm_to_vmem [thread:$0]  %s18, 32, %s225, [#allocation27]
    $region77: #{_predict_impl.1} parent=1 // pred_fallthru
      _
    // Predicated region
    $region78: #{_predict_impl.1} parent=1 // pred_check
      _
    $region79: #{_predict_impl.1} parent=1 // pred_check_branch
      %229 = sbr.rel (0) target = $region81
    $region80: #{_predict_impl.1} parent=1 // pred_region
      %s231 = ssub.s32 2048, 2048
      %232 = vsyncadd [#allocation30], %s231
      %s233 = sshll.u32 [#allocation29], 4
      %s234 = int_to_ptr.vmem [resolvable:$true] %s233
      %239 = dma.hbm_to_vmem [thread:$0]  %s19, 2048, %s234, [#allocation30], 64, 64, 4
    $region81: #{_predict_impl.1} parent=1 // pred_fallthru
      _
    // Predicated region
    $region82: #{_predict_impl.1} parent=1 // pred_check
      _
    $region83: #{_predict_impl.1} parent=1 // pred_check_branch
      %241 = sbr.rel (0) target = $region85
    $region84: #{_predict_impl.1} parent=1 // pred_region
      %s243 = ssub.s32 16, 16
      %244 = vsyncadd [#allocation30], %s243
      %s246 = sshll.u32 [#allocation31], 4
      %s247 = int_to_ptr.vmem [resolvable:$true] %s246
      %249 = dma.hbm_to_vmem [thread:$0]  %s20, 16, %s247, [#allocation30]
    $region85: #{_predict_impl.1} parent=1 // pred_fallthru
      _
    // Predicated region
    $region86: #{_predict_impl.1} parent=1 // pred_check
      _
    $region87: #{_predict_impl.1} parent=1 // pred_check_branch
      %251 = sbr.rel (0) target = $region89
    $region88: #{_predict_impl.1} parent=1 // pred_region
      %s253 = ssub.s32 16, 16
      %254 = vsyncadd [#allocation33], %s253
      %s256 = sshll.u32 [#allocation32], 4
      %s257 = int_to_ptr.vmem [resolvable:$true] %s256
      %259 = dma.hbm_to_vmem [thread:$0]  %s21, 16, %s257, [#allocation33]
    $region89: #{_predict_impl.1} parent=1 // pred_fallthru
      _
    // Predicated region
    $region90: #{_predict_impl.1} parent=1 // pred_check
      _
    $region91: #{_predict_impl.1} parent=1 // pred_check_branch
      %261 = sbr.rel (0) target = $region93
    $region92: #{_predict_impl.1} parent=1 // pred_region
      %s263 = ssub.s32 16, 16
      %264 = vsyncadd [#allocation33], %s263
      %s266 = sshll.u32 [#allocation34], 4
      %s267 = int_to_ptr.vmem [resolvable:$true] %s266
      %269 = dma.hbm_to_vmem [thread:$0]  %s22, 16, %s267, [#allocation33]
    $region93: #{_predict_impl.1} parent=1 // pred_fallthru
      _
    // Predicated region
    $region94: #{_predict_impl.1} parent=1 // pred_check
      _
    $region95: #{_predict_impl.1} parent=1 // pred_check_branch
      %271 = sbr.rel (0) target = $region97
    $region96: #{_predict_impl.1} parent=1 // pred_region
      %s273 = ssub.s32 16, 16
      %274 = vsyncadd [#allocation36], %s273
      %s276 = sshll.u32 [#allocation35], 4
      %s277 = int_to_ptr.vmem [resolvable:$true] %s276
      %279 = dma.hbm_to_vmem [thread:$0]  %s23, 16, %s277, [#allocation36]
    $region97: #{_predict_impl.1} parent=1 // pred_fallthru
      _
    // Predicated region
    $region98: #{_predict_impl.1} parent=1 // pred_check
      _
    $region99: #{_predict_impl.1} parent=1 // pred_check_branch
      %281 = sbr.rel (0) target = $region101
    $region100: #{_predict_impl.1} parent=1 // pred_region
      _
    $region101: #{_predict_impl.1} parent=1 // pred_fallthru
      _
    // Predicated region
    $region102: #{_predict_impl.1} parent=1 // pred_check
      _
    $region103: #{_predict_impl.1} parent=1 // pred_check_branch
      %283 = sbr.rel (0) target = $region105
    $region104: #{_predict_impl.1} parent=1 // pred_region
      %284 = dma.done [#allocation4], 73728
    $region105: #{_predict_impl.1} parent=1 // pred_fallthru
      _
    // Predicated region
    $region106: #{_predict_impl.1} parent=1 // pred_check
      _
    $region107: #{_predict_impl.1} parent=1 // pred_check_branch
      %286 = sbr.rel (0) target = $region109
    $region108: #{_predict_impl.1} parent=1 // pred_region
      %287 = dma.done [#allocation6], 96
    $region109: #{_predict_impl.1} parent=1 // pred_fallthru
      _
    // Predicated region
    $region110: #{_predict_impl.1} parent=1 // pred_check
      _
    $region111: #{_predict_impl.1} parent=1 // pred_check_branch
      %289 = sbr.rel (0) target = $region113
    $region112: #{_predict_impl.1} parent=1 // pred_region
      %290 = dma.done [#allocation6], 96
    $region113: #{_predict_impl.1} parent=1 // pred_fallthru
      _
    // Predicated region
    $region114: #{_predict_impl.1} parent=1 // pred_check
      _
    $region115: #{_predict_impl.1} parent=1 // pred_check_branch
      %292 = sbr.rel (0) target = $region117
    $region116: #{_predict_impl.1} parent=1 // pred_region
      %293 = dma.done [#allocation9], 96
    $region117: #{_predict_impl.1} parent=1 // pred_fallthru
      _
    // Predicated region
    $region118: #{_predict_impl.1} parent=1 // pred_check
      _
    $region119: #{_predict_impl.1} parent=1 // pred_check_branch
      %295 = sbr.rel (0) target = $region121
    $region120: #{_predict_impl.1} parent=1 // pred_region
      %296 = dma.done [#allocation9], 18432
    $region121: #{_predict_impl.1} parent=1 // pred_fallthru
      _
    // Predicated region
    $region122: #{_predict_impl.1} parent=1 // pred_check
      _
    $region123: #{_predict_impl.1} parent=1 // pred_check_branch
      %298 = sbr.rel (0) target = $region125
    $region124: #{_predict_impl.1} parent=1 // pred_region
      %299 = dma.done [#allocation12], 48
    $region125: #{_predict_impl.1} parent=1 // pred_fallthru
      _
    // Predicated region
    $region126: #{_predict_impl.1} parent=1 // pred_check
      _
    $region127: #{_predict_impl.1} parent=1 // pred_check_branch
      %301 = sbr.rel (0) target = $region129
    $region128: #{_predict_impl.1} parent=1 // pred_region
      %302 = dma.done [#allocation12], 48
    $region129: #{_predict_impl.1} parent=1 // pred_fallthru
      _
    // Predicated region
    $region130: #{_predict_impl.1} parent=1 // pred_check
      _
    $region131: #{_predict_impl.1} parent=1 // pred_check_branch
      %304 = sbr.rel (0) target = $region133
    $region132: #{_predict_impl.1} parent=1 // pred_region
      %305 = dma.done [#allocation15], 48
    $region133: #{_predict_impl.1} parent=1 // pred_fallthru
      _
    // Predicated region
    $region134: #{_predict_impl.1} parent=1 // pred_check
      _
    $region135: #{_predict_impl.1} parent=1 // pred_check_branch
      %307 = sbr.rel (0) target = $region137
    $region136: #{_predict_impl.1} parent=1 // pred_region
      %308 = dma.done [#allocation15], 6144
    $region137: #{_predict_impl.1} parent=1 // pred_fallthru
      _
    // Predicated region
    $region138: #{_predict_impl.1} parent=1 // pred_check
      _
    $region139: #{_predict_impl.1} parent=1 // pred_check_branch
      %310 = sbr.rel (0) target = $region141
    $region140: #{_predict_impl.1} parent=1 // pred_region
      %311 = dma.done [#allocation18], 32
    $region141: #{_predict_impl.1} parent=1 // pred_fallthru
      _
    // Predicated region
    $region142: #{_predict_impl.1} parent=1 // pred_check
      _
    $region143: #{_predict_impl.1} parent=1 // pred_check_branch
      %313 = sbr.rel (0) target = $region145
    $region144: #{_predict_impl.1} parent=1 // pred_region
      %314 = dma.done [#allocation18], 32
    $region145: #{_predict_impl.1} parent=1 // pred_fallthru
      _
    // Predicated region
    $region146: #{_predict_impl.1} parent=1 // pred_check
      _
    $region147: #{_predict_impl.1} parent=1 // pred_check_branch
      %316 = sbr.rel (0) target = $region149
    $region148: #{_predict_impl.1} parent=1 // pred_region
      %317 = dma.done [#allocation21], 32
    $region149: #{_predict_impl.1} parent=1 // pred_fallthru
      _
    // Predicated region
    $region150: #{_predict_impl.1} parent=1 // pred_check
      _
    $region151: #{_predict_impl.1} parent=1 // pred_check_branch
      %319 = sbr.rel (0) target = $region153
    $region152: #{_predict_impl.1} parent=1 // pred_region
      %320 = dma.done [#allocation21], 4096
    $region153: #{_predict_impl.1} parent=1 // pred_fallthru
      _
    // Predicated region
    $region154: #{_predict_impl.1} parent=1 // pred_check
      _
    $region155: #{_predict_impl.1} parent=1 // pred_check_branch
      %322 = sbr.rel (0) target = $region157
    $region156: #{_predict_impl.1} parent=1 // pred_region
      %323 = dma.done [#allocation24], 4096
    $region157: #{_predict_impl.1} parent=1 // pred_fallthru
      _
    // Predicated region
    $region158: #{_predict_impl.1} parent=1 // pred_check
      _
    $region159: #{_predict_impl.1} parent=1 // pred_check_branch
      %325 = sbr.rel (0) target = $region161
    $region160: #{_predict_impl.1} parent=1 // pred_region
      %326 = dma.done [#allocation24], 32
    $region161: #{_predict_impl.1} parent=1 // pred_fallthru
      _
    // Predicated region
    $region162: #{_predict_impl.1} parent=1 // pred_check
      _
    $region163: #{_predict_impl.1} parent=1 // pred_check_branch
      %328 = sbr.rel (0) target = $region165
    $region164: #{_predict_impl.1} parent=1 // pred_region
      %329 = dma.done [#allocation27], 32
    $region165: #{_predict_impl.1} parent=1 // pred_fallthru
      _
    // Predicated region
    $region166: #{_predict_impl.1} parent=1 // pred_check
      _
    $region167: #{_predict_impl.1} parent=1 // pred_check_branch
      %331 = sbr.rel (0) target = $region169
    $region168: #{_predict_impl.1} parent=1 // pred_region
      %332 = dma.done [#allocation27], 32
    $region169: #{_predict_impl.1} parent=1 // pred_fallthru
      _
    // Predicated region
    $region170: #{_predict_impl.1} parent=1 // pred_check
      _
    $region171: #{_predict_impl.1} parent=1 // pred_check_branch
      %334 = sbr.rel (0) target = $region173
    $region172: #{_predict_impl.1} parent=1 // pred_region
      %335 = dma.done [#allocation30], 2048
    $region173: #{_predict_impl.1} parent=1 // pred_fallthru
      _
    // Predicated region
    $region174: #{_predict_impl.1} parent=1 // pred_check
      _
    $region175: #{_predict_impl.1} parent=1 // pred_check_branch
      %337 = sbr.rel (0) target = $region177
    $region176: #{_predict_impl.1} parent=1 // pred_region
      %338 = dma.done [#allocation30], 16
    $region177: #{_predict_impl.1} parent=1 // pred_fallthru
      _
    // Predicated region
    $region178: #{_predict_impl.1} parent=1 // pred_check
      _
    $region179: #{_predict_impl.1} parent=1 // pred_check_branch
      %340 = sbr.rel (0) target = $region181
    $region180: #{_predict_impl.1} parent=1 // pred_region
      %341 = dma.done [#allocation33], 16
    $region181: #{_predict_impl.1} parent=1 // pred_fallthru
      _
    // Predicated region
    $region182: #{_predict_impl.1} parent=1 // pred_check
      _
    $region183: #{_predict_impl.1} parent=1 // pred_check_branch
      %343 = sbr.rel (0) target = $region185
    $region184: #{_predict_impl.1} parent=1 // pred_region
      %344 = dma.done [#allocation33], 16
    $region185: #{_predict_impl.1} parent=1 // pred_fallthru
      _
    // Predicated region
    $region186: #{_predict_impl.1} parent=1 // pred_check
      _
    $region187: #{_predict_impl.1} parent=1 // pred_check_branch
      %346 = sbr.rel (0) target = $region189
    $region188: #{_predict_impl.1} parent=1 // pred_region
      %347 = dma.done [#allocation36], 16
    $region189: #{_predict_impl.1} parent=1 // pred_fallthru
      _
    %v349 = vld [vmem:[%s0] sm:$0xff]
    %v350 = vld [vmem:[%s0 + $0x8] sm:$0xff]
    %v351 = vld [vmem:[%s0 + $0x10] sm:$0xff]
    %v352 = vld [vmem:[%s0 + $0x18] sm:$0xff]
    %v353 = vld [vmem:[%s0 + $0x20] sm:$0xff]
    %v354 = vld [vmem:[%s0 + $0x28] sm:$0xff]
    %v355 = vld [vmem:[%s1] sm:$0xff]
    %v356 = vld [vmem:[%s1 + $0x8] sm:$0xff]
    %v357 = vld [vmem:[%s1 + $0x10] sm:$0xff]
    %v358 = vld [vmem:[%s1 + $0x18] sm:$0xff]
    %v359 = vld [vmem:[%s1 + $0x20] sm:$0xff]
    %v360 = vld [vmem:[%s1 + $0x28] sm:$0xff]
    %v367 = vunpack.c.l.b16 %v349
    %v368 = vunpack.c.h.b16 %v349
    %v369 = vunpack.c.l.b16 %v350
    %v370 = vunpack.c.h.b16 %v350
    %v371 = vunpack.c.l.b16 %v351
    %v372 = vunpack.c.h.b16 %v351
    %v373 = vunpack.c.l.b16 %v352
    %v374 = vunpack.c.h.b16 %v352
    %v375 = vunpack.c.l.b16 %v353
    %v376 = vunpack.c.h.b16 %v353
    %v377 = vunpack.c.l.b16 %v354
    %v378 = vunpack.c.h.b16 %v354
    %v379 = vpack.c.b16 %v367, %v367
    %v380 = vpack.c.b16 %v368, %v368
    %v381 = vpack.c.b16 %v369, %v369
    %v382 = vpack.c.b16 %v370, %v370
    %v383 = vpack.c.b16 %v371, %v371
    %v384 = vpack.c.b16 %v372, %v372
    %v385 = vpack.c.b16 %v373, %v373
    %v386 = vpack.c.b16 %v374, %v374
    %v387 = vpack.c.b16 %v375, %v375
    %v388 = vpack.c.b16 %v376, %v376
    %v389 = vpack.c.b16 %v377, %v377
    %v390 = vpack.c.b16 %v378, %v378
    %v397 = vunpack.c.l.b16 %v355
    %v398 = vunpack.c.h.b16 %v355
    %v399 = vunpack.c.l.b16 %v356
    %v400 = vunpack.c.h.b16 %v356
    %v401 = vunpack.c.l.b16 %v357
    %v402 = vunpack.c.h.b16 %v357
    %v403 = vunpack.c.l.b16 %v358
    %v404 = vunpack.c.h.b16 %v358
    %v405 = vunpack.c.l.b16 %v359
    %v406 = vunpack.c.h.b16 %v359
    %v407 = vunpack.c.l.b16 %v360
    %v408 = vunpack.c.h.b16 %v360
    %v409 = vpack.c.b16 %v397, %v397
    %v410 = vpack.c.b16 %v398, %v398
    %v411 = vpack.c.b16 %v399, %v399
    %v412 = vpack.c.b16 %v400, %v400
    %v413 = vpack.c.b16 %v401, %v401
    %v414 = vpack.c.b16 %v402, %v402
    %v415 = vpack.c.b16 %v403, %v403
    %v416 = vpack.c.b16 %v404, %v404
    %v417 = vpack.c.b16 %v405, %v405
    %v418 = vpack.c.b16 %v406, %v406
    %v419 = vpack.c.b16 %v407, %v407
    %v420 = vpack.c.b16 %v408, %v408
    %vm421 = vcmask 1043456
    %v424 = vsel %vm421, %v379, %v409
    %v428 = vsel %vm421, %v380, %v410
    %v432 = vsel %vm421, %v381, %v411
    %v436 = vsel %vm421, %v382, %v412
    %v440 = vsel %vm421, %v383, %v413
    %v444 = vsel %vm421, %v384, %v414
    %v448 = vsel %vm421, %v385, %v415
    %v452 = vsel %vm421, %v386, %v416
    %v456 = vsel %vm421, %v387, %v417
    %v460 = vsel %vm421, %v388, %v418
    %v464 = vsel %vm421, %v389, %v419
    %v468 = vsel %vm421, %v390, %v420
    %v470 = vld [vmem:[#allocation3] sm:$0xff]
    %v471 = vld [vmem:[#allocation3 + $0x8] sm:$0xff]
    %v472 = vld [vmem:[#allocation3 + $0x10] sm:$0xff]
    %v473 = vld [vmem:[#allocation3 + $0x18] sm:$0xff]
    %v474 = vld [vmem:[#allocation3 + $0x20] sm:$0xff]
    %v475 = vld [vmem:[#allocation3 + $0x28] sm:$0xff]
    %v476 = vld [vmem:[#allocation3 + $0x30] sm:$0xff]
    %v477 = vld [vmem:[#allocation3 + $0x38] sm:$0xff]
    %v478 = vld [vmem:[#allocation3 + $0x40] sm:$0xff]
    %v479 = vld [vmem:[#allocation3 + $0x48] sm:$0xff]
    %v480 = vld [vmem:[#allocation3 + $0x50] sm:$0xff]
    %v481 = vld [vmem:[#allocation3 + $0x58] sm:$0xff]
    %v482 = vld [vmem:[#allocation3 + $0x60] sm:$0xff]
    %v483 = vld [vmem:[#allocation3 + $0x68] sm:$0xff]
    %v484 = vld [vmem:[#allocation3 + $0x70] sm:$0xff]
    %v485 = vld [vmem:[#allocation3 + $0x78] sm:$0xff]
    %v486 = vld [vmem:[#allocation3 + $0x80] sm:$0xff]
    %v487 = vld [vmem:[#allocation3 + $0x88] sm:$0xff]
    %v488 = vld [vmem:[#allocation3 + $0x90] sm:$0xff]
    %v489 = vld [vmem:[#allocation3 + $0x98] sm:$0xff]
    %v490 = vld [vmem:[#allocation3 + $0xa0] sm:$0xff]
    %v491 = vld [vmem:[#allocation3 + $0xa8] sm:$0xff]
    %v492 = vld [vmem:[#allocation3 + $0xb0] sm:$0xff]
    %v493 = vld [vmem:[#allocation3 + $0xb8] sm:$0xff]
    %v494 = vld [vmem:[#allocation3 + $0xc0] sm:$0xff]
    %v495 = vld [vmem:[#allocation3 + $0xc8] sm:$0xff]
    %v496 = vld [vmem:[#allocation3 + $0xd0] sm:$0xff]
    %v497 = vld [vmem:[#allocation3 + $0xd8] sm:$0xff]
    %v498 = vld [vmem:[#allocation3 + $0xe0] sm:$0xff]
    %v499 = vld [vmem:[#allocation3 + $0xe8] sm:$0xff]
    %v500 = vld [vmem:[#allocation3 + $0xf0] sm:$0xff]
    %v501 = vld [vmem:[#allocation3 + $0xf8] sm:$0xff]
    %v502 = vld [vmem:[#allocation3 + $0x100] sm:$0xff]
    %v503 = vld [vmem:[#allocation3 + $0x108] sm:$0xff]
    %v504 = vld [vmem:[#allocation3 + $0x110] sm:$0xff]
    %v505 = vld [vmem:[#allocation3 + $0x118] sm:$0xff]
    %v506 = vld [vmem:[#allocation3 + $0x120] sm:$0xff]
    %v507 = vld [vmem:[#allocation3 + $0x128] sm:$0xff]
    %v508 = vld [vmem:[#allocation3 + $0x130] sm:$0xff]
    %v509 = vld [vmem:[#allocation3 + $0x138] sm:$0xff]
    %v510 = vld [vmem:[#allocation3 + $0x140] sm:$0xff]
    %v511 = vld [vmem:[#allocation3 + $0x148] sm:$0xff]
    %v512 = vld [vmem:[#allocation3 + $0x150] sm:$0xff]
    %v513 = vld [vmem:[#allocation3 + $0x158] sm:$0xff]
    %v514 = vld [vmem:[#allocation3 + $0x160] sm:$0xff]
    %v515 = vld [vmem:[#allocation3 + $0x168] sm:$0xff]
    %v516 = vld [vmem:[#allocation3 + $0x170] sm:$0xff]
    %v517 = vld [vmem:[#allocation3 + $0x178] sm:$0xff]
    %v518 = vld [vmem:[#allocation3 + $0x180] sm:$0xff]
    %v519 = vld [vmem:[#allocation3 + $0x188] sm:$0xff]
    %v520 = vld [vmem:[#allocation3 + $0x190] sm:$0xff]
    %v521 = vld [vmem:[#allocation3 + $0x198] sm:$0xff]
    %v522 = vld [vmem:[#allocation3 + $0x1a0] sm:$0xff]
    %v523 = vld [vmem:[#allocation3 + $0x1a8] sm:$0xff]
    %v524 = vld [vmem:[#allocation3 + $0x1b0] sm:$0xff]
    %v525 = vld [vmem:[#allocation3 + $0x1b8] sm:$0xff]
    %v526 = vld [vmem:[#allocation3 + $0x1c0] sm:$0xff]
    %v527 = vld [vmem:[#allocation3 + $0x1c8] sm:$0xff]
    %v528 = vld [vmem:[#allocation3 + $0x1d0] sm:$0xff]
    %v529 = vld [vmem:[#allocation3 + $0x1d8] sm:$0xff]
    %v530 = vld [vmem:[#allocation3 + $0x1e0] sm:$0xff]
    %v531 = vld [vmem:[#allocation3 + $0x1e8] sm:$0xff]
    %v532 = vld [vmem:[#allocation3 + $0x1f0] sm:$0xff]
    %v533 = vld [vmem:[#allocation3 + $0x1f8] sm:$0xff]
    %v534 = vld [vmem:[#allocation3 + $0x200] sm:$0xff]
    %v535 = vld [vmem:[#allocation3 + $0x208] sm:$0xff]
    %v536 = vld [vmem:[#allocation3 + $0x210] sm:$0xff]
    %v537 = vld [vmem:[#allocation3 + $0x218] sm:$0xff]
    %v538 = vld [vmem:[#allocation3 + $0x220] sm:$0xff]
    %v539 = vld [vmem:[#allocation3 + $0x228] sm:$0xff]
    %v540 = vld [vmem:[#allocation3 + $0x230] sm:$0xff]
    %v541 = vld [vmem:[#allocation3 + $0x238] sm:$0xff]
    %v542 = vld [vmem:[#allocation3 + $0x240] sm:$0xff]
    %v543 = vld [vmem:[#allocation3 + $0x248] sm:$0xff]
    %v544 = vld [vmem:[#allocation3 + $0x250] sm:$0xff]
    %v545 = vld [vmem:[#allocation3 + $0x258] sm:$0xff]
    %v546 = vld [vmem:[#allocation3 + $0x260] sm:$0xff]
    %v547 = vld [vmem:[#allocation3 + $0x268] sm:$0xff]
    %v548 = vld [vmem:[#allocation3 + $0x270] sm:$0xff]
    %v549 = vld [vmem:[#allocation3 + $0x278] sm:$0xff]
    %v550 = vld [vmem:[#allocation3 + $0x280] sm:$0xff]
    %v551 = vld [vmem:[#allocation3 + $0x288] sm:$0xff]
    %v552 = vld [vmem:[#allocation3 + $0x290] sm:$0xff]
    %v553 = vld [vmem:[#allocation3 + $0x298] sm:$0xff]
    %v554 = vld [vmem:[#allocation3 + $0x2a0] sm:$0xff]
    %v555 = vld [vmem:[#allocation3 + $0x2a8] sm:$0xff]
    %v556 = vld [vmem:[#allocation3 + $0x2b0] sm:$0xff]
    %v557 = vld [vmem:[#allocation3 + $0x2b8] sm:$0xff]
    %v558 = vld [vmem:[#allocation3 + $0x2c0] sm:$0xff]
    %v559 = vld [vmem:[#allocation3 + $0x2c8] sm:$0xff]
    %v560 = vld [vmem:[#allocation3 + $0x2d0] sm:$0xff]
    %v561 = vld [vmem:[#allocation3 + $0x2d8] sm:$0xff]
    %v562 = vld [vmem:[#allocation3 + $0x2e0] sm:$0xff]
    %v563 = vld [vmem:[#allocation3 + $0x2e8] sm:$0xff]
    %v564 = vld [vmem:[#allocation3 + $0x2f0] sm:$0xff]
    %v565 = vld [vmem:[#allocation3 + $0x2f8] sm:$0xff]
    %v566 = vld [vmem:[#allocation3 + $0x300] sm:$0xff]
    %v567 = vld [vmem:[#allocation3 + $0x308] sm:$0xff]
    %v568 = vld [vmem:[#allocation3 + $0x310] sm:$0xff]
    %v569 = vld [vmem:[#allocation3 + $0x318] sm:$0xff]
    %v570 = vld [vmem:[#allocation3 + $0x320] sm:$0xff]
    %v571 = vld [vmem:[#allocation3 + $0x328] sm:$0xff]
    %v572 = vld [vmem:[#allocation3 + $0x330] sm:$0xff]
    %v573 = vld [vmem:[#allocation3 + $0x338] sm:$0xff]
    %v574 = vld [vmem:[#allocation3 + $0x340] sm:$0xff]
    %v575 = vld [vmem:[#allocation3 + $0x348] sm:$0xff]
    %v576 = vld [vmem:[#allocation3 + $0x350] sm:$0xff]
    %v577 = vld [vmem:[#allocation3 + $0x358] sm:$0xff]
    %v578 = vld [vmem:[#allocation3 + $0x360] sm:$0xff]
    %v579 = vld [vmem:[#allocation3 + $0x368] sm:$0xff]
    %v580 = vld [vmem:[#allocation3 + $0x370] sm:$0xff]
    %v581 = vld [vmem:[#allocation3 + $0x378] sm:$0xff]
    %v582 = vld [vmem:[#allocation3 + $0x380] sm:$0xff]
    %v583 = vld [vmem:[#allocation3 + $0x388] sm:$0xff]
    %v584 = vld [vmem:[#allocation3 + $0x390] sm:$0xff]
    %v585 = vld [vmem:[#allocation3 + $0x398] sm:$0xff]
    %v586 = vld [vmem:[#allocation3 + $0x3a0] sm:$0xff]
    %v587 = vld [vmem:[#allocation3 + $0x3a8] sm:$0xff]
    %v588 = vld [vmem:[#allocation3 + $0x3b0] sm:$0xff]
    %v589 = vld [vmem:[#allocation3 + $0x3b8] sm:$0xff]
    %v590 = vld [vmem:[#allocation3 + $0x3c0] sm:$0xff]
    %v591 = vld [vmem:[#allocation3 + $0x3c8] sm:$0xff]
    %v592 = vld [vmem:[#allocation3 + $0x3d0] sm:$0xff]
    %v593 = vld [vmem:[#allocation3 + $0x3d8] sm:$0xff]
    %v594 = vld [vmem:[#allocation3 + $0x3e0] sm:$0xff]
    %v595 = vld [vmem:[#allocation3 + $0x3e8] sm:$0xff]
    %v596 = vld [vmem:[#allocation3 + $0x3f0] sm:$0xff]
    %v597 = vld [vmem:[#allocation3 + $0x3f8] sm:$0xff]
    %v598 = vld [vmem:[#allocation3 + $0x400] sm:$0xff]
    %v599 = vld [vmem:[#allocation3 + $0x408] sm:$0xff]
    %v600 = vld [vmem:[#allocation3 + $0x410] sm:$0xff]
    %v601 = vld [vmem:[#allocation3 + $0x418] sm:$0xff]
    %v602 = vld [vmem:[#allocation3 + $0x420] sm:$0xff]
    %v603 = vld [vmem:[#allocation3 + $0x428] sm:$0xff]
    %v604 = vld [vmem:[#allocation3 + $0x430] sm:$0xff]
    %v605 = vld [vmem:[#allocation3 + $0x438] sm:$0xff]
    %v606 = vld [vmem:[#allocation3 + $0x440] sm:$0xff]
    %v607 = vld [vmem:[#allocation3 + $0x448] sm:$0xff]
    %v608 = vld [vmem:[#allocation3 + $0x450] sm:$0xff]
    %v609 = vld [vmem:[#allocation3 + $0x458] sm:$0xff]
    %v610 = vld [vmem:[#allocation3 + $0x460] sm:$0xff]
    %v611 = vld [vmem:[#allocation3 + $0x468] sm:$0xff]
    %v612 = vld [vmem:[#allocation3 + $0x470] sm:$0xff]
    %v613 = vld [vmem:[#allocation3 + $0x478] sm:$0xff]
    %v614 = vld [vmem:[#allocation3 + $0x480] sm:$0xff]
    %v615 = vld [vmem:[#allocation3 + $0x488] sm:$0xff]
    %v616 = vld [vmem:[#allocation3 + $0x490] sm:$0xff]
    %v617 = vld [vmem:[#allocation3 + $0x498] sm:$0xff]
    %v618 = vld [vmem:[#allocation3 + $0x4a0] sm:$0xff]
    %v619 = vld [vmem:[#allocation3 + $0x4a8] sm:$0xff]
    %v620 = vld [vmem:[#allocation3 + $0x4b0] sm:$0xff]
    %v621 = vld [vmem:[#allocation3 + $0x4b8] sm:$0xff]
    %v622 = vld [vmem:[#allocation3 + $0x4c0] sm:$0xff]
    %v623 = vld [vmem:[#allocation3 + $0x4c8] sm:$0xff]
    %v624 = vld [vmem:[#allocation3 + $0x4d0] sm:$0xff]
    %v625 = vld [vmem:[#allocation3 + $0x4d8] sm:$0xff]
    %v626 = vld [vmem:[#allocation3 + $0x4e0] sm:$0xff]
    %v627 = vld [vmem:[#allocation3 + $0x4e8] sm:$0xff]
    %v628 = vld [vmem:[#allocation3 + $0x4f0] sm:$0xff]
    %v629 = vld [vmem:[#allocation3 + $0x4f8] sm:$0xff]
    %v630 = vld [vmem:[#allocation3 + $0x500] sm:$0xff]
    %v631 = vld [vmem:[#allocation3 + $0x508] sm:$0xff]
    %v632 = vld [vmem:[#allocation3 + $0x510] sm:$0xff]
    %v633 = vld [vmem:[#allocation3 + $0x518] sm:$0xff]
    %v634 = vld [vmem:[#allocation3 + $0x520] sm:$0xff]
    %v635 = vld [vmem:[#allocation3 + $0x528] sm:$0xff]
    %v636 = vld [vmem:[#allocation3 + $0x530] sm:$0xff]
    %v637 = vld [vmem:[#allocation3 + $0x538] sm:$0xff]
    %v638 = vld [vmem:[#allocation3 + $0x540] sm:$0xff]
    %v639 = vld [vmem:[#allocation3 + $0x548] sm:$0xff]
    %v640 = vld [vmem:[#allocation3 + $0x550] sm:$0xff]
    %v641 = vld [vmem:[#allocation3 + $0x558] sm:$0xff]
    %v642 = vld [vmem:[#allocation3 + $0x560] sm:$0xff]
    %v643 = vld [vmem:[#allocation3 + $0x568] sm:$0xff]
    %v644 = vld [vmem:[#allocation3 + $0x570] sm:$0xff]
    %v645 = vld [vmem:[#allocation3 + $0x578] sm:$0xff]
    %v646 = vld [vmem:[#allocation3 + $0x580] sm:$0xff]
    %v647 = vld [vmem:[#allocation3 + $0x588] sm:$0xff]
    %v648 = vld [vmem:[#allocation3 + $0x590] sm:$0xff]
    %v649 = vld [vmem:[#allocation3 + $0x598] sm:$0xff]
    %v650 = vld [vmem:[#allocation3 + $0x5a0] sm:$0xff]
    %v651 = vld [vmem:[#allocation3 + $0x5a8] sm:$0xff]
    %v652 = vld [vmem:[#allocation3 + $0x5b0] sm:$0xff]
    %v653 = vld [vmem:[#allocation3 + $0x5b8] sm:$0xff]
    %v654 = vld [vmem:[#allocation3 + $0x5c0] sm:$0xff]
    %v655 = vld [vmem:[#allocation3 + $0x5c8] sm:$0xff]
    %v656 = vld [vmem:[#allocation3 + $0x5d0] sm:$0xff]
    %v657 = vld [vmem:[#allocation3 + $0x5d8] sm:$0xff]
    %v658 = vld [vmem:[#allocation3 + $0x5e0] sm:$0xff]
    %v659 = vld [vmem:[#allocation3 + $0x5e8] sm:$0xff]
    %v660 = vld [vmem:[#allocation3 + $0x5f0] sm:$0xff]
    %v661 = vld [vmem:[#allocation3 + $0x5f8] sm:$0xff]
    %v662 = vld [vmem:[#allocation3 + $0x600] sm:$0xff]
    %v663 = vld [vmem:[#allocation3 + $0x608] sm:$0xff]
    %v664 = vld [vmem:[#allocation3 + $0x610] sm:$0xff]
    %v665 = vld [vmem:[#allocation3 + $0x618] sm:$0xff]
    %v666 = vld [vmem:[#allocation3 + $0x620] sm:$0xff]
    %v667 = vld [vmem:[#allocation3 + $0x628] sm:$0xff]
    %v668 = vld [vmem:[#allocation3 + $0x630] sm:$0xff]
    %v669 = vld [vmem:[#allocation3 + $0x638] sm:$0xff]
    %v670 = vld [vmem:[#allocation3 + $0x640] sm:$0xff]
    %v671 = vld [vmem:[#allocation3 + $0x648] sm:$0xff]
    %v672 = vld [vmem:[#allocation3 + $0x650] sm:$0xff]
    %v673 = vld [vmem:[#allocation3 + $0x658] sm:$0xff]
    %v674 = vld [vmem:[#allocation3 + $0x660] sm:$0xff]
    %v675 = vld [vmem:[#allocation3 + $0x668] sm:$0xff]
    %v676 = vld [vmem:[#allocation3 + $0x670] sm:$0xff]
    %v677 = vld [vmem:[#allocation3 + $0x678] sm:$0xff]
    %v678 = vld [vmem:[#allocation3 + $0x680] sm:$0xff]
    %v679 = vld [vmem:[#allocation3 + $0x688] sm:$0xff]
    %v680 = vld [vmem:[#allocation3 + $0x690] sm:$0xff]
    %v681 = vld [vmem:[#allocation3 + $0x698] sm:$0xff]
    %v682 = vld [vmem:[#allocation3 + $0x6a0] sm:$0xff]
    %v683 = vld [vmem:[#allocation3 + $0x6a8] sm:$0xff]
    %v684 = vld [vmem:[#allocation3 + $0x6b0] sm:$0xff]
    %v685 = vld [vmem:[#allocation3 + $0x6b8] sm:$0xff]
    %v686 = vld [vmem:[#allocation3 + $0x6c0] sm:$0xff]
    %v687 = vld [vmem:[#allocation3 + $0x6c8] sm:$0xff]
    %v688 = vld [vmem:[#allocation3 + $0x6d0] sm:$0xff]
    %v689 = vld [vmem:[#allocation3 + $0x6d8] sm:$0xff]
    %v690 = vld [vmem:[#allocation3 + $0x6e0] sm:$0xff]
    %v691 = vld [vmem:[#allocation3 + $0x6e8] sm:$0xff]
    %v692 = vld [vmem:[#allocation3 + $0x6f0] sm:$0xff]
    %v693 = vld [vmem:[#allocation3 + $0x6f8] sm:$0xff]
    %v694 = vld [vmem:[#allocation3 + $0x700] sm:$0xff]
    %v695 = vld [vmem:[#allocation3 + $0x708] sm:$0xff]
    %v696 = vld [vmem:[#allocation3 + $0x710] sm:$0xff]
    %v697 = vld [vmem:[#allocation3 + $0x718] sm:$0xff]
    %v698 = vld [vmem:[#allocation3 + $0x720] sm:$0xff]
    %v699 = vld [vmem:[#allocation3 + $0x728] sm:$0xff]
    %v700 = vld [vmem:[#allocation3 + $0x730] sm:$0xff]
    %v701 = vld [vmem:[#allocation3 + $0x738] sm:$0xff]
    %v702 = vld [vmem:[#allocation3 + $0x740] sm:$0xff]
    %v703 = vld [vmem:[#allocation3 + $0x748] sm:$0xff]
    %v704 = vld [vmem:[#allocation3 + $0x750] sm:$0xff]
    %v705 = vld [vmem:[#allocation3 + $0x758] sm:$0xff]
    %v706 = vld [vmem:[#allocation3 + $0x760] sm:$0xff]
    %v707 = vld [vmem:[#allocation3 + $0x768] sm:$0xff]
    %v708 = vld [vmem:[#allocation3 + $0x770] sm:$0xff]
    %v709 = vld [vmem:[#allocation3 + $0x778] sm:$0xff]
    %v710 = vld [vmem:[#allocation3 + $0x780] sm:$0xff]
    %v711 = vld [vmem:[#allocation3 + $0x788] sm:$0xff]
    %v712 = vld [vmem:[#allocation3 + $0x790] sm:$0xff]
    %v713 = vld [vmem:[#allocation3 + $0x798] sm:$0xff]
    %v714 = vld [vmem:[#allocation3 + $0x7a0] sm:$0xff]
    %v715 = vld [vmem:[#allocation3 + $0x7a8] sm:$0xff]
    %v716 = vld [vmem:[#allocation3 + $0x7b0] sm:$0xff]
    %v717 = vld [vmem:[#allocation3 + $0x7b8] sm:$0xff]
    %v718 = vld [vmem:[#allocation3 + $0x7c0] sm:$0xff]
    %v719 = vld [vmem:[#allocation3 + $0x7c8] sm:$0xff]
    %v720 = vld [vmem:[#allocation3 + $0x7d0] sm:$0xff]
    %v721 = vld [vmem:[#allocation3 + $0x7d8] sm:$0xff]
    %v722 = vld [vmem:[#allocation3 + $0x7e0] sm:$0xff]
    %v723 = vld [vmem:[#allocation3 + $0x7e8] sm:$0xff]
    %v724 = vld [vmem:[#allocation3 + $0x7f0] sm:$0xff]
    %v725 = vld [vmem:[#allocation3 + $0x7f8] sm:$0xff]
    %v726 = vld [vmem:[#allocation3 + $0x800] sm:$0xff]
    %v727 = vld [vmem:[#allocation3 + $0x808] sm:$0xff]
    %v728 = vld [vmem:[#allocation3 + $0x810] sm:$0xff]
    %v729 = vld [vmem:[#allocation3 + $0x818] sm:$0xff]
    %v730 = vld [vmem:[#allocation3 + $0x820] sm:$0xff]
    %v731 = vld [vmem:[#allocation3 + $0x828] sm:$0xff]
    %v732 = vld [vmem:[#allocation3 + $0x830] sm:$0xff]
    %v733 = vld [vmem:[#allocation3 + $0x838] sm:$0xff]
    %v734 = vld [vmem:[#allocation3 + $0x840] sm:$0xff]
    %v735 = vld [vmem:[#allocation3 + $0x848] sm:$0xff]
    %v736 = vld [vmem:[#allocation3 + $0x850] sm:$0xff]
    %v737 = vld [vmem:[#allocation3 + $0x858] sm:$0xff]
    %v738 = vld [vmem:[#allocation3 + $0x860] sm:$0xff]
    %v739 = vld [vmem:[#allocation3 + $0x868] sm:$0xff]
    %v740 = vld [vmem:[#allocation3 + $0x870] sm:$0xff]
    %v741 = vld [vmem:[#allocation3 + $0x878] sm:$0xff]
    %v742 = vld [vmem:[#allocation3 + $0x880] sm:$0xff]
    %v743 = vld [vmem:[#allocation3 + $0x888] sm:$0xff]
    %v744 = vld [vmem:[#allocation3 + $0x890] sm:$0xff]
    %v745 = vld [vmem:[#allocation3 + $0x898] sm:$0xff]
    %v746 = vld [vmem:[#allocation3 + $0x8a0] sm:$0xff]
    %v747 = vld [vmem:[#allocation3 + $0x8a8] sm:$0xff]
    %v748 = vld [vmem:[#allocation3 + $0x8b0] sm:$0xff]
    %v749 = vld [vmem:[#allocation3 + $0x8b8] sm:$0xff]
    %v750 = vld [vmem:[#allocation3 + $0x8c0] sm:$0xff]
    %v751 = vld [vmem:[#allocation3 + $0x8c8] sm:$0xff]
    %v752 = vld [vmem:[#allocation3 + $0x8d0] sm:$0xff]
    %v753 = vld [vmem:[#allocation3 + $0x8d8] sm:$0xff]
    %v754 = vld [vmem:[#allocation3 + $0x8e0] sm:$0xff]
    %v755 = vld [vmem:[#allocation3 + $0x8e8] sm:$0xff]
    %v756 = vld [vmem:[#allocation3 + $0x8f0] sm:$0xff]
    %v757 = vld [vmem:[#allocation3 + $0x8f8] sm:$0xff]
    %v758 = vld [vmem:[#allocation3 + $0x900] sm:$0xff]
    %v759 = vld [vmem:[#allocation3 + $0x908] sm:$0xff]
    %v760 = vld [vmem:[#allocation3 + $0x910] sm:$0xff]
    %v761 = vld [vmem:[#allocation3 + $0x918] sm:$0xff]
    %v762 = vld [vmem:[#allocation3 + $0x920] sm:$0xff]
    %v763 = vld [vmem:[#allocation3 + $0x928] sm:$0xff]
    %v764 = vld [vmem:[#allocation3 + $0x930] sm:$0xff]
    %v765 = vld [vmem:[#allocation3 + $0x938] sm:$0xff]
    %v766 = vld [vmem:[#allocation3 + $0x940] sm:$0xff]
    %v767 = vld [vmem:[#allocation3 + $0x948] sm:$0xff]
    %v768 = vld [vmem:[#allocation3 + $0x950] sm:$0xff]
    %v769 = vld [vmem:[#allocation3 + $0x958] sm:$0xff]
    %v770 = vld [vmem:[#allocation3 + $0x960] sm:$0xff]
    %v771 = vld [vmem:[#allocation3 + $0x968] sm:$0xff]
    %v772 = vld [vmem:[#allocation3 + $0x970] sm:$0xff]
    %v773 = vld [vmem:[#allocation3 + $0x978] sm:$0xff]
    %v774 = vld [vmem:[#allocation3 + $0x980] sm:$0xff]
    %v775 = vld [vmem:[#allocation3 + $0x988] sm:$0xff]
    %v776 = vld [vmem:[#allocation3 + $0x990] sm:$0xff]
    %v777 = vld [vmem:[#allocation3 + $0x998] sm:$0xff]
    %v778 = vld [vmem:[#allocation3 + $0x9a0] sm:$0xff]
    %v779 = vld [vmem:[#allocation3 + $0x9a8] sm:$0xff]
    %v780 = vld [vmem:[#allocation3 + $0x9b0] sm:$0xff]
    %v781 = vld [vmem:[#allocation3 + $0x9b8] sm:$0xff]
    %v782 = vld [vmem:[#allocation3 + $0x9c0] sm:$0xff]
    %v783 = vld [vmem:[#allocation3 + $0x9c8] sm:$0xff]
    %v784 = vld [vmem:[#allocation3 + $0x9d0] sm:$0xff]
    %v785 = vld [vmem:[#allocation3 + $0x9d8] sm:$0xff]
    %v786 = vld [vmem:[#allocation3 + $0x9e0] sm:$0xff]
    %v787 = vld [vmem:[#allocation3 + $0x9e8] sm:$0xff]
    %v788 = vld [vmem:[#allocation3 + $0x9f0] sm:$0xff]
    %v789 = vld [vmem:[#allocation3 + $0x9f8] sm:$0xff]
    %v790 = vld [vmem:[#allocation3 + $0xa00] sm:$0xff]
    %v791 = vld [vmem:[#allocation3 + $0xa08] sm:$0xff]
    %v792 = vld [vmem:[#allocation3 + $0xa10] sm:$0xff]
    %v793 = vld [vmem:[#allocation3 + $0xa18] sm:$0xff]
    %v794 = vld [vmem:[#allocation3 + $0xa20] sm:$0xff]
    %v795 = vld [vmem:[#allocation3 + $0xa28] sm:$0xff]
    %v796 = vld [vmem:[#allocation3 + $0xa30] sm:$0xff]
    %v797 = vld [vmem:[#allocation3 + $0xa38] sm:$0xff]
    %v798 = vld [vmem:[#allocation3 + $0xa40] sm:$0xff]
    %v799 = vld [vmem:[#allocation3 + $0xa48] sm:$0xff]
    %v800 = vld [vmem:[#allocation3 + $0xa50] sm:$0xff]
    %v801 = vld [vmem:[#allocation3 + $0xa58] sm:$0xff]
    %v802 = vld [vmem:[#allocation3 + $0xa60] sm:$0xff]
    %v803 = vld [vmem:[#allocation3 + $0xa68] sm:$0xff]
    %v804 = vld [vmem:[#allocation3 + $0xa70] sm:$0xff]
    %v805 = vld [vmem:[#allocation3 + $0xa78] sm:$0xff]
    %v806 = vld [vmem:[#allocation3 + $0xa80] sm:$0xff]
    %v807 = vld [vmem:[#allocation3 + $0xa88] sm:$0xff]
    %v808 = vld [vmem:[#allocation3 + $0xa90] sm:$0xff]
    %v809 = vld [vmem:[#allocation3 + $0xa98] sm:$0xff]
    %v810 = vld [vmem:[#allocation3 + $0xaa0] sm:$0xff]
    %v811 = vld [vmem:[#allocation3 + $0xaa8] sm:$0xff]
    %v812 = vld [vmem:[#allocation3 + $0xab0] sm:$0xff]
    %v813 = vld [vmem:[#allocation3 + $0xab8] sm:$0xff]
    %v814 = vld [vmem:[#allocation3 + $0xac0] sm:$0xff]
    %v815 = vld [vmem:[#allocation3 + $0xac8] sm:$0xff]
    %v816 = vld [vmem:[#allocation3 + $0xad0] sm:$0xff]
    %v817 = vld [vmem:[#allocation3 + $0xad8] sm:$0xff]
    %v818 = vld [vmem:[#allocation3 + $0xae0] sm:$0xff]
    %v819 = vld [vmem:[#allocation3 + $0xae8] sm:$0xff]
    %v820 = vld [vmem:[#allocation3 + $0xaf0] sm:$0xff]
    %v821 = vld [vmem:[#allocation3 + $0xaf8] sm:$0xff]
    %v822 = vld [vmem:[#allocation3 + $0xb00] sm:$0xff]
    %v823 = vld [vmem:[#allocation3 + $0xb08] sm:$0xff]
    %v824 = vld [vmem:[#allocation3 + $0xb10] sm:$0xff]
    %v825 = vld [vmem:[#allocation3 + $0xb18] sm:$0xff]
    %v826 = vld [vmem:[#allocation3 + $0xb20] sm:$0xff]
    %v827 = vld [vmem:[#allocation3 + $0xb28] sm:$0xff]
    %v828 = vld [vmem:[#allocation3 + $0xb30] sm:$0xff]
    %v829 = vld [vmem:[#allocation3 + $0xb38] sm:$0xff]
    %v830 = vld [vmem:[#allocation3 + $0xb40] sm:$0xff]
    %v831 = vld [vmem:[#allocation3 + $0xb48] sm:$0xff]
    %v832 = vld [vmem:[#allocation3 + $0xb50] sm:$0xff]
    %v833 = vld [vmem:[#allocation3 + $0xb58] sm:$0xff]
    %v834 = vld [vmem:[#allocation3 + $0xb60] sm:$0xff]
    %v835 = vld [vmem:[#allocation3 + $0xb68] sm:$0xff]
    %v836 = vld [vmem:[#allocation3 + $0xb70] sm:$0xff]
    %v837 = vld [vmem:[#allocation3 + $0xb78] sm:$0xff]
    %v838 = vld [vmem:[#allocation3 + $0xb80] sm:$0xff]
    %v839 = vld [vmem:[#allocation3 + $0xb88] sm:$0xff]
    %v840 = vld [vmem:[#allocation3 + $0xb90] sm:$0xff]
    %v841 = vld [vmem:[#allocation3 + $0xb98] sm:$0xff]
    %v842 = vld [vmem:[#allocation3 + $0xba0] sm:$0xff]
    %v843 = vld [vmem:[#allocation3 + $0xba8] sm:$0xff]
    %v844 = vld [vmem:[#allocation3 + $0xbb0] sm:$0xff]
    %v845 = vld [vmem:[#allocation3 + $0xbb8] sm:$0xff]
    %v846 = vld [vmem:[#allocation3 + $0xbc0] sm:$0xff]
    %v847 = vld [vmem:[#allocation3 + $0xbc8] sm:$0xff]
    %v848 = vld [vmem:[#allocation3 + $0xbd0] sm:$0xff]
    %v849 = vld [vmem:[#allocation3 + $0xbd8] sm:$0xff]
    %v850 = vld [vmem:[#allocation3 + $0xbe0] sm:$0xff]
    %v851 = vld [vmem:[#allocation3 + $0xbe8] sm:$0xff]
    %v852 = vld [vmem:[#allocation3 + $0xbf0] sm:$0xff]
    %v853 = vld [vmem:[#allocation3 + $0xbf8] sm:$0xff]
    %v854 = vld [vmem:[#allocation3 + $0xc00] sm:$0xff]
    %v855 = vld [vmem:[#allocation3 + $0xc08] sm:$0xff]
    %v856 = vld [vmem:[#allocation3 + $0xc10] sm:$0xff]
    %v857 = vld [vmem:[#allocation3 + $0xc18] sm:$0xff]
    %v858 = vld [vmem:[#allocation3 + $0xc20] sm:$0xff]
    %v859 = vld [vmem:[#allocation3 + $0xc28] sm:$0xff]
    %v860 = vld [vmem:[#allocation3 + $0xc30] sm:$0xff]
    %v861 = vld [vmem:[#allocation3 + $0xc38] sm:$0xff]
    %v862 = vld [vmem:[#allocation3 + $0xc40] sm:$0xff]
    %v863 = vld [vmem:[#allocation3 + $0xc48] sm:$0xff]
    %v864 = vld [vmem:[#allocation3 + $0xc50] sm:$0xff]
    %v865 = vld [vmem:[#allocation3 + $0xc58] sm:$0xff]
    %v866 = vld [vmem:[#allocation3 + $0xc60] sm:$0xff]
    %v867 = vld [vmem:[#allocation3 + $0xc68] sm:$0xff]
    %v868 = vld [vmem:[#allocation3 + $0xc70] sm:$0xff]
    %v869 = vld [vmem:[#allocation3 + $0xc78] sm:$0xff]
    %v870 = vld [vmem:[#allocation3 + $0xc80] sm:$0xff]
    %v871 = vld [vmem:[#allocation3 + $0xc88] sm:$0xff]
    %v872 = vld [vmem:[#allocation3 + $0xc90] sm:$0xff]
    %v873 = vld [vmem:[#allocation3 + $0xc98] sm:$0xff]
    %v874 = vld [vmem:[#allocation3 + $0xca0] sm:$0xff]
    %v875 = vld [vmem:[#allocation3 + $0xca8] sm:$0xff]
    %v876 = vld [vmem:[#allocation3 + $0xcb0] sm:$0xff]
    %v877 = vld [vmem:[#allocation3 + $0xcb8] sm:$0xff]
    %v878 = vld [vmem:[#allocation3 + $0xcc0] sm:$0xff]
    %v879 = vld [vmem:[#allocation3 + $0xcc8] sm:$0xff]
    %v880 = vld [vmem:[#allocation3 + $0xcd0] sm:$0xff]
    %v881 = vld [vmem:[#allocation3 + $0xcd8] sm:$0xff]
    %v882 = vld [vmem:[#allocation3 + $0xce0] sm:$0xff]
    %v883 = vld [vmem:[#allocation3 + $0xce8] sm:$0xff]
    %v884 = vld [vmem:[#allocation3 + $0xcf0] sm:$0xff]
    %v885 = vld [vmem:[#allocation3 + $0xcf8] sm:$0xff]
    %v886 = vld [vmem:[#allocation3 + $0xd00] sm:$0xff]
    %v887 = vld [vmem:[#allocation3 + $0xd08] sm:$0xff]
    %v888 = vld [vmem:[#allocation3 + $0xd10] sm:$0xff]
    %v889 = vld [vmem:[#allocation3 + $0xd18] sm:$0xff]
    %v890 = vld [vmem:[#allocation3 + $0xd20] sm:$0xff]
    %v891 = vld [vmem:[#allocation3 + $0xd28] sm:$0xff]
    %v892 = vld [vmem:[#allocation3 + $0xd30] sm:$0xff]
    %v893 = vld [vmem:[#allocation3 + $0xd38] sm:$0xff]
    %v894 = vld [vmem:[#allocation3 + $0xd40] sm:$0xff]
    %v895 = vld [vmem:[#allocation3 + $0xd48] sm:$0xff]
    %v896 = vld [vmem:[#allocation3 + $0xd50] sm:$0xff]
    %v897 = vld [vmem:[#allocation3 + $0xd58] sm:$0xff]
    %v898 = vld [vmem:[#allocation3 + $0xd60] sm:$0xff]
    %v899 = vld [vmem:[#allocation3 + $0xd68] sm:$0xff]
    %v900 = vld [vmem:[#allocation3 + $0xd70] sm:$0xff]
    %v901 = vld [vmem:[#allocation3 + $0xd78] sm:$0xff]
    %v902 = vld [vmem:[#allocation3 + $0xd80] sm:$0xff]
    %v903 = vld [vmem:[#allocation3 + $0xd88] sm:$0xff]
    %v904 = vld [vmem:[#allocation3 + $0xd90] sm:$0xff]
    %v905 = vld [vmem:[#allocation3 + $0xd98] sm:$0xff]
    %v906 = vld [vmem:[#allocation3 + $0xda0] sm:$0xff]
    %v907 = vld [vmem:[#allocation3 + $0xda8] sm:$0xff]
    %v908 = vld [vmem:[#allocation3 + $0xdb0] sm:$0xff]
    %v909 = vld [vmem:[#allocation3 + $0xdb8] sm:$0xff]
    %v910 = vld [vmem:[#allocation3 + $0xdc0] sm:$0xff]
    %v911 = vld [vmem:[#allocation3 + $0xdc8] sm:$0xff]
    %v912 = vld [vmem:[#allocation3 + $0xdd0] sm:$0xff]
    %v913 = vld [vmem:[#allocation3 + $0xdd8] sm:$0xff]
    %v914 = vld [vmem:[#allocation3 + $0xde0] sm:$0xff]
    %v915 = vld [vmem:[#allocation3 + $0xde8] sm:$0xff]
    %v916 = vld [vmem:[#allocation3 + $0xdf0] sm:$0xff]
    %v917 = vld [vmem:[#allocation3 + $0xdf8] sm:$0xff]
    %v918 = vld [vmem:[#allocation3 + $0xe00] sm:$0xff]
    %v919 = vld [vmem:[#allocation3 + $0xe08] sm:$0xff]
    %v920 = vld [vmem:[#allocation3 + $0xe10] sm:$0xff]
    %v921 = vld [vmem:[#allocation3 + $0xe18] sm:$0xff]
    %v922 = vld [vmem:[#allocation3 + $0xe20] sm:$0xff]
    %v923 = vld [vmem:[#allocation3 + $0xe28] sm:$0xff]
    %v924 = vld [vmem:[#allocation3 + $0xe30] sm:$0xff]
    %v925 = vld [vmem:[#allocation3 + $0xe38] sm:$0xff]
    %v926 = vld [vmem:[#allocation3 + $0xe40] sm:$0xff]
    %v927 = vld [vmem:[#allocation3 + $0xe48] sm:$0xff]
    %v928 = vld [vmem:[#allocation3 + $0xe50] sm:$0xff]
    %v929 = vld [vmem:[#allocation3 + $0xe58] sm:$0xff]
    %v930 = vld [vmem:[#allocation3 + $0xe60] sm:$0xff]
    %v931 = vld [vmem:[#allocation3 + $0xe68] sm:$0xff]
    %v932 = vld [vmem:[#allocation3 + $0xe70] sm:$0xff]
    %v933 = vld [vmem:[#allocation3 + $0xe78] sm:$0xff]
    %v934 = vld [vmem:[#allocation3 + $0xe80] sm:$0xff]
    %v935 = vld [vmem:[#allocation3 + $0xe88] sm:$0xff]
    %v936 = vld [vmem:[#allocation3 + $0xe90] sm:$0xff]
    %v937 = vld [vmem:[#allocation3 + $0xe98] sm:$0xff]
    %v938 = vld [vmem:[#allocation3 + $0xea0] sm:$0xff]
    %v939 = vld [vmem:[#allocation3 + $0xea8] sm:$0xff]
    %v940 = vld [vmem:[#allocation3 + $0xeb0] sm:$0xff]
    %v941 = vld [vmem:[#allocation3 + $0xeb8] sm:$0xff]
    %v942 = vld [vmem:[#allocation3 + $0xec0] sm:$0xff]
    %v943 = vld [vmem:[#allocation3 + $0xec8] sm:$0xff]
    %v944 = vld [vmem:[#allocation3 + $0xed0] sm:$0xff]
    %v945 = vld [vmem:[#allocation3 + $0xed8] sm:$0xff]
    %v946 = vld [vmem:[#allocation3 + $0xee0] sm:$0xff]
    %v947 = vld [vmem:[#allocation3 + $0xee8] sm:$0xff]
    %v948 = vld [vmem:[#allocation3 + $0xef0] sm:$0xff]
    %v949 = vld [vmem:[#allocation3 + $0xef8] sm:$0xff]
    %v950 = vld [vmem:[#allocation3 + $0xf00] sm:$0xff]
    %v951 = vld [vmem:[#allocation3 + $0xf08] sm:$0xff]
    %v952 = vld [vmem:[#allocation3 + $0xf10] sm:$0xff]
    %v953 = vld [vmem:[#allocation3 + $0xf18] sm:$0xff]
    %v954 = vld [vmem:[#allocation3 + $0xf20] sm:$0xff]
    %v955 = vld [vmem:[#allocation3 + $0xf28] sm:$0xff]
    %v956 = vld [vmem:[#allocation3 + $0xf30] sm:$0xff]
    %v957 = vld [vmem:[#allocation3 + $0xf38] sm:$0xff]
    %v958 = vld [vmem:[#allocation3 + $0xf40] sm:$0xff]
    %v959 = vld [vmem:[#allocation3 + $0xf48] sm:$0xff]
    %v960 = vld [vmem:[#allocation3 + $0xf50] sm:$0xff]
    %v961 = vld [vmem:[#allocation3 + $0xf58] sm:$0xff]
    %v962 = vld [vmem:[#allocation3 + $0xf60] sm:$0xff]
    %v963 = vld [vmem:[#allocation3 + $0xf68] sm:$0xff]
    %v964 = vld [vmem:[#allocation3 + $0xf70] sm:$0xff]
    %v965 = vld [vmem:[#allocation3 + $0xf78] sm:$0xff]
    %v966 = vld [vmem:[#allocation3 + $0xf80] sm:$0xff]
    %v967 = vld [vmem:[#allocation3 + $0xf88] sm:$0xff]
    %v968 = vld [vmem:[#allocation3 + $0xf90] sm:$0xff]
    %v969 = vld [vmem:[#allocation3 + $0xf98] sm:$0xff]
    %v970 = vld [vmem:[#allocation3 + $0xfa0] sm:$0xff]
    %v971 = vld [vmem:[#allocation3 + $0xfa8] sm:$0xff]
    %v972 = vld [vmem:[#allocation3 + $0xfb0] sm:$0xff]
    %v973 = vld [vmem:[#allocation3 + $0xfb8] sm:$0xff]
    %v974 = vld [vmem:[#allocation3 + $0xfc0] sm:$0xff]
    %v975 = vld [vmem:[#allocation3 + $0xfc8] sm:$0xff]
    %v976 = vld [vmem:[#allocation3 + $0xfd0] sm:$0xff]
    %v977 = vld [vmem:[#allocation3 + $0xfd8] sm:$0xff]
    %v978 = vld [vmem:[#allocation3 + $0xfe0] sm:$0xff]
    %v979 = vld [vmem:[#allocation3 + $0xfe8] sm:$0xff]
    %v980 = vld [vmem:[#allocation3 + $0xff0] sm:$0xff]
    %v981 = vld [vmem:[#allocation3 + $0xff8] sm:$0xff]
    %v982 = vld [vmem:[#allocation3 + $0x1000] sm:$0xff]
    %v983 = vld [vmem:[#allocation3 + $0x1008] sm:$0xff]
    %v984 = vld [vmem:[#allocation3 + $0x1010] sm:$0xff]
    %v985 = vld [vmem:[#allocation3 + $0x1018] sm:$0xff]
    %v986 = vld [vmem:[#allocation3 + $0x1020] sm:$0xff]
    %v987 = vld [vmem:[#allocation3 + $0x1028] sm:$0xff]
    %v988 = vld [vmem:[#allocation3 + $0x1030] sm:$0xff]
    %v989 = vld [vmem:[#allocation3 + $0x1038] sm:$0xff]
    %v990 = vld [vmem:[#allocation3 + $0x1040] sm:$0xff]
    %v991 = vld [vmem:[#allocation3 + $0x1048] sm:$0xff]
    %v992 = vld [vmem:[#allocation3 + $0x1050] sm:$0xff]
    %v993 = vld [vmem:[#allocation3 + $0x1058] sm:$0xff]
    %v994 = vld [vmem:[#allocation3 + $0x1060] sm:$0xff]
    %v995 = vld [vmem:[#allocation3 + $0x1068] sm:$0xff]
    %v996 = vld [vmem:[#allocation3 + $0x1070] sm:$0xff]
    %v997 = vld [vmem:[#allocation3 + $0x1078] sm:$0xff]
    %v998 = vld [vmem:[#allocation3 + $0x1080] sm:$0xff]
    %v999 = vld [vmem:[#allocation3 + $0x1088] sm:$0xff]
    %v1000 = vld [vmem:[#allocation3 + $0x1090] sm:$0xff]
    %v1001 = vld [vmem:[#allocation3 + $0x1098] sm:$0xff]
    %v1002 = vld [vmem:[#allocation3 + $0x10a0] sm:$0xff]
    %v1003 = vld [vmem:[#allocation3 + $0x10a8] sm:$0xff]
    %v1004 = vld [vmem:[#allocation3 + $0x10b0] sm:$0xff]
    %v1005 = vld [vmem:[#allocation3 + $0x10b8] sm:$0xff]
    %v1006 = vld [vmem:[#allocation3 + $0x10c0] sm:$0xff]
    %v1007 = vld [vmem:[#allocation3 + $0x10c8] sm:$0xff]
    %v1008 = vld [vmem:[#allocation3 + $0x10d0] sm:$0xff]
    %v1009 = vld [vmem:[#allocation3 + $0x10d8] sm:$0xff]
    %v1010 = vld [vmem:[#allocation3 + $0x10e0] sm:$0xff]
    %v1011 = vld [vmem:[#allocation3 + $0x10e8] sm:$0xff]
    %v1012 = vld [vmem:[#allocation3 + $0x10f0] sm:$0xff]
    %v1013 = vld [vmem:[#allocation3 + $0x10f8] sm:$0xff]
    %v1014 = vld [vmem:[#allocation3 + $0x1100] sm:$0xff]
    %v1015 = vld [vmem:[#allocation3 + $0x1108] sm:$0xff]
    %v1016 = vld [vmem:[#allocation3 + $0x1110] sm:$0xff]
    %v1017 = vld [vmem:[#allocation3 + $0x1118] sm:$0xff]
    %v1018 = vld [vmem:[#allocation3 + $0x1120] sm:$0xff]
    %v1019 = vld [vmem:[#allocation3 + $0x1128] sm:$0xff]
    %v1020 = vld [vmem:[#allocation3 + $0x1130] sm:$0xff]
    %v1021 = vld [vmem:[#allocation3 + $0x1138] sm:$0xff]
    %v1022 = vld [vmem:[#allocation3 + $0x1140] sm:$0xff]
    %v1023 = vld [vmem:[#allocation3 + $0x1148] sm:$0xff]
    %v1024 = vld [vmem:[#allocation3 + $0x1150] sm:$0xff]
    %v1025 = vld [vmem:[#allocation3 + $0x1158] sm:$0xff]
    %v1026 = vld [vmem:[#allocation3 + $0x1160] sm:$0xff]
    %v1027 = vld [vmem:[#allocation3 + $0x1168] sm:$0xff]
    %v1028 = vld [vmem:[#allocation3 + $0x1170] sm:$0xff]
    %v1029 = vld [vmem:[#allocation3 + $0x1178] sm:$0xff]
    %v1030 = vld [vmem:[#allocation3 + $0x1180] sm:$0xff]
    %v1031 = vld [vmem:[#allocation3 + $0x1188] sm:$0xff]
    %v1032 = vld [vmem:[#allocation3 + $0x1190] sm:$0xff]
    %v1033 = vld [vmem:[#allocation3 + $0x1198] sm:$0xff]
    %v1034 = vld [vmem:[#allocation3 + $0x11a0] sm:$0xff]
    %v1035 = vld [vmem:[#allocation3 + $0x11a8] sm:$0xff]
    %v1036 = vld [vmem:[#allocation3 + $0x11b0] sm:$0xff]
    %v1037 = vld [vmem:[#allocation3 + $0x11b8] sm:$0xff]
    %v1038 = vld [vmem:[#allocation3 + $0x11c0] sm:$0xff]
    %v1039 = vld [vmem:[#allocation3 + $0x11c8] sm:$0xff]
    %v1040 = vld [vmem:[#allocation3 + $0x11d0] sm:$0xff]
    %v1041 = vld [vmem:[#allocation3 + $0x11d8] sm:$0xff]
    %v1042 = vld [vmem:[#allocation3 + $0x11e0] sm:$0xff]
    %v1043 = vld [vmem:[#allocation3 + $0x11e8] sm:$0xff]
    %v1044 = vld [vmem:[#allocation3 + $0x11f0] sm:$0xff]
    %v1045 = vld [vmem:[#allocation3 + $0x11f8] sm:$0xff]
    %v1046 = vld [vmem:[#allocation5] sm:$0x3f]
    %v1048 = vlaneseq
    %v1049 = vshrl.u32 %v1048, 7
    %v1050 = vsub.s32 0, %v1049
    %v1051 = vrot.slane %v1046, %v1050
    %v1052 = vlaneseq
    %v1053 = vshrl.u32 %v1052, 7
    %v1054 = vsub.s32 1, %v1053
    %v1055 = vrot.slane %v1046, %v1054
    %v1056 = vlaneseq
    %v1057 = vshrl.u32 %v1056, 7
    %v1058 = vsub.s32 2, %v1057
    %v1059 = vrot.slane %v1046, %v1058
    %v1060 = vlaneseq
    %v1061 = vshrl.u32 %v1060, 7
    %v1062 = vsub.s32 3, %v1061
    %v1063 = vrot.slane %v1046, %v1062
    %v1064 = vlaneseq
    %v1065 = vshrl.u32 %v1064, 7
    %v1066 = vsub.s32 4, %v1065
    %v1067 = vrot.slane %v1046, %v1066
    %v1068 = vlaneseq
    %v1069 = vshrl.u32 %v1068, 7
    %v1070 = vsub.s32 5, %v1069
    %v1071 = vrot.slane %v1046, %v1070
    %v1654 = vunpack.c.l.b16 %v470
    %v1655 = vunpack.c.h.b16 %v470
    %v1656 = vunpack.c.l.b16 %v471
    %v1657 = vunpack.c.h.b16 %v471
    %v1658 = vunpack.c.l.b16 %v472
    %v1659 = vunpack.c.h.b16 %v472
    %v1660 = vunpack.c.l.b16 %v473
    %v1661 = vunpack.c.h.b16 %v473
    %v1662 = vunpack.c.l.b16 %v474
    %v1663 = vunpack.c.h.b16 %v474
    %v1664 = vunpack.c.l.b16 %v475
    %v1665 = vunpack.c.h.b16 %v475
    %v1666 = vunpack.c.l.b16 %v476
    %v1667 = vunpack.c.h.b16 %v476
    %v1668 = vunpack.c.l.b16 %v477
    %v1669 = vunpack.c.h.b16 %v477
    %v1670 = vunpack.c.l.b16 %v478
    %v1671 = vunpack.c.h.b16 %v478
    %v1672 = vunpack.c.l.b16 %v479
    %v1673 = vunpack.c.h.b16 %v479
    %v1674 = vunpack.c.l.b16 %v480
    %v1675 = vunpack.c.h.b16 %v480
    %v1676 = vunpack.c.l.b16 %v481
    %v1677 = vunpack.c.h.b16 %v481
    %v1678 = vunpack.c.l.b16 %v482
    %v1679 = vunpack.c.h.b16 %v482
    %v1680 = vunpack.c.l.b16 %v483
    %v1681 = vunpack.c.h.b16 %v483
    %v1682 = vunpack.c.l.b16 %v484
    %v1683 = vunpack.c.h.b16 %v484
    %v1684 = vunpack.c.l.b16 %v485
    %v1685 = vunpack.c.h.b16 %v485
    %v1686 = vunpack.c.l.b16 %v486
    %v1687 = vunpack.c.h.b16 %v486
    %v1688 = vunpack.c.l.b16 %v487
    %v1689 = vunpack.c.h.b16 %v487
    %v1690 = vunpack.c.l.b16 %v488
    %v1691 = vunpack.c.h.b16 %v488
    %v1692 = vunpack.c.l.b16 %v489
    %v1693 = vunpack.c.h.b16 %v489
    %v1694 = vunpack.c.l.b16 %v490
    %v1695 = vunpack.c.h.b16 %v490
    %v1696 = vunpack.c.l.b16 %v491
    %v1697 = vunpack.c.h.b16 %v491
    %v1698 = vunpack.c.l.b16 %v492
    %v1699 = vunpack.c.h.b16 %v492
    %v1700 = vunpack.c.l.b16 %v493
    %v1701 = vunpack.c.h.b16 %v493
    %v1702 = vunpack.c.l.b16 %v494
    %v1703 = vunpack.c.h.b16 %v494
    %v1704 = vunpack.c.l.b16 %v495
    %v1705 = vunpack.c.h.b16 %v495
    %v1706 = vunpack.c.l.b16 %v496
    %v1707 = vunpack.c.h.b16 %v496
    %v1708 = vunpack.c.l.b16 %v497
    %v1709 = vunpack.c.h.b16 %v497
    %v1710 = vunpack.c.l.b16 %v498
    %v1711 = vunpack.c.h.b16 %v498
    %v1712 = vunpack.c.l.b16 %v499
    %v1713 = vunpack.c.h.b16 %v499
    %v1714 = vunpack.c.l.b16 %v500
    %v1715 = vunpack.c.h.b16 %v500
    %v1716 = vunpack.c.l.b16 %v501
    %v1717 = vunpack.c.h.b16 %v501
    %v1718 = vunpack.c.l.b16 %v502
    %v1719 = vunpack.c.h.b16 %v502
    %v1720 = vunpack.c.l.b16 %v503
    %v1721 = vunpack.c.h.b16 %v503
    %v1722 = vunpack.c.l.b16 %v504
    %v1723 = vunpack.c.h.b16 %v504
    %v1724 = vunpack.c.l.b16 %v505
    %v1725 = vunpack.c.h.b16 %v505
    %v1726 = vunpack.c.l.b16 %v506
    %v1727 = vunpack.c.h.b16 %v506
    %v1728 = vunpack.c.l.b16 %v507
    %v1729 = vunpack.c.h.b16 %v507
    %v1730 = vunpack.c.l.b16 %v508
    %v1731 = vunpack.c.h.b16 %v508
    %v1732 = vunpack.c.l.b16 %v509
    %v1733 = vunpack.c.h.b16 %v509
    %v1734 = vunpack.c.l.b16 %v510
    %v1735 = vunpack.c.h.b16 %v510
    %v1736 = vunpack.c.l.b16 %v511
    %v1737 = vunpack.c.h.b16 %v511
    %v1738 = vunpack.c.l.b16 %v512
    %v1739 = vunpack.c.h.b16 %v512
    %v1740 = vunpack.c.l.b16 %v513
    %v1741 = vunpack.c.h.b16 %v513
    %v1742 = vunpack.c.l.b16 %v514
    %v1743 = vunpack.c.h.b16 %v514
    %v1744 = vunpack.c.l.b16 %v515
    %v1745 = vunpack.c.h.b16 %v515
    %v1746 = vunpack.c.l.b16 %v516
    %v1747 = vunpack.c.h.b16 %v516
    %v1748 = vunpack.c.l.b16 %v517
    %v1749 = vunpack.c.h.b16 %v517
    %v1750 = vunpack.c.l.b16 %v518
    %v1751 = vunpack.c.h.b16 %v518
    %v1752 = vunpack.c.l.b16 %v519
    %v1753 = vunpack.c.h.b16 %v519
    %v1754 = vunpack.c.l.b16 %v520
    %v1755 = vunpack.c.h.b16 %v520
    %v1756 = vunpack.c.l.b16 %v521
    %v1757 = vunpack.c.h.b16 %v521
    %v1758 = vunpack.c.l.b16 %v522
    %v1759 = vunpack.c.h.b16 %v522
    %v1760 = vunpack.c.l.b16 %v523
    %v1761 = vunpack.c.h.b16 %v523
    %v1762 = vunpack.c.l.b16 %v524
    %v1763 = vunpack.c.h.b16 %v524
    %v1764 = vunpack.c.l.b16 %v525
    %v1765 = vunpack.c.h.b16 %v525
    %v1766 = vunpack.c.l.b16 %v526
    %v1767 = vunpack.c.h.b16 %v526
    %v1768 = vunpack.c.l.b16 %v527
    %v1769 = vunpack.c.h.b16 %v527
    %v1770 = vunpack.c.l.b16 %v528
    %v1771 = vunpack.c.h.b16 %v528
    %v1772 = vunpack.c.l.b16 %v529
    %v1773 = vunpack.c.h.b16 %v529
    %v1774 = vunpack.c.l.b16 %v530
    %v1775 = vunpack.c.h.b16 %v530
    %v1776 = vunpack.c.l.b16 %v531
    %v1777 = vunpack.c.h.b16 %v531
    %v1778 = vunpack.c.l.b16 %v532
    %v1779 = vunpack.c.h.b16 %v532
    %v1780 = vunpack.c.l.b16 %v533
    %v1781 = vunpack.c.h.b16 %v533
    %v1782 = vunpack.c.l.b16 %v534
    %v1783 = vunpack.c.h.b16 %v534
    %v1784 = vunpack.c.l.b16 %v535
    %v1785 = vunpack.c.h.b16 %v535
    %v1786 = vunpack.c.l.b16 %v536
    %v1787 = vunpack.c.h.b16 %v536
    %v1788 = vunpack.c.l.b16 %v537
    %v1789 = vunpack.c.h.b16 %v537
    %v1790 = vunpack.c.l.b16 %v538
    %v1791 = vunpack.c.h.b16 %v538
    %v1792 = vunpack.c.l.b16 %v539
    %v1793 = vunpack.c.h.b16 %v539
    %v1794 = vunpack.c.l.b16 %v540
    %v1795 = vunpack.c.h.b16 %v540
    %v1796 = vunpack.c.l.b16 %v541
    %v1797 = vunpack.c.h.b16 %v541
    %v1798 = vunpack.c.l.b16 %v542
    %v1799 = vunpack.c.h.b16 %v542
    %v1800 = vunpack.c.l.b16 %v543
    %v1801 = vunpack.c.h.b16 %v543
    %v1802 = vunpack.c.l.b16 %v544
    %v1803 = vunpack.c.h.b16 %v544
    %v1804 = vunpack.c.l.b16 %v545
    %v1805 = vunpack.c.h.b16 %v545
    %v1806 = vunpack.c.l.b16 %v546
    %v1807 = vunpack.c.h.b16 %v546
    %v1808 = vunpack.c.l.b16 %v547
    %v1809 = vunpack.c.h.b16 %v547
    %v1810 = vunpack.c.l.b16 %v548
    %v1811 = vunpack.c.h.b16 %v548
    %v1812 = vunpack.c.l.b16 %v549
    %v1813 = vunpack.c.h.b16 %v549
    %v1814 = vunpack.c.l.b16 %v550
    %v1815 = vunpack.c.h.b16 %v550
    %v1816 = vunpack.c.l.b16 %v551
    %v1817 = vunpack.c.h.b16 %v551
    %v1818 = vunpack.c.l.b16 %v552
    %v1819 = vunpack.c.h.b16 %v552
    %v1820 = vunpack.c.l.b16 %v553
    %v1821 = vunpack.c.h.b16 %v553
    %v1822 = vunpack.c.l.b16 %v554
    %v1823 = vunpack.c.h.b16 %v554
    %v1824 = vunpack.c.l.b16 %v555
    %v1825 = vunpack.c.h.b16 %v555
    %v1826 = vunpack.c.l.b16 %v556
    %v1827 = vunpack.c.h.b16 %v556
    %v1828 = vunpack.c.l.b16 %v557
    %v1829 = vunpack.c.h.b16 %v557
    %v1830 = vunpack.c.l.b16 %v558
    %v1831 = vunpack.c.h.b16 %v558
    %v1832 = vunpack.c.l.b16 %v559
    %v1833 = vunpack.c.h.b16 %v559
    %v1834 = vunpack.c.l.b16 %v560
    %v1835 = vunpack.c.h.b16 %v560
    %v1836 = vunpack.c.l.b16 %v561
    %v1837 = vunpack.c.h.b16 %v561
    %v1838 = vunpack.c.l.b16 %v562
    %v1839 = vunpack.c.h.b16 %v562
    %v1840 = vunpack.c.l.b16 %v563
    %v1841 = vunpack.c.h.b16 %v563
    %v1842 = vunpack.c.l.b16 %v564
    %v1843 = vunpack.c.h.b16 %v564
    %v1844 = vunpack.c.l.b16 %v565
    %v1845 = vunpack.c.h.b16 %v565
    %v1846 = vunpack.c.l.b16 %v566
    %v1847 = vunpack.c.h.b16 %v566
    %v1848 = vunpack.c.l.b16 %v567
    %v1849 = vunpack.c.h.b16 %v567
    %v1850 = vunpack.c.l.b16 %v568
    %v1851 = vunpack.c.h.b16 %v568
    %v1852 = vunpack.c.l.b16 %v569
    %v1853 = vunpack.c.h.b16 %v569
    %v1854 = vunpack.c.l.b16 %v570
    %v1855 = vunpack.c.h.b16 %v570
    %v1856 = vunpack.c.l.b16 %v571
    %v1857 = vunpack.c.h.b16 %v571
    %v1858 = vunpack.c.l.b16 %v572
    %v1859 = vunpack.c.h.b16 %v572
    %v1860 = vunpack.c.l.b16 %v573
    %v1861 = vunpack.c.h.b16 %v573
    %v1862 = vunpack.c.l.b16 %v574
    %v1863 = vunpack.c.h.b16 %v574
    %v1864 = vunpack.c.l.b16 %v575
    %v1865 = vunpack.c.h.b16 %v575
    %v1866 = vunpack.c.l.b16 %v576
    %v1867 = vunpack.c.h.b16 %v576
    %v1868 = vunpack.c.l.b16 %v577
    %v1869 = vunpack.c.h.b16 %v577
    %v1870 = vunpack.c.l.b16 %v578
    %v1871 = vunpack.c.h.b16 %v578
    %v1872 = vunpack.c.l.b16 %v579
    %v1873 = vunpack.c.h.b16 %v579
    %v1874 = vunpack.c.l.b16 %v580
    %v1875 = vunpack.c.h.b16 %v580
    %v1876 = vunpack.c.l.b16 %v581
    %v1877 = vunpack.c.h.b16 %v581
    %v1878 = vunpack.c.l.b16 %v582
    %v1879 = vunpack.c.h.b16 %v582
    %v1880 = vunpack.c.l.b16 %v583
    %v1881 = vunpack.c.h.b16 %v583
    %v1882 = vunpack.c.l.b16 %v584
    %v1883 = vunpack.c.h.b16 %v584
    %v1884 = vunpack.c.l.b16 %v585
    %v1885 = vunpack.c.h.b16 %v585
    %v1886 = vunpack.c.l.b16 %v586
    %v1887 = vunpack.c.h.b16 %v586
    %v1888 = vunpack.c.l.b16 %v587
    %v1889 = vunpack.c.h.b16 %v587
    %v1890 = vunpack.c.l.b16 %v588
    %v1891 = vunpack.c.h.b16 %v588
    %v1892 = vunpack.c.l.b16 %v589
    %v1893 = vunpack.c.h.b16 %v589
    %v1894 = vunpack.c.l.b16 %v590
    %v1895 = vunpack.c.h.b16 %v590
    %v1896 = vunpack.c.l.b16 %v591
    %v1897 = vunpack.c.h.b16 %v591
    %v1898 = vunpack.c.l.b16 %v592
    %v1899 = vunpack.c.h.b16 %v592
    %v1900 = vunpack.c.l.b16 %v593
    %v1901 = vunpack.c.h.b16 %v593
    %v1902 = vunpack.c.l.b16 %v594
    %v1903 = vunpack.c.h.b16 %v594
    %v1904 = vunpack.c.l.b16 %v595
    %v1905 = vunpack.c.h.b16 %v595
    %v1906 = vunpack.c.l.b16 %v596
    %v1907 = vunpack.c.h.b16 %v596
    %v1908 = vunpack.c.l.b16 %v597
    %v1909 = vunpack.c.h.b16 %v597
    %v1910 = vunpack.c.l.b16 %v598
    %v1911 = vunpack.c.h.b16 %v598
    %v1912 = vunpack.c.l.b16 %v599
    %v1913 = vunpack.c.h.b16 %v599
    %v1914 = vunpack.c.l.b16 %v600
    %v1915 = vunpack.c.h.b16 %v600
    %v1916 = vunpack.c.l.b16 %v601
    %v1917 = vunpack.c.h.b16 %v601
    %v1918 = vunpack.c.l.b16 %v602
    %v1919 = vunpack.c.h.b16 %v602
    %v1920 = vunpack.c.l.b16 %v603
    %v1921 = vunpack.c.h.b16 %v603
    %v1922 = vunpack.c.l.b16 %v604
    %v1923 = vunpack.c.h.b16 %v604
    %v1924 = vunpack.c.l.b16 %v605
    %v1925 = vunpack.c.h.b16 %v605
    %v1926 = vunpack.c.l.b16 %v606
    %v1927 = vunpack.c.h.b16 %v606
    %v1928 = vunpack.c.l.b16 %v607
    %v1929 = vunpack.c.h.b16 %v607
    %v1930 = vunpack.c.l.b16 %v608
    %v1931 = vunpack.c.h.b16 %v608
    %v1932 = vunpack.c.l.b16 %v609
    %v1933 = vunpack.c.h.b16 %v609
    %v1934 = vunpack.c.l.b16 %v610
    %v1935 = vunpack.c.h.b16 %v610
    %v1936 = vunpack.c.l.b16 %v611
    %v1937 = vunpack.c.h.b16 %v611
    %v1938 = vunpack.c.l.b16 %v612
    %v1939 = vunpack.c.h.b16 %v612
    %v1940 = vunpack.c.l.b16 %v613
    %v1941 = vunpack.c.h.b16 %v613
    %v1942 = vunpack.c.l.b16 %v614
    %v1943 = vunpack.c.h.b16 %v614
    %v1944 = vunpack.c.l.b16 %v615
    %v1945 = vunpack.c.h.b16 %v615
    %v1946 = vunpack.c.l.b16 %v616
    %v1947 = vunpack.c.h.b16 %v616
    %v1948 = vunpack.c.l.b16 %v617
    %v1949 = vunpack.c.h.b16 %v617
    %v1950 = vunpack.c.l.b16 %v618
    %v1951 = vunpack.c.h.b16 %v618
    %v1952 = vunpack.c.l.b16 %v619
    %v1953 = vunpack.c.h.b16 %v619
    %v1954 = vunpack.c.l.b16 %v620
    %v1955 = vunpack.c.h.b16 %v620
    %v1956 = vunpack.c.l.b16 %v621
    %v1957 = vunpack.c.h.b16 %v621
    %v1958 = vunpack.c.l.b16 %v622
    %v1959 = vunpack.c.h.b16 %v622
    %v1960 = vunpack.c.l.b16 %v623
    %v1961 = vunpack.c.h.b16 %v623
    %v1962 = vunpack.c.l.b16 %v624
    %v1963 = vunpack.c.h.b16 %v624
    %v1964 = vunpack.c.l.b16 %v625
    %v1965 = vunpack.c.h.b16 %v625
    %v1966 = vunpack.c.l.b16 %v626
    %v1967 = vunpack.c.h.b16 %v626
    %v1968 = vunpack.c.l.b16 %v627
    %v1969 = vunpack.c.h.b16 %v627
    %v1970 = vunpack.c.l.b16 %v628
    %v1971 = vunpack.c.h.b16 %v628
    %v1972 = vunpack.c.l.b16 %v629
    %v1973 = vunpack.c.h.b16 %v629
    %v1974 = vunpack.c.l.b16 %v630
    %v1975 = vunpack.c.h.b16 %v630
    %v1976 = vunpack.c.l.b16 %v631
    %v1977 = vunpack.c.h.b16 %v631
    %v1978 = vunpack.c.l.b16 %v632
    %v1979 = vunpack.c.h.b16 %v632
    %v1980 = vunpack.c.l.b16 %v633
    %v1981 = vunpack.c.h.b16 %v633
    %v1982 = vunpack.c.l.b16 %v634
    %v1983 = vunpack.c.h.b16 %v634
    %v1984 = vunpack.c.l.b16 %v635
    %v1985 = vunpack.c.h.b16 %v635
    %v1986 = vunpack.c.l.b16 %v636
    %v1987 = vunpack.c.h.b16 %v636
    %v1988 = vunpack.c.l.b16 %v637
    %v1989 = vunpack.c.h.b16 %v637
    %v1990 = vunpack.c.l.b16 %v638
    %v1991 = vunpack.c.h.b16 %v638
    %v1992 = vunpack.c.l.b16 %v639
    %v1993 = vunpack.c.h.b16 %v639
    %v1994 = vunpack.c.l.b16 %v640
    %v1995 = vunpack.c.h.b16 %v640
    %v1996 = vunpack.c.l.b16 %v641
    %v1997 = vunpack.c.h.b16 %v641
    %v1998 = vunpack.c.l.b16 %v642
    %v1999 = vunpack.c.h.b16 %v642
    %v2000 = vunpack.c.l.b16 %v643
    %v2001 = vunpack.c.h.b16 %v643
    %v2002 = vunpack.c.l.b16 %v644
    %v2003 = vunpack.c.h.b16 %v644
    %v2004 = vunpack.c.l.b16 %v645
    %v2005 = vunpack.c.h.b16 %v645
    %v2006 = vunpack.c.l.b16 %v646
    %v2007 = vunpack.c.h.b16 %v646
    %v2008 = vunpack.c.l.b16 %v647
    %v2009 = vunpack.c.h.b16 %v647
    %v2010 = vunpack.c.l.b16 %v648
    %v2011 = vunpack.c.h.b16 %v648
    %v2012 = vunpack.c.l.b16 %v649
    %v2013 = vunpack.c.h.b16 %v649
    %v2014 = vunpack.c.l.b16 %v650
    %v2015 = vunpack.c.h.b16 %v650
    %v2016 = vunpack.c.l.b16 %v651
    %v2017 = vunpack.c.h.b16 %v651
    %v2018 = vunpack.c.l.b16 %v652
    %v2019 = vunpack.c.h.b16 %v652
    %v2020 = vunpack.c.l.b16 %v653
    %v2021 = vunpack.c.h.b16 %v653
    %v2022 = vunpack.c.l.b16 %v654
    %v2023 = vunpack.c.h.b16 %v654
    %v2024 = vunpack.c.l.b16 %v655
    %v2025 = vunpack.c.h.b16 %v655
    %v2026 = vunpack.c.l.b16 %v656
    %v2027 = vunpack.c.h.b16 %v656
    %v2028 = vunpack.c.l.b16 %v657
    %v2029 = vunpack.c.h.b16 %v657
    %v2030 = vunpack.c.l.b16 %v658
    %v2031 = vunpack.c.h.b16 %v658
    %v2032 = vunpack.c.l.b16 %v659
    %v2033 = vunpack.c.h.b16 %v659
    %v2034 = vunpack.c.l.b16 %v660
    %v2035 = vunpack.c.h.b16 %v660
    %v2036 = vunpack.c.l.b16 %v661
    %v2037 = vunpack.c.h.b16 %v661
    %v2038 = vunpack.c.l.b16 %v662
    %v2039 = vunpack.c.h.b16 %v662
    %v2040 = vunpack.c.l.b16 %v663
    %v2041 = vunpack.c.h.b16 %v663
    %v2042 = vunpack.c.l.b16 %v664
    %v2043 = vunpack.c.h.b16 %v664
    %v2044 = vunpack.c.l.b16 %v665
    %v2045 = vunpack.c.h.b16 %v665
    %v2046 = vunpack.c.l.b16 %v666
    %v2047 = vunpack.c.h.b16 %v666
    %v2048 = vunpack.c.l.b16 %v667
    %v2049 = vunpack.c.h.b16 %v667
    %v2050 = vunpack.c.l.b16 %v668
    %v2051 = vunpack.c.h.b16 %v668
    %v2052 = vunpack.c.l.b16 %v669
    %v2053 = vunpack.c.h.b16 %v669
    %v2054 = vunpack.c.l.b16 %v670
    %v2055 = vunpack.c.h.b16 %v670
    %v2056 = vunpack.c.l.b16 %v671
    %v2057 = vunpack.c.h.b16 %v671
    %v2058 = vunpack.c.l.b16 %v672
    %v2059 = vunpack.c.h.b16 %v672
    %v2060 = vunpack.c.l.b16 %v673
    %v2061 = vunpack.c.h.b16 %v673
    %v2062 = vunpack.c.l.b16 %v674
    %v2063 = vunpack.c.h.b16 %v674
    %v2064 = vunpack.c.l.b16 %v675
    %v2065 = vunpack.c.h.b16 %v675
    %v2066 = vunpack.c.l.b16 %v676
    %v2067 = vunpack.c.h.b16 %v676
    %v2068 = vunpack.c.l.b16 %v677
    %v2069 = vunpack.c.h.b16 %v677
    %v2070 = vunpack.c.l.b16 %v678
    %v2071 = vunpack.c.h.b16 %v678
    %v2072 = vunpack.c.l.b16 %v679
    %v2073 = vunpack.c.h.b16 %v679
    %v2074 = vunpack.c.l.b16 %v680
    %v2075 = vunpack.c.h.b16 %v680
    %v2076 = vunpack.c.l.b16 %v681
    %v2077 = vunpack.c.h.b16 %v681
    %v2078 = vunpack.c.l.b16 %v682
    %v2079 = vunpack.c.h.b16 %v682
    %v2080 = vunpack.c.l.b16 %v683
    %v2081 = vunpack.c.h.b16 %v683
    %v2082 = vunpack.c.l.b16 %v684
    %v2083 = vunpack.c.h.b16 %v684
    %v2084 = vunpack.c.l.b16 %v685
    %v2085 = vunpack.c.h.b16 %v685
    %v2086 = vunpack.c.l.b16 %v686
    %v2087 = vunpack.c.h.b16 %v686
    %v2088 = vunpack.c.l.b16 %v687
    %v2089 = vunpack.c.h.b16 %v687
    %v2090 = vunpack.c.l.b16 %v688
    %v2091 = vunpack.c.h.b16 %v688
    %v2092 = vunpack.c.l.b16 %v689
    %v2093 = vunpack.c.h.b16 %v689
    %v2094 = vunpack.c.l.b16 %v690
    %v2095 = vunpack.c.h.b16 %v690
    %v2096 = vunpack.c.l.b16 %v691
    %v2097 = vunpack.c.h.b16 %v691
    %v2098 = vunpack.c.l.b16 %v692
    %v2099 = vunpack.c.h.b16 %v692
    %v2100 = vunpack.c.l.b16 %v693
    %v2101 = vunpack.c.h.b16 %v693
    %v2102 = vunpack.c.l.b16 %v694
    %v2103 = vunpack.c.h.b16 %v694
    %v2104 = vunpack.c.l.b16 %v695
    %v2105 = vunpack.c.h.b16 %v695
    %v2106 = vunpack.c.l.b16 %v696
    %v2107 = vunpack.c.h.b16 %v696
    %v2108 = vunpack.c.l.b16 %v697
    %v2109 = vunpack.c.h.b16 %v697
    %v2110 = vunpack.c.l.b16 %v698
    %v2111 = vunpack.c.h.b16 %v698
    %v2112 = vunpack.c.l.b16 %v699
    %v2113 = vunpack.c.h.b16 %v699
    %v2114 = vunpack.c.l.b16 %v700
    %v2115 = vunpack.c.h.b16 %v700
    %v2116 = vunpack.c.l.b16 %v701
    %v2117 = vunpack.c.h.b16 %v701
    %v2118 = vunpack.c.l.b16 %v702
    %v2119 = vunpack.c.h.b16 %v702
    %v2120 = vunpack.c.l.b16 %v703
    %v2121 = vunpack.c.h.b16 %v703
    %v2122 = vunpack.c.l.b16 %v704
    %v2123 = vunpack.c.h.b16 %v704
    %v2124 = vunpack.c.l.b16 %v705
    %v2125 = vunpack.c.h.b16 %v705
    %v2126 = vunpack.c.l.b16 %v706
    %v2127 = vunpack.c.h.b16 %v706
    %v2128 = vunpack.c.l.b16 %v707
    %v2129 = vunpack.c.h.b16 %v707
    %v2130 = vunpack.c.l.b16 %v708
    %v2131 = vunpack.c.h.b16 %v708
    %v2132 = vunpack.c.l.b16 %v709
    %v2133 = vunpack.c.h.b16 %v709
    %v2134 = vunpack.c.l.b16 %v710
    %v2135 = vunpack.c.h.b16 %v710
    %v2136 = vunpack.c.l.b16 %v711
    %v2137 = vunpack.c.h.b16 %v711
    %v2138 = vunpack.c.l.b16 %v712
    %v2139 = vunpack.c.h.b16 %v712
    %v2140 = vunpack.c.l.b16 %v713
    %v2141 = vunpack.c.h.b16 %v713
    %v2142 = vunpack.c.l.b16 %v714
    %v2143 = vunpack.c.h.b16 %v714
    %v2144 = vunpack.c.l.b16 %v715
    %v2145 = vunpack.c.h.b16 %v715
    %v2146 = vunpack.c.l.b16 %v716
    %v2147 = vunpack.c.h.b16 %v716
    %v2148 = vunpack.c.l.b16 %v717
    %v2149 = vunpack.c.h.b16 %v717
    %v2150 = vunpack.c.l.b16 %v718
    %v2151 = vunpack.c.h.b16 %v718
    %v2152 = vunpack.c.l.b16 %v719
    %v2153 = vunpack.c.h.b16 %v719
    %v2154 = vunpack.c.l.b16 %v720
    %v2155 = vunpack.c.h.b16 %v720
    %v2156 = vunpack.c.l.b16 %v721
    %v2157 = vunpack.c.h.b16 %v721
    %v2158 = vunpack.c.l.b16 %v722
    %v2159 = vunpack.c.h.b16 %v722
    %v2160 = vunpack.c.l.b16 %v723
    %v2161 = vunpack.c.h.b16 %v723
    %v2162 = vunpack.c.l.b16 %v724
    %v2163 = vunpack.c.h.b16 %v724
    %v2164 = vunpack.c.l.b16 %v725
    %v2165 = vunpack.c.h.b16 %v725
    %v2166 = vunpack.c.l.b16 %v726
    %v2167 = vunpack.c.h.b16 %v726
    %v2168 = vunpack.c.l.b16 %v727
    %v2169 = vunpack.c.h.b16 %v727
    %v2170 = vunpack.c.l.b16 %v728
    %v2171 = vunpack.c.h.b16 %v728
    %v2172 = vunpack.c.l.b16 %v729
    %v2173 = vunpack.c.h.b16 %v729
    %v2174 = vunpack.c.l.b16 %v730
    %v2175 = vunpack.c.h.b16 %v730
    %v2176 = vunpack.c.l.b16 %v731
    %v2177 = vunpack.c.h.b16 %v731
    %v2178 = vunpack.c.l.b16 %v732
    %v2179 = vunpack.c.h.b16 %v732
    %v2180 = vunpack.c.l.b16 %v733
    %v2181 = vunpack.c.h.b16 %v733
    %v2182 = vunpack.c.l.b16 %v734
    %v2183 = vunpack.c.h.b16 %v734
    %v2184 = vunpack.c.l.b16 %v735
    %v2185 = vunpack.c.h.b16 %v735
    %v2186 = vunpack.c.l.b16 %v736
    %v2187 = vunpack.c.h.b16 %v736
    %v2188 = vunpack.c.l.b16 %v737
    %v2189 = vunpack.c.h.b16 %v737
    %v2190 = vunpack.c.l.b16 %v738
    %v2191 = vunpack.c.h.b16 %v738
    %v2192 = vunpack.c.l.b16 %v739
    %v2193 = vunpack.c.h.b16 %v739
    %v2194 = vunpack.c.l.b16 %v740
    %v2195 = vunpack.c.h.b16 %v740
    %v2196 = vunpack.c.l.b16 %v741
    %v2197 = vunpack.c.h.b16 %v741
    %v2198 = vunpack.c.l.b16 %v742
    %v2199 = vunpack.c.h.b16 %v742
    %v2200 = vunpack.c.l.b16 %v743
    %v2201 = vunpack.c.h.b16 %v743
    %v2202 = vunpack.c.l.b16 %v744
    %v2203 = vunpack.c.h.b16 %v744
    %v2204 = vunpack.c.l.b16 %v745
    %v2205 = vunpack.c.h.b16 %v745
    %v2206 = vunpack.c.l.b16 %v746
    %v2207 = vunpack.c.h.b16 %v746
    %v2208 = vunpack.c.l.b16 %v747
    %v2209 = vunpack.c.h.b16 %v747
    %v2210 = vunpack.c.l.b16 %v748
    %v2211 = vunpack.c.h.b16 %v748
    %v2212 = vunpack.c.l.b16 %v749
    %v2213 = vunpack.c.h.b16 %v749
    %v2214 = vunpack.c.l.b16 %v750
    %v2215 = vunpack.c.h.b16 %v750
    %v2216 = vunpack.c.l.b16 %v751
    %v2217 = vunpack.c.h.b16 %v751
    %v2218 = vunpack.c.l.b16 %v752
    %v2219 = vunpack.c.h.b16 %v752
    %v2220 = vunpack.c.l.b16 %v753
    %v2221 = vunpack.c.h.b16 %v753
    %v2222 = vunpack.c.l.b16 %v754
    %v2223 = vunpack.c.h.b16 %v754
    %v2224 = vunpack.c.l.b16 %v755
    %v2225 = vunpack.c.h.b16 %v755
    %v2226 = vunpack.c.l.b16 %v756
    %v2227 = vunpack.c.h.b16 %v756
    %v2228 = vunpack.c.l.b16 %v757
    %v2229 = vunpack.c.h.b16 %v757
    %v2230 = vunpack.c.l.b16 %v758
    %v2231 = vunpack.c.h.b16 %v758
    %v2232 = vunpack.c.l.b16 %v759
    %v2233 = vunpack.c.h.b16 %v759
    %v2234 = vunpack.c.l.b16 %v760
    %v2235 = vunpack.c.h.b16 %v760
    %v2236 = vunpack.c.l.b16 %v761
    %v2237 = vunpack.c.h.b16 %v761
    %v2238 = vunpack.c.l.b16 %v762
    %v2239 = vunpack.c.h.b16 %v762
    %v2240 = vunpack.c.l.b16 %v763
    %v2241 = vunpack.c.h.b16 %v763
    %v2242 = vunpack.c.l.b16 %v764
    %v2243 = vunpack.c.h.b16 %v764
    %v2244 = vunpack.c.l.b16 %v765
    %v2245 = vunpack.c.h.b16 %v765
    %v2246 = vunpack.c.l.b16 %v766
    %v2247 = vunpack.c.h.b16 %v766
    %v2248 = vunpack.c.l.b16 %v767
    %v2249 = vunpack.c.h.b16 %v767
    %v2250 = vunpack.c.l.b16 %v768
    %v2251 = vunpack.c.h.b16 %v768
    %v2252 = vunpack.c.l.b16 %v769
    %v2253 = vunpack.c.h.b16 %v769
    %v2254 = vunpack.c.l.b16 %v770
    %v2255 = vunpack.c.h.b16 %v770
    %v2256 = vunpack.c.l.b16 %v771
    %v2257 = vunpack.c.h.b16 %v771
    %v2258 = vunpack.c.l.b16 %v772
    %v2259 = vunpack.c.h.b16 %v772
    %v2260 = vunpack.c.l.b16 %v773
    %v2261 = vunpack.c.h.b16 %v773
    %v2262 = vunpack.c.l.b16 %v774
    %v2263 = vunpack.c.h.b16 %v774
    %v2264 = vunpack.c.l.b16 %v775
    %v2265 = vunpack.c.h.b16 %v775
    %v2266 = vunpack.c.l.b16 %v776
    %v2267 = vunpack.c.h.b16 %v776
    %v2268 = vunpack.c.l.b16 %v777
    %v2269 = vunpack.c.h.b16 %v777
    %v2270 = vunpack.c.l.b16 %v778
    %v2271 = vunpack.c.h.b16 %v778
    %v2272 = vunpack.c.l.b16 %v779
    %v2273 = vunpack.c.h.b16 %v779
    %v2274 = vunpack.c.l.b16 %v780
    %v2275 = vunpack.c.h.b16 %v780
    %v2276 = vunpack.c.l.b16 %v781
    %v2277 = vunpack.c.h.b16 %v781
    %v2278 = vunpack.c.l.b16 %v782
    %v2279 = vunpack.c.h.b16 %v782
    %v2280 = vunpack.c.l.b16 %v783
    %v2281 = vunpack.c.h.b16 %v783
    %v2282 = vunpack.c.l.b16 %v784
    %v2283 = vunpack.c.h.b16 %v784
    %v2284 = vunpack.c.l.b16 %v785
    %v2285 = vunpack.c.h.b16 %v785
    %v2286 = vunpack.c.l.b16 %v786
    %v2287 = vunpack.c.h.b16 %v786
    %v2288 = vunpack.c.l.b16 %v787
    %v2289 = vunpack.c.h.b16 %v787
    %v2290 = vunpack.c.l.b16 %v788
    %v2291 = vunpack.c.h.b16 %v788
    %v2292 = vunpack.c.l.b16 %v789
    %v2293 = vunpack.c.h.b16 %v789
    %v2294 = vunpack.c.l.b16 %v790
    %v2295 = vunpack.c.h.b16 %v790
    %v2296 = vunpack.c.l.b16 %v791
    %v2297 = vunpack.c.h.b16 %v791
    %v2298 = vunpack.c.l.b16 %v792
    %v2299 = vunpack.c.h.b16 %v792
    %v2300 = vunpack.c.l.b16 %v793
    %v2301 = vunpack.c.h.b16 %v793
    %v2302 = vunpack.c.l.b16 %v794
    %v2303 = vunpack.c.h.b16 %v794
    %v2304 = vunpack.c.l.b16 %v795
    %v2305 = vunpack.c.h.b16 %v795
    %v2306 = vunpack.c.l.b16 %v796
    %v2307 = vunpack.c.h.b16 %v796
    %v2308 = vunpack.c.l.b16 %v797
    %v2309 = vunpack.c.h.b16 %v797
    %v2310 = vunpack.c.l.b16 %v798
    %v2311 = vunpack.c.h.b16 %v798
    %v2312 = vunpack.c.l.b16 %v799
    %v2313 = vunpack.c.h.b16 %v799
    %v2314 = vunpack.c.l.b16 %v800
    %v2315 = vunpack.c.h.b16 %v800
    %v2316 = vunpack.c.l.b16 %v801
    %v2317 = vunpack.c.h.b16 %v801
    %v2318 = vunpack.c.l.b16 %v802
    %v2319 = vunpack.c.h.b16 %v802
    %v2320 = vunpack.c.l.b16 %v803
    %v2321 = vunpack.c.h.b16 %v803
    %v2322 = vunpack.c.l.b16 %v804
    %v2323 = vunpack.c.h.b16 %v804
    %v2324 = vunpack.c.l.b16 %v805
    %v2325 = vunpack.c.h.b16 %v805
    %v2326 = vunpack.c.l.b16 %v806
    %v2327 = vunpack.c.h.b16 %v806
    %v2328 = vunpack.c.l.b16 %v807
    %v2329 = vunpack.c.h.b16 %v807
    %v2330 = vunpack.c.l.b16 %v808
    %v2331 = vunpack.c.h.b16 %v808
    %v2332 = vunpack.c.l.b16 %v809
    %v2333 = vunpack.c.h.b16 %v809
    %v2334 = vunpack.c.l.b16 %v810
    %v2335 = vunpack.c.h.b16 %v810
    %v2336 = vunpack.c.l.b16 %v811
    %v2337 = vunpack.c.h.b16 %v811
    %v2338 = vunpack.c.l.b16 %v812
    %v2339 = vunpack.c.h.b16 %v812
    %v2340 = vunpack.c.l.b16 %v813
    %v2341 = vunpack.c.h.b16 %v813
    %v2342 = vunpack.c.l.b16 %v814
    %v2343 = vunpack.c.h.b16 %v814
    %v2344 = vunpack.c.l.b16 %v815
    %v2345 = vunpack.c.h.b16 %v815
    %v2346 = vunpack.c.l.b16 %v816
    %v2347 = vunpack.c.h.b16 %v816
    %v2348 = vunpack.c.l.b16 %v817
    %v2349 = vunpack.c.h.b16 %v817
    %v2350 = vunpack.c.l.b16 %v818
    %v2351 = vunpack.c.h.b16 %v818
    %v2352 = vunpack.c.l.b16 %v819
    %v2353 = vunpack.c.h.b16 %v819
    %v2354 = vunpack.c.l.b16 %v820
    %v2355 = vunpack.c.h.b16 %v820
    %v2356 = vunpack.c.l.b16 %v821
    %v2357 = vunpack.c.h.b16 %v821
    %v2358 = vunpack.c.l.b16 %v822
    %v2359 = vunpack.c.h.b16 %v822
    %v2360 = vunpack.c.l.b16 %v823
    %v2361 = vunpack.c.h.b16 %v823
    %v2362 = vunpack.c.l.b16 %v824
    %v2363 = vunpack.c.h.b16 %v824
    %v2364 = vunpack.c.l.b16 %v825
    %v2365 = vunpack.c.h.b16 %v825
    %v2366 = vunpack.c.l.b16 %v826
    %v2367 = vunpack.c.h.b16 %v826
    %v2368 = vunpack.c.l.b16 %v827
    %v2369 = vunpack.c.h.b16 %v827
    %v2370 = vunpack.c.l.b16 %v828
    %v2371 = vunpack.c.h.b16 %v828
    %v2372 = vunpack.c.l.b16 %v829
    %v2373 = vunpack.c.h.b16 %v829
    %v2374 = vunpack.c.l.b16 %v830
    %v2375 = vunpack.c.h.b16 %v830
    %v2376 = vunpack.c.l.b16 %v831
    %v2377 = vunpack.c.h.b16 %v831
    %v2378 = vunpack.c.l.b16 %v832
    %v2379 = vunpack.c.h.b16 %v832
    %v2380 = vunpack.c.l.b16 %v833
    %v2381 = vunpack.c.h.b16 %v833
    %v2382 = vunpack.c.l.b16 %v834
    %v2383 = vunpack.c.h.b16 %v834
    %v2384 = vunpack.c.l.b16 %v835
    %v2385 = vunpack.c.h.b16 %v835
    %v2386 = vunpack.c.l.b16 %v836
    %v2387 = vunpack.c.h.b16 %v836
    %v2388 = vunpack.c.l.b16 %v837
    %v2389 = vunpack.c.h.b16 %v837
    %v2390 = vunpack.c.l.b16 %v838
    %v2391 = vunpack.c.h.b16 %v838
    %v2392 = vunpack.c.l.b16 %v839
    %v2393 = vunpack.c.h.b16 %v839
    %v2394 = vunpack.c.l.b16 %v840
    %v2395 = vunpack.c.h.b16 %v840
    %v2396 = vunpack.c.l.b16 %v841
    %v2397 = vunpack.c.h.b16 %v841
    %v2398 = vunpack.c.l.b16 %v842
    %v2399 = vunpack.c.h.b16 %v842
    %v2400 = vunpack.c.l.b16 %v843
    %v2401 = vunpack.c.h.b16 %v843
    %v2402 = vunpack.c.l.b16 %v844
    %v2403 = vunpack.c.h.b16 %v844
    %v2404 = vunpack.c.l.b16 %v845
    %v2405 = vunpack.c.h.b16 %v845
    %v2406 = vunpack.c.l.b16 %v846
    %v2407 = vunpack.c.h.b16 %v846
    %v2408 = vunpack.c.l.b16 %v847
    %v2409 = vunpack.c.h.b16 %v847
    %v2410 = vunpack.c.l.b16 %v848
    %v2411 = vunpack.c.h.b16 %v848
    %v2412 = vunpack.c.l.b16 %v849
    %v2413 = vunpack.c.h.b16 %v849
    %v2414 = vunpack.c.l.b16 %v850
    %v2415 = vunpack.c.h.b16 %v850
    %v2416 = vunpack.c.l.b16 %v851
    %v2417 = vunpack.c.h.b16 %v851
    %v2418 = vunpack.c.l.b16 %v852
    %v2419 = vunpack.c.h.b16 %v852
    %v2420 = vunpack.c.l.b16 %v853
    %v2421 = vunpack.c.h.b16 %v853
    %v2422 = vunpack.c.l.b16 %v854
    %v2423 = vunpack.c.h.b16 %v854
    %v2424 = vunpack.c.l.b16 %v855
    %v2425 = vunpack.c.h.b16 %v855
    %v2426 = vunpack.c.l.b16 %v856
    %v2427 = vunpack.c.h.b16 %v856
    %v2428 = vunpack.c.l.b16 %v857
    %v2429 = vunpack.c.h.b16 %v857
    %v2430 = vunpack.c.l.b16 %v858
    %v2431 = vunpack.c.h.b16 %v858
    %v2432 = vunpack.c.l.b16 %v859
    %v2433 = vunpack.c.h.b16 %v859
    %v2434 = vunpack.c.l.b16 %v860
    %v2435 = vunpack.c.h.b16 %v860
    %v2436 = vunpack.c.l.b16 %v861
    %v2437 = vunpack.c.h.b16 %v861
    %v2438 = vunpack.c.l.b16 %v862
    %v2439 = vunpack.c.h.b16 %v862
    %v2440 = vunpack.c.l.b16 %v863
    %v2441 = vunpack.c.h.b16 %v863
    %v2442 = vunpack.c.l.b16 %v864
    %v2443 = vunpack.c.h.b16 %v864
    %v2444 = vunpack.c.l.b16 %v865
    %v2445 = vunpack.c.h.b16 %v865
    %v2446 = vunpack.c.l.b16 %v866
    %v2447 = vunpack.c.h.b16 %v866
    %v2448 = vunpack.c.l.b16 %v867
    %v2449 = vunpack.c.h.b16 %v867
    %v2450 = vunpack.c.l.b16 %v868
    %v2451 = vunpack.c.h.b16 %v868
    %v2452 = vunpack.c.l.b16 %v869
    %v2453 = vunpack.c.h.b16 %v869
    %v2454 = vunpack.c.l.b16 %v870
    %v2455 = vunpack.c.h.b16 %v870
    %v2456 = vunpack.c.l.b16 %v871
    %v2457 = vunpack.c.h.b16 %v871
    %v2458 = vunpack.c.l.b16 %v872
    %v2459 = vunpack.c.h.b16 %v872
    %v2460 = vunpack.c.l.b16 %v873
    %v2461 = vunpack.c.h.b16 %v873
    %v2462 = vunpack.c.l.b16 %v874
    %v2463 = vunpack.c.h.b16 %v874
    %v2464 = vunpack.c.l.b16 %v875
    %v2465 = vunpack.c.h.b16 %v875
    %v2466 = vunpack.c.l.b16 %v876
    %v2467 = vunpack.c.h.b16 %v876
    %v2468 = vunpack.c.l.b16 %v877
    %v2469 = vunpack.c.h.b16 %v877
    %v2470 = vunpack.c.l.b16 %v878
    %v2471 = vunpack.c.h.b16 %v878
    %v2472 = vunpack.c.l.b16 %v879
    %v2473 = vunpack.c.h.b16 %v879
    %v2474 = vunpack.c.l.b16 %v880
    %v2475 = vunpack.c.h.b16 %v880
    %v2476 = vunpack.c.l.b16 %v881
    %v2477 = vunpack.c.h.b16 %v881
    %v2478 = vunpack.c.l.b16 %v882
    %v2479 = vunpack.c.h.b16 %v882
    %v2480 = vunpack.c.l.b16 %v883
    %v2481 = vunpack.c.h.b16 %v883
    %v2482 = vunpack.c.l.b16 %v884
    %v2483 = vunpack.c.h.b16 %v884
    %v2484 = vunpack.c.l.b16 %v885
    %v2485 = vunpack.c.h.b16 %v885
    %v2486 = vunpack.c.l.b16 %v886
    %v2487 = vunpack.c.h.b16 %v886
    %v2488 = vunpack.c.l.b16 %v887
    %v2489 = vunpack.c.h.b16 %v887
    %v2490 = vunpack.c.l.b16 %v888
    %v2491 = vunpack.c.h.b16 %v888
    %v2492 = vunpack.c.l.b16 %v889
    %v2493 = vunpack.c.h.b16 %v889
    %v2494 = vunpack.c.l.b16 %v890
    %v2495 = vunpack.c.h.b16 %v890
    %v2496 = vunpack.c.l.b16 %v891
    %v2497 = vunpack.c.h.b16 %v891
    %v2498 = vunpack.c.l.b16 %v892
    %v2499 = vunpack.c.h.b16 %v892
    %v2500 = vunpack.c.l.b16 %v893
    %v2501 = vunpack.c.h.b16 %v893
    %v2502 = vunpack.c.l.b16 %v894
    %v2503 = vunpack.c.h.b16 %v894
    %v2504 = vunpack.c.l.b16 %v895
    %v2505 = vunpack.c.h.b16 %v895
    %v2506 = vunpack.c.l.b16 %v896
    %v2507 = vunpack.c.h.b16 %v896
    %v2508 = vunpack.c.l.b16 %v897
    %v2509 = vunpack.c.h.b16 %v897
    %v2510 = vunpack.c.l.b16 %v898
    %v2511 = vunpack.c.h.b16 %v898
    %v2512 = vunpack.c.l.b16 %v899
    %v2513 = vunpack.c.h.b16 %v899
    %v2514 = vunpack.c.l.b16 %v900
    %v2515 = vunpack.c.h.b16 %v900
    %v2516 = vunpack.c.l.b16 %v901
    %v2517 = vunpack.c.h.b16 %v901
    %v2518 = vunpack.c.l.b16 %v902
    %v2519 = vunpack.c.h.b16 %v902
    %v2520 = vunpack.c.l.b16 %v903
    %v2521 = vunpack.c.h.b16 %v903
    %v2522 = vunpack.c.l.b16 %v904
    %v2523 = vunpack.c.h.b16 %v904
    %v2524 = vunpack.c.l.b16 %v905
    %v2525 = vunpack.c.h.b16 %v905
    %v2526 = vunpack.c.l.b16 %v906
    %v2527 = vunpack.c.h.b16 %v906
    %v2528 = vunpack.c.l.b16 %v907
    %v2529 = vunpack.c.h.b16 %v907
    %v2530 = vunpack.c.l.b16 %v908
    %v2531 = vunpack.c.h.b16 %v908
    %v2532 = vunpack.c.l.b16 %v909
    %v2533 = vunpack.c.h.b16 %v909
    %v2534 = vunpack.c.l.b16 %v910
    %v2535 = vunpack.c.h.b16 %v910
    %v2536 = vunpack.c.l.b16 %v911
    %v2537 = vunpack.c.h.b16 %v911
    %v2538 = vunpack.c.l.b16 %v912
    %v2539 = vunpack.c.h.b16 %v912
    %v2540 = vunpack.c.l.b16 %v913
    %v2541 = vunpack.c.h.b16 %v913
    %v2542 = vunpack.c.l.b16 %v914
    %v2543 = vunpack.c.h.b16 %v914
    %v2544 = vunpack.c.l.b16 %v915
    %v2545 = vunpack.c.h.b16 %v915
    %v2546 = vunpack.c.l.b16 %v916
    %v2547 = vunpack.c.h.b16 %v916
    %v2548 = vunpack.c.l.b16 %v917
    %v2549 = vunpack.c.h.b16 %v917
    %v2550 = vunpack.c.l.b16 %v918
    %v2551 = vunpack.c.h.b16 %v918
    %v2552 = vunpack.c.l.b16 %v919
    %v2553 = vunpack.c.h.b16 %v919
    %v2554 = vunpack.c.l.b16 %v920
    %v2555 = vunpack.c.h.b16 %v920
    %v2556 = vunpack.c.l.b16 %v921
    %v2557 = vunpack.c.h.b16 %v921
    %v2558 = vunpack.c.l.b16 %v922
    %v2559 = vunpack.c.h.b16 %v922
    %v2560 = vunpack.c.l.b16 %v923
    %v2561 = vunpack.c.h.b16 %v923
    %v2562 = vunpack.c.l.b16 %v924
    %v2563 = vunpack.c.h.b16 %v924
    %v2564 = vunpack.c.l.b16 %v925
    %v2565 = vunpack.c.h.b16 %v925
    %v2566 = vunpack.c.l.b16 %v926
    %v2567 = vunpack.c.h.b16 %v926
    %v2568 = vunpack.c.l.b16 %v927
    %v2569 = vunpack.c.h.b16 %v927
    %v2570 = vunpack.c.l.b16 %v928
    %v2571 = vunpack.c.h.b16 %v928
    %v2572 = vunpack.c.l.b16 %v929
    %v2573 = vunpack.c.h.b16 %v929
    %v2574 = vunpack.c.l.b16 %v930
    %v2575 = vunpack.c.h.b16 %v930
    %v2576 = vunpack.c.l.b16 %v931
    %v2577 = vunpack.c.h.b16 %v931
    %v2578 = vunpack.c.l.b16 %v932
    %v2579 = vunpack.c.h.b16 %v932
    %v2580 = vunpack.c.l.b16 %v933
    %v2581 = vunpack.c.h.b16 %v933
    %v2582 = vunpack.c.l.b16 %v934
    %v2583 = vunpack.c.h.b16 %v934
    %v2584 = vunpack.c.l.b16 %v935
    %v2585 = vunpack.c.h.b16 %v935
    %v2586 = vunpack.c.l.b16 %v936
    %v2587 = vunpack.c.h.b16 %v936
    %v2588 = vunpack.c.l.b16 %v937
    %v2589 = vunpack.c.h.b16 %v937
    %v2590 = vunpack.c.l.b16 %v938
    %v2591 = vunpack.c.h.b16 %v938
    %v2592 = vunpack.c.l.b16 %v939
    %v2593 = vunpack.c.h.b16 %v939
    %v2594 = vunpack.c.l.b16 %v940
    %v2595 = vunpack.c.h.b16 %v940
    %v2596 = vunpack.c.l.b16 %v941
    %v2597 = vunpack.c.h.b16 %v941
    %v2598 = vunpack.c.l.b16 %v942
    %v2599 = vunpack.c.h.b16 %v942
    %v2600 = vunpack.c.l.b16 %v943
    %v2601 = vunpack.c.h.b16 %v943
    %v2602 = vunpack.c.l.b16 %v944
    %v2603 = vunpack.c.h.b16 %v944
    %v2604 = vunpack.c.l.b16 %v945
    %v2605 = vunpack.c.h.b16 %v945
    %v2606 = vunpack.c.l.b16 %v946
    %v2607 = vunpack.c.h.b16 %v946
    %v2608 = vunpack.c.l.b16 %v947
    %v2609 = vunpack.c.h.b16 %v947
    %v2610 = vunpack.c.l.b16 %v948
    %v2611 = vunpack.c.h.b16 %v948
    %v2612 = vunpack.c.l.b16 %v949
    %v2613 = vunpack.c.h.b16 %v949
    %v2614 = vunpack.c.l.b16 %v950
    %v2615 = vunpack.c.h.b16 %v950
    %v2616 = vunpack.c.l.b16 %v951
    %v2617 = vunpack.c.h.b16 %v951
    %v2618 = vunpack.c.l.b16 %v952
    %v2619 = vunpack.c.h.b16 %v952
    %v2620 = vunpack.c.l.b16 %v953
    %v2621 = vunpack.c.h.b16 %v953
    %v2622 = vunpack.c.l.b16 %v954
    %v2623 = vunpack.c.h.b16 %v954
    %v2624 = vunpack.c.l.b16 %v955
    %v2625 = vunpack.c.h.b16 %v955
    %v2626 = vunpack.c.l.b16 %v956
    %v2627 = vunpack.c.h.b16 %v956
    %v2628 = vunpack.c.l.b16 %v957
    %v2629 = vunpack.c.h.b16 %v957
    %v2630 = vunpack.c.l.b16 %v958
    %v2631 = vunpack.c.h.b16 %v958
    %v2632 = vunpack.c.l.b16 %v959
    %v2633 = vunpack.c.h.b16 %v959
    %v2634 = vunpack.c.l.b16 %v960
    %v2635 = vunpack.c.h.b16 %v960
    %v2636 = vunpack.c.l.b16 %v961
    %v2637 = vunpack.c.h.b16 %v961
    %v2638 = vunpack.c.l.b16 %v962
    %v2639 = vunpack.c.h.b16 %v962
    %v2640 = vunpack.c.l.b16 %v963
    %v2641 = vunpack.c.h.b16 %v963
    %v2642 = vunpack.c.l.b16 %v964
    %v2643 = vunpack.c.h.b16 %v964
    %v2644 = vunpack.c.l.b16 %v965
    %v2645 = vunpack.c.h.b16 %v965
    %v2646 = vunpack.c.l.b16 %v966
    %v2647 = vunpack.c.h.b16 %v966
    %v2648 = vunpack.c.l.b16 %v967
    %v2649 = vunpack.c.h.b16 %v967
    %v2650 = vunpack.c.l.b16 %v968
    %v2651 = vunpack.c.h.b16 %v968
    %v2652 = vunpack.c.l.b16 %v969
    %v2653 = vunpack.c.h.b16 %v969
    %v2654 = vunpack.c.l.b16 %v970
    %v2655 = vunpack.c.h.b16 %v970
    %v2656 = vunpack.c.l.b16 %v971
    %v2657 = vunpack.c.h.b16 %v971
    %v2658 = vunpack.c.l.b16 %v972
    %v2659 = vunpack.c.h.b16 %v972
    %v2660 = vunpack.c.l.b16 %v973
    %v2661 = vunpack.c.h.b16 %v973
    %v2662 = vunpack.c.l.b16 %v974
    %v2663 = vunpack.c.h.b16 %v974
    %v2664 = vunpack.c.l.b16 %v975
    %v2665 = vunpack.c.h.b16 %v975
    %v2666 = vunpack.c.l.b16 %v976
    %v2667 = vunpack.c.h.b16 %v976
    %v2668 = vunpack.c.l.b16 %v977
    %v2669 = vunpack.c.h.b16 %v977
    %v2670 = vunpack.c.l.b16 %v978
    %v2671 = vunpack.c.h.b16 %v978
    %v2672 = vunpack.c.l.b16 %v979
    %v2673 = vunpack.c.h.b16 %v979
    %v2674 = vunpack.c.l.b16 %v980
    %v2675 = vunpack.c.h.b16 %v980
    %v2676 = vunpack.c.l.b16 %v981
    %v2677 = vunpack.c.h.b16 %v981
    %v2678 = vunpack.c.l.b16 %v982
    %v2679 = vunpack.c.h.b16 %v982
    %v2680 = vunpack.c.l.b16 %v983
    %v2681 = vunpack.c.h.b16 %v983
    %v2682 = vunpack.c.l.b16 %v984
    %v2683 = vunpack.c.h.b16 %v984
    %v2684 = vunpack.c.l.b16 %v985
    %v2685 = vunpack.c.h.b16 %v985
    %v2686 = vunpack.c.l.b16 %v986
    %v2687 = vunpack.c.h.b16 %v986
    %v2688 = vunpack.c.l.b16 %v987
    %v2689 = vunpack.c.h.b16 %v987
    %v2690 = vunpack.c.l.b16 %v988
    %v2691 = vunpack.c.h.b16 %v988
    %v2692 = vunpack.c.l.b16 %v989
    %v2693 = vunpack.c.h.b16 %v989
    %v2694 = vunpack.c.l.b16 %v990
    %v2695 = vunpack.c.h.b16 %v990
    %v2696 = vunpack.c.l.b16 %v991
    %v2697 = vunpack.c.h.b16 %v991
    %v2698 = vunpack.c.l.b16 %v992
    %v2699 = vunpack.c.h.b16 %v992
    %v2700 = vunpack.c.l.b16 %v993
    %v2701 = vunpack.c.h.b16 %v993
    %v2702 = vunpack.c.l.b16 %v994
    %v2703 = vunpack.c.h.b16 %v994
    %v2704 = vunpack.c.l.b16 %v995
    %v2705 = vunpack.c.h.b16 %v995
    %v2706 = vunpack.c.l.b16 %v996
    %v2707 = vunpack.c.h.b16 %v996
    %v2708 = vunpack.c.l.b16 %v997
    %v2709 = vunpack.c.h.b16 %v997
    %v2710 = vunpack.c.l.b16 %v998
    %v2711 = vunpack.c.h.b16 %v998
    %v2712 = vunpack.c.l.b16 %v999
    %v2713 = vunpack.c.h.b16 %v999
    %v2714 = vunpack.c.l.b16 %v1000
    %v2715 = vunpack.c.h.b16 %v1000
    %v2716 = vunpack.c.l.b16 %v1001
    %v2717 = vunpack.c.h.b16 %v1001
    %v2718 = vunpack.c.l.b16 %v1002
    %v2719 = vunpack.c.h.b16 %v1002
    %v2720 = vunpack.c.l.b16 %v1003
    %v2721 = vunpack.c.h.b16 %v1003
    %v2722 = vunpack.c.l.b16 %v1004
    %v2723 = vunpack.c.h.b16 %v1004
    %v2724 = vunpack.c.l.b16 %v1005
    %v2725 = vunpack.c.h.b16 %v1005
    %v2726 = vunpack.c.l.b16 %v1006
    %v2727 = vunpack.c.h.b16 %v1006
    %v2728 = vunpack.c.l.b16 %v1007
    %v2729 = vunpack.c.h.b16 %v1007
    %v2730 = vunpack.c.l.b16 %v1008
    %v2731 = vunpack.c.h.b16 %v1008
    %v2732 = vunpack.c.l.b16 %v1009
    %v2733 = vunpack.c.h.b16 %v1009
    %v2734 = vunpack.c.l.b16 %v1010
    %v2735 = vunpack.c.h.b16 %v1010
    %v2736 = vunpack.c.l.b16 %v1011
    %v2737 = vunpack.c.h.b16 %v1011
    %v2738 = vunpack.c.l.b16 %v1012
    %v2739 = vunpack.c.h.b16 %v1012
    %v2740 = vunpack.c.l.b16 %v1013
    %v2741 = vunpack.c.h.b16 %v1013
    %v2742 = vunpack.c.l.b16 %v1014
    %v2743 = vunpack.c.h.b16 %v1014
    %v2744 = vunpack.c.l.b16 %v1015
    %v2745 = vunpack.c.h.b16 %v1015
    %v2746 = vunpack.c.l.b16 %v1016
    %v2747 = vunpack.c.h.b16 %v1016
    %v2748 = vunpack.c.l.b16 %v1017
    %v2749 = vunpack.c.h.b16 %v1017
    %v2750 = vunpack.c.l.b16 %v1018
    %v2751 = vunpack.c.h.b16 %v1018
    %v2752 = vunpack.c.l.b16 %v1019
    %v2753 = vunpack.c.h.b16 %v1019
    %v2754 = vunpack.c.l.b16 %v1020
    %v2755 = vunpack.c.h.b16 %v1020
    %v2756 = vunpack.c.l.b16 %v1021
    %v2757 = vunpack.c.h.b16 %v1021
    %v2758 = vunpack.c.l.b16 %v1022
    %v2759 = vunpack.c.h.b16 %v1022
    %v2760 = vunpack.c.l.b16 %v1023
    %v2761 = vunpack.c.h.b16 %v1023
    %v2762 = vunpack.c.l.b16 %v1024
    %v2763 = vunpack.c.h.b16 %v1024
    %v2764 = vunpack.c.l.b16 %v1025
    %v2765 = vunpack.c.h.b16 %v1025
    %v2766 = vunpack.c.l.b16 %v1026
    %v2767 = vunpack.c.h.b16 %v1026
    %v2768 = vunpack.c.l.b16 %v1027
    %v2769 = vunpack.c.h.b16 %v1027
    %v2770 = vunpack.c.l.b16 %v1028
    %v2771 = vunpack.c.h.b16 %v1028
    %v2772 = vunpack.c.l.b16 %v1029
    %v2773 = vunpack.c.h.b16 %v1029
    %v2774 = vunpack.c.l.b16 %v1030
    %v2775 = vunpack.c.h.b16 %v1030
    %v2776 = vunpack.c.l.b16 %v1031
    %v2777 = vunpack.c.h.b16 %v1031
    %v2778 = vunpack.c.l.b16 %v1032
    %v2779 = vunpack.c.h.b16 %v1032
    %v2780 = vunpack.c.l.b16 %v1033
    %v2781 = vunpack.c.h.b16 %v1033
    %v2782 = vunpack.c.l.b16 %v1034
    %v2783 = vunpack.c.h.b16 %v1034
    %v2784 = vunpack.c.l.b16 %v1035
    %v2785 = vunpack.c.h.b16 %v1035
    %v2786 = vunpack.c.l.b16 %v1036
    %v2787 = vunpack.c.h.b16 %v1036
    %v2788 = vunpack.c.l.b16 %v1037
    %v2789 = vunpack.c.h.b16 %v1037
    %v2790 = vunpack.c.l.b16 %v1038
    %v2791 = vunpack.c.h.b16 %v1038
    %v2792 = vunpack.c.l.b16 %v1039
    %v2793 = vunpack.c.h.b16 %v1039
    %v2794 = vunpack.c.l.b16 %v1040
    %v2795 = vunpack.c.h.b16 %v1040
    %v2796 = vunpack.c.l.b16 %v1041
    %v2797 = vunpack.c.h.b16 %v1041
    %v2798 = vunpack.c.l.b16 %v1042
    %v2799 = vunpack.c.h.b16 %v1042
    %v2800 = vunpack.c.l.b16 %v1043
    %v2801 = vunpack.c.h.b16 %v1043
    %v2802 = vunpack.c.l.b16 %v1044
    %v2803 = vunpack.c.h.b16 %v1044
    %v2804 = vunpack.c.l.b16 %v1045
    %v2805 = vunpack.c.h.b16 %v1045
    %v2806 = vpack.c.b16 %v1660, %v1654
    %v2807 = vpack.c.b16 %v1661, %v1655
    %v2808 = vpack.c.b16 %v1662, %v1656
    %v2809 = vpack.c.b16 %v1663, %v1657
    %v2810 = vpack.c.b16 %v1664, %v1658
    %v2811 = vpack.c.b16 %v1665, %v1659
    %v2812 = vpack.c.b16 %v1672, %v1666
    %v2813 = vpack.c.b16 %v1673, %v1667
    %v2814 = vpack.c.b16 %v1674, %v1668
    %v2815 = vpack.c.b16 %v1675, %v1669
    %v2816 = vpack.c.b16 %v1676, %v1670
    %v2817 = vpack.c.b16 %v1677, %v1671
    %v2818 = vpack.c.b16 %v1684, %v1678
    %v2819 = vpack.c.b16 %v1685, %v1679
    %v2820 = vpack.c.b16 %v1686, %v1680
    %v2821 = vpack.c.b16 %v1687, %v1681
    %v2822 = vpack.c.b16 %v1688, %v1682
    %v2823 = vpack.c.b16 %v1689, %v1683
    %v2824 = vpack.c.b16 %v1696, %v1690
    %v2825 = vpack.c.b16 %v1697, %v1691
    %v2826 = vpack.c.b16 %v1698, %v1692
    %v2827 = vpack.c.b16 %v1699, %v1693
    %v2828 = vpack.c.b16 %v1700, %v1694
    %v2829 = vpack.c.b16 %v1701, %v1695
    %v2830 = vpack.c.b16 %v1708, %v1702
    %v2831 = vpack.c.b16 %v1709, %v1703
    %v2832 = vpack.c.b16 %v1710, %v1704
    %v2833 = vpack.c.b16 %v1711, %v1705
    %v2834 = vpack.c.b16 %v1712, %v1706
    %v2835 = vpack.c.b16 %v1713, %v1707
    %v2836 = vpack.c.b16 %v1720, %v1714
    %v2837 = vpack.c.b16 %v1721, %v1715
    %v2838 = vpack.c.b16 %v1722, %v1716
    %v2839 = vpack.c.b16 %v1723, %v1717
    %v2840 = vpack.c.b16 %v1724, %v1718
    %v2841 = vpack.c.b16 %v1725, %v1719
    %v2842 = vpack.c.b16 %v1732, %v1726
    %v2843 = vpack.c.b16 %v1733, %v1727
    %v2844 = vpack.c.b16 %v1734, %v1728
    %v2845 = vpack.c.b16 %v1735, %v1729
    %v2846 = vpack.c.b16 %v1736, %v1730
    %v2847 = vpack.c.b16 %v1737, %v1731
    %v2848 = vpack.c.b16 %v1744, %v1738
    %v2849 = vpack.c.b16 %v1745, %v1739
    %v2850 = vpack.c.b16 %v1746, %v1740
    %v2851 = vpack.c.b16 %v1747, %v1741
    %v2852 = vpack.c.b16 %v1748, %v1742
    %v2853 = vpack.c.b16 %v1749, %v1743
    %v2854 = vpack.c.b16 %v1756, %v1750
    %v2855 = vpack.c.b16 %v1757, %v1751
    %v2856 = vpack.c.b16 %v1758, %v1752
    %v2857 = vpack.c.b16 %v1759, %v1753
    %v2858 = vpack.c.b16 %v1760, %v1754
    %v2859 = vpack.c.b16 %v1761, %v1755
    %v2860 = vpack.c.b16 %v1768, %v1762
    %v2861 = vpack.c.b16 %v1769, %v1763
    %v2862 = vpack.c.b16 %v1770, %v1764
    %v2863 = vpack.c.b16 %v1771, %v1765
    %v2864 = vpack.c.b16 %v1772, %v1766
    %v2865 = vpack.c.b16 %v1773, %v1767
    %v2866 = vpack.c.b16 %v1780, %v1774
    %v2867 = vpack.c.b16 %v1781, %v1775
    %v2868 = vpack.c.b16 %v1782, %v1776
    %v2869 = vpack.c.b16 %v1783, %v1777
    %v2870 = vpack.c.b16 %v1784, %v1778
    %v2871 = vpack.c.b16 %v1785, %v1779
    %v2872 = vpack.c.b16 %v1792, %v1786
    %v2873 = vpack.c.b16 %v1793, %v1787
    %v2874 = vpack.c.b16 %v1794, %v1788
    %v2875 = vpack.c.b16 %v1795, %v1789
    %v2876 = vpack.c.b16 %v1796, %v1790
    %v2877 = vpack.c.b16 %v1797, %v1791
    %v2878 = vpack.c.b16 %v1804, %v1798
    %v2879 = vpack.c.b16 %v1805, %v1799
    %v2880 = vpack.c.b16 %v1806, %v1800
    %v2881 = vpack.c.b16 %v1807, %v1801
    %v2882 = vpack.c.b16 %v1808, %v1802
    %v2883 = vpack.c.b16 %v1809, %v1803
    %v2884 = vpack.c.b16 %v1816, %v1810
    %v2885 = vpack.c.b16 %v1817, %v1811
    %v2886 = vpack.c.b16 %v1818, %v1812
    %v2887 = vpack.c.b16 %v1819, %v1813
    %v2888 = vpack.c.b16 %v1820, %v1814
    %v2889 = vpack.c.b16 %v1821, %v1815
    %v2890 = vpack.c.b16 %v1828, %v1822
    %v2891 = vpack.c.b16 %v1829, %v1823
    %v2892 = vpack.c.b16 %v1830, %v1824
    %v2893 = vpack.c.b16 %v1831, %v1825
    %v2894 = vpack.c.b16 %v1832, %v1826
    %v2895 = vpack.c.b16 %v1833, %v1827
    %v2896 = vpack.c.b16 %v1840, %v1834
    %v2897 = vpack.c.b16 %v1841, %v1835
    %v2898 = vpack.c.b16 %v1842, %v1836
    %v2899 = vpack.c.b16 %v1843, %v1837
    %v2900 = vpack.c.b16 %v1844, %v1838
    %v2901 = vpack.c.b16 %v1845, %v1839
    %v2902 = vpack.c.b16 %v1852, %v1846
    %v2903 = vpack.c.b16 %v1853, %v1847
    %v2904 = vpack.c.b16 %v1854, %v1848
    %v2905 = vpack.c.b16 %v1855, %v1849
    %v2906 = vpack.c.b16 %v1856, %v1850
    %v2907 = vpack.c.b16 %v1857, %v1851
    %v2908 = vpack.c.b16 %v1864, %v1858
    %v2909 = vpack.c.b16 %v1865, %v1859
    %v2910 = vpack.c.b16 %v1866, %v1860
    %v2911 = vpack.c.b16 %v1867, %v1861
    %v2912 = vpack.c.b16 %v1868, %v1862
    %v2913 = vpack.c.b16 %v1869, %v1863
    %v2914 = vpack.c.b16 %v1876, %v1870
    %v2915 = vpack.c.b16 %v1877, %v1871
    %v2916 = vpack.c.b16 %v1878, %v1872
    %v2917 = vpack.c.b16 %v1879, %v1873
    %v2918 = vpack.c.b16 %v1880, %v1874
    %v2919 = vpack.c.b16 %v1881, %v1875
    %v2920 = vpack.c.b16 %v1888, %v1882
    %v2921 = vpack.c.b16 %v1889, %v1883
    %v2922 = vpack.c.b16 %v1890, %v1884
    %v2923 = vpack.c.b16 %v1891, %v1885
    %v2924 = vpack.c.b16 %v1892, %v1886
    %v2925 = vpack.c.b16 %v1893, %v1887
    %v2926 = vpack.c.b16 %v1900, %v1894
    %v2927 = vpack.c.b16 %v1901, %v1895
    %v2928 = vpack.c.b16 %v1902, %v1896
    %v2929 = vpack.c.b16 %v1903, %v1897
    %v2930 = vpack.c.b16 %v1904, %v1898
    %v2931 = vpack.c.b16 %v1905, %v1899
    %v2932 = vpack.c.b16 %v1912, %v1906
    %v2933 = vpack.c.b16 %v1913, %v1907
    %v2934 = vpack.c.b16 %v1914, %v1908
    %v2935 = vpack.c.b16 %v1915, %v1909
    %v2936 = vpack.c.b16 %v1916, %v1910
    %v2937 = vpack.c.b16 %v1917, %v1911
    %v2938 = vpack.c.b16 %v1924, %v1918
    %v2939 = vpack.c.b16 %v1925, %v1919
    %v2940 = vpack.c.b16 %v1926, %v1920
    %v2941 = vpack.c.b16 %v1927, %v1921
    %v2942 = vpack.c.b16 %v1928, %v1922
    %v2943 = vpack.c.b16 %v1929, %v1923
    %v2944 = vpack.c.b16 %v1936, %v1930
    %v2945 = vpack.c.b16 %v1937, %v1931
    %v2946 = vpack.c.b16 %v1938, %v1932
    %v2947 = vpack.c.b16 %v1939, %v1933
    %v2948 = vpack.c.b16 %v1940, %v1934
    %v2949 = vpack.c.b16 %v1941, %v1935
    %v2950 = vpack.c.b16 %v1948, %v1942
    %v2951 = vpack.c.b16 %v1949, %v1943
    %v2952 = vpack.c.b16 %v1950, %v1944
    %v2953 = vpack.c.b16 %v1951, %v1945
    %v2954 = vpack.c.b16 %v1952, %v1946
    %v2955 = vpack.c.b16 %v1953, %v1947
    %v2956 = vpack.c.b16 %v1960, %v1954
    %v2957 = vpack.c.b16 %v1961, %v1955
    %v2958 = vpack.c.b16 %v1962, %v1956
    %v2959 = vpack.c.b16 %v1963, %v1957
    %v2960 = vpack.c.b16 %v1964, %v1958
    %v2961 = vpack.c.b16 %v1965, %v1959
    %v2962 = vpack.c.b16 %v1972, %v1966
    %v2963 = vpack.c.b16 %v1973, %v1967
    %v2964 = vpack.c.b16 %v1974, %v1968
    %v2965 = vpack.c.b16 %v1975, %v1969
    %v2966 = vpack.c.b16 %v1976, %v1970
    %v2967 = vpack.c.b16 %v1977, %v1971
    %v2968 = vpack.c.b16 %v1984, %v1978
    %v2969 = vpack.c.b16 %v1985, %v1979
    %v2970 = vpack.c.b16 %v1986, %v1980
    %v2971 = vpack.c.b16 %v1987, %v1981
    %v2972 = vpack.c.b16 %v1988, %v1982
    %v2973 = vpack.c.b16 %v1989, %v1983
    %v2974 = vpack.c.b16 %v1996, %v1990
    %v2975 = vpack.c.b16 %v1997, %v1991
    %v2976 = vpack.c.b16 %v1998, %v1992
    %v2977 = vpack.c.b16 %v1999, %v1993
    %v2978 = vpack.c.b16 %v2000, %v1994
    %v2979 = vpack.c.b16 %v2001, %v1995
    %v2980 = vpack.c.b16 %v2008, %v2002
    %v2981 = vpack.c.b16 %v2009, %v2003
    %v2982 = vpack.c.b16 %v2010, %v2004
    %v2983 = vpack.c.b16 %v2011, %v2005
    %v2984 = vpack.c.b16 %v2012, %v2006
    %v2985 = vpack.c.b16 %v2013, %v2007
    %v2986 = vpack.c.b16 %v2020, %v2014
    %v2987 = vpack.c.b16 %v2021, %v2015
    %v2988 = vpack.c.b16 %v2022, %v2016
    %v2989 = vpack.c.b16 %v2023, %v2017
    %v2990 = vpack.c.b16 %v2024, %v2018
    %v2991 = vpack.c.b16 %v2025, %v2019
    %v2992 = vpack.c.b16 %v2032, %v2026
    %v2993 = vpack.c.b16 %v2033, %v2027
    %v2994 = vpack.c.b16 %v2034, %v2028
    %v2995 = vpack.c.b16 %v2035, %v2029
    %v2996 = vpack.c.b16 %v2036, %v2030
    %v2997 = vpack.c.b16 %v2037, %v2031
    %v2998 = vpack.c.b16 %v2044, %v2038
    %v2999 = vpack.c.b16 %v2045, %v2039
    %v3000 = vpack.c.b16 %v2046, %v2040
    %v3001 = vpack.c.b16 %v2047, %v2041
    %v3002 = vpack.c.b16 %v2048, %v2042
    %v3003 = vpack.c.b16 %v2049, %v2043
    %v3004 = vpack.c.b16 %v2056, %v2050
    %v3005 = vpack.c.b16 %v2057, %v2051
    %v3006 = vpack.c.b16 %v2058, %v2052
    %v3007 = vpack.c.b16 %v2059, %v2053
    %v3008 = vpack.c.b16 %v2060, %v2054
    %v3009 = vpack.c.b16 %v2061, %v2055
    %v3010 = vpack.c.b16 %v2068, %v2062
    %v3011 = vpack.c.b16 %v2069, %v2063
    %v3012 = vpack.c.b16 %v2070, %v2064
    %v3013 = vpack.c.b16 %v2071, %v2065
    %v3014 = vpack.c.b16 %v2072, %v2066
    %v3015 = vpack.c.b16 %v2073, %v2067
    %v3016 = vpack.c.b16 %v2080, %v2074
    %v3017 = vpack.c.b16 %v2081, %v2075
    %v3018 = vpack.c.b16 %v2082, %v2076
    %v3019 = vpack.c.b16 %v2083, %v2077
    %v3020 = vpack.c.b16 %v2084, %v2078
    %v3021 = vpack.c.b16 %v2085, %v2079
    %v3022 = vpack.c.b16 %v2092, %v2086
    %v3023 = vpack.c.b16 %v2093, %v2087
    %v3024 = vpack.c.b16 %v2094, %v2088
    %v3025 = vpack.c.b16 %v2095, %v2089
    %v3026 = vpack.c.b16 %v2096, %v2090
    %v3027 = vpack.c.b16 %v2097, %v2091
    %v3028 = vpack.c.b16 %v2104, %v2098
    %v3029 = vpack.c.b16 %v2105, %v2099
    %v3030 = vpack.c.b16 %v2106, %v2100
    %v3031 = vpack.c.b16 %v2107, %v2101
    %v3032 = vpack.c.b16 %v2108, %v2102
    %v3033 = vpack.c.b16 %v2109, %v2103
    %v3034 = vpack.c.b16 %v2116, %v2110
    %v3035 = vpack.c.b16 %v2117, %v2111
    %v3036 = vpack.c.b16 %v2118, %v2112
    %v3037 = vpack.c.b16 %v2119, %v2113
    %v3038 = vpack.c.b16 %v2120, %v2114
    %v3039 = vpack.c.b16 %v2121, %v2115
    %v3040 = vpack.c.b16 %v2128, %v2122
    %v3041 = vpack.c.b16 %v2129, %v2123
    %v3042 = vpack.c.b16 %v2130, %v2124
    %v3043 = vpack.c.b16 %v2131, %v2125
    %v3044 = vpack.c.b16 %v2132, %v2126
    %v3045 = vpack.c.b16 %v2133, %v2127
    %v3046 = vpack.c.b16 %v2140, %v2134
    %v3047 = vpack.c.b16 %v2141, %v2135
    %v3048 = vpack.c.b16 %v2142, %v2136
    %v3049 = vpack.c.b16 %v2143, %v2137
    %v3050 = vpack.c.b16 %v2144, %v2138
    %v3051 = vpack.c.b16 %v2145, %v2139
    %v3052 = vpack.c.b16 %v2152, %v2146
    %v3053 = vpack.c.b16 %v2153, %v2147
    %v3054 = vpack.c.b16 %v2154, %v2148
    %v3055 = vpack.c.b16 %v2155, %v2149
    %v3056 = vpack.c.b16 %v2156, %v2150
    %v3057 = vpack.c.b16 %v2157, %v2151
    %v3058 = vpack.c.b16 %v2164, %v2158
    %v3059 = vpack.c.b16 %v2165, %v2159
    %v3060 = vpack.c.b16 %v2166, %v2160
    %v3061 = vpack.c.b16 %v2167, %v2161
    %v3062 = vpack.c.b16 %v2168, %v2162
    %v3063 = vpack.c.b16 %v2169, %v2163
    %v3064 = vpack.c.b16 %v2176, %v2170
    %v3065 = vpack.c.b16 %v2177, %v2171
    %v3066 = vpack.c.b16 %v2178, %v2172
    %v3067 = vpack.c.b16 %v2179, %v2173
    %v3068 = vpack.c.b16 %v2180, %v2174
    %v3069 = vpack.c.b16 %v2181, %v2175
    %v3070 = vpack.c.b16 %v2188, %v2182
    %v3071 = vpack.c.b16 %v2189, %v2183
    %v3072 = vpack.c.b16 %v2190, %v2184
    %v3073 = vpack.c.b16 %v2191, %v2185
    %v3074 = vpack.c.b16 %v2192, %v2186
    %v3075 = vpack.c.b16 %v2193, %v2187
    %v3076 = vpack.c.b16 %v2200, %v2194
    %v3077 = vpack.c.b16 %v2201, %v2195
    %v3078 = vpack.c.b16 %v2202, %v2196
    %v3079 = vpack.c.b16 %v2203, %v2197
    %v3080 = vpack.c.b16 %v2204, %v2198
    %v3081 = vpack.c.b16 %v2205, %v2199
    %v3082 = vpack.c.b16 %v2212, %v2206
    %v3083 = vpack.c.b16 %v2213, %v2207
    %v3084 = vpack.c.b16 %v2214, %v2208
    %v3085 = vpack.c.b16 %v2215, %v2209
    %v3086 = vpack.c.b16 %v2216, %v2210
    %v3087 = vpack.c.b16 %v2217, %v2211
    %v3088 = vpack.c.b16 %v2224, %v2218
    %v3089 = vpack.c.b16 %v2225, %v2219
    %v3090 = vpack.c.b16 %v2226, %v2220
    %v3091 = vpack.c.b16 %v2227, %v2221
    %v3092 = vpack.c.b16 %v2228, %v2222
    %v3093 = vpack.c.b16 %v2229, %v2223
    %v3094 = vpack.c.b16 %v2236, %v2230
    %v3095 = vpack.c.b16 %v2237, %v2231
    %v3096 = vpack.c.b16 %v2238, %v2232
    %v3097 = vpack.c.b16 %v2239, %v2233
    %v3098 = vpack.c.b16 %v2240, %v2234
    %v3099 = vpack.c.b16 %v2241, %v2235
    %v3100 = vpack.c.b16 %v2248, %v2242
    %v3101 = vpack.c.b16 %v2249, %v2243
    %v3102 = vpack.c.b16 %v2250, %v2244
    %v3103 = vpack.c.b16 %v2251, %v2245
    %v3104 = vpack.c.b16 %v2252, %v2246
    %v3105 = vpack.c.b16 %v2253, %v2247
    %v3106 = vpack.c.b16 %v2260, %v2254
    %v3107 = vpack.c.b16 %v2261, %v2255
    %v3108 = vpack.c.b16 %v2262, %v2256
    %v3109 = vpack.c.b16 %v2263, %v2257
    %v3110 = vpack.c.b16 %v2264, %v2258
    %v3111 = vpack.c.b16 %v2265, %v2259
    %v3112 = vpack.c.b16 %v2272, %v2266
    %v3113 = vpack.c.b16 %v2273, %v2267
    %v3114 = vpack.c.b16 %v2274, %v2268
    %v3115 = vpack.c.b16 %v2275, %v2269
    %v3116 = vpack.c.b16 %v2276, %v2270
    %v3117 = vpack.c.b16 %v2277, %v2271
    %v3118 = vpack.c.b16 %v2284, %v2278
    %v3119 = vpack.c.b16 %v2285, %v2279
    %v3120 = vpack.c.b16 %v2286, %v2280
    %v3121 = vpack.c.b16 %v2287, %v2281
    %v3122 = vpack.c.b16 %v2288, %v2282
    %v3123 = vpack.c.b16 %v2289, %v2283
    %v3124 = vpack.c.b16 %v2296, %v2290
    %v3125 = vpack.c.b16 %v2297, %v2291
    %v3126 = vpack.c.b16 %v2298, %v2292
    %v3127 = vpack.c.b16 %v2299, %v2293
    %v3128 = vpack.c.b16 %v2300, %v2294
    %v3129 = vpack.c.b16 %v2301, %v2295
    %v3130 = vpack.c.b16 %v2308, %v2302
    %v3131 = vpack.c.b16 %v2309, %v2303
    %v3132 = vpack.c.b16 %v2310, %v2304
    %v3133 = vpack.c.b16 %v2311, %v2305
    %v3134 = vpack.c.b16 %v2312, %v2306
    %v3135 = vpack.c.b16 %v2313, %v2307
    %v3136 = vpack.c.b16 %v2320, %v2314
    %v3137 = vpack.c.b16 %v2321, %v2315
    %v3138 = vpack.c.b16 %v2322, %v2316
    %v3139 = vpack.c.b16 %v2323, %v2317
    %v3140 = vpack.c.b16 %v2324, %v2318
    %v3141 = vpack.c.b16 %v2325, %v2319
    %v3142 = vpack.c.b16 %v2332, %v2326
    %v3143 = vpack.c.b16 %v2333, %v2327
    %v3144 = vpack.c.b16 %v2334, %v2328
    %v3145 = vpack.c.b16 %v2335, %v2329
    %v3146 = vpack.c.b16 %v2336, %v2330
    %v3147 = vpack.c.b16 %v2337, %v2331
    %v3148 = vpack.c.b16 %v2344, %v2338
    %v3149 = vpack.c.b16 %v2345, %v2339
    %v3150 = vpack.c.b16 %v2346, %v2340
    %v3151 = vpack.c.b16 %v2347, %v2341
    %v3152 = vpack.c.b16 %v2348, %v2342
    %v3153 = vpack.c.b16 %v2349, %v2343
    %v3154 = vpack.c.b16 %v2356, %v2350
    %v3155 = vpack.c.b16 %v2357, %v2351
    %v3156 = vpack.c.b16 %v2358, %v2352
    %v3157 = vpack.c.b16 %v2359, %v2353
    %v3158 = vpack.c.b16 %v2360, %v2354
    %v3159 = vpack.c.b16 %v2361, %v2355
    %v3160 = vpack.c.b16 %v2368, %v2362
    %v3161 = vpack.c.b16 %v2369, %v2363
    %v3162 = vpack.c.b16 %v2370, %v2364
    %v3163 = vpack.c.b16 %v2371, %v2365
    %v3164 = vpack.c.b16 %v2372, %v2366
    %v3165 = vpack.c.b16 %v2373, %v2367
    %v3166 = vpack.c.b16 %v2380, %v2374
    %v3167 = vpack.c.b16 %v2381, %v2375
    %v3168 = vpack.c.b16 %v2382, %v2376
    %v3169 = vpack.c.b16 %v2383, %v2377
    %v3170 = vpack.c.b16 %v2384, %v2378
    %v3171 = vpack.c.b16 %v2385, %v2379
    %v3172 = vpack.c.b16 %v2392, %v2386
    %v3173 = vpack.c.b16 %v2393, %v2387
    %v3174 = vpack.c.b16 %v2394, %v2388
    %v3175 = vpack.c.b16 %v2395, %v2389
    %v3176 = vpack.c.b16 %v2396, %v2390
    %v3177 = vpack.c.b16 %v2397, %v2391
    %v3178 = vpack.c.b16 %v2404, %v2398
    %v3179 = vpack.c.b16 %v2405, %v2399
    %v3180 = vpack.c.b16 %v2406, %v2400
    %v3181 = vpack.c.b16 %v2407, %v2401
    %v3182 = vpack.c.b16 %v2408, %v2402
    %v3183 = vpack.c.b16 %v2409, %v2403
    %v3184 = vpack.c.b16 %v2416, %v2410
    %v3185 = vpack.c.b16 %v2417, %v2411
    %v3186 = vpack.c.b16 %v2418, %v2412
    %v3187 = vpack.c.b16 %v2419, %v2413
    %v3188 = vpack.c.b16 %v2420, %v2414
    %v3189 = vpack.c.b16 %v2421, %v2415
    %v3190 = vpack.c.b16 %v2428, %v2422
    %v3191 = vpack.c.b16 %v2429, %v2423
    %v3192 = vpack.c.b16 %v2430, %v2424
    %v3193 = vpack.c.b16 %v2431, %v2425
    %v3194 = vpack.c.b16 %v2432, %v2426
    %v3195 = vpack.c.b16 %v2433, %v2427
    %v3196 = vpack.c.b16 %v2440, %v2434
    %v3197 = vpack.c.b16 %v2441, %v2435
    %v3198 = vpack.c.b16 %v2442, %v2436
    %v3199 = vpack.c.b16 %v2443, %v2437
    %v3200 = vpack.c.b16 %v2444, %v2438
    %v3201 = vpack.c.b16 %v2445, %v2439
    %v3202 = vpack.c.b16 %v2452, %v2446
    %v3203 = vpack.c.b16 %v2453, %v2447
    %v3204 = vpack.c.b16 %v2454, %v2448
    %v3205 = vpack.c.b16 %v2455, %v2449
    %v3206 = vpack.c.b16 %v2456, %v2450
    %v3207 = vpack.c.b16 %v2457, %v2451
    %v3208 = vpack.c.b16 %v2464, %v2458
    %v3209 = vpack.c.b16 %v2465, %v2459
    %v3210 = vpack.c.b16 %v2466, %v2460
    %v3211 = vpack.c.b16 %v2467, %v2461
    %v3212 = vpack.c.b16 %v2468, %v2462
    %v3213 = vpack.c.b16 %v2469, %v2463
    %v3214 = vpack.c.b16 %v2476, %v2470
    %v3215 = vpack.c.b16 %v2477, %v2471
    %v3216 = vpack.c.b16 %v2478, %v2472
    %v3217 = vpack.c.b16 %v2479, %v2473
    %v3218 = vpack.c.b16 %v2480, %v2474
    %v3219 = vpack.c.b16 %v2481, %v2475
    %v3220 = vpack.c.b16 %v2488, %v2482
    %v3221 = vpack.c.b16 %v2489, %v2483
    %v3222 = vpack.c.b16 %v2490, %v2484
    %v3223 = vpack.c.b16 %v2491, %v2485
    %v3224 = vpack.c.b16 %v2492, %v2486
    %v3225 = vpack.c.b16 %v2493, %v2487
    %v3226 = vpack.c.b16 %v2500, %v2494
    %v3227 = vpack.c.b16 %v2501, %v2495
    %v3228 = vpack.c.b16 %v2502, %v2496
    %v3229 = vpack.c.b16 %v2503, %v2497
    %v3230 = vpack.c.b16 %v2504, %v2498
    %v3231 = vpack.c.b16 %v2505, %v2499
    %v3232 = vpack.c.b16 %v2512, %v2506
    %v3233 = vpack.c.b16 %v2513, %v2507
    %v3234 = vpack.c.b16 %v2514, %v2508
    %v3235 = vpack.c.b16 %v2515, %v2509
    %v3236 = vpack.c.b16 %v2516, %v2510
    %v3237 = vpack.c.b16 %v2517, %v2511
    %v3238 = vpack.c.b16 %v2524, %v2518
    %v3239 = vpack.c.b16 %v2525, %v2519
    %v3240 = vpack.c.b16 %v2526, %v2520
    %v3241 = vpack.c.b16 %v2527, %v2521
    %v3242 = vpack.c.b16 %v2528, %v2522
    %v3243 = vpack.c.b16 %v2529, %v2523
    %v3244 = vpack.c.b16 %v2536, %v2530
    %v3245 = vpack.c.b16 %v2537, %v2531
    %v3246 = vpack.c.b16 %v2538, %v2532
    %v3247 = vpack.c.b16 %v2539, %v2533
    %v3248 = vpack.c.b16 %v2540, %v2534
    %v3249 = vpack.c.b16 %v2541, %v2535
    %v3250 = vpack.c.b16 %v2548, %v2542
    %v3251 = vpack.c.b16 %v2549, %v2543
    %v3252 = vpack.c.b16 %v2550, %v2544
    %v3253 = vpack.c.b16 %v2551, %v2545
    %v3254 = vpack.c.b16 %v2552, %v2546
    %v3255 = vpack.c.b16 %v2553, %v2547
    %v3256 = vpack.c.b16 %v2560, %v2554
    %v3257 = vpack.c.b16 %v2561, %v2555
    %v3258 = vpack.c.b16 %v2562, %v2556
    %v3259 = vpack.c.b16 %v2563, %v2557
    %v3260 = vpack.c.b16 %v2564, %v2558
    %v3261 = vpack.c.b16 %v2565, %v2559
    %v3262 = vpack.c.b16 %v2572, %v2566
    %v3263 = vpack.c.b16 %v2573, %v2567
    %v3264 = vpack.c.b16 %v2574, %v2568
    %v3265 = vpack.c.b16 %v2575, %v2569
    %v3266 = vpack.c.b16 %v2576, %v2570
    %v3267 = vpack.c.b16 %v2577, %v2571
    %v3268 = vpack.c.b16 %v2584, %v2578
    %v3269 = vpack.c.b16 %v2585, %v2579
    %v3270 = vpack.c.b16 %v2586, %v2580
    %v3271 = vpack.c.b16 %v2587, %v2581
    %v3272 = vpack.c.b16 %v2588, %v2582
    %v3273 = vpack.c.b16 %v2589, %v2583
    %v3274 = vpack.c.b16 %v2596, %v2590
    %v3275 = vpack.c.b16 %v2597, %v2591
    %v3276 = vpack.c.b16 %v2598, %v2592
    %v3277 = vpack.c.b16 %v2599, %v2593
    %v3278 = vpack.c.b16 %v2600, %v2594
    %v3279 = vpack.c.b16 %v2601, %v2595
    %v3280 = vpack.c.b16 %v2608, %v2602
    %v3281 = vpack.c.b16 %v2609, %v2603
    %v3282 = vpack.c.b16 %v2610, %v2604
    %v3283 = vpack.c.b16 %v2611, %v2605
    %v3284 = vpack.c.b16 %v2612, %v2606
    %v3285 = vpack.c.b16 %v2613, %v2607
    %v3286 = vpack.c.b16 %v2620, %v2614
    %v3287 = vpack.c.b16 %v2621, %v2615
    %v3288 = vpack.c.b16 %v2622, %v2616
    %v3289 = vpack.c.b16 %v2623, %v2617
    %v3290 = vpack.c.b16 %v2624, %v2618
    %v3291 = vpack.c.b16 %v2625, %v2619
    %v3292 = vpack.c.b16 %v2632, %v2626
    %v3293 = vpack.c.b16 %v2633, %v2627
    %v3294 = vpack.c.b16 %v2634, %v2628
    %v3295 = vpack.c.b16 %v2635, %v2629
    %v3296 = vpack.c.b16 %v2636, %v2630
    %v3297 = vpack.c.b16 %v2637, %v2631
    %v3298 = vpack.c.b16 %v2644, %v2638
    %v3299 = vpack.c.b16 %v2645, %v2639
    %v3300 = vpack.c.b16 %v2646, %v2640
    %v3301 = vpack.c.b16 %v2647, %v2641
    %v3302 = vpack.c.b16 %v2648, %v2642
    %v3303 = vpack.c.b16 %v2649, %v2643
    %v3304 = vpack.c.b16 %v2656, %v2650
    %v3305 = vpack.c.b16 %v2657, %v2651
    %v3306 = vpack.c.b16 %v2658, %v2652
    %v3307 = vpack.c.b16 %v2659, %v2653
    %v3308 = vpack.c.b16 %v2660, %v2654
    %v3309 = vpack.c.b16 %v2661, %v2655
    %v3310 = vpack.c.b16 %v2668, %v2662
    %v3311 = vpack.c.b16 %v2669, %v2663
    %v3312 = vpack.c.b16 %v2670, %v2664
    %v3313 = vpack.c.b16 %v2671, %v2665
    %v3314 = vpack.c.b16 %v2672, %v2666
    %v3315 = vpack.c.b16 %v2673, %v2667
    %v3316 = vpack.c.b16 %v2680, %v2674
    %v3317 = vpack.c.b16 %v2681, %v2675
    %v3318 = vpack.c.b16 %v2682, %v2676
    %v3319 = vpack.c.b16 %v2683, %v2677
    %v3320 = vpack.c.b16 %v2684, %v2678
    %v3321 = vpack.c.b16 %v2685, %v2679
    %v3322 = vpack.c.b16 %v2692, %v2686
    %v3323 = vpack.c.b16 %v2693, %v2687
    %v3324 = vpack.c.b16 %v2694, %v2688
    %v3325 = vpack.c.b16 %v2695, %v2689
    %v3326 = vpack.c.b16 %v2696, %v2690
    %v3327 = vpack.c.b16 %v2697, %v2691
    %v3328 = vpack.c.b16 %v2704, %v2698
    %v3329 = vpack.c.b16 %v2705, %v2699
    %v3330 = vpack.c.b16 %v2706, %v2700
    %v3331 = vpack.c.b16 %v2707, %v2701
    %v3332 = vpack.c.b16 %v2708, %v2702
    %v3333 = vpack.c.b16 %v2709, %v2703
    %v3334 = vpack.c.b16 %v2716, %v2710
    %v3335 = vpack.c.b16 %v2717, %v2711
    %v3336 = vpack.c.b16 %v2718, %v2712
    %v3337 = vpack.c.b16 %v2719, %v2713
    %v3338 = vpack.c.b16 %v2720, %v2714
    %v3339 = vpack.c.b16 %v2721, %v2715
    %v3340 = vpack.c.b16 %v2728, %v2722
    %v3341 = vpack.c.b16 %v2729, %v2723
    %v3342 = vpack.c.b16 %v2730, %v2724
    %v3343 = vpack.c.b16 %v2731, %v2725
    %v3344 = vpack.c.b16 %v2732, %v2726
    %v3345 = vpack.c.b16 %v2733, %v2727
    %v3346 = vpack.c.b16 %v2740, %v2734
    %v3347 = vpack.c.b16 %v2741, %v2735
    %v3348 = vpack.c.b16 %v2742, %v2736
    %v3349 = vpack.c.b16 %v2743, %v2737
    %v3350 = vpack.c.b16 %v2744, %v2738
    %v3351 = vpack.c.b16 %v2745, %v2739
    %v3352 = vpack.c.b16 %v2752, %v2746
    %v3353 = vpack.c.b16 %v2753, %v2747
    %v3354 = vpack.c.b16 %v2754, %v2748
    %v3355 = vpack.c.b16 %v2755, %v2749
    %v3356 = vpack.c.b16 %v2756, %v2750
    %v3357 = vpack.c.b16 %v2757, %v2751
    %v3358 = vpack.c.b16 %v2764, %v2758
    %v3359 = vpack.c.b16 %v2765, %v2759
    %v3360 = vpack.c.b16 %v2766, %v2760
    %v3361 = vpack.c.b16 %v2767, %v2761
    %v3362 = vpack.c.b16 %v2768, %v2762
    %v3363 = vpack.c.b16 %v2769, %v2763
    %v3364 = vpack.c.b16 %v2776, %v2770
    %v3365 = vpack.c.b16 %v2777, %v2771
    %v3366 = vpack.c.b16 %v2778, %v2772
    %v3367 = vpack.c.b16 %v2779, %v2773
    %v3368 = vpack.c.b16 %v2780, %v2774
    %v3369 = vpack.c.b16 %v2781, %v2775
    %v3370 = vpack.c.b16 %v2788, %v2782
    %v3371 = vpack.c.b16 %v2789, %v2783
    %v3372 = vpack.c.b16 %v2790, %v2784
    %v3373 = vpack.c.b16 %v2791, %v2785
    %v3374 = vpack.c.b16 %v2792, %v2786
    %v3375 = vpack.c.b16 %v2793, %v2787
    %v3376 = vpack.c.b16 %v2800, %v2794
    %v3377 = vpack.c.b16 %v2801, %v2795
    %v3378 = vpack.c.b16 %v2802, %v2796
    %v3379 = vpack.c.b16 %v2803, %v2797
    %v3380 = vpack.c.b16 %v2804, %v2798
    %v3381 = vpack.c.b16 %v2805, %v2799
    %3958 = vmatprep.subr.bf16.mxu0 %v2807
    %3959 = vmatpush1.bf16.msra.mxu0 %v2806
    %3960 = vmatprep.subr.bf16.mxu0 %v2813
    %3961 = vmatpush1.bf16.msra.mxu0 %v2812
    %3962 = vmatprep.subr.bf16.mxu0 %v2819
    %3963 = vmatpush1.bf16.msra.mxu0 %v2818
    %3964 = vmatprep.subr.bf16.mxu0 %v2825
    %3965 = vmatpush1.bf16.msra.mxu0 %v2824
    %3966 = vmatprep.subr.bf16.mxu0 %v2831
    %3967 = vmatpush1.bf16.msra.mxu0 %v2830
    %3968 = vmatprep.subr.bf16.mxu0 %v2837
    %3969 = vmatpush1.bf16.msra.mxu0 %v2836
    %3970 = vmatprep.subr.bf16.mxu0 %v2843
    %3971 = vmatpush1.bf16.msra.mxu0 %v2842
    %3972 = vmatprep.subr.bf16.mxu0 %v2849
    %3973 = vmatpush1.bf16.msra.mxu0 %v2848
    %3974 = vmatprep.subr.bf16.mxu0 %v2855
    %3975 = vmatpush1.bf16.msra.mxu0 %v2854
    %3976 = vmatprep.subr.bf16.mxu0 %v2861
    %3977 = vmatpush1.bf16.msra.mxu0 %v2860
    %3978 = vmatprep.subr.bf16.mxu0 %v2867
    %3979 = vmatpush1.bf16.msra.mxu0 %v2866
    %3980 = vmatprep.subr.bf16.mxu0 %v2873
    %3981 = vmatpush1.bf16.msra.mxu0 %v2872
    %3982 = vmatprep.subr.bf16.mxu0 %v2879
    %3983 = vmatpush1.bf16.msra.mxu0 %v2878
    %3984 = vmatprep.subr.bf16.mxu0 %v2885
    %3985 = vmatpush1.bf16.msra.mxu0 %v2884
    %3986 = vmatprep.subr.bf16.mxu0 %v2891
    %3987 = vmatpush1.bf16.msra.mxu0 %v2890
    %3988 = vmatprep.subr.bf16.mxu0 %v2897
    %3989 = vmatpush1.bf16.msra.mxu0 %v2896
    %3990 = vmatprep.mubr.bf16.mxu0 %v428
    %3991 = vmatmul.mubr.bf16.gmra.mrb[0].mxu0 %v424
    %v3992 = vpop.f32.mrb[0].mxu0
    %v3993 = vadd.f32 %v1051, %v3992
    %v3994 = vpop.f32.mrb[0].mxu0
    %v3995 = vadd.f32 %v1055, %v3994
    %v3996 = vpop.f32.mrb[0].mxu0
    %v3997 = vadd.f32 %v1051, %v3996
    %v3998 = vpop.f32.mrb[0].mxu0
    %v3999 = vadd.f32 %v1055, %v3998
    %4000 = vdwg.mxu0
    %4001 = vmatprep.subr.bf16.mxu0 %v2903
    %4002 = vmatpush1.bf16.msra.mxu0 %v2902
    %4003 = vmatprep.subr.bf16.mxu0 %v2909
    %4004 = vmatpush1.bf16.msra.mxu0 %v2908
    %4005 = vmatprep.subr.bf16.mxu0 %v2915
    %4006 = vmatpush1.bf16.msra.mxu0 %v2914
    %4007 = vmatprep.subr.bf16.mxu0 %v2921
    %4008 = vmatpush1.bf16.msra.mxu0 %v2920
    %4009 = vmatprep.subr.bf16.mxu0 %v2927
    %4010 = vmatpush1.bf16.msra.mxu0 %v2926
    %4011 = vmatprep.subr.bf16.mxu0 %v2933
    %4012 = vmatpush1.bf16.msra.mxu0 %v2932
    %4013 = vmatprep.subr.bf16.mxu0 %v2939
    %4014 = vmatpush1.bf16.msra.mxu0 %v2938
    %4015 = vmatprep.subr.bf16.mxu0 %v2945
    %4016 = vmatpush1.bf16.msra.mxu0 %v2944
    %4017 = vmatprep.subr.bf16.mxu0 %v2951
    %4018 = vmatpush1.bf16.msra.mxu0 %v2950
    %4019 = vmatprep.subr.bf16.mxu0 %v2957
    %4020 = vmatpush1.bf16.msra.mxu0 %v2956
    %4021 = vmatprep.subr.bf16.mxu0 %v2963
    %4022 = vmatpush1.bf16.msra.mxu0 %v2962
    %4023 = vmatprep.subr.bf16.mxu0 %v2969
    %4024 = vmatpush1.bf16.msra.mxu0 %v2968
    %4025 = vmatprep.subr.bf16.mxu0 %v2975
    %4026 = vmatpush1.bf16.msra.mxu0 %v2974
    %4027 = vmatprep.subr.bf16.mxu0 %v2981
    %4028 = vmatpush1.bf16.msra.mxu0 %v2980
    %4029 = vmatprep.subr.bf16.mxu0 %v2987
    %4030 = vmatpush1.bf16.msra.mxu0 %v2986
    %4031 = vmatprep.subr.bf16.mxu0 %v2993
    %4032 = vmatpush1.bf16.msra.mxu0 %v2992
    %4033 = vmatprep.mubr.bf16.mxu0 %v436
    %4034 = vmatmul.mubr.bf16.gmra.mrb[0].mxu0 %v432
    %v4035 = vpop.f32.mrb[0].mxu0
    %v4036 = vadd.f32 %v3993, %v4035
    %v4037 = vpop.f32.mrb[0].mxu0
    %v4038 = vadd.f32 %v3995, %v4037
    %v4039 = vpop.f32.mrb[0].mxu0
    %v4040 = vadd.f32 %v3997, %v4039
    %v4041 = vpop.f32.mrb[0].mxu0
    %v4042 = vadd.f32 %v3999, %v4041
    %4043 = vdwg.mxu0
    %4044 = vmatprep.subr.bf16.mxu0 %v2999
    %4045 = vmatpush1.bf16.msra.mxu0 %v2998
    %4046 = vmatprep.subr.bf16.mxu0 %v3005
    %4047 = vmatpush1.bf16.msra.mxu0 %v3004
    %4048 = vmatprep.subr.bf16.mxu0 %v3011
    %4049 = vmatpush1.bf16.msra.mxu0 %v3010
    %4050 = vmatprep.subr.bf16.mxu0 %v3017
    %4051 = vmatpush1.bf16.msra.mxu0 %v3016
    %4052 = vmatprep.subr.bf16.mxu0 %v3023
    %4053 = vmatpush1.bf16.msra.mxu0 %v3022
    %4054 = vmatprep.subr.bf16.mxu0 %v3029
    %4055 = vmatpush1.bf16.msra.mxu0 %v3028
    %4056 = vmatprep.subr.bf16.mxu0 %v3035
    %4057 = vmatpush1.bf16.msra.mxu0 %v3034
    %4058 = vmatprep.subr.bf16.mxu0 %v3041
    %4059 = vmatpush1.bf16.msra.mxu0 %v3040
    %4060 = vmatprep.subr.bf16.mxu0 %v3047
    %4061 = vmatpush1.bf16.msra.mxu0 %v3046
    %4062 = vmatprep.subr.bf16.mxu0 %v3053
    %4063 = vmatpush1.bf16.msra.mxu0 %v3052
    %4064 = vmatprep.subr.bf16.mxu0 %v3059
    %4065 = vmatpush1.bf16.msra.mxu0 %v3058
    %4066 = vmatprep.subr.bf16.mxu0 %v3065
    %4067 = vmatpush1.bf16.msra.mxu0 %v3064
    %4068 = vmatprep.subr.bf16.mxu0 %v3071
    %4069 = vmatpush1.bf16.msra.mxu0 %v3070
    %4070 = vmatprep.subr.bf16.mxu0 %v3077
    %4071 = vmatpush1.bf16.msra.mxu0 %v3076
    %4072 = vmatprep.subr.bf16.mxu0 %v3083
    %4073 = vmatpush1.bf16.msra.mxu0 %v3082
    %4074 = vmatprep.subr.bf16.mxu0 %v3089
    %4075 = vmatpush1.bf16.msra.mxu0 %v3088
    %4076 = vmatprep.mubr.bf16.mxu0 %v444
    %4077 = vmatmul.mubr.bf16.gmra.mrb[0].mxu0 %v440
    %v4078 = vpop.f32.mrb[0].mxu0
    %v4079 = vadd.f32 %v4036, %v4078
    %v4080 = vpop.f32.mrb[0].mxu0
    %v4081 = vadd.f32 %v4038, %v4080
    %v4082 = vpop.f32.mrb[0].mxu0
    %v4083 = vadd.f32 %v4040, %v4082
    %v4084 = vpop.f32.mrb[0].mxu0
    %v4085 = vadd.f32 %v4042, %v4084
    %4086 = vdwg.mxu0
    %4087 = vmatprep.subr.bf16.mxu0 %v3095
    %4088 = vmatpush1.bf16.msra.mxu0 %v3094
    %4089 = vmatprep.subr.bf16.mxu0 %v3101
    %4090 = vmatpush1.bf16.msra.mxu0 %v3100
    %4091 = vmatprep.subr.bf16.mxu0 %v3107
    %4092 = vmatpush1.bf16.msra.mxu0 %v3106
    %4093 = vmatprep.subr.bf16.mxu0 %v3113
    %4094 = vmatpush1.bf16.msra.mxu0 %v3112
    %4095 = vmatprep.subr.bf16.mxu0 %v3119
    %4096 = vmatpush1.bf16.msra.mxu0 %v3118
    %4097 = vmatprep.subr.bf16.mxu0 %v3125
    %4098 = vmatpush1.bf16.msra.mxu0 %v3124
    %4099 = vmatprep.subr.bf16.mxu0 %v3131
    %4100 = vmatpush1.bf16.msra.mxu0 %v3130
    %4101 = vmatprep.subr.bf16.mxu0 %v3137
    %4102 = vmatpush1.bf16.msra.mxu0 %v3136
    %4103 = vmatprep.subr.bf16.mxu0 %v3143
    %4104 = vmatpush1.bf16.msra.mxu0 %v3142
    %4105 = vmatprep.subr.bf16.mxu0 %v3149
    %4106 = vmatpush1.bf16.msra.mxu0 %v3148
    %4107 = vmatprep.subr.bf16.mxu0 %v3155
    %4108 = vmatpush1.bf16.msra.mxu0 %v3154
    %4109 = vmatprep.subr.bf16.mxu0 %v3161
    %4110 = vmatpush1.bf16.msra.mxu0 %v3160
    %4111 = vmatprep.subr.bf16.mxu0 %v3167
    %4112 = vmatpush1.bf16.msra.mxu0 %v3166
    %4113 = vmatprep.subr.bf16.mxu0 %v3173
    %4114 = vmatpush1.bf16.msra.mxu0 %v3172
    %4115 = vmatprep.subr.bf16.mxu0 %v3179
    %4116 = vmatpush1.bf16.msra.mxu0 %v3178
    %4117 = vmatprep.subr.bf16.mxu0 %v3185
    %4118 = vmatpush1.bf16.msra.mxu0 %v3184
    %4119 = vmatprep.mubr.bf16.mxu0 %v452
    %4120 = vmatmul.mubr.bf16.gmra.mrb[0].mxu0 %v448
    %v4121 = vpop.f32.mrb[0].mxu0
    %v4122 = vadd.f32 %v4079, %v4121
    %v4123 = vpop.f32.mrb[0].mxu0
    %v4124 = vadd.f32 %v4081, %v4123
    %v4125 = vpop.f32.mrb[0].mxu0
    %v4126 = vadd.f32 %v4083, %v4125
    %v4127 = vpop.f32.mrb[0].mxu0
    %v4128 = vadd.f32 %v4085, %v4127
    %4129 = vdwg.mxu0
    %4130 = vmatprep.subr.bf16.mxu0 %v3191
    %4131 = vmatpush1.bf16.msra.mxu0 %v3190
    %4132 = vmatprep.subr.bf16.mxu0 %v3197
    %4133 = vmatpush1.bf16.msra.mxu0 %v3196
    %4134 = vmatprep.subr.bf16.mxu0 %v3203
    %4135 = vmatpush1.bf16.msra.mxu0 %v3202
    %4136 = vmatprep.subr.bf16.mxu0 %v3209
    %4137 = vmatpush1.bf16.msra.mxu0 %v3208
    %4138 = vmatprep.subr.bf16.mxu0 %v3215
    %4139 = vmatpush1.bf16.msra.mxu0 %v3214
    %4140 = vmatprep.subr.bf16.mxu0 %v3221
    %4141 = vmatpush1.bf16.msra.mxu0 %v3220
    %4142 = vmatprep.subr.bf16.mxu0 %v3227
    %4143 = vmatpush1.bf16.msra.mxu0 %v3226
    %4144 = vmatprep.subr.bf16.mxu0 %v3233
    %4145 = vmatpush1.bf16.msra.mxu0 %v3232
    %4146 = vmatprep.subr.bf16.mxu0 %v3239
    %4147 = vmatpush1.bf16.msra.mxu0 %v3238
    %4148 = vmatprep.subr.bf16.mxu0 %v3245
    %4149 = vmatpush1.bf16.msra.mxu0 %v3244
    %4150 = vmatprep.subr.bf16.mxu0 %v3251
    %4151 = vmatpush1.bf16.msra.mxu0 %v3250
    %4152 = vmatprep.subr.bf16.mxu0 %v3257
    %4153 = vmatpush1.bf16.msra.mxu0 %v3256
    %4154 = vmatprep.subr.bf16.mxu0 %v3263
    %4155 = vmatpush1.bf16.msra.mxu0 %v3262
    %4156 = vmatprep.subr.bf16.mxu0 %v3269
    %4157 = vmatpush1.bf16.msra.mxu0 %v3268
    %4158 = vmatprep.subr.bf16.mxu0 %v3275
    %4159 = vmatpush1.bf16.msra.mxu0 %v3274
    %4160 = vmatprep.subr.bf16.mxu0 %v3281
    %4161 = vmatpush1.bf16.msra.mxu0 %v3280
    %4162 = vmatprep.mubr.bf16.mxu0 %v460
    %4163 = vmatmul.mubr.bf16.gmra.mrb[0].mxu0 %v456
    %v4164 = vpop.f32.mrb[0].mxu0
    %v4165 = vadd.f32 %v4122, %v4164
    %v4166 = vpop.f32.mrb[0].mxu0
    %v4167 = vadd.f32 %v4124, %v4166
    %v4168 = vpop.f32.mrb[0].mxu0
    %v4169 = vadd.f32 %v4126, %v4168
    %v4170 = vpop.f32.mrb[0].mxu0
    %v4171 = vadd.f32 %v4128, %v4170
    %4172 = vdwg.mxu0
    %4173 = vmatprep.subr.bf16.mxu0 %v3287
    %4174 = vmatpush1.bf16.msra.mxu0 %v3286
    %4175 = vmatprep.subr.bf16.mxu0 %v3293
    %4176 = vmatpush1.bf16.msra.mxu0 %v3292
    %4177 = vmatprep.subr.bf16.mxu0 %v3299
    %4178 = vmatpush1.bf16.msra.mxu0 %v3298
    %4179 = vmatprep.subr.bf16.mxu0 %v3305
    %4180 = vmatpush1.bf16.msra.mxu0 %v3304
    %4181 = vmatprep.subr.bf16.mxu0 %v3311
    %4182 = vmatpush1.bf16.msra.mxu0 %v3310
    %4183 = vmatprep.subr.bf16.mxu0 %v3317
    %4184 = vmatpush1.bf16.msra.mxu0 %v3316
    %4185 = vmatprep.subr.bf16.mxu0 %v3323
    %4186 = vmatpush1.bf16.msra.mxu0 %v3322
    %4187 = vmatprep.subr.bf16.mxu0 %v3329
    %4188 = vmatpush1.bf16.msra.mxu0 %v3328
    %4189 = vmatprep.subr.bf16.mxu0 %v3335
    %4190 = vmatpush1.bf16.msra.mxu0 %v3334
    %4191 = vmatprep.subr.bf16.mxu0 %v3341
    %4192 = vmatpush1.bf16.msra.mxu0 %v3340
    %4193 = vmatprep.subr.bf16.mxu0 %v3347
    %4194 = vmatpush1.bf16.msra.mxu0 %v3346
    %4195 = vmatprep.subr.bf16.mxu0 %v3353
    %4196 = vmatpush1.bf16.msra.mxu0 %v3352
    %4197 = vmatprep.subr.bf16.mxu0 %v3359
    %4198 = vmatpush1.bf16.msra.mxu0 %v3358
    %4199 = vmatprep.subr.bf16.mxu0 %v3365
    %4200 = vmatpush1.bf16.msra.mxu0 %v3364
    %4201 = vmatprep.subr.bf16.mxu0 %v3371
    %4202 = vmatpush1.bf16.msra.mxu0 %v3370
    %4203 = vmatprep.subr.bf16.mxu0 %v3377
    %4204 = vmatpush1.bf16.msra.mxu0 %v3376
    %4205 = vmatprep.mubr.bf16.mxu0 %v468
    %4206 = vmatmul.mubr.bf16.gmra.mrb[0].mxu0 %v464
    %v4207 = vpop.f32.mrb[0].mxu0
    %v4208 = vadd.f32 %v4165, %v4207
    %v4209 = vpop.f32.mrb[0].mxu0
    %v4210 = vadd.f32 %v4167, %v4209
    %v4211 = vpop.f32.mrb[0].mxu0
    %v4212 = vadd.f32 %v4169, %v4211
    %v4213 = vpop.f32.mrb[0].mxu0
    %v4214 = vadd.f32 %v4171, %v4213
    %4215 = vdwg.mxu0
    %4216 = vmatprep.subr.bf16.mxu0 %v2809
    %4217 = vmatpush1.bf16.msra.mxu0 %v2808
    %4218 = vmatprep.subr.bf16.mxu0 %v2815
    %4219 = vmatpush1.bf16.msra.mxu0 %v2814
    %4220 = vmatprep.subr.bf16.mxu0 %v2821
    %4221 = vmatpush1.bf16.msra.mxu0 %v2820
    %4222 = vmatprep.subr.bf16.mxu0 %v2827
    %4223 = vmatpush1.bf16.msra.mxu0 %v2826
    %4224 = vmatprep.subr.bf16.mxu0 %v2833
    %4225 = vmatpush1.bf16.msra.mxu0 %v2832
    %4226 = vmatprep.subr.bf16.mxu0 %v2839
    %4227 = vmatpush1.bf16.msra.mxu0 %v2838
    %4228 = vmatprep.subr.bf16.mxu0 %v2845
    %4229 = vmatpush1.bf16.msra.mxu0 %v2844
    %4230 = vmatprep.subr.bf16.mxu0 %v2851
    %4231 = vmatpush1.bf16.msra.mxu0 %v2850
    %4232 = vmatprep.subr.bf16.mxu0 %v2857
    %4233 = vmatpush1.bf16.msra.mxu0 %v2856
    %4234 = vmatprep.subr.bf16.mxu0 %v2863
    %4235 = vmatpush1.bf16.msra.mxu0 %v2862
    %4236 = vmatprep.subr.bf16.mxu0 %v2869
    %4237 = vmatpush1.bf16.msra.mxu0 %v2868
    %4238 = vmatprep.subr.bf16.mxu0 %v2875
    %4239 = vmatpush1.bf16.msra.mxu0 %v2874
    %4240 = vmatprep.subr.bf16.mxu0 %v2881
    %4241 = vmatpush1.bf16.msra.mxu0 %v2880
    %4242 = vmatprep.subr.bf16.mxu0 %v2887
    %4243 = vmatpush1.bf16.msra.mxu0 %v2886
    %4244 = vmatprep.subr.bf16.mxu0 %v2893
    %4245 = vmatpush1.bf16.msra.mxu0 %v2892
    %4246 = vmatprep.subr.bf16.mxu0 %v2899
    %4247 = vmatpush1.bf16.msra.mxu0 %v2898
    %4248 = vmatprep.mubr.bf16.mxu0 %v428
    %4249 = vmatmul.mubr.bf16.gmra.mrb[0].mxu0 %v424
    %v4250 = vpop.f32.mrb[0].mxu0
    %v4251 = vadd.f32 %v1059, %v4250
    %v4252 = vpop.f32.mrb[0].mxu0
    %v4253 = vadd.f32 %v1063, %v4252
    %v4254 = vpop.f32.mrb[0].mxu0
    %v4255 = vadd.f32 %v1059, %v4254
    %v4256 = vpop.f32.mrb[0].mxu0
    %v4257 = vadd.f32 %v1063, %v4256
    %4258 = vdwg.mxu0
    %4259 = vmatprep.subr.bf16.mxu0 %v2905
    %4260 = vmatpush1.bf16.msra.mxu0 %v2904
    %4261 = vmatprep.subr.bf16.mxu0 %v2911
    %4262 = vmatpush1.bf16.msra.mxu0 %v2910
    %4263 = vmatprep.subr.bf16.mxu0 %v2917
    %4264 = vmatpush1.bf16.msra.mxu0 %v2916
    %4265 = vmatprep.subr.bf16.mxu0 %v2923
    %4266 = vmatpush1.bf16.msra.mxu0 %v2922
    %4267 = vmatprep.subr.bf16.mxu0 %v2929
    %4268 = vmatpush1.bf16.msra.mxu0 %v2928
    %4269 = vmatprep.subr.bf16.mxu0 %v2935
    %4270 = vmatpush1.bf16.msra.mxu0 %v2934
    %4271 = vmatprep.subr.bf16.mxu0 %v2941
    %4272 = vmatpush1.bf16.msra.mxu0 %v2940
    %4273 = vmatprep.subr.bf16.mxu0 %v2947
    %4274 = vmatpush1.bf16.msra.mxu0 %v2946
    %4275 = vmatprep.subr.bf16.mxu0 %v2953
    %4276 = vmatpush1.bf16.msra.mxu0 %v2952
    %4277 = vmatprep.subr.bf16.mxu0 %v2959
    %4278 = vmatpush1.bf16.msra.mxu0 %v2958
    %4279 = vmatprep.subr.bf16.mxu0 %v2965
    %4280 = vmatpush1.bf16.msra.mxu0 %v2964
    %4281 = vmatprep.subr.bf16.mxu0 %v2971
    %4282 = vmatpush1.bf16.msra.mxu0 %v2970
    %4283 = vmatprep.subr.bf16.mxu0 %v2977
    %4284 = vmatpush1.bf16.msra.mxu0 %v2976
    %4285 = vmatprep.subr.bf16.mxu0 %v2983
    %4286 = vmatpush1.bf16.msra.mxu0 %v2982
    %4287 = vmatprep.subr.bf16.mxu0 %v2989
    %4288 = vmatpush1.bf16.msra.mxu0 %v2988
    %4289 = vmatprep.subr.bf16.mxu0 %v2995
    %4290 = vmatpush1.bf16.msra.mxu0 %v2994
    %4291 = vmatprep.mubr.bf16.mxu0 %v436
    %4292 = vmatmul.mubr.bf16.gmra.mrb[0].mxu0 %v432
    %v4293 = vpop.f32.mrb[0].mxu0
    %v4294 = vadd.f32 %v4251, %v4293
    %v4295 = vpop.f32.mrb[0].mxu0
    %v4296 = vadd.f32 %v4253, %v4295
    %v4297 = vpop.f32.mrb[0].mxu0
    %v4298 = vadd.f32 %v4255, %v4297
    %v4299 = vpop.f32.mrb[0].mxu0
    %v4300 = vadd.f32 %v4257, %v4299
    %4301 = vdwg.mxu0
    %4302 = vmatprep.subr.bf16.mxu0 %v3001
    %4303 = vmatpush1.bf16.msra.mxu0 %v3000
    %4304 = vmatprep.subr.bf16.mxu0 %v3007
    %4305 = vmatpush1.bf16.msra.mxu0 %v3006
    %4306 = vmatprep.subr.bf16.mxu0 %v3013
    %4307 = vmatpush1.bf16.msra.mxu0 %v3012
    %4308 = vmatprep.subr.bf16.mxu0 %v3019
    %4309 = vmatpush1.bf16.msra.mxu0 %v3018
    %4310 = vmatprep.subr.bf16.mxu0 %v3025
    %4311 = vmatpush1.bf16.msra.mxu0 %v3024
    %4312 = vmatprep.subr.bf16.mxu0 %v3031
    %4313 = vmatpush1.bf16.msra.mxu0 %v3030
    %4314 = vmatprep.subr.bf16.mxu0 %v3037
    %4315 = vmatpush1.bf16.msra.mxu0 %v3036
    %4316 = vmatprep.subr.bf16.mxu0 %v3043
    %4317 = vmatpush1.bf16.msra.mxu0 %v3042
    %4318 = vmatprep.subr.bf16.mxu0 %v3049
    %4319 = vmatpush1.bf16.msra.mxu0 %v3048
    %4320 = vmatprep.subr.bf16.mxu0 %v3055
    %4321 = vmatpush1.bf16.msra.mxu0 %v3054
    %4322 = vmatprep.subr.bf16.mxu0 %v3061
    %4323 = vmatpush1.bf16.msra.mxu0 %v3060
    %4324 = vmatprep.subr.bf16.mxu0 %v3067
    %4325 = vmatpush1.bf16.msra.mxu0 %v3066
    %4326 = vmatprep.subr.bf16.mxu0 %v3073
    %4327 = vmatpush1.bf16.msra.mxu0 %v3072
    %4328 = vmatprep.subr.bf16.mxu0 %v3079
    %4329 = vmatpush1.bf16.msra.mxu0 %v3078
    %4330 = vmatprep.subr.bf16.mxu0 %v3085
    %4331 = vmatpush1.bf16.msra.mxu0 %v3084
    %4332 = vmatprep.subr.bf16.mxu0 %v3091
    %4333 = vmatpush1.bf16.msra.mxu0 %v3090
    %4334 = vmatprep.mubr.bf16.mxu0 %v444
    %4335 = vmatmul.mubr.bf16.gmra.mrb[0].mxu0 %v440
    %v4336 = vpop.f32.mrb[0].mxu0
    %v4337 = vadd.f32 %v4294, %v4336
    %v4338 = vpop.f32.mrb[0].mxu0
    %v4339 = vadd.f32 %v4296, %v4338
    %v4340 = vpop.f32.mrb[0].mxu0
    %v4341 = vadd.f32 %v4298, %v4340
    %v4342 = vpop.f32.mrb[0].mxu0
    %v4343 = vadd.f32 %v4300, %v4342
    %4344 = vdwg.mxu0
    %4345 = vmatprep.subr.bf16.mxu0 %v3097
    %4346 = vmatpush1.bf16.msra.mxu0 %v3096
    %4347 = vmatprep.subr.bf16.mxu0 %v3103
    %4348 = vmatpush1.bf16.msra.mxu0 %v3102
    %4349 = vmatprep.subr.bf16.mxu0 %v3109
    %4350 = vmatpush1.bf16.msra.mxu0 %v3108
    %4351 = vmatprep.subr.bf16.mxu0 %v3115
    %4352 = vmatpush1.bf16.msra.mxu0 %v3114
    %4353 = vmatprep.subr.bf16.mxu0 %v3121
    %4354 = vmatpush1.bf16.msra.mxu0 %v3120
    %4355 = vmatprep.subr.bf16.mxu0 %v3127
    %4356 = vmatpush1.bf16.msra.mxu0 %v3126
    %4357 = vmatprep.subr.bf16.mxu0 %v3133
    %4358 = vmatpush1.bf16.msra.mxu0 %v3132
    %4359 = vmatprep.subr.bf16.mxu0 %v3139
    %4360 = vmatpush1.bf16.msra.mxu0 %v3138
    %4361 = vmatprep.subr.bf16.mxu0 %v3145
    %4362 = vmatpush1.bf16.msra.mxu0 %v3144
    %4363 = vmatprep.subr.bf16.mxu0 %v3151
    %4364 = vmatpush1.bf16.msra.mxu0 %v3150
    %4365 = vmatprep.subr.bf16.mxu0 %v3157
    %4366 = vmatpush1.bf16.msra.mxu0 %v3156
    %4367 = vmatprep.subr.bf16.mxu0 %v3163
    %4368 = vmatpush1.bf16.msra.mxu0 %v3162
    %4369 = vmatprep.subr.bf16.mxu0 %v3169
    %4370 = vmatpush1.bf16.msra.mxu0 %v3168
    %4371 = vmatprep.subr.bf16.mxu0 %v3175
    %4372 = vmatpush1.bf16.msra.mxu0 %v3174
    %4373 = vmatprep.subr.bf16.mxu0 %v3181
    %4374 = vmatpush1.bf16.msra.mxu0 %v3180
    %4375 = vmatprep.subr.bf16.mxu0 %v3187
    %4376 = vmatpush1.bf16.msra.mxu0 %v3186
    %4377 = vmatprep.mubr.bf16.mxu0 %v452
    %4378 = vmatmul.mubr.bf16.gmra.mrb[0].mxu0 %v448
    %v4379 = vpop.f32.mrb[0].mxu0
    %v4380 = vadd.f32 %v4337, %v4379
    %v4381 = vpop.f32.mrb[0].mxu0
    %v4382 = vadd.f32 %v4339, %v4381
    %v4383 = vpop.f32.mrb[0].mxu0
    %v4384 = vadd.f32 %v4341, %v4383
    %v4385 = vpop.f32.mrb[0].mxu0
    %v4386 = vadd.f32 %v4343, %v4385
    %4387 = vdwg.mxu0
    %4388 = vmatprep.subr.bf16.mxu0 %v3193
    %4389 = vmatpush1.bf16.msra.mxu0 %v3192
    %4390 = vmatprep.subr.bf16.mxu0 %v3199
    %4391 = vmatpush1.bf16.msra.mxu0 %v3198
    %4392 = vmatprep.subr.bf16.mxu0 %v3205
    %4393 = vmatpush1.bf16.msra.mxu0 %v3204
    %4394 = vmatprep.subr.bf16.mxu0 %v3211
    %4395 = vmatpush1.bf16.msra.mxu0 %v3210
    %4396 = vmatprep.subr.bf16.mxu0 %v3217
    %4397 = vmatpush1.bf16.msra.mxu0 %v3216
    %4398 = vmatprep.subr.bf16.mxu0 %v3223
    %4399 = vmatpush1.bf16.msra.mxu0 %v3222
    %4400 = vmatprep.subr.bf16.mxu0 %v3229
    %4401 = vmatpush1.bf16.msra.mxu0 %v3228
    %4402 = vmatprep.subr.bf16.mxu0 %v3235
    %4403 = vmatpush1.bf16.msra.mxu0 %v3234
    %4404 = vmatprep.subr.bf16.mxu0 %v3241
    %4405 = vmatpush1.bf16.msra.mxu0 %v3240
    %4406 = vmatprep.subr.bf16.mxu0 %v3247
    %4407 = vmatpush1.bf16.msra.mxu0 %v3246
    %4408 = vmatprep.subr.bf16.mxu0 %v3253
    %4409 = vmatpush1.bf16.msra.mxu0 %v3252
    %4410 = vmatprep.subr.bf16.mxu0 %v3259
    %4411 = vmatpush1.bf16.msra.mxu0 %v3258
    %4412 = vmatprep.subr.bf16.mxu0 %v3265
    %4413 = vmatpush1.bf16.msra.mxu0 %v3264
    %4414 = vmatprep.subr.bf16.mxu0 %v3271
    %4415 = vmatpush1.bf16.msra.mxu0 %v3270
    %4416 = vmatprep.subr.bf16.mxu0 %v3277
    %4417 = vmatpush1.bf16.msra.mxu0 %v3276
    %4418 = vmatprep.subr.bf16.mxu0 %v3283
    %4419 = vmatpush1.bf16.msra.mxu0 %v3282
    %4420 = vmatprep.mubr.bf16.mxu0 %v460
    %4421 = vmatmul.mubr.bf16.gmra.mrb[0].mxu0 %v456
    %v4422 = vpop.f32.mrb[0].mxu0
    %v4423 = vadd.f32 %v4380, %v4422
    %v4424 = vpop.f32.mrb[0].mxu0
    %v4425 = vadd.f32 %v4382, %v4424
    %v4426 = vpop.f32.mrb[0].mxu0
    %v4427 = vadd.f32 %v4384, %v4426
    %v4428 = vpop.f32.mrb[0].mxu0
    %v4429 = vadd.f32 %v4386, %v4428
    %4430 = vdwg.mxu0
    %4431 = vmatprep.subr.bf16.mxu0 %v3289
    %4432 = vmatpush1.bf16.msra.mxu0 %v3288
    %4433 = vmatprep.subr.bf16.mxu0 %v3295
    %4434 = vmatpush1.bf16.msra.mxu0 %v3294
    %4435 = vmatprep.subr.bf16.mxu0 %v3301
    %4436 = vmatpush1.bf16.msra.mxu0 %v3300
    %4437 = vmatprep.subr.bf16.mxu0 %v3307
    %4438 = vmatpush1.bf16.msra.mxu0 %v3306
    %4439 = vmatprep.subr.bf16.mxu0 %v3313
    %4440 = vmatpush1.bf16.msra.mxu0 %v3312
    %4441 = vmatprep.subr.bf16.mxu0 %v3319
    %4442 = vmatpush1.bf16.msra.mxu0 %v3318
    %4443 = vmatprep.subr.bf16.mxu0 %v3325
    %4444 = vmatpush1.bf16.msra.mxu0 %v3324
    %4445 = vmatprep.subr.bf16.mxu0 %v3331
    %4446 = vmatpush1.bf16.msra.mxu0 %v3330
    %4447 = vmatprep.subr.bf16.mxu0 %v3337
    %4448 = vmatpush1.bf16.msra.mxu0 %v3336
    %4449 = vmatprep.subr.bf16.mxu0 %v3343
    %4450 = vmatpush1.bf16.msra.mxu0 %v3342
    %4451 = vmatprep.subr.bf16.mxu0 %v3349
    %4452 = vmatpush1.bf16.msra.mxu0 %v3348
    %4453 = vmatprep.subr.bf16.mxu0 %v3355
    %4454 = vmatpush1.bf16.msra.mxu0 %v3354
    %4455 = vmatprep.subr.bf16.mxu0 %v3361
    %4456 = vmatpush1.bf16.msra.mxu0 %v3360
    %4457 = vmatprep.subr.bf16.mxu0 %v3367
    %4458 = vmatpush1.bf16.msra.mxu0 %v3366
    %4459 = vmatprep.subr.bf16.mxu0 %v3373
    %4460 = vmatpush1.bf16.msra.mxu0 %v3372
    %4461 = vmatprep.subr.bf16.mxu0 %v3379
    %4462 = vmatpush1.bf16.msra.mxu0 %v3378
    %4463 = vmatprep.mubr.bf16.mxu0 %v468
    %4464 = vmatmul.mubr.bf16.gmra.mrb[0].mxu0 %v464
    %v4465 = vpop.f32.mrb[0].mxu0
    %v4466 = vadd.f32 %v4423, %v4465
    %v4467 = vpop.f32.mrb[0].mxu0
    %v4468 = vadd.f32 %v4425, %v4467
    %v4469 = vpop.f32.mrb[0].mxu0
    %v4470 = vadd.f32 %v4427, %v4469
    %v4471 = vpop.f32.mrb[0].mxu0
    %v4472 = vadd.f32 %v4429, %v4471
    %4473 = vdwg.mxu0
    %4474 = vmatprep.subr.bf16.mxu0 %v2811
    %4475 = vmatpush1.bf16.msra.mxu0 %v2810
    %4476 = vmatprep.subr.bf16.mxu0 %v2817
    %4477 = vmatpush1.bf16.msra.mxu0 %v2816
    %4478 = vmatprep.subr.bf16.mxu0 %v2823
    %4479 = vmatpush1.bf16.msra.mxu0 %v2822
    %4480 = vmatprep.subr.bf16.mxu0 %v2829
    %4481 = vmatpush1.bf16.msra.mxu0 %v2828
    %4482 = vmatprep.subr.bf16.mxu0 %v2835
    %4483 = vmatpush1.bf16.msra.mxu0 %v2834
    %4484 = vmatprep.subr.bf16.mxu0 %v2841
    %4485 = vmatpush1.bf16.msra.mxu0 %v2840
    %4486 = vmatprep.subr.bf16.mxu0 %v2847
    %4487 = vmatpush1.bf16.msra.mxu0 %v2846
    %4488 = vmatprep.subr.bf16.mxu0 %v2853
    %4489 = vmatpush1.bf16.msra.mxu0 %v2852
    %4490 = vmatprep.subr.bf16.mxu0 %v2859
    %4491 = vmatpush1.bf16.msra.mxu0 %v2858
    %4492 = vmatprep.subr.bf16.mxu0 %v2865
    %4493 = vmatpush1.bf16.msra.mxu0 %v2864
    %4494 = vmatprep.subr.bf16.mxu0 %v2871
    %4495 = vmatpush1.bf16.msra.mxu0 %v2870
    %4496 = vmatprep.subr.bf16.mxu0 %v2877
    %4497 = vmatpush1.bf16.msra.mxu0 %v2876
    %4498 = vmatprep.subr.bf16.mxu0 %v2883
    %4499 = vmatpush1.bf16.msra.mxu0 %v2882
    %4500 = vmatprep.subr.bf16.mxu0 %v2889
    %4501 = vmatpush1.bf16.msra.mxu0 %v2888
    %4502 = vmatprep.subr.bf16.mxu0 %v2895
    %4503 = vmatpush1.bf16.msra.mxu0 %v2894
    %4504 = vmatprep.subr.bf16.mxu0 %v2901
    %4505 = vmatpush1.bf16.msra.mxu0 %v2900
    %4506 = vmatprep.mubr.bf16.mxu0 %v428
    %4507 = vmatmul.mubr.bf16.gmra.mrb[0].mxu0 %v424
    %v4508 = vpop.f32.mrb[0].mxu0
    %v4509 = vadd.f32 %v1067, %v4508
    %v4510 = vpop.f32.mrb[0].mxu0
    %v4511 = vadd.f32 %v1071, %v4510
    %v4512 = vpop.f32.mrb[0].mxu0
    %v4513 = vadd.f32 %v1067, %v4512
    %v4514 = vpop.f32.mrb[0].mxu0
    %v4515 = vadd.f32 %v1071, %v4514
    %4516 = vdwg.mxu0
    %4517 = vmatprep.subr.bf16.mxu0 %v2907
    %4518 = vmatpush1.bf16.msra.mxu0 %v2906
    %4519 = vmatprep.subr.bf16.mxu0 %v2913
    %4520 = vmatpush1.bf16.msra.mxu0 %v2912
    %4521 = vmatprep.subr.bf16.mxu0 %v2919
    %4522 = vmatpush1.bf16.msra.mxu0 %v2918
    %4523 = vmatprep.subr.bf16.mxu0 %v2925
    %4524 = vmatpush1.bf16.msra.mxu0 %v2924
    %4525 = vmatprep.subr.bf16.mxu0 %v2931
    %4526 = vmatpush1.bf16.msra.mxu0 %v2930
    %4527 = vmatprep.subr.bf16.mxu0 %v2937
    %4528 = vmatpush1.bf16.msra.mxu0 %v2936
    %4529 = vmatprep.subr.bf16.mxu0 %v2943
    %4530 = vmatpush1.bf16.msra.mxu0 %v2942
    %4531 = vmatprep.subr.bf16.mxu0 %v2949
    %4532 = vmatpush1.bf16.msra.mxu0 %v2948
    %4533 = vmatprep.subr.bf16.mxu0 %v2955
    %4534 = vmatpush1.bf16.msra.mxu0 %v2954
    %4535 = vmatprep.subr.bf16.mxu0 %v2961
    %4536 = vmatpush1.bf16.msra.mxu0 %v2960
    %4537 = vmatprep.subr.bf16.mxu0 %v2967
    %4538 = vmatpush1.bf16.msra.mxu0 %v2966
    %4539 = vmatprep.subr.bf16.mxu0 %v2973
    %4540 = vmatpush1.bf16.msra.mxu0 %v2972
    %4541 = vmatprep.subr.bf16.mxu0 %v2979
    %4542 = vmatpush1.bf16.msra.mxu0 %v2978
    %4543 = vmatprep.subr.bf16.mxu0 %v2985
    %4544 = vmatpush1.bf16.msra.mxu0 %v2984
    %4545 = vmatprep.subr.bf16.mxu0 %v2991
    %4546 = vmatpush1.bf16.msra.mxu0 %v2990
    %4547 = vmatprep.subr.bf16.mxu0 %v2997
    %4548 = vmatpush1.bf16.msra.mxu0 %v2996
    %4549 = vmatprep.mubr.bf16.mxu0 %v436
    %4550 = vmatmul.mubr.bf16.gmra.mrb[0].mxu0 %v432
    %v4551 = vpop.f32.mrb[0].mxu0
    %v4552 = vadd.f32 %v4509, %v4551
    %v4553 = vpop.f32.mrb[0].mxu0
    %v4554 = vadd.f32 %v4511, %v4553
    %v4555 = vpop.f32.mrb[0].mxu0
    %v4556 = vadd.f32 %v4513, %v4555
    %v4557 = vpop.f32.mrb[0].mxu0
    %v4558 = vadd.f32 %v4515, %v4557
    %4559 = vdwg.mxu0
    %4560 = vmatprep.subr.bf16.mxu0 %v3003
    %4561 = vmatpush1.bf16.msra.mxu0 %v3002
    %4562 = vmatprep.subr.bf16.mxu0 %v3009
    %4563 = vmatpush1.bf16.msra.mxu0 %v3008
    %4564 = vmatprep.subr.bf16.mxu0 %v3015
    %4565 = vmatpush1.bf16.msra.mxu0 %v3014
    %4566 = vmatprep.subr.bf16.mxu0 %v3021
    %4567 = vmatpush1.bf16.msra.mxu0 %v3020
    %4568 = vmatprep.subr.bf16.mxu0 %v3027
    %4569 = vmatpush1.bf16.msra.mxu0 %v3026
    %4570 = vmatprep.subr.bf16.mxu0 %v3033
    %4571 = vmatpush1.bf16.msra.mxu0 %v3032
    %4572 = vmatprep.subr.bf16.mxu0 %v3039
    %4573 = vmatpush1.bf16.msra.mxu0 %v3038
    %4574 = vmatprep.subr.bf16.mxu0 %v3045
    %4575 = vmatpush1.bf16.msra.mxu0 %v3044
    %4576 = vmatprep.subr.bf16.mxu0 %v3051
    %4577 = vmatpush1.bf16.msra.mxu0 %v3050
    %4578 = vmatprep.subr.bf16.mxu0 %v3057
    %4579 = vmatpush1.bf16.msra.mxu0 %v3056
    %4580 = vmatprep.subr.bf16.mxu0 %v3063
    %4581 = vmatpush1.bf16.msra.mxu0 %v3062
    %4582 = vmatprep.subr.bf16.mxu0 %v3069
    %4583 = vmatpush1.bf16.msra.mxu0 %v3068
    %4584 = vmatprep.subr.bf16.mxu0 %v3075
    %4585 = vmatpush1.bf16.msra.mxu0 %v3074
    %4586 = vmatprep.subr.bf16.mxu0 %v3081
    %4587 = vmatpush1.bf16.msra.mxu0 %v3080
    %4588 = vmatprep.subr.bf16.mxu0 %v3087
    %4589 = vmatpush1.bf16.msra.mxu0 %v3086
    %4590 = vmatprep.subr.bf16.mxu0 %v3093
    %4591 = vmatpush1.bf16.msra.mxu0 %v3092
    %4592 = vmatprep.mubr.bf16.mxu0 %v444
    %4593 = vmatmul.mubr.bf16.gmra.mrb[0].mxu0 %v440
    %v4594 = vpop.f32.mrb[0].mxu0
    %v4595 = vadd.f32 %v4552, %v4594
    %v4596 = vpop.f32.mrb[0].mxu0
    %v4597 = vadd.f32 %v4554, %v4596
    %v4598 = vpop.f32.mrb[0].mxu0
    %v4599 = vadd.f32 %v4556, %v4598
    %v4600 = vpop.f32.mrb[0].mxu0
    %v4601 = vadd.f32 %v4558, %v4600
    %4602 = vdwg.mxu0
    %4603 = vmatprep.subr.bf16.mxu0 %v3099
    %4604 = vmatpush1.bf16.msra.mxu0 %v3098
    %4605 = vmatprep.subr.bf16.mxu0 %v3105
    %4606 = vmatpush1.bf16.msra.mxu0 %v3104
    %4607 = vmatprep.subr.bf16.mxu0 %v3111
    %4608 = vmatpush1.bf16.msra.mxu0 %v3110
    %4609 = vmatprep.subr.bf16.mxu0 %v3117
    %4610 = vmatpush1.bf16.msra.mxu0 %v3116
    %4611 = vmatprep.subr.bf16.mxu0 %v3123
    %4612 = vmatpush1.bf16.msra.mxu0 %v3122
    %4613 = vmatprep.subr.bf16.mxu0 %v3129
    %4614 = vmatpush1.bf16.msra.mxu0 %v3128
    %4615 = vmatprep.subr.bf16.mxu0 %v3135
    %4616 = vmatpush1.bf16.msra.mxu0 %v3134
    %4617 = vmatprep.subr.bf16.mxu0 %v3141
    %4618 = vmatpush1.bf16.msra.mxu0 %v3140
    %4619 = vmatprep.subr.bf16.mxu0 %v3147
    %4620 = vmatpush1.bf16.msra.mxu0 %v3146
    %4621 = vmatprep.subr.bf16.mxu0 %v3153
    %4622 = vmatpush1.bf16.msra.mxu0 %v3152
    %4623 = vmatprep.subr.bf16.mxu0 %v3159
    %4624 = vmatpush1.bf16.msra.mxu0 %v3158
    %4625 = vmatprep.subr.bf16.mxu0 %v3165
    %4626 = vmatpush1.bf16.msra.mxu0 %v3164
    %4627 = vmatprep.subr.bf16.mxu0 %v3171
    %4628 = vmatpush1.bf16.msra.mxu0 %v3170
    %4629 = vmatprep.subr.bf16.mxu0 %v3177
    %4630 = vmatpush1.bf16.msra.mxu0 %v3176
    %4631 = vmatprep.subr.bf16.mxu0 %v3183
    %4632 = vmatpush1.bf16.msra.mxu0 %v3182
    %4633 = vmatprep.subr.bf16.mxu0 %v3189
    %4634 = vmatpush1.bf16.msra.mxu0 %v3188
    %4635 = vmatprep.mubr.bf16.mxu0 %v452
    %4636 = vmatmul.mubr.bf16.gmra.mrb[0].mxu0 %v448
    %v4637 = vpop.f32.mrb[0].mxu0
    %v4638 = vadd.f32 %v4595, %v4637
    %v4639 = vpop.f32.mrb[0].mxu0
    %v4640 = vadd.f32 %v4597, %v4639
    %v4641 = vpop.f32.mrb[0].mxu0
    %v4642 = vadd.f32 %v4599, %v4641
    %v4643 = vpop.f32.mrb[0].mxu0
    %v4644 = vadd.f32 %v4601, %v4643
    %4645 = vdwg.mxu0
    %4646 = vmatprep.subr.bf16.mxu0 %v3195
    %4647 = vmatpush1.bf16.msra.mxu0 %v3194
    %4648 = vmatprep.subr.bf16.mxu0 %v3201
    %4649 = vmatpush1.bf16.msra.mxu0 %v3200
    %4650 = vmatprep.subr.bf16.mxu0 %v3207
    %4651 = vmatpush1.bf16.msra.mxu0 %v3206
    %4652 = vmatprep.subr.bf16.mxu0 %v3213
    %4653 = vmatpush1.bf16.msra.mxu0 %v3212
    %4654 = vmatprep.subr.bf16.mxu0 %v3219
    %4655 = vmatpush1.bf16.msra.mxu0 %v3218
    %4656 = vmatprep.subr.bf16.mxu0 %v3225
    %4657 = vmatpush1.bf16.msra.mxu0 %v3224
    %4658 = vmatprep.subr.bf16.mxu0 %v3231
    %4659 = vmatpush1.bf16.msra.mxu0 %v3230
    %4660 = vmatprep.subr.bf16.mxu0 %v3237
    %4661 = vmatpush1.bf16.msra.mxu0 %v3236
    %4662 = vmatprep.subr.bf16.mxu0 %v3243
    %4663 = vmatpush1.bf16.msra.mxu0 %v3242
    %4664 = vmatprep.subr.bf16.mxu0 %v3249
    %4665 = vmatpush1.bf16.msra.mxu0 %v3248
    %4666 = vmatprep.subr.bf16.mxu0 %v3255
    %4667 = vmatpush1.bf16.msra.mxu0 %v3254
    %4668 = vmatprep.subr.bf16.mxu0 %v3261
    %4669 = vmatpush1.bf16.msra.mxu0 %v3260
    %4670 = vmatprep.subr.bf16.mxu0 %v3267
    %4671 = vmatpush1.bf16.msra.mxu0 %v3266
    %4672 = vmatprep.subr.bf16.mxu0 %v3273
    %4673 = vmatpush1.bf16.msra.mxu0 %v3272
    %4674 = vmatprep.subr.bf16.mxu0 %v3279
    %4675 = vmatpush1.bf16.msra.mxu0 %v3278
    %4676 = vmatprep.subr.bf16.mxu0 %v3285
    %4677 = vmatpush1.bf16.msra.mxu0 %v3284
    %4678 = vmatprep.mubr.bf16.mxu0 %v460
    %4679 = vmatmul.mubr.bf16.gmra.mrb[0].mxu0 %v456
    %v4680 = vpop.f32.mrb[0].mxu0
    %v4681 = vadd.f32 %v4638, %v4680
    %v4682 = vpop.f32.mrb[0].mxu0
    %v4683 = vadd.f32 %v4640, %v4682
    %v4684 = vpop.f32.mrb[0].mxu0
    %v4685 = vadd.f32 %v4642, %v4684
    %v4686 = vpop.f32.mrb[0].mxu0
    %v4687 = vadd.f32 %v4644, %v4686
    %4688 = vdwg.mxu0
    %4689 = vmatprep.subr.bf16.mxu0 %v3291
    %4690 = vmatpush1.bf16.msra.mxu0 %v3290
    %4691 = vmatprep.subr.bf16.mxu0 %v3297
    %4692 = vmatpush1.bf16.msra.mxu0 %v3296
    %4693 = vmatprep.subr.bf16.mxu0 %v3303
    %4694 = vmatpush1.bf16.msra.mxu0 %v3302
    %4695 = vmatprep.subr.bf16.mxu0 %v3309
    %4696 = vmatpush1.bf16.msra.mxu0 %v3308
    %4697 = vmatprep.subr.bf16.mxu0 %v3315
    %4698 = vmatpush1.bf16.msra.mxu0 %v3314
    %4699 = vmatprep.subr.bf16.mxu0 %v3321
    %4700 = vmatpush1.bf16.msra.mxu0 %v3320
    %4701 = vmatprep.subr.bf16.mxu0 %v3327
    %4702 = vmatpush1.bf16.msra.mxu0 %v3326
    %4703 = vmatprep.subr.bf16.mxu0 %v3333
    %4704 = vmatpush1.bf16.msra.mxu0 %v3332
    %4705 = vmatprep.subr.bf16.mxu0 %v3339
    %4706 = vmatpush1.bf16.msra.mxu0 %v3338
    %4707 = vmatprep.subr.bf16.mxu0 %v3345
    %4708 = vmatpush1.bf16.msra.mxu0 %v3344
    %4709 = vmatprep.subr.bf16.mxu0 %v3351
    %4710 = vmatpush1.bf16.msra.mxu0 %v3350
    %4711 = vmatprep.subr.bf16.mxu0 %v3357
    %4712 = vmatpush1.bf16.msra.mxu0 %v3356
    %4713 = vmatprep.subr.bf16.mxu0 %v3363
    %4714 = vmatpush1.bf16.msra.mxu0 %v3362
    %4715 = vmatprep.subr.bf16.mxu0 %v3369
    %4716 = vmatpush1.bf16.msra.mxu0 %v3368
    %4717 = vmatprep.subr.bf16.mxu0 %v3375
    %4718 = vmatpush1.bf16.msra.mxu0 %v3374
    %4719 = vmatprep.subr.bf16.mxu0 %v3381
    %4720 = vmatpush1.bf16.msra.mxu0 %v3380
    %4721 = vmatprep.mubr.bf16.mxu0 %v468
    %4722 = vmatmul.mubr.bf16.gmra.mrb[0].mxu0 %v464
    %v4723 = vpop.f32.mrb[0].mxu0
    %v4724 = vadd.f32 %v4681, %v4723
    %v4725 = vpop.f32.mrb[0].mxu0
    %v4726 = vadd.f32 %v4683, %v4725
    %v4727 = vpop.f32.mrb[0].mxu0
    %v4728 = vadd.f32 %v4685, %v4727
    %v4729 = vpop.f32.mrb[0].mxu0
    %v4730 = vadd.f32 %v4687, %v4729
    %4731 = vdwg.mxu0
    %v4732 = vld [vmem:[#allocation7] sm:$0x3f]
    %v4733 = vld [vmem:[#allocation8] sm:$0x3f]
    %v4734 = vadd.f32 %v4208, %v4210
    %v4735 = vadd.f32 %v4734, %v4466
    %v4736 = vadd.f32 %v4735, %v4468
    %v4737 = vadd.f32 %v4736, %v4724
    %v4738 = vadd.f32 %v4737, %v4726
    %4739 = vadd.xlane.f32.xlu0 %v4738
    %v4740 = vpop.xlane.xlu0 %4739
    %v4741 = vadd.f32 %v4212, %v4214
    %v4742 = vadd.f32 %v4741, %v4470
    %v4743 = vadd.f32 %v4742, %v4472
    %v4744 = vadd.f32 %v4743, %v4728
    %v4745 = vadd.f32 %v4744, %v4730
    %4746 = vadd.xlane.f32.xlu0 %v4745
    %v4747 = vpop.xlane.xlu0 %4746
    %v4748 = vmul.f32 %v4208, %v4208
    %v4749 = vmul.f32 %v4210, %v4210
    %v4750 = vmul.f32 %v4466, %v4466
    %v4751 = vmul.f32 %v4468, %v4468
    %v4752 = vmul.f32 %v4724, %v4724
    %v4753 = vmul.f32 %v4726, %v4726
    %v4754 = vmul.f32 %v4212, %v4212
    %v4755 = vmul.f32 %v4214, %v4214
    %v4756 = vmul.f32 %v4470, %v4470
    %v4757 = vmul.f32 %v4472, %v4472
    %v4758 = vmul.f32 %v4728, %v4728
    %v4759 = vmul.f32 %v4730, %v4730
    %v4760 = vadd.f32 %v4748, %v4749
    %v4761 = vadd.f32 %v4760, %v4750
    %v4762 = vadd.f32 %v4761, %v4751
    %v4763 = vadd.f32 %v4762, %v4752
    %v4764 = vadd.f32 %v4763, %v4753
    %4765 = vadd.xlane.f32.xlu0 %v4764
    %v4766 = vpop.xlane.xlu0 %4765
    %v4767 = vadd.f32 %v4754, %v4755
    %v4768 = vadd.f32 %v4767, %v4756
    %v4769 = vadd.f32 %v4768, %v4757
    %v4770 = vadd.f32 %v4769, %v4758
    %v4771 = vadd.f32 %v4770, %v4759
    %4772 = vadd.xlane.f32.xlu0 %v4771
    %v4773 = vpop.xlane.xlu0 %4772
    %v4774 = vmul.f32 %v4740, 0.0013020834
    %v4775 = vmul.f32 %v4747, 0.0013020834
    %v4776 = vmul.f32 %v4766, 0.0013020834
    %v4777 = vmul.f32 %v4773, 0.0013020834
    %v4778 = vmul.f32 %v4774, %v4774
    %v4779 = vmul.f32 %v4775, %v4775
    %v4780 = vsub.f32 %v4776, %v4778
    %v4781 = vsub.f32 %v4777, %v4779
    %v4782 = vmax.f32 %v4780, 0.0
    %v4783 = vmax.f32 %v4781, 0.0
    %v4784 = vsub.f32 %v4208, %v4774
    %v4785 = vsub.f32 %v4210, %v4774
    %v4786 = vsub.f32 %v4466, %v4774
    %v4787 = vsub.f32 %v4468, %v4774
    %v4788 = vsub.f32 %v4724, %v4774
    %v4789 = vsub.f32 %v4726, %v4774
    %v4790 = vsub.f32 %v4212, %v4775
    %v4791 = vsub.f32 %v4214, %v4775
    %v4792 = vsub.f32 %v4470, %v4775
    %v4793 = vsub.f32 %v4472, %v4775
    %v4794 = vsub.f32 %v4728, %v4775
    %v4795 = vsub.f32 %v4730, %v4775
    %v4796 = vadd.f32 %v4782, 1e-05
    %v4797 = vadd.f32 %v4783, 1e-05
    %v4798 = vrsqrt.pop %v4796
    %v4799 = vrsqrt.pop %v4797
    %v4800 = vmul.f32 %v4784, %v4798
    %v4801 = vmul.f32 %v4785, %v4798
    %v4802 = vmul.f32 %v4786, %v4798
    %v4803 = vmul.f32 %v4787, %v4798
    %v4804 = vmul.f32 %v4788, %v4798
    %v4805 = vmul.f32 %v4789, %v4798
    %v4806 = vmul.f32 %v4790, %v4799
    %v4807 = vmul.f32 %v4791, %v4799
    %v4808 = vmul.f32 %v4792, %v4799
    %v4809 = vmul.f32 %v4793, %v4799
    %v4810 = vmul.f32 %v4794, %v4799
    %v4811 = vmul.f32 %v4795, %v4799
    %v4813 = vlaneseq
    %v4814 = vshrl.u32 %v4813, 7
    %v4815 = vsub.s32 0, %v4814
    %v4816 = vrot.slane %v4732, %v4815
    %v4817 = vlaneseq
    %v4818 = vshrl.u32 %v4817, 7
    %v4819 = vsub.s32 1, %v4818
    %v4820 = vrot.slane %v4732, %v4819
    %v4821 = vlaneseq
    %v4822 = vshrl.u32 %v4821, 7
    %v4823 = vsub.s32 2, %v4822
    %v4824 = vrot.slane %v4732, %v4823
    %v4825 = vlaneseq
    %v4826 = vshrl.u32 %v4825, 7
    %v4827 = vsub.s32 3, %v4826
    %v4828 = vrot.slane %v4732, %v4827
    %v4829 = vlaneseq
    %v4830 = vshrl.u32 %v4829, 7
    %v4831 = vsub.s32 4, %v4830
    %v4832 = vrot.slane %v4732, %v4831
    %v4833 = vlaneseq
    %v4834 = vshrl.u32 %v4833, 7
    %v4835 = vsub.s32 5, %v4834
    %v4836 = vrot.slane %v4732, %v4835
    %v4843 = vmul.f32 %v4800, %v4816
    %v4844 = vmul.f32 %v4801, %v4820
    %v4845 = vmul.f32 %v4802, %v4824
    %v4846 = vmul.f32 %v4803, %v4828
    %v4847 = vmul.f32 %v4804, %v4832
    %v4848 = vmul.f32 %v4805, %v4836
    %v4849 = vmul.f32 %v4806, %v4816
    %v4850 = vmul.f32 %v4807, %v4820
    %v4851 = vmul.f32 %v4808, %v4824
    %v4852 = vmul.f32 %v4809, %v4828
    %v4853 = vmul.f32 %v4810, %v4832
    %v4854 = vmul.f32 %v4811, %v4836
    %v4856 = vlaneseq
    %v4857 = vshrl.u32 %v4856, 7
    %v4858 = vsub.s32 0, %v4857
    %v4859 = vrot.slane %v4733, %v4858
    %v4860 = vlaneseq
    %v4861 = vshrl.u32 %v4860, 7
    %v4862 = vsub.s32 1, %v4861
    %v4863 = vrot.slane %v4733, %v4862
    %v4864 = vlaneseq
    %v4865 = vshrl.u32 %v4864, 7
    %v4866 = vsub.s32 2, %v4865
    %v4867 = vrot.slane %v4733, %v4866
    %v4868 = vlaneseq
    %v4869 = vshrl.u32 %v4868, 7
    %v4870 = vsub.s32 3, %v4869
    %v4871 = vrot.slane %v4733, %v4870
    %v4872 = vlaneseq
    %v4873 = vshrl.u32 %v4872, 7
    %v4874 = vsub.s32 4, %v4873
    %v4875 = vrot.slane %v4733, %v4874
    %v4876 = vlaneseq
    %v4877 = vshrl.u32 %v4876, 7
    %v4878 = vsub.s32 5, %v4877
    %v4879 = vrot.slane %v4733, %v4878
    %v4886 = vadd.f32 %v4843, %v4859
    %v4887 = vadd.f32 %v4844, %v4863
    %v4888 = vadd.f32 %v4845, %v4867
    %v4889 = vadd.f32 %v4846, %v4871
    %v4890 = vadd.f32 %v4847, %v4875
    %v4891 = vadd.f32 %v4848, %v4879
    %v4892 = vadd.f32 %v4849, %v4859
    %v4893 = vadd.f32 %v4850, %v4863
    %v4894 = vadd.f32 %v4851, %v4867
    %v4895 = vadd.f32 %v4852, %v4871
    %v4896 = vadd.f32 %v4853, %v4875
    %v4897 = vadd.f32 %v4854, %v4879
    %v4898 = vmax.f32 %v4886, 0.0
    %v4899 = vmax.f32 %v4887, 0.0
    %v4900 = vmax.f32 %v4888, 0.0
    %v4901 = vmax.f32 %v4889, 0.0
    %v4902 = vmax.f32 %v4890, 0.0
    %v4903 = vmax.f32 %v4891, 0.0
    %v4904 = vmax.f32 %v4892, 0.0
    %v4905 = vmax.f32 %v4893, 0.0
    %v4906 = vmax.f32 %v4894, 0.0
    %v4907 = vmax.f32 %v4895, 0.0
    %v4908 = vmax.f32 %v4896, 0.0
    %v4909 = vmax.f32 %v4897, 0.0
    %v4910 = vpack.c.bf16 %v4904, %v4898
    %v4911 = vpack.c.bf16 %v4905, %v4899
    %v4912 = vpack.c.bf16 %v4906, %v4900
    %v4913 = vpack.c.bf16 %v4907, %v4901
    %v4914 = vpack.c.bf16 %v4908, %v4902
    %v4915 = vpack.c.bf16 %v4909, %v4903
    %v4916 = vld [vmem:[#allocation10] sm:$0xff]
    %v4917 = vld [vmem:[#allocation10 + $0x8] sm:$0xf]
    %v4918 = vld [vmem:[#allocation10 + $0xc] sm:$0xff]
    %v4919 = vld [vmem:[#allocation10 + $0x14] sm:$0xf]
    %v4920 = vld [vmem:[#allocation10 + $0x18] sm:$0xff]
    %v4921 = vld [vmem:[#allocation10 + $0x20] sm:$0xf]
    %v4922 = vld [vmem:[#allocation10 + $0x24] sm:$0xff]
    %v4923 = vld [vmem:[#allocation10 + $0x2c] sm:$0xf]
    %v4924 = vld [vmem:[#allocation10 + $0x30] sm:$0xff]
    %v4925 = vld [vmem:[#allocation10 + $0x38] sm:$0xf]
    %v4926 = vld [vmem:[#allocation10 + $0x3c] sm:$0xff]
    %v4927 = vld [vmem:[#allocation10 + $0x44] sm:$0xf]
    %v4928 = vld [vmem:[#allocation10 + $0x48] sm:$0xff]
    %v4929 = vld [vmem:[#allocation10 + $0x50] sm:$0xf]
    %v4930 = vld [vmem:[#allocation10 + $0x54] sm:$0xff]
    %v4931 = vld [vmem:[#allocation10 + $0x5c] sm:$0xf]
    %v4932 = vld [vmem:[#allocation10 + $0x60] sm:$0xff]
    %v4933 = vld [vmem:[#allocation10 + $0x68] sm:$0xf]
    %v4934 = vld [vmem:[#allocation10 + $0x6c] sm:$0xff]
    %v4935 = vld [vmem:[#allocation10 + $0x74] sm:$0xf]
    %v4936 = vld [vmem:[#allocation10 + $0x78] sm:$0xff]
    %v4937 = vld [vmem:[#allocation10 + $0x80] sm:$0xf]
    %v4938 = vld [vmem:[#allocation10 + $0x84] sm:$0xff]
    %v4939 = vld [vmem:[#allocation10 + $0x8c] sm:$0xf]
    %v4940 = vld [vmem:[#allocation10 + $0x90] sm:$0xff]
    %v4941 = vld [vmem:[#allocation10 + $0x98] sm:$0xf]
    %v4942 = vld [vmem:[#allocation10 + $0x9c] sm:$0xff]
    %v4943 = vld [vmem:[#allocation10 + $0xa4] sm:$0xf]
    %v4944 = vld [vmem:[#allocation10 + $0xa8] sm:$0xff]
    %v4945 = vld [vmem:[#allocation10 + $0xb0] sm:$0xf]
    %v4946 = vld [vmem:[#allocation10 + $0xb4] sm:$0xff]
    %v4947 = vld [vmem:[#allocation10 + $0xbc] sm:$0xf]
    %v4948 = vld [vmem:[#allocation10 + $0xc0] sm:$0xff]
    %v4949 = vld [vmem:[#allocation10 + $0xc8] sm:$0xf]
    %v4950 = vld [vmem:[#allocation10 + $0xcc] sm:$0xff]
    %v4951 = vld [vmem:[#allocation10 + $0xd4] sm:$0xf]
    %v4952 = vld [vmem:[#allocation10 + $0xd8] sm:$0xff]
    %v4953 = vld [vmem:[#allocation10 + $0xe0] sm:$0xf]
    %v4954 = vld [vmem:[#allocation10 + $0xe4] sm:$0xff]
    %v4955 = vld [vmem:[#allocation10 + $0xec] sm:$0xf]
    %v4956 = vld [vmem:[#allocation10 + $0xf0] sm:$0xff]
    %v4957 = vld [vmem:[#allocation10 + $0xf8] sm:$0xf]
    %v4958 = vld [vmem:[#allocation10 + $0xfc] sm:$0xff]
    %v4959 = vld [vmem:[#allocation10 + $0x104] sm:$0xf]
    %v4960 = vld [vmem:[#allocation10 + $0x108] sm:$0xff]
    %v4961 = vld [vmem:[#allocation10 + $0x110] sm:$0xf]
    %v4962 = vld [vmem:[#allocation10 + $0x114] sm:$0xff]
    %v4963 = vld [vmem:[#allocation10 + $0x11c] sm:$0xf]
    %v4964 = vld [vmem:[#allocation10 + $0x120] sm:$0xff]
    %v4965 = vld [vmem:[#allocation10 + $0x128] sm:$0xf]
    %v4966 = vld [vmem:[#allocation10 + $0x12c] sm:$0xff]
    %v4967 = vld [vmem:[#allocation10 + $0x134] sm:$0xf]
    %v4968 = vld [vmem:[#allocation10 + $0x138] sm:$0xff]
    %v4969 = vld [vmem:[#allocation10 + $0x140] sm:$0xf]
    %v4970 = vld [vmem:[#allocation10 + $0x144] sm:$0xff]
    %v4971 = vld [vmem:[#allocation10 + $0x14c] sm:$0xf]
    %v4972 = vld [vmem:[#allocation10 + $0x150] sm:$0xff]
    %v4973 = vld [vmem:[#allocation10 + $0x158] sm:$0xf]
    %v4974 = vld [vmem:[#allocation10 + $0x15c] sm:$0xff]
    %v4975 = vld [vmem:[#allocation10 + $0x164] sm:$0xf]
    %v4976 = vld [vmem:[#allocation10 + $0x168] sm:$0xff]
    %v4977 = vld [vmem:[#allocation10 + $0x170] sm:$0xf]
    %v4978 = vld [vmem:[#allocation10 + $0x174] sm:$0xff]
    %v4979 = vld [vmem:[#allocation10 + $0x17c] sm:$0xf]
    %v4980 = vld [vmem:[#allocation10 + $0x180] sm:$0xff]
    %v4981 = vld [vmem:[#allocation10 + $0x188] sm:$0xf]
    %v4982 = vld [vmem:[#allocation10 + $0x18c] sm:$0xff]
    %v4983 = vld [vmem:[#allocation10 + $0x194] sm:$0xf]
    %v4984 = vld [vmem:[#allocation10 + $0x198] sm:$0xff]
    %v4985 = vld [vmem:[#allocation10 + $0x1a0] sm:$0xf]
    %v4986 = vld [vmem:[#allocation10 + $0x1a4] sm:$0xff]
    %v4987 = vld [vmem:[#allocation10 + $0x1ac] sm:$0xf]
    %v4988 = vld [vmem:[#allocation10 + $0x1b0] sm:$0xff]
    %v4989 = vld [vmem:[#allocation10 + $0x1b8] sm:$0xf]
    %v4990 = vld [vmem:[#allocation10 + $0x1bc] sm:$0xff]
    %v4991 = vld [vmem:[#allocation10 + $0x1c4] sm:$0xf]
    %v4992 = vld [vmem:[#allocation10 + $0x1c8] sm:$0xff]
    %v4993 = vld [vmem:[#allocation10 + $0x1d0] sm:$0xf]
    %v4994 = vld [vmem:[#allocation10 + $0x1d4] sm:$0xff]
    %v4995 = vld [vmem:[#allocation10 + $0x1dc] sm:$0xf]
    %v4996 = vld [vmem:[#allocation10 + $0x1e0] sm:$0xff]
    %v4997 = vld [vmem:[#allocation10 + $0x1e8] sm:$0xf]
    %v4998 = vld [vmem:[#allocation10 + $0x1ec] sm:$0xff]
    %v4999 = vld [vmem:[#allocation10 + $0x1f4] sm:$0xf]
    %v5000 = vld [vmem:[#allocation10 + $0x1f8] sm:$0xff]
    %v5001 = vld [vmem:[#allocation10 + $0x200] sm:$0xf]
    %v5002 = vld [vmem:[#allocation10 + $0x204] sm:$0xff]
    %v5003 = vld [vmem:[#allocation10 + $0x20c] sm:$0xf]
    %v5004 = vld [vmem:[#allocation10 + $0x210] sm:$0xff]
    %v5005 = vld [vmem:[#allocation10 + $0x218] sm:$0xf]
    %v5006 = vld [vmem:[#allocation10 + $0x21c] sm:$0xff]
    %v5007 = vld [vmem:[#allocation10 + $0x224] sm:$0xf]
    %v5008 = vld [vmem:[#allocation10 + $0x228] sm:$0xff]
    %v5009 = vld [vmem:[#allocation10 + $0x230] sm:$0xf]
    %v5010 = vld [vmem:[#allocation10 + $0x234] sm:$0xff]
    %v5011 = vld [vmem:[#allocation10 + $0x23c] sm:$0xf]
    %v5012 = vld [vmem:[#allocation10 + $0x240] sm:$0xff]
    %v5013 = vld [vmem:[#allocation10 + $0x248] sm:$0xf]
    %v5014 = vld [vmem:[#allocation10 + $0x24c] sm:$0xff]
    %v5015 = vld [vmem:[#allocation10 + $0x254] sm:$0xf]
    %v5016 = vld [vmem:[#allocation10 + $0x258] sm:$0xff]
    %v5017 = vld [vmem:[#allocation10 + $0x260] sm:$0xf]
    %v5018 = vld [vmem:[#allocation10 + $0x264] sm:$0xff]
    %v5019 = vld [vmem:[#allocation10 + $0x26c] sm:$0xf]
    %v5020 = vld [vmem:[#allocation10 + $0x270] sm:$0xff]
    %v5021 = vld [vmem:[#allocation10 + $0x278] sm:$0xf]
    %v5022 = vld [vmem:[#allocation10 + $0x27c] sm:$0xff]
    %v5023 = vld [vmem:[#allocation10 + $0x284] sm:$0xf]
    %v5024 = vld [vmem:[#allocation10 + $0x288] sm:$0xff]
    %v5025 = vld [vmem:[#allocation10 + $0x290] sm:$0xf]
    %v5026 = vld [vmem:[#allocation10 + $0x294] sm:$0xff]
    %v5027 = vld [vmem:[#allocation10 + $0x29c] sm:$0xf]
    %v5028 = vld [vmem:[#allocation10 + $0x2a0] sm:$0xff]
    %v5029 = vld [vmem:[#allocation10 + $0x2a8] sm:$0xf]
    %v5030 = vld [vmem:[#allocation10 + $0x2ac] sm:$0xff]
    %v5031 = vld [vmem:[#allocation10 + $0x2b4] sm:$0xf]
    %v5032 = vld [vmem:[#allocation10 + $0x2b8] sm:$0xff]
    %v5033 = vld [vmem:[#allocation10 + $0x2c0] sm:$0xf]
    %v5034 = vld [vmem:[#allocation10 + $0x2c4] sm:$0xff]
    %v5035 = vld [vmem:[#allocation10 + $0x2cc] sm:$0xf]
    %v5036 = vld [vmem:[#allocation10 + $0x2d0] sm:$0xff]
    %v5037 = vld [vmem:[#allocation10 + $0x2d8] sm:$0xf]
    %v5038 = vld [vmem:[#allocation10 + $0x2dc] sm:$0xff]
    %v5039 = vld [vmem:[#allocation10 + $0x2e4] sm:$0xf]
    %v5040 = vld [vmem:[#allocation10 + $0x2e8] sm:$0xff]
    %v5041 = vld [vmem:[#allocation10 + $0x2f0] sm:$0xf]
    %v5042 = vld [vmem:[#allocation10 + $0x2f4] sm:$0xff]
    %v5043 = vld [vmem:[#allocation10 + $0x2fc] sm:$0xf]
    %v5044 = vld [vmem:[#allocation10 + $0x300] sm:$0xff]
    %v5045 = vld [vmem:[#allocation10 + $0x308] sm:$0xf]
    %v5046 = vld [vmem:[#allocation10 + $0x30c] sm:$0xff]
    %v5047 = vld [vmem:[#allocation10 + $0x314] sm:$0xf]
    %v5048 = vld [vmem:[#allocation10 + $0x318] sm:$0xff]
    %v5049 = vld [vmem:[#allocation10 + $0x320] sm:$0xf]
    %v5050 = vld [vmem:[#allocation10 + $0x324] sm:$0xff]
    %v5051 = vld [vmem:[#allocation10 + $0x32c] sm:$0xf]
    %v5052 = vld [vmem:[#allocation10 + $0x330] sm:$0xff]
    %v5053 = vld [vmem:[#allocation10 + $0x338] sm:$0xf]
    %v5054 = vld [vmem:[#allocation10 + $0x33c] sm:$0xff]
    %v5055 = vld [vmem:[#allocation10 + $0x344] sm:$0xf]
    %v5056 = vld [vmem:[#allocation10 + $0x348] sm:$0xff]
    %v5057 = vld [vmem:[#allocation10 + $0x350] sm:$0xf]
    %v5058 = vld [vmem:[#allocation10 + $0x354] sm:$0xff]
    %v5059 = vld [vmem:[#allocation10 + $0x35c] sm:$0xf]
    %v5060 = vld [vmem:[#allocation10 + $0x360] sm:$0xff]
    %v5061 = vld [vmem:[#allocation10 + $0x368] sm:$0xf]
    %v5062 = vld [vmem:[#allocation10 + $0x36c] sm:$0xff]
    %v5063 = vld [vmem:[#allocation10 + $0x374] sm:$0xf]
    %v5064 = vld [vmem:[#allocation10 + $0x378] sm:$0xff]
    %v5065 = vld [vmem:[#allocation10 + $0x380] sm:$0xf]
    %v5066 = vld [vmem:[#allocation10 + $0x384] sm:$0xff]
    %v5067 = vld [vmem:[#allocation10 + $0x38c] sm:$0xf]
    %v5068 = vld [vmem:[#allocation10 + $0x390] sm:$0xff]
    %v5069 = vld [vmem:[#allocation10 + $0x398] sm:$0xf]
    %v5070 = vld [vmem:[#allocation10 + $0x39c] sm:$0xff]
    %v5071 = vld [vmem:[#allocation10 + $0x3a4] sm:$0xf]
    %v5072 = vld [vmem:[#allocation10 + $0x3a8] sm:$0xff]
    %v5073 = vld [vmem:[#allocation10 + $0x3b0] sm:$0xf]
    %v5074 = vld [vmem:[#allocation10 + $0x3b4] sm:$0xff]
    %v5075 = vld [vmem:[#allocation10 + $0x3bc] sm:$0xf]
    %v5076 = vld [vmem:[#allocation10 + $0x3c0] sm:$0xff]
    %v5077 = vld [vmem:[#allocation10 + $0x3c8] sm:$0xf]
    %v5078 = vld [vmem:[#allocation10 + $0x3cc] sm:$0xff]
    %v5079 = vld [vmem:[#allocation10 + $0x3d4] sm:$0xf]
    %v5080 = vld [vmem:[#allocation10 + $0x3d8] sm:$0xff]
    %v5081 = vld [vmem:[#allocation10 + $0x3e0] sm:$0xf]
    %v5082 = vld [vmem:[#allocation10 + $0x3e4] sm:$0xff]
    %v5083 = vld [vmem:[#allocation10 + $0x3ec] sm:$0xf]
    %v5084 = vld [vmem:[#allocation10 + $0x3f0] sm:$0xff]
    %v5085 = vld [vmem:[#allocation10 + $0x3f8] sm:$0xf]
    %v5086 = vld [vmem:[#allocation10 + $0x3fc] sm:$0xff]
    %v5087 = vld [vmem:[#allocation10 + $0x404] sm:$0xf]
    %v5088 = vld [vmem:[#allocation10 + $0x408] sm:$0xff]
    %v5089 = vld [vmem:[#allocation10 + $0x410] sm:$0xf]
    %v5090 = vld [vmem:[#allocation10 + $0x414] sm:$0xff]
    %v5091 = vld [vmem:[#allocation10 + $0x41c] sm:$0xf]
    %v5092 = vld [vmem:[#allocation10 + $0x420] sm:$0xff]
    %v5093 = vld [vmem:[#allocation10 + $0x428] sm:$0xf]
    %v5094 = vld [vmem:[#allocation10 + $0x42c] sm:$0xff]
    %v5095 = vld [vmem:[#allocation10 + $0x434] sm:$0xf]
    %v5096 = vld [vmem:[#allocation10 + $0x438] sm:$0xff]
    %v5097 = vld [vmem:[#allocation10 + $0x440] sm:$0xf]
    %v5098 = vld [vmem:[#allocation10 + $0x444] sm:$0xff]
    %v5099 = vld [vmem:[#allocation10 + $0x44c] sm:$0xf]
    %v5100 = vld [vmem:[#allocation10 + $0x450] sm:$0xff]
    %v5101 = vld [vmem:[#allocation10 + $0x458] sm:$0xf]
    %v5102 = vld [vmem:[#allocation10 + $0x45c] sm:$0xff]
    %v5103 = vld [vmem:[#allocation10 + $0x464] sm:$0xf]
    %v5104 = vld [vmem:[#allocation10 + $0x468] sm:$0xff]
    %v5105 = vld [vmem:[#allocation10 + $0x470] sm:$0xf]
    %v5106 = vld [vmem:[#allocation10 + $0x474] sm:$0xff]
    %v5107 = vld [vmem:[#allocation10 + $0x47c] sm:$0xf]
    %v5108 = vld [vmem:[#allocation11] sm:$0x7]
    %v5110 = vlaneseq
    %v5111 = vshrl.u32 %v5110, 7
    %v5112 = vsub.s32 0, %v5111
    %v5113 = vrot.slane %v5108, %v5112
    %v5114 = vlaneseq
    %v5115 = vshrl.u32 %v5114, 7
    %v5116 = vsub.s32 1, %v5115
    %v5117 = vrot.slane %v5108, %v5116
    %v5118 = vlaneseq
    %v5119 = vshrl.u32 %v5118, 7
    %v5120 = vsub.s32 2, %v5119
    %v5121 = vrot.slane %v5108, %v5120
    %v5317 = vunpack.c.l.b16 %v4916
    %v5318 = vunpack.c.h.b16 %v4916
    %v5319 = vunpack.c.l.b16 %v4917
    %v5320 = vunpack.c.l.b16 %v4918
    %v5321 = vunpack.c.h.b16 %v4918
    %v5322 = vunpack.c.l.b16 %v4919
    %v5323 = vunpack.c.l.b16 %v4920
    %v5324 = vunpack.c.h.b16 %v4920
    %v5325 = vunpack.c.l.b16 %v4921
    %v5326 = vunpack.c.l.b16 %v4922
    %v5327 = vunpack.c.h.b16 %v4922
    %v5328 = vunpack.c.l.b16 %v4923
    %v5329 = vunpack.c.l.b16 %v4924
    %v5330 = vunpack.c.h.b16 %v4924
    %v5331 = vunpack.c.l.b16 %v4925
    %v5332 = vunpack.c.l.b16 %v4926
    %v5333 = vunpack.c.h.b16 %v4926
    %v5334 = vunpack.c.l.b16 %v4927
    %v5335 = vunpack.c.l.b16 %v4928
    %v5336 = vunpack.c.h.b16 %v4928
    %v5337 = vunpack.c.l.b16 %v4929
    %v5338 = vunpack.c.l.b16 %v4930
    %v5339 = vunpack.c.h.b16 %v4930
    %v5340 = vunpack.c.l.b16 %v4931
    %v5341 = vunpack.c.l.b16 %v4932
    %v5342 = vunpack.c.h.b16 %v4932
    %v5343 = vunpack.c.l.b16 %v4933
    %v5344 = vunpack.c.l.b16 %v4934
    %v5345 = vunpack.c.h.b16 %v4934
    %v5346 = vunpack.c.l.b16 %v4935
    %v5347 = vunpack.c.l.b16 %v4936
    %v5348 = vunpack.c.h.b16 %v4936
    %v5349 = vunpack.c.l.b16 %v4937
    %v5350 = vunpack.c.l.b16 %v4938
    %v5351 = vunpack.c.h.b16 %v4938
    %v5352 = vunpack.c.l.b16 %v4939
    %v5353 = vunpack.c.l.b16 %v4940
    %v5354 = vunpack.c.h.b16 %v4940
    %v5355 = vunpack.c.l.b16 %v4941
    %v5356 = vunpack.c.l.b16 %v4942
    %v5357 = vunpack.c.h.b16 %v4942
    %v5358 = vunpack.c.l.b16 %v4943
    %v5359 = vunpack.c.l.b16 %v4944
    %v5360 = vunpack.c.h.b16 %v4944
    %v5361 = vunpack.c.l.b16 %v4945
    %v5362 = vunpack.c.l.b16 %v4946
    %v5363 = vunpack.c.h.b16 %v4946
    %v5364 = vunpack.c.l.b16 %v4947
    %v5365 = vunpack.c.l.b16 %v4948
    %v5366 = vunpack.c.h.b16 %v4948
    %v5367 = vunpack.c.l.b16 %v4949
    %v5368 = vunpack.c.l.b16 %v4950
    %v5369 = vunpack.c.h.b16 %v4950
    %v5370 = vunpack.c.l.b16 %v4951
    %v5371 = vunpack.c.l.b16 %v4952
    %v5372 = vunpack.c.h.b16 %v4952
    %v5373 = vunpack.c.l.b16 %v4953
    %v5374 = vunpack.c.l.b16 %v4954
    %v5375 = vunpack.c.h.b16 %v4954
    %v5376 = vunpack.c.l.b16 %v4955
    %v5377 = vunpack.c.l.b16 %v4956
    %v5378 = vunpack.c.h.b16 %v4956
    %v5379 = vunpack.c.l.b16 %v4957
    %v5380 = vunpack.c.l.b16 %v4958
    %v5381 = vunpack.c.h.b16 %v4958
    %v5382 = vunpack.c.l.b16 %v4959
    %v5383 = vunpack.c.l.b16 %v4960
    %v5384 = vunpack.c.h.b16 %v4960
    %v5385 = vunpack.c.l.b16 %v4961
    %v5386 = vunpack.c.l.b16 %v4962
    %v5387 = vunpack.c.h.b16 %v4962
    %v5388 = vunpack.c.l.b16 %v4963
    %v5389 = vunpack.c.l.b16 %v4964
    %v5390 = vunpack.c.h.b16 %v4964
    %v5391 = vunpack.c.l.b16 %v4965
    %v5392 = vunpack.c.l.b16 %v4966
    %v5393 = vunpack.c.h.b16 %v4966
    %v5394 = vunpack.c.l.b16 %v4967
    %v5395 = vunpack.c.l.b16 %v4968
    %v5396 = vunpack.c.h.b16 %v4968
    %v5397 = vunpack.c.l.b16 %v4969
    %v5398 = vunpack.c.l.b16 %v4970
    %v5399 = vunpack.c.h.b16 %v4970
    %v5400 = vunpack.c.l.b16 %v4971
    %v5401 = vunpack.c.l.b16 %v4972
    %v5402 = vunpack.c.h.b16 %v4972
    %v5403 = vunpack.c.l.b16 %v4973
    %v5404 = vunpack.c.l.b16 %v4974
    %v5405 = vunpack.c.h.b16 %v4974
    %v5406 = vunpack.c.l.b16 %v4975
    %v5407 = vunpack.c.l.b16 %v4976
    %v5408 = vunpack.c.h.b16 %v4976
    %v5409 = vunpack.c.l.b16 %v4977
    %v5410 = vunpack.c.l.b16 %v4978
    %v5411 = vunpack.c.h.b16 %v4978
    %v5412 = vunpack.c.l.b16 %v4979
    %v5413 = vunpack.c.l.b16 %v4980
    %v5414 = vunpack.c.h.b16 %v4980
    %v5415 = vunpack.c.l.b16 %v4981
    %v5416 = vunpack.c.l.b16 %v4982
    %v5417 = vunpack.c.h.b16 %v4982
    %v5418 = vunpack.c.l.b16 %v4983
    %v5419 = vunpack.c.l.b16 %v4984
    %v5420 = vunpack.c.h.b16 %v4984
    %v5421 = vunpack.c.l.b16 %v4985
    %v5422 = vunpack.c.l.b16 %v4986
    %v5423 = vunpack.c.h.b16 %v4986
    %v5424 = vunpack.c.l.b16 %v4987
    %v5425 = vunpack.c.l.b16 %v4988
    %v5426 = vunpack.c.h.b16 %v4988
    %v5427 = vunpack.c.l.b16 %v4989
    %v5428 = vunpack.c.l.b16 %v4990
    %v5429 = vunpack.c.h.b16 %v4990
    %v5430 = vunpack.c.l.b16 %v4991
    %v5431 = vunpack.c.l.b16 %v4992
    %v5432 = vunpack.c.h.b16 %v4992
    %v5433 = vunpack.c.l.b16 %v4993
    %v5434 = vunpack.c.l.b16 %v4994
    %v5435 = vunpack.c.h.b16 %v4994
    %v5436 = vunpack.c.l.b16 %v4995
    %v5437 = vunpack.c.l.b16 %v4996
    %v5438 = vunpack.c.h.b16 %v4996
    %v5439 = vunpack.c.l.b16 %v4997
    %v5440 = vunpack.c.l.b16 %v4998
    %v5441 = vunpack.c.h.b16 %v4998
    %v5442 = vunpack.c.l.b16 %v4999
    %v5443 = vunpack.c.l.b16 %v5000
    %v5444 = vunpack.c.h.b16 %v5000
    %v5445 = vunpack.c.l.b16 %v5001
    %v5446 = vunpack.c.l.b16 %v5002
    %v5447 = vunpack.c.h.b16 %v5002
    %v5448 = vunpack.c.l.b16 %v5003
    %v5449 = vunpack.c.l.b16 %v5004
    %v5450 = vunpack.c.h.b16 %v5004
    %v5451 = vunpack.c.l.b16 %v5005
    %v5452 = vunpack.c.l.b16 %v5006
    %v5453 = vunpack.c.h.b16 %v5006
    %v5454 = vunpack.c.l.b16 %v5007
    %v5455 = vunpack.c.l.b16 %v5008
    %v5456 = vunpack.c.h.b16 %v5008
    %v5457 = vunpack.c.l.b16 %v5009
    %v5458 = vunpack.c.l.b16 %v5010
    %v5459 = vunpack.c.h.b16 %v5010
    %v5460 = vunpack.c.l.b16 %v5011
    %v5461 = vunpack.c.l.b16 %v5012
    %v5462 = vunpack.c.h.b16 %v5012
    %v5463 = vunpack.c.l.b16 %v5013
    %v5464 = vunpack.c.l.b16 %v5014
    %v5465 = vunpack.c.h.b16 %v5014
    %v5466 = vunpack.c.l.b16 %v5015
    %v5467 = vunpack.c.l.b16 %v5016
    %v5468 = vunpack.c.h.b16 %v5016
    %v5469 = vunpack.c.l.b16 %v5017
    %v5470 = vunpack.c.l.b16 %v5018
    %v5471 = vunpack.c.h.b16 %v5018
    %v5472 = vunpack.c.l.b16 %v5019
    %v5473 = vunpack.c.l.b16 %v5020
    %v5474 = vunpack.c.h.b16 %v5020
    %v5475 = vunpack.c.l.b16 %v5021
    %v5476 = vunpack.c.l.b16 %v5022
    %v5477 = vunpack.c.h.b16 %v5022
    %v5478 = vunpack.c.l.b16 %v5023
    %v5479 = vunpack.c.l.b16 %v5024
    %v5480 = vunpack.c.h.b16 %v5024
    %v5481 = vunpack.c.l.b16 %v5025
    %v5482 = vunpack.c.l.b16 %v5026
    %v5483 = vunpack.c.h.b16 %v5026
    %v5484 = vunpack.c.l.b16 %v5027
    %v5485 = vunpack.c.l.b16 %v5028
    %v5486 = vunpack.c.h.b16 %v5028
    %v5487 = vunpack.c.l.b16 %v5029
    %v5488 = vunpack.c.l.b16 %v5030
    %v5489 = vunpack.c.h.b16 %v5030
    %v5490 = vunpack.c.l.b16 %v5031
    %v5491 = vunpack.c.l.b16 %v5032
    %v5492 = vunpack.c.h.b16 %v5032
    %v5493 = vunpack.c.l.b16 %v5033
    %v5494 = vunpack.c.l.b16 %v5034
    %v5495 = vunpack.c.h.b16 %v5034
    %v5496 = vunpack.c.l.b16 %v5035
    %v5497 = vunpack.c.l.b16 %v5036
    %v5498 = vunpack.c.h.b16 %v5036
    %v5499 = vunpack.c.l.b16 %v5037
    %v5500 = vunpack.c.l.b16 %v5038
    %v5501 = vunpack.c.h.b16 %v5038
    %v5502 = vunpack.c.l.b16 %v5039
    %v5503 = vunpack.c.l.b16 %v5040
    %v5504 = vunpack.c.h.b16 %v5040
    %v5505 = vunpack.c.l.b16 %v5041
    %v5506 = vunpack.c.l.b16 %v5042
    %v5507 = vunpack.c.h.b16 %v5042
    %v5508 = vunpack.c.l.b16 %v5043
    %v5509 = vunpack.c.l.b16 %v5044
    %v5510 = vunpack.c.h.b16 %v5044
    %v5511 = vunpack.c.l.b16 %v5045
    %v5512 = vunpack.c.l.b16 %v5046
    %v5513 = vunpack.c.h.b16 %v5046
    %v5514 = vunpack.c.l.b16 %v5047
    %v5515 = vunpack.c.l.b16 %v5048
    %v5516 = vunpack.c.h.b16 %v5048
    %v5517 = vunpack.c.l.b16 %v5049
    %v5518 = vunpack.c.l.b16 %v5050
    %v5519 = vunpack.c.h.b16 %v5050
    %v5520 = vunpack.c.l.b16 %v5051
    %v5521 = vunpack.c.l.b16 %v5052
    %v5522 = vunpack.c.h.b16 %v5052
    %v5523 = vunpack.c.l.b16 %v5053
    %v5524 = vunpack.c.l.b16 %v5054
    %v5525 = vunpack.c.h.b16 %v5054
    %v5526 = vunpack.c.l.b16 %v5055
    %v5527 = vunpack.c.l.b16 %v5056
    %v5528 = vunpack.c.h.b16 %v5056
    %v5529 = vunpack.c.l.b16 %v5057
    %v5530 = vunpack.c.l.b16 %v5058
    %v5531 = vunpack.c.h.b16 %v5058
    %v5532 = vunpack.c.l.b16 %v5059
    %v5533 = vunpack.c.l.b16 %v5060
    %v5534 = vunpack.c.h.b16 %v5060
    %v5535 = vunpack.c.l.b16 %v5061
    %v5536 = vunpack.c.l.b16 %v5062
    %v5537 = vunpack.c.h.b16 %v5062
    %v5538 = vunpack.c.l.b16 %v5063
    %v5539 = vunpack.c.l.b16 %v5064
    %v5540 = vunpack.c.h.b16 %v5064
    %v5541 = vunpack.c.l.b16 %v5065
    %v5542 = vunpack.c.l.b16 %v5066
    %v5543 = vunpack.c.h.b16 %v5066
    %v5544 = vunpack.c.l.b16 %v5067
    %v5545 = vunpack.c.l.b16 %v5068
    %v5546 = vunpack.c.h.b16 %v5068
    %v5547 = vunpack.c.l.b16 %v5069
    %v5548 = vunpack.c.l.b16 %v5070
    %v5549 = vunpack.c.h.b16 %v5070
    %v5550 = vunpack.c.l.b16 %v5071
    %v5551 = vunpack.c.l.b16 %v5072
    %v5552 = vunpack.c.h.b16 %v5072
    %v5553 = vunpack.c.l.b16 %v5073
    %v5554 = vunpack.c.l.b16 %v5074
    %v5555 = vunpack.c.h.b16 %v5074
    %v5556 = vunpack.c.l.b16 %v5075
    %v5557 = vunpack.c.l.b16 %v5076
    %v5558 = vunpack.c.h.b16 %v5076
    %v5559 = vunpack.c.l.b16 %v5077
    %v5560 = vunpack.c.l.b16 %v5078
    %v5561 = vunpack.c.h.b16 %v5078
    %v5562 = vunpack.c.l.b16 %v5079
    %v5563 = vunpack.c.l.b16 %v5080
    %v5564 = vunpack.c.h.b16 %v5080
    %v5565 = vunpack.c.l.b16 %v5081
    %v5566 = vunpack.c.l.b16 %v5082
    %v5567 = vunpack.c.h.b16 %v5082
    %v5568 = vunpack.c.l.b16 %v5083
    %v5569 = vunpack.c.l.b16 %v5084
    %v5570 = vunpack.c.h.b16 %v5084
    %v5571 = vunpack.c.l.b16 %v5085
    %v5572 = vunpack.c.l.b16 %v5086
    %v5573 = vunpack.c.h.b16 %v5086
    %v5574 = vunpack.c.l.b16 %v5087
    %v5575 = vunpack.c.l.b16 %v5088
    %v5576 = vunpack.c.h.b16 %v5088
    %v5577 = vunpack.c.l.b16 %v5089
    %v5578 = vunpack.c.l.b16 %v5090
    %v5579 = vunpack.c.h.b16 %v5090
    %v5580 = vunpack.c.l.b16 %v5091
    %v5581 = vunpack.c.l.b16 %v5092
    %v5582 = vunpack.c.h.b16 %v5092
    %v5583 = vunpack.c.l.b16 %v5093
    %v5584 = vunpack.c.l.b16 %v5094
    %v5585 = vunpack.c.h.b16 %v5094
    %v5586 = vunpack.c.l.b16 %v5095
    %v5587 = vunpack.c.l.b16 %v5096
    %v5588 = vunpack.c.h.b16 %v5096
    %v5589 = vunpack.c.l.b16 %v5097
    %v5590 = vunpack.c.l.b16 %v5098
    %v5591 = vunpack.c.h.b16 %v5098
    %v5592 = vunpack.c.l.b16 %v5099
    %v5593 = vunpack.c.l.b16 %v5100
    %v5594 = vunpack.c.h.b16 %v5100
    %v5595 = vunpack.c.l.b16 %v5101
    %v5596 = vunpack.c.l.b16 %v5102
    %v5597 = vunpack.c.h.b16 %v5102
    %v5598 = vunpack.c.l.b16 %v5103
    %v5599 = vunpack.c.l.b16 %v5104
    %v5600 = vunpack.c.h.b16 %v5104
    %v5601 = vunpack.c.l.b16 %v5105
    %v5602 = vunpack.c.l.b16 %v5106
    %v5603 = vunpack.c.h.b16 %v5106
    %v5604 = vunpack.c.l.b16 %v5107
    %v5605 = vpack.c.b16 %v5320, %v5317
    %v5606 = vpack.c.b16 %v5321, %v5318
    %v5607 = vpack.c.b16 %v5322, %v5319
    %v5608 = vpack.c.b16 %v5326, %v5323
    %v5609 = vpack.c.b16 %v5327, %v5324
    %v5610 = vpack.c.b16 %v5328, %v5325
    %v5611 = vpack.c.b16 %v5332, %v5329
    %v5612 = vpack.c.b16 %v5333, %v5330
    %v5613 = vpack.c.b16 %v5334, %v5331
    %v5614 = vpack.c.b16 %v5338, %v5335
    %v5615 = vpack.c.b16 %v5339, %v5336
    %v5616 = vpack.c.b16 %v5340, %v5337
    %v5617 = vpack.c.b16 %v5344, %v5341
    %v5618 = vpack.c.b16 %v5345, %v5342
    %v5619 = vpack.c.b16 %v5346, %v5343
    %v5620 = vpack.c.b16 %v5350, %v5347
    %v5621 = vpack.c.b16 %v5351, %v5348
    %v5622 = vpack.c.b16 %v5352, %v5349
    %v5623 = vpack.c.b16 %v5356, %v5353
    %v5624 = vpack.c.b16 %v5357, %v5354
    %v5625 = vpack.c.b16 %v5358, %v5355
    %v5626 = vpack.c.b16 %v5362, %v5359
    %v5627 = vpack.c.b16 %v5363, %v5360
    %v5628 = vpack.c.b16 %v5364, %v5361
    %v5629 = vpack.c.b16 %v5368, %v5365
    %v5630 = vpack.c.b16 %v5369, %v5366
    %v5631 = vpack.c.b16 %v5370, %v5367
    %v5632 = vpack.c.b16 %v5374, %v5371
    %v5633 = vpack.c.b16 %v5375, %v5372
    %v5634 = vpack.c.b16 %v5376, %v5373
    %v5635 = vpack.c.b16 %v5380, %v5377
    %v5636 = vpack.c.b16 %v5381, %v5378
    %v5637 = vpack.c.b16 %v5382, %v5379
    %v5638 = vpack.c.b16 %v5386, %v5383
    %v5639 = vpack.c.b16 %v5387, %v5384
    %v5640 = vpack.c.b16 %v5388, %v5385
    %v5641 = vpack.c.b16 %v5392, %v5389
    %v5642 = vpack.c.b16 %v5393, %v5390
    %v5643 = vpack.c.b16 %v5394, %v5391
    %v5644 = vpack.c.b16 %v5398, %v5395
    %v5645 = vpack.c.b16 %v5399, %v5396
    %v5646 = vpack.c.b16 %v5400, %v5397
    %v5647 = vpack.c.b16 %v5404, %v5401
    %v5648 = vpack.c.b16 %v5405, %v5402
    %v5649 = vpack.c.b16 %v5406, %v5403
    %v5650 = vpack.c.b16 %v5410, %v5407
    %v5651 = vpack.c.b16 %v5411, %v5408
    %v5652 = vpack.c.b16 %v5412, %v5409
    %v5653 = vpack.c.b16 %v5416, %v5413
    %v5654 = vpack.c.b16 %v5417, %v5414
    %v5655 = vpack.c.b16 %v5418, %v5415
    %v5656 = vpack.c.b16 %v5422, %v5419
    %v5657 = vpack.c.b16 %v5423, %v5420
    %v5658 = vpack.c.b16 %v5424, %v5421
    %v5659 = vpack.c.b16 %v5428, %v5425
    %v5660 = vpack.c.b16 %v5429, %v5426
    %v5661 = vpack.c.b16 %v5430, %v5427
    %v5662 = vpack.c.b16 %v5434, %v5431
    %v5663 = vpack.c.b16 %v5435, %v5432
    %v5664 = vpack.c.b16 %v5436, %v5433
    %v5665 = vpack.c.b16 %v5440, %v5437
    %v5666 = vpack.c.b16 %v5441, %v5438
    %v5667 = vpack.c.b16 %v5442, %v5439
    %v5668 = vpack.c.b16 %v5446, %v5443
    %v5669 = vpack.c.b16 %v5447, %v5444
    %v5670 = vpack.c.b16 %v5448, %v5445
    %v5671 = vpack.c.b16 %v5452, %v5449
    %v5672 = vpack.c.b16 %v5453, %v5450
    %v5673 = vpack.c.b16 %v5454, %v5451
    %v5674 = vpack.c.b16 %v5458, %v5455
    %v5675 = vpack.c.b16 %v5459, %v5456
    %v5676 = vpack.c.b16 %v5460, %v5457
    %v5677 = vpack.c.b16 %v5464, %v5461
    %v5678 = vpack.c.b16 %v5465, %v5462
    %v5679 = vpack.c.b16 %v5466, %v5463
    %v5680 = vpack.c.b16 %v5470, %v5467
    %v5681 = vpack.c.b16 %v5471, %v5468
    %v5682 = vpack.c.b16 %v5472, %v5469
    %v5683 = vpack.c.b16 %v5476, %v5473
    %v5684 = vpack.c.b16 %v5477, %v5474
    %v5685 = vpack.c.b16 %v5478, %v5475
    %v5686 = vpack.c.b16 %v5482, %v5479
    %v5687 = vpack.c.b16 %v5483, %v5480
    %v5688 = vpack.c.b16 %v5484, %v5481
    %v5689 = vpack.c.b16 %v5488, %v5485
    %v5690 = vpack.c.b16 %v5489, %v5486
    %v5691 = vpack.c.b16 %v5490, %v5487
    %v5692 = vpack.c.b16 %v5494, %v5491
    %v5693 = vpack.c.b16 %v5495, %v5492
    %v5694 = vpack.c.b16 %v5496, %v5493
    %v5695 = vpack.c.b16 %v5500, %v5497
    %v5696 = vpack.c.b16 %v5501, %v5498
    %v5697 = vpack.c.b16 %v5502, %v5499
    %v5698 = vpack.c.b16 %v5506, %v5503
    %v5699 = vpack.c.b16 %v5507, %v5504
    %v5700 = vpack.c.b16 %v5508, %v5505
    %v5701 = vpack.c.b16 %v5512, %v5509
    %v5702 = vpack.c.b16 %v5513, %v5510
    %v5703 = vpack.c.b16 %v5514, %v5511
    %v5704 = vpack.c.b16 %v5518, %v5515
    %v5705 = vpack.c.b16 %v5519, %v5516
    %v5706 = vpack.c.b16 %v5520, %v5517
    %v5707 = vpack.c.b16 %v5524, %v5521
    %v5708 = vpack.c.b16 %v5525, %v5522
    %v5709 = vpack.c.b16 %v5526, %v5523
    %v5710 = vpack.c.b16 %v5530, %v5527
    %v5711 = vpack.c.b16 %v5531, %v5528
    %v5712 = vpack.c.b16 %v5532, %v5529
    %v5713 = vpack.c.b16 %v5536, %v5533
    %v5714 = vpack.c.b16 %v5537, %v5534
    %v5715 = vpack.c.b16 %v5538, %v5535
    %v5716 = vpack.c.b16 %v5542, %v5539
    %v5717 = vpack.c.b16 %v5543, %v5540
    %v5718 = vpack.c.b16 %v5544, %v5541
    %v5719 = vpack.c.b16 %v5548, %v5545
    %v5720 = vpack.c.b16 %v5549, %v5546
    %v5721 = vpack.c.b16 %v5550, %v5547
    %v5722 = vpack.c.b16 %v5554, %v5551
    %v5723 = vpack.c.b16 %v5555, %v5552
    %v5724 = vpack.c.b16 %v5556, %v5553
    %v5725 = vpack.c.b16 %v5560, %v5557
    %v5726 = vpack.c.b16 %v5561, %v5558
    %v5727 = vpack.c.b16 %v5562, %v5559
    %v5728 = vpack.c.b16 %v5566, %v5563
    %v5729 = vpack.c.b16 %v5567, %v5564
    %v5730 = vpack.c.b16 %v5568, %v5565
    %v5731 = vpack.c.b16 %v5572, %v5569
    %v5732 = vpack.c.b16 %v5573, %v5570
    %v5733 = vpack.c.b16 %v5574, %v5571
    %v5734 = vpack.c.b16 %v5578, %v5575
    %v5735 = vpack.c.b16 %v5579, %v5576
    %v5736 = vpack.c.b16 %v5580, %v5577
    %v5737 = vpack.c.b16 %v5584, %v5581
    %v5738 = vpack.c.b16 %v5585, %v5582
    %v5739 = vpack.c.b16 %v5586, %v5583
    %v5740 = vpack.c.b16 %v5590, %v5587
    %v5741 = vpack.c.b16 %v5591, %v5588
    %v5742 = vpack.c.b16 %v5592, %v5589
    %v5743 = vpack.c.b16 %v5596, %v5593
    %v5744 = vpack.c.b16 %v5597, %v5594
    %v5745 = vpack.c.b16 %v5598, %v5595
    %v5746 = vpack.c.b16 %v5602, %v5599
    %v5747 = vpack.c.b16 %v5603, %v5600
    %v5748 = vpack.c.b16 %v5604, %v5601
    %5893 = vmatprep.subr.bf16.mxu0 %v5606
    %5894 = vmatpush1.bf16.msra.mxu0 %v5605
    %5895 = vmatprep.subr.bf16.mxu0 %v5609
    %5896 = vmatpush1.bf16.msra.mxu0 %v5608
    %5897 = vmatprep.subr.bf16.mxu0 %v5612
    %5898 = vmatpush1.bf16.msra.mxu0 %v5611
    %5899 = vmatprep.subr.bf16.mxu0 %v5615
    %5900 = vmatpush1.bf16.msra.mxu0 %v5614
    %5901 = vmatprep.subr.bf16.mxu0 %v5618
    %5902 = vmatpush1.bf16.msra.mxu0 %v5617
    %5903 = vmatprep.subr.bf16.mxu0 %v5621
    %5904 = vmatpush1.bf16.msra.mxu0 %v5620
    %5905 = vmatprep.subr.bf16.mxu0 %v5624
    %5906 = vmatpush1.bf16.msra.mxu0 %v5623
    %5907 = vmatprep.subr.bf16.mxu0 %v5627
    %5908 = vmatpush1.bf16.msra.mxu0 %v5626
    %5909 = vmatprep.subr.bf16.mxu0 %v5630
    %5910 = vmatpush1.bf16.msra.mxu0 %v5629
    %5911 = vmatprep.subr.bf16.mxu0 %v5633
    %5912 = vmatpush1.bf16.msra.mxu0 %v5632
    %5913 = vmatprep.subr.bf16.mxu0 %v5636
    %5914 = vmatpush1.bf16.msra.mxu0 %v5635
    %5915 = vmatprep.subr.bf16.mxu0 %v5639
    %5916 = vmatpush1.bf16.msra.mxu0 %v5638
    %5917 = vmatprep.subr.bf16.mxu0 %v5642
    %5918 = vmatpush1.bf16.msra.mxu0 %v5641
    %5919 = vmatprep.subr.bf16.mxu0 %v5645
    %5920 = vmatpush1.bf16.msra.mxu0 %v5644
    %5921 = vmatprep.subr.bf16.mxu0 %v5648
    %5922 = vmatpush1.bf16.msra.mxu0 %v5647
    %5923 = vmatprep.subr.bf16.mxu0 %v5651
    %5924 = vmatpush1.bf16.msra.mxu0 %v5650
    %5925 = vmatprep.mubr.bf16.mxu0 %v4911
    %5926 = vmatmul.mubr.bf16.gmra.mrb[0].mxu0 %v4910
    %v5927 = vpop.f32.mrb[0].mxu0
    %v5928 = vadd.f32 %v5113, %v5927
    %v5929 = vpop.f32.mrb[0].mxu0
    %v5930 = vadd.f32 %v5117, %v5929
    %v5931 = vpop.f32.mrb[0].mxu0
    %v5932 = vadd.f32 %v5113, %v5931
    %v5933 = vpop.f32.mrb[0].mxu0
    %v5934 = vadd.f32 %v5117, %v5933
    %5935 = vdwg.mxu0
    %5936 = vmatprep.subr.bf16.mxu0 %v5654
    %5937 = vmatpush1.bf16.msra.mxu0 %v5653
    %5938 = vmatprep.subr.bf16.mxu0 %v5657
    %5939 = vmatpush1.bf16.msra.mxu0 %v5656
    %5940 = vmatprep.subr.bf16.mxu0 %v5660
    %5941 = vmatpush1.bf16.msra.mxu0 %v5659
    %5942 = vmatprep.subr.bf16.mxu0 %v5663
    %5943 = vmatpush1.bf16.msra.mxu0 %v5662
    %5944 = vmatprep.subr.bf16.mxu0 %v5666
    %5945 = vmatpush1.bf16.msra.mxu0 %v5665
    %5946 = vmatprep.subr.bf16.mxu0 %v5669
    %5947 = vmatpush1.bf16.msra.mxu0 %v5668
    %5948 = vmatprep.subr.bf16.mxu0 %v5672
    %5949 = vmatpush1.bf16.msra.mxu0 %v5671
    %5950 = vmatprep.subr.bf16.mxu0 %v5675
    %5951 = vmatpush1.bf16.msra.mxu0 %v5674
    %5952 = vmatprep.subr.bf16.mxu0 %v5678
    %5953 = vmatpush1.bf16.msra.mxu0 %v5677
    %5954 = vmatprep.subr.bf16.mxu0 %v5681
    %5955 = vmatpush1.bf16.msra.mxu0 %v5680
    %5956 = vmatprep.subr.bf16.mxu0 %v5684
    %5957 = vmatpush1.bf16.msra.mxu0 %v5683
    %5958 = vmatprep.subr.bf16.mxu0 %v5687
    %5959 = vmatpush1.bf16.msra.mxu0 %v5686
    %5960 = vmatprep.subr.bf16.mxu0 %v5690
    %5961 = vmatpush1.bf16.msra.mxu0 %v5689
    %5962 = vmatprep.subr.bf16.mxu0 %v5693
    %5963 = vmatpush1.bf16.msra.mxu0 %v5692
    %5964 = vmatprep.subr.bf16.mxu0 %v5696
    %5965 = vmatpush1.bf16.msra.mxu0 %v5695
    %5966 = vmatprep.subr.bf16.mxu0 %v5699
    %5967 = vmatpush1.bf16.msra.mxu0 %v5698
    %5968 = vmatprep.mubr.bf16.mxu0 %v4913
    %5969 = vmatmul.mubr.bf16.gmra.mrb[0].mxu0 %v4912
    %v5970 = vpop.f32.mrb[0].mxu0
    %v5971 = vadd.f32 %v5928, %v5970
    %v5972 = vpop.f32.mrb[0].mxu0
    %v5973 = vadd.f32 %v5930, %v5972
    %v5974 = vpop.f32.mrb[0].mxu0
    %v5975 = vadd.f32 %v5932, %v5974
    %v5976 = vpop.f32.mrb[0].mxu0
    %v5977 = vadd.f32 %v5934, %v5976
    %5978 = vdwg.mxu0
    %5979 = vmatprep.subr.bf16.mxu0 %v5702
    %5980 = vmatpush1.bf16.msra.mxu0 %v5701
    %5981 = vmatprep.subr.bf16.mxu0 %v5705
    %5982 = vmatpush1.bf16.msra.mxu0 %v5704
    %5983 = vmatprep.subr.bf16.mxu0 %v5708
    %5984 = vmatpush1.bf16.msra.mxu0 %v5707
    %5985 = vmatprep.subr.bf16.mxu0 %v5711
    %5986 = vmatpush1.bf16.msra.mxu0 %v5710
    %5987 = vmatprep.subr.bf16.mxu0 %v5714
    %5988 = vmatpush1.bf16.msra.mxu0 %v5713
    %5989 = vmatprep.subr.bf16.mxu0 %v5717
    %5990 = vmatpush1.bf16.msra.mxu0 %v5716
    %5991 = vmatprep.subr.bf16.mxu0 %v5720
    %5992 = vmatpush1.bf16.msra.mxu0 %v5719
    %5993 = vmatprep.subr.bf16.mxu0 %v5723
    %5994 = vmatpush1.bf16.msra.mxu0 %v5722
    %5995 = vmatprep.subr.bf16.mxu0 %v5726
    %5996 = vmatpush1.bf16.msra.mxu0 %v5725
    %5997 = vmatprep.subr.bf16.mxu0 %v5729
    %5998 = vmatpush1.bf16.msra.mxu0 %v5728
    %5999 = vmatprep.subr.bf16.mxu0 %v5732
    %6000 = vmatpush1.bf16.msra.mxu0 %v5731
    %6001 = vmatprep.subr.bf16.mxu0 %v5735
    %6002 = vmatpush1.bf16.msra.mxu0 %v5734
    %6003 = vmatprep.subr.bf16.mxu0 %v5738
    %6004 = vmatpush1.bf16.msra.mxu0 %v5737
    %6005 = vmatprep.subr.bf16.mxu0 %v5741
    %6006 = vmatpush1.bf16.msra.mxu0 %v5740
    %6007 = vmatprep.subr.bf16.mxu0 %v5744
    %6008 = vmatpush1.bf16.msra.mxu0 %v5743
    %6009 = vmatprep.subr.bf16.mxu0 %v5747
    %6010 = vmatpush1.bf16.msra.mxu0 %v5746
    %6011 = vmatprep.mubr.bf16.mxu0 %v4915
    %6012 = vmatmul.mubr.bf16.gmra.mrb[0].mxu0 %v4914
    %v6013 = vpop.f32.mrb[0].mxu0
    %v6014 = vadd.f32 %v5971, %v6013
    %v6015 = vpop.f32.mrb[0].mxu0
    %v6016 = vadd.f32 %v5973, %v6015
    %v6017 = vpop.f32.mrb[0].mxu0
    %v6018 = vadd.f32 %v5975, %v6017
    %v6019 = vpop.f32.mrb[0].mxu0
    %v6020 = vadd.f32 %v5977, %v6019
    %6021 = vdwg.mxu0
    %6022 = vmatprep.subr.bf16.mxu0 0
    %6023 = vmatpush1.bf16.msra.mxu0 %v5607
    %6024 = vmatprep.subr.bf16.mxu0 0
    %6025 = vmatpush1.bf16.msra.mxu0 %v5610
    %6026 = vmatprep.subr.bf16.mxu0 0
    %6027 = vmatpush1.bf16.msra.mxu0 %v5613
    %6028 = vmatprep.subr.bf16.mxu0 0
    %6029 = vmatpush1.bf16.msra.mxu0 %v5616
    %6030 = vmatprep.subr.bf16.mxu0 0
    %6031 = vmatpush1.bf16.msra.mxu0 %v5619
    %6032 = vmatprep.subr.bf16.mxu0 0
    %6033 = vmatpush1.bf16.msra.mxu0 %v5622
    %6034 = vmatprep.subr.bf16.mxu0 0
    %6035 = vmatpush1.bf16.msra.mxu0 %v5625
    %6036 = vmatprep.subr.bf16.mxu0 0
    %6037 = vmatpush1.bf16.msra.mxu0 %v5628
    %6038 = vmatprep.subr.bf16.mxu0 0
    %6039 = vmatpush1.bf16.msra.mxu0 %v5631
    %6040 = vmatprep.subr.bf16.mxu0 0
    %6041 = vmatpush1.bf16.msra.mxu0 %v5634
    %6042 = vmatprep.subr.bf16.mxu0 0
    %6043 = vmatpush1.bf16.msra.mxu0 %v5637
    %6044 = vmatprep.subr.bf16.mxu0 0
    %6045 = vmatpush1.bf16.msra.mxu0 %v5640
    %6046 = vmatprep.subr.bf16.mxu0 0
    %6047 = vmatpush1.bf16.msra.mxu0 %v5643
    %6048 = vmatprep.subr.bf16.mxu0 0
    %6049 = vmatpush1.bf16.msra.mxu0 %v5646
    %6050 = vmatprep.subr.bf16.mxu0 0
    %6051 = vmatpush1.bf16.msra.mxu0 %v5649
    %6052 = vmatprep.subr.bf16.mxu0 0
    %6053 = vmatpush1.bf16.msra.mxu0 %v5652
    %6054 = vmatprep.mubr.bf16.mxu0 %v4911
    %6055 = vmatmul.mubr.bf16.gmra.mrb[0].mxu0 %v4910
    %v6056 = vpop.f32.mrb[0].mxu0
    %v6057 = vadd.f32 %v5121, %v6056
    %v6058 = vpop.f32.mrb[0].mxu0
    %v6059 = vpop.f32.mrb[0].mxu0
    %v6060 = vadd.f32 %v5121, %v6059
    %v6061 = vpop.f32.mrb[0].mxu0
    %6062 = vdwg.mxu0
    %6063 = vmatprep.subr.bf16.mxu0 0
    %6064 = vmatpush1.bf16.msra.mxu0 %v5655
    %6065 = vmatprep.subr.bf16.mxu0 0
    %6066 = vmatpush1.bf16.msra.mxu0 %v5658
    %6067 = vmatprep.subr.bf16.mxu0 0
    %6068 = vmatpush1.bf16.msra.mxu0 %v5661
    %6069 = vmatprep.subr.bf16.mxu0 0
    %6070 = vmatpush1.bf16.msra.mxu0 %v5664
    %6071 = vmatprep.subr.bf16.mxu0 0
    %6072 = vmatpush1.bf16.msra.mxu0 %v5667
    %6073 = vmatprep.subr.bf16.mxu0 0
    %6074 = vmatpush1.bf16.msra.mxu0 %v5670
    %6075 = vmatprep.subr.bf16.mxu0 0
    %6076 = vmatpush1.bf16.msra.mxu0 %v5673
    %6077 = vmatprep.subr.bf16.mxu0 0
    %6078 = vmatpush1.bf16.msra.mxu0 %v5676
    %6079 = vmatprep.subr.bf16.mxu0 0
    %6080 = vmatpush1.bf16.msra.mxu0 %v5679
    %6081 = vmatprep.subr.bf16.mxu0 0
    %6082 = vmatpush1.bf16.msra.mxu0 %v5682
    %6083 = vmatprep.subr.bf16.mxu0 0
    %6084 = vmatpush1.bf16.msra.mxu0 %v5685
    %6085 = vmatprep.subr.bf16.mxu0 0
    %6086 = vmatpush1.bf16.msra.mxu0 %v5688
    %6087 = vmatprep.subr.bf16.mxu0 0
    %6088 = vmatpush1.bf16.msra.mxu0 %v5691
    %6089 = vmatprep.subr.bf16.mxu0 0
    %6090 = vmatpush1.bf16.msra.mxu0 %v5694
    %6091 = vmatprep.subr.bf16.mxu0 0
    %6092 = vmatpush1.bf16.msra.mxu0 %v5697
    %6093 = vmatprep.subr.bf16.mxu0 0
    %6094 = vmatpush1.bf16.msra.mxu0 %v5700
    %6095 = vmatprep.mubr.bf16.mxu0 %v4913
    %6096 = vmatmul.mubr.bf16.gmra.mrb[0].mxu0 %v4912
    %v6097 = vpop.f32.mrb[0].mxu0
    %v6098 = vadd.f32 %v6057, %v6097
    %v6099 = vpop.f32.mrb[0].mxu0
    %v6100 = vpop.f32.mrb[0].mxu0
    %v6101 = vadd.f32 %v6060, %v6100
    %v6102 = vpop.f32.mrb[0].mxu0
    %6103 = vdwg.mxu0
    %6104 = vmatprep.subr.bf16.mxu0 0
    %6105 = vmatpush1.bf16.msra.mxu0 %v5703
    %6106 = vmatprep.subr.bf16.mxu0 0
    %6107 = vmatpush1.bf16.msra.mxu0 %v5706
    %6108 = vmatprep.subr.bf16.mxu0 0
    %6109 = vmatpush1.bf16.msra.mxu0 %v5709
    %6110 = vmatprep.subr.bf16.mxu0 0
    %6111 = vmatpush1.bf16.msra.mxu0 %v5712
    %6112 = vmatprep.subr.bf16.mxu0 0
    %6113 = vmatpush1.bf16.msra.mxu0 %v5715
    %6114 = vmatprep.subr.bf16.mxu0 0
    %6115 = vmatpush1.bf16.msra.mxu0 %v5718
    %6116 = vmatprep.subr.bf16.mxu0 0
    %6117 = vmatpush1.bf16.msra.mxu0 %v5721
    %6118 = vmatprep.subr.bf16.mxu0 0
    %6119 = vmatpush1.bf16.msra.mxu0 %v5724
    %6120 = vmatprep.subr.bf16.mxu0 0
    %6121 = vmatpush1.bf16.msra.mxu0 %v5727
    %6122 = vmatprep.subr.bf16.mxu0 0
    %6123 = vmatpush1.bf16.msra.mxu0 %v5730
    %6124 = vmatprep.subr.bf16.mxu0 0
    %6125 = vmatpush1.bf16.msra.mxu0 %v5733
    %6126 = vmatprep.subr.bf16.mxu0 0
    %6127 = vmatpush1.bf16.msra.mxu0 %v5736
    %6128 = vmatprep.subr.bf16.mxu0 0
    %6129 = vmatpush1.bf16.msra.mxu0 %v5739
    %6130 = vmatprep.subr.bf16.mxu0 0
    %6131 = vmatpush1.bf16.msra.mxu0 %v5742
    %6132 = vmatprep.subr.bf16.mxu0 0
    %6133 = vmatpush1.bf16.msra.mxu0 %v5745
    %6134 = vmatprep.subr.bf16.mxu0 0
    %6135 = vmatpush1.bf16.msra.mxu0 %v5748
    %6136 = vmatprep.mubr.bf16.mxu0 %v4915
    %6137 = vmatmul.mubr.bf16.gmra.mrb[0].mxu0 %v4914
    %v6138 = vpop.f32.mrb[0].mxu0
    %v6139 = vadd.f32 %v6098, %v6138
    %v6140 = vpop.f32.mrb[0].mxu0
    %v6141 = vpop.f32.mrb[0].mxu0
    %v6142 = vadd.f32 %v6101, %v6141
    %v6143 = vpop.f32.mrb[0].mxu0
    %6144 = vdwg.mxu0
    %v6145 = vld [vmem:[#allocation13] sm:$0x7]
    %v6146 = vld [vmem:[#allocation14] sm:$0x7]
    %v6147 = vadd.f32 %v6014, %v6016
    %v6148 = vadd.f32 %v6147, %v6139
    %6149 = vadd.xlane.f32.xlu0 %v6148
    %v6150 = vpop.xlane.xlu0 %6149
    %v6151 = vadd.f32 %v6018, %v6020
    %v6152 = vadd.f32 %v6151, %v6142
    %6153 = vadd.xlane.f32.xlu0 %v6152
    %v6154 = vpop.xlane.xlu0 %6153
    %v6155 = vmul.f32 %v6014, %v6014
    %v6156 = vmul.f32 %v6016, %v6016
    %v6157 = vmul.f32 %v6139, %v6139
    %v6158 = vmul.f32 %v6018, %v6018
    %v6159 = vmul.f32 %v6020, %v6020
    %v6160 = vmul.f32 %v6142, %v6142
    %v6161 = vadd.f32 %v6155, %v6156
    %v6162 = vadd.f32 %v6161, %v6157
    %6163 = vadd.xlane.f32.xlu0 %v6162
    %v6164 = vpop.xlane.xlu0 %6163
    %v6165 = vadd.f32 %v6158, %v6159
    %v6166 = vadd.f32 %v6165, %v6160
    %6167 = vadd.xlane.f32.xlu0 %v6166
    %v6168 = vpop.xlane.xlu0 %6167
    %v6169 = vmul.f32 %v6150, 0.0026041667
    %v6170 = vmul.f32 %v6154, 0.0026041667
    %v6171 = vmul.f32 %v6164, 0.0026041667
    %v6172 = vmul.f32 %v6168, 0.0026041667
    %v6173 = vmul.f32 %v6169, %v6169
    %v6174 = vmul.f32 %v6170, %v6170
    %v6175 = vsub.f32 %v6171, %v6173
    %v6176 = vsub.f32 %v6172, %v6174
    %v6177 = vmax.f32 %v6175, 0.0
    %v6178 = vmax.f32 %v6176, 0.0
    %v6179 = vsub.f32 %v6014, %v6169
    %v6180 = vsub.f32 %v6016, %v6169
    %v6181 = vsub.f32 %v6139, %v6169
    %v6182 = vsub.f32 %v6018, %v6170
    %v6183 = vsub.f32 %v6020, %v6170
    %v6184 = vsub.f32 %v6142, %v6170
    %v6185 = vadd.f32 %v6177, 1e-05
    %v6186 = vadd.f32 %v6178, 1e-05
    %v6187 = vrsqrt.pop %v6185
    %v6188 = vrsqrt.pop %v6186
    %v6189 = vmul.f32 %v6179, %v6187
    %v6190 = vmul.f32 %v6180, %v6187
    %v6191 = vmul.f32 %v6181, %v6187
    %v6192 = vmul.f32 %v6182, %v6188
    %v6193 = vmul.f32 %v6183, %v6188
    %v6194 = vmul.f32 %v6184, %v6188
    %v6196 = vlaneseq
    %v6197 = vshrl.u32 %v6196, 7
    %v6198 = vsub.s32 0, %v6197
    %v6199 = vrot.slane %v6145, %v6198
    %v6200 = vlaneseq
    %v6201 = vshrl.u32 %v6200, 7
    %v6202 = vsub.s32 1, %v6201
    %v6203 = vrot.slane %v6145, %v6202
    %v6204 = vlaneseq
    %v6205 = vshrl.u32 %v6204, 7
    %v6206 = vsub.s32 2, %v6205
    %v6207 = vrot.slane %v6145, %v6206
    %v6211 = vmul.f32 %v6189, %v6199
    %v6212 = vmul.f32 %v6190, %v6203
    %v6213 = vmul.f32 %v6191, %v6207
    %v6214 = vmul.f32 %v6192, %v6199
    %v6215 = vmul.f32 %v6193, %v6203
    %v6216 = vmul.f32 %v6194, %v6207
    %v6218 = vlaneseq
    %v6219 = vshrl.u32 %v6218, 7
    %v6220 = vsub.s32 0, %v6219
    %v6221 = vrot.slane %v6146, %v6220
    %v6222 = vlaneseq
    %v6223 = vshrl.u32 %v6222, 7
    %v6224 = vsub.s32 1, %v6223
    %v6225 = vrot.slane %v6146, %v6224
    %v6226 = vlaneseq
    %v6227 = vshrl.u32 %v6226, 7
    %v6228 = vsub.s32 2, %v6227
    %v6229 = vrot.slane %v6146, %v6228
    %v6233 = vadd.f32 %v6211, %v6221
    %v6234 = vadd.f32 %v6212, %v6225
    %v6235 = vadd.f32 %v6213, %v6229
    %v6236 = vadd.f32 %v6214, %v6221
    %v6237 = vadd.f32 %v6215, %v6225
    %v6238 = vadd.f32 %v6216, %v6229
    %v6239 = vmax.f32 %v6233, 0.0
    %v6240 = vmax.f32 %v6234, 0.0
    %v6241 = vmax.f32 %v6235, 0.0
    %v6242 = vmax.f32 %v6236, 0.0
    %v6243 = vmax.f32 %v6237, 0.0
    %v6244 = vmax.f32 %v6238, 0.0
    %v6245 = vpack.c.bf16 %v6242, %v6239
    %v6246 = vpack.c.bf16 %v6243, %v6240
    %v6247 = vpack.c.bf16 %v6244, %v6241
    %v6248 = vld [vmem:[#allocation16] sm:$0xff]
    %v6249 = vld [vmem:[#allocation16 + $0x8] sm:$0xff]
    %v6250 = vld [vmem:[#allocation16 + $0x10] sm:$0xff]
    %v6251 = vld [vmem:[#allocation16 + $0x18] sm:$0xff]
    %v6252 = vld [vmem:[#allocation16 + $0x20] sm:$0xff]
    %v6253 = vld [vmem:[#allocation16 + $0x28] sm:$0xff]
    %v6254 = vld [vmem:[#allocation16 + $0x30] sm:$0xff]
    %v6255 = vld [vmem:[#allocation16 + $0x38] sm:$0xff]
    %v6256 = vld [vmem:[#allocation16 + $0x40] sm:$0xff]
    %v6257 = vld [vmem:[#allocation16 + $0x48] sm:$0xff]
    %v6258 = vld [vmem:[#allocation16 + $0x50] sm:$0xff]
    %v6259 = vld [vmem:[#allocation16 + $0x58] sm:$0xff]
    %v6260 = vld [vmem:[#allocation16 + $0x60] sm:$0xff]
    %v6261 = vld [vmem:[#allocation16 + $0x68] sm:$0xff]
    %v6262 = vld [vmem:[#allocation16 + $0x70] sm:$0xff]
    %v6263 = vld [vmem:[#allocation16 + $0x78] sm:$0xff]
    %v6264 = vld [vmem:[#allocation16 + $0x80] sm:$0xff]
    %v6265 = vld [vmem:[#allocation16 + $0x88] sm:$0xff]
    %v6266 = vld [vmem:[#allocation16 + $0x90] sm:$0xff]
    %v6267 = vld [vmem:[#allocation16 + $0x98] sm:$0xff]
    %v6268 = vld [vmem:[#allocation16 + $0xa0] sm:$0xff]
    %v6269 = vld [vmem:[#allocation16 + $0xa8] sm:$0xff]
    %v6270 = vld [vmem:[#allocation16 + $0xb0] sm:$0xff]
    %v6271 = vld [vmem:[#allocation16 + $0xb8] sm:$0xff]
    %v6272 = vld [vmem:[#allocation16 + $0xc0] sm:$0xff]
    %v6273 = vld [vmem:[#allocation16 + $0xc8] sm:$0xff]
    %v6274 = vld [vmem:[#allocation16 + $0xd0] sm:$0xff]
    %v6275 = vld [vmem:[#allocation16 + $0xd8] sm:$0xff]
    %v6276 = vld [vmem:[#allocation16 + $0xe0] sm:$0xff]
    %v6277 = vld [vmem:[#allocation16 + $0xe8] sm:$0xff]
    %v6278 = vld [vmem:[#allocation16 + $0xf0] sm:$0xff]
    %v6279 = vld [vmem:[#allocation16 + $0xf8] sm:$0xff]
    %v6280 = vld [vmem:[#allocation16 + $0x100] sm:$0xff]
    %v6281 = vld [vmem:[#allocation16 + $0x108] sm:$0xff]
    %v6282 = vld [vmem:[#allocation16 + $0x110] sm:$0xff]
    %v6283 = vld [vmem:[#allocation16 + $0x118] sm:$0xff]
    %v6284 = vld [vmem:[#allocation16 + $0x120] sm:$0xff]
    %v6285 = vld [vmem:[#allocation16 + $0x128] sm:$0xff]
    %v6286 = vld [vmem:[#allocation16 + $0x130] sm:$0xff]
    %v6287 = vld [vmem:[#allocation16 + $0x138] sm:$0xff]
    %v6288 = vld [vmem:[#allocation16 + $0x140] sm:$0xff]
    %v6289 = vld [vmem:[#allocation16 + $0x148] sm:$0xff]
    %v6290 = vld [vmem:[#allocation16 + $0x150] sm:$0xff]
    %v6291 = vld [vmem:[#allocation16 + $0x158] sm:$0xff]
    %v6292 = vld [vmem:[#allocation16 + $0x160] sm:$0xff]
    %v6293 = vld [vmem:[#allocation16 + $0x168] sm:$0xff]
    %v6294 = vld [vmem:[#allocation16 + $0x170] sm:$0xff]
    %v6295 = vld [vmem:[#allocation16 + $0x178] sm:$0xff]
    %v6296 = vld [vmem:[#allocation17] sm:$0x3]
    %v6298 = vlaneseq
    %v6299 = vshrl.u32 %v6298, 7
    %v6300 = vsub.s32 0, %v6299
    %v6301 = vrot.slane %v6296, %v6300
    %v6302 = vlaneseq
    %v6303 = vshrl.u32 %v6302, 7
    %v6304 = vsub.s32 1, %v6303
    %v6305 = vrot.slane %v6296, %v6304
    %v6356 = vunpack.c.l.b16 %v6248
    %v6357 = vunpack.c.h.b16 %v6248
    %v6358 = vunpack.c.l.b16 %v6249
    %v6359 = vunpack.c.h.b16 %v6249
    %v6360 = vunpack.c.l.b16 %v6250
    %v6361 = vunpack.c.h.b16 %v6250
    %v6362 = vunpack.c.l.b16 %v6251
    %v6363 = vunpack.c.h.b16 %v6251
    %v6364 = vunpack.c.l.b16 %v6252
    %v6365 = vunpack.c.h.b16 %v6252
    %v6366 = vunpack.c.l.b16 %v6253
    %v6367 = vunpack.c.h.b16 %v6253
    %v6368 = vunpack.c.l.b16 %v6254
    %v6369 = vunpack.c.h.b16 %v6254
    %v6370 = vunpack.c.l.b16 %v6255
    %v6371 = vunpack.c.h.b16 %v6255
    %v6372 = vunpack.c.l.b16 %v6256
    %v6373 = vunpack.c.h.b16 %v6256
    %v6374 = vunpack.c.l.b16 %v6257
    %v6375 = vunpack.c.h.b16 %v6257
    %v6376 = vunpack.c.l.b16 %v6258
    %v6377 = vunpack.c.h.b16 %v6258
    %v6378 = vunpack.c.l.b16 %v6259
    %v6379 = vunpack.c.h.b16 %v6259
    %v6380 = vunpack.c.l.b16 %v6260
    %v6381 = vunpack.c.h.b16 %v6260
    %v6382 = vunpack.c.l.b16 %v6261
    %v6383 = vunpack.c.h.b16 %v6261
    %v6384 = vunpack.c.l.b16 %v6262
    %v6385 = vunpack.c.h.b16 %v6262
    %v6386 = vunpack.c.l.b16 %v6263
    %v6387 = vunpack.c.h.b16 %v6263
    %v6388 = vunpack.c.l.b16 %v6264
    %v6389 = vunpack.c.h.b16 %v6264
    %v6390 = vunpack.c.l.b16 %v6265
    %v6391 = vunpack.c.h.b16 %v6265
    %v6392 = vunpack.c.l.b16 %v6266
    %v6393 = vunpack.c.h.b16 %v6266
    %v6394 = vunpack.c.l.b16 %v6267
    %v6395 = vunpack.c.h.b16 %v6267
    %v6396 = vunpack.c.l.b16 %v6268
    %v6397 = vunpack.c.h.b16 %v6268
    %v6398 = vunpack.c.l.b16 %v6269
    %v6399 = vunpack.c.h.b16 %v6269
    %v6400 = vunpack.c.l.b16 %v6270
    %v6401 = vunpack.c.h.b16 %v6270
    %v6402 = vunpack.c.l.b16 %v6271
    %v6403 = vunpack.c.h.b16 %v6271
    %v6404 = vunpack.c.l.b16 %v6272
    %v6405 = vunpack.c.h.b16 %v6272
    %v6406 = vunpack.c.l.b16 %v6273
    %v6407 = vunpack.c.h.b16 %v6273
    %v6408 = vunpack.c.l.b16 %v6274
    %v6409 = vunpack.c.h.b16 %v6274
    %v6410 = vunpack.c.l.b16 %v6275
    %v6411 = vunpack.c.h.b16 %v6275
    %v6412 = vunpack.c.l.b16 %v6276
    %v6413 = vunpack.c.h.b16 %v6276
    %v6414 = vunpack.c.l.b16 %v6277
    %v6415 = vunpack.c.h.b16 %v6277
    %v6416 = vunpack.c.l.b16 %v6278
    %v6417 = vunpack.c.h.b16 %v6278
    %v6418 = vunpack.c.l.b16 %v6279
    %v6419 = vunpack.c.h.b16 %v6279
    %v6420 = vunpack.c.l.b16 %v6280
    %v6421 = vunpack.c.h.b16 %v6280
    %v6422 = vunpack.c.l.b16 %v6281
    %v6423 = vunpack.c.h.b16 %v6281
    %v6424 = vunpack.c.l.b16 %v6282
    %v6425 = vunpack.c.h.b16 %v6282
    %v6426 = vunpack.c.l.b16 %v6283
    %v6427 = vunpack.c.h.b16 %v6283
    %v6428 = vunpack.c.l.b16 %v6284
    %v6429 = vunpack.c.h.b16 %v6284
    %v6430 = vunpack.c.l.b16 %v6285
    %v6431 = vunpack.c.h.b16 %v6285
    %v6432 = vunpack.c.l.b16 %v6286
    %v6433 = vunpack.c.h.b16 %v6286
    %v6434 = vunpack.c.l.b16 %v6287
    %v6435 = vunpack.c.h.b16 %v6287
    %v6436 = vunpack.c.l.b16 %v6288
    %v6437 = vunpack.c.h.b16 %v6288
    %v6438 = vunpack.c.l.b16 %v6289
    %v6439 = vunpack.c.h.b16 %v6289
    %v6440 = vunpack.c.l.b16 %v6290
    %v6441 = vunpack.c.h.b16 %v6290
    %v6442 = vunpack.c.l.b16 %v6291
    %v6443 = vunpack.c.h.b16 %v6291
    %v6444 = vunpack.c.l.b16 %v6292
    %v6445 = vunpack.c.h.b16 %v6292
    %v6446 = vunpack.c.l.b16 %v6293
    %v6447 = vunpack.c.h.b16 %v6293
    %v6448 = vunpack.c.l.b16 %v6294
    %v6449 = vunpack.c.h.b16 %v6294
    %v6450 = vunpack.c.l.b16 %v6295
    %v6451 = vunpack.c.h.b16 %v6295
    %v6452 = vpack.c.b16 %v6358, %v6356
    %v6453 = vpack.c.b16 %v6359, %v6357
    %v6454 = vpack.c.b16 %v6362, %v6360
    %v6455 = vpack.c.b16 %v6363, %v6361
    %v6456 = vpack.c.b16 %v6366, %v6364
    %v6457 = vpack.c.b16 %v6367, %v6365
    %v6458 = vpack.c.b16 %v6370, %v6368
    %v6459 = vpack.c.b16 %v6371, %v6369
    %v6460 = vpack.c.b16 %v6374, %v6372
    %v6461 = vpack.c.b16 %v6375, %v6373
    %v6462 = vpack.c.b16 %v6378, %v6376
    %v6463 = vpack.c.b16 %v6379, %v6377
    %v6464 = vpack.c.b16 %v6382, %v6380
    %v6465 = vpack.c.b16 %v6383, %v6381
    %v6466 = vpack.c.b16 %v6386, %v6384
    %v6467 = vpack.c.b16 %v6387, %v6385
    %v6468 = vpack.c.b16 %v6390, %v6388
    %v6469 = vpack.c.b16 %v6391, %v6389
    %v6470 = vpack.c.b16 %v6394, %v6392
    %v6471 = vpack.c.b16 %v6395, %v6393
    %v6472 = vpack.c.b16 %v6398, %v6396
    %v6473 = vpack.c.b16 %v6399, %v6397
    %v6474 = vpack.c.b16 %v6402, %v6400
    %v6475 = vpack.c.b16 %v6403, %v6401
    %v6476 = vpack.c.b16 %v6406, %v6404
    %v6477 = vpack.c.b16 %v6407, %v6405
    %v6478 = vpack.c.b16 %v6410, %v6408
    %v6479 = vpack.c.b16 %v6411, %v6409
    %v6480 = vpack.c.b16 %v6414, %v6412
    %v6481 = vpack.c.b16 %v6415, %v6413
    %v6482 = vpack.c.b16 %v6418, %v6416
    %v6483 = vpack.c.b16 %v6419, %v6417
    %v6484 = vpack.c.b16 %v6422, %v6420
    %v6485 = vpack.c.b16 %v6423, %v6421
    %v6486 = vpack.c.b16 %v6426, %v6424
    %v6487 = vpack.c.b16 %v6427, %v6425
    %v6488 = vpack.c.b16 %v6430, %v6428
    %v6489 = vpack.c.b16 %v6431, %v6429
    %v6490 = vpack.c.b16 %v6434, %v6432
    %v6491 = vpack.c.b16 %v6435, %v6433
    %v6492 = vpack.c.b16 %v6438, %v6436
    %v6493 = vpack.c.b16 %v6439, %v6437
    %v6494 = vpack.c.b16 %v6442, %v6440
    %v6495 = vpack.c.b16 %v6443, %v6441
    %v6496 = vpack.c.b16 %v6446, %v6444
    %v6497 = vpack.c.b16 %v6447, %v6445
    %v6498 = vpack.c.b16 %v6450, %v6448
    %v6499 = vpack.c.b16 %v6451, %v6449
    %6548 = vmatprep.subr.bf16.mxu0 %v6453
    %6549 = vmatpush1.bf16.msra.mxu0 %v6452
    %6550 = vmatprep.subr.bf16.mxu0 %v6455
    %6551 = vmatpush1.bf16.msra.mxu0 %v6454
    %6552 = vmatprep.subr.bf16.mxu0 %v6457
    %6553 = vmatpush1.bf16.msra.mxu0 %v6456
    %6554 = vmatprep.subr.bf16.mxu0 %v6459
    %6555 = vmatpush1.bf16.msra.mxu0 %v6458
    %6556 = vmatprep.subr.bf16.mxu0 %v6461
    %6557 = vmatpush1.bf16.msra.mxu0 %v6460
    %6558 = vmatprep.subr.bf16.mxu0 %v6463
    %6559 = vmatpush1.bf16.msra.mxu0 %v6462
    %6560 = vmatprep.subr.bf16.mxu0 %v6465
    %6561 = vmatpush1.bf16.msra.mxu0 %v6464
    %6562 = vmatprep.subr.bf16.mxu0 %v6467
    %6563 = vmatpush1.bf16.msra.mxu0 %v6466
    %6564 = vmatprep.subr.bf16.mxu0 %v6469
    %6565 = vmatpush1.bf16.msra.mxu0 %v6468
    %6566 = vmatprep.subr.bf16.mxu0 %v6471
    %6567 = vmatpush1.bf16.msra.mxu0 %v6470
    %6568 = vmatprep.subr.bf16.mxu0 %v6473
    %6569 = vmatpush1.bf16.msra.mxu0 %v6472
    %6570 = vmatprep.subr.bf16.mxu0 %v6475
    %6571 = vmatpush1.bf16.msra.mxu0 %v6474
    %6572 = vmatprep.subr.bf16.mxu0 %v6477
    %6573 = vmatpush1.bf16.msra.mxu0 %v6476
    %6574 = vmatprep.subr.bf16.mxu0 %v6479
    %6575 = vmatpush1.bf16.msra.mxu0 %v6478
    %6576 = vmatprep.subr.bf16.mxu0 %v6481
    %6577 = vmatpush1.bf16.msra.mxu0 %v6480
    %6578 = vmatprep.subr.bf16.mxu0 %v6483
    %6579 = vmatpush1.bf16.msra.mxu0 %v6482
    %6580 = vmatprep.mubr.bf16.mxu0 %v6246
    %6581 = vmatmul.mubr.bf16.gmra.mrb[0].mxu0 %v6245
    %v6582 = vpop.f32.mrb[0].mxu0
    %v6583 = vadd.f32 %v6301, %v6582
    %v6584 = vpop.f32.mrb[0].mxu0
    %v6585 = vadd.f32 %v6305, %v6584
    %v6586 = vpop.f32.mrb[0].mxu0
    %v6587 = vadd.f32 %v6301, %v6586
    %v6588 = vpop.f32.mrb[0].mxu0
    %v6589 = vadd.f32 %v6305, %v6588
    %6590 = vdwg.mxu0
    %6591 = vmatprep.subr.bf16.mxu0 %v6485
    %6592 = vmatpush1.bf16.msra.mxu0 %v6484
    %6593 = vmatprep.subr.bf16.mxu0 %v6487
    %6594 = vmatpush1.bf16.msra.mxu0 %v6486
    %6595 = vmatprep.subr.bf16.mxu0 %v6489
    %6596 = vmatpush1.bf16.msra.mxu0 %v6488
    %6597 = vmatprep.subr.bf16.mxu0 %v6491
    %6598 = vmatpush1.bf16.msra.mxu0 %v6490
    %6599 = vmatprep.subr.bf16.mxu0 %v6493
    %6600 = vmatpush1.bf16.msra.mxu0 %v6492
    %6601 = vmatprep.subr.bf16.mxu0 %v6495
    %6602 = vmatpush1.bf16.msra.mxu0 %v6494
    %6603 = vmatprep.subr.bf16.mxu0 %v6497
    %6604 = vmatpush1.bf16.msra.mxu0 %v6496
    %6605 = vmatprep.subr.bf16.mxu0 %v6499
    %6606 = vmatpush1.bf16.msra.mxu0 %v6498
    %6607 = vmatprep.subr.bf16.mxu0 0
    %6608 = vmatpush1.bf16.msra.mxu0 0
    %6609 = vmatprep.subr.bf16.mxu0 0
    %6610 = vmatpush1.bf16.msra.mxu0 0
    %6611 = vmatprep.subr.bf16.mxu0 0
    %6612 = vmatpush1.bf16.msra.mxu0 0
    %6613 = vmatprep.subr.bf16.mxu0 0
    %6614 = vmatpush1.bf16.msra.mxu0 0
    %6615 = vmatprep.subr.bf16.mxu0 0
    %6616 = vmatpush1.bf16.msra.mxu0 0
    %6617 = vmatprep.subr.bf16.mxu0 0
    %6618 = vmatpush1.bf16.msra.mxu0 0
    %6619 = vmatprep.subr.bf16.mxu0 0
    %6620 = vmatpush1.bf16.msra.mxu0 0
    %6621 = vmatprep.subr.bf16.mxu0 0
    %6622 = vmatpush1.bf16.msra.mxu0 0
    %6623 = vmatprep.mubr.bf16.mxu0 0
    %6624 = vmatmul.mubr.bf16.gmra.mrb[0].mxu0 %v6247
    %v6625 = vpop.f32.mrb[0].mxu0
    %v6626 = vadd.f32 %v6583, %v6625
    %v6627 = vpop.f32.mrb[0].mxu0
    %v6628 = vadd.f32 %v6585, %v6627
    %v6629 = vpop.f32.mrb[0].mxu0
    %v6630 = vadd.f32 %v6587, %v6629
    %v6631 = vpop.f32.mrb[0].mxu0
    %v6632 = vadd.f32 %v6589, %v6631
    %6633 = vdwg.mxu0
    %v6634 = vld [vmem:[#allocation19] sm:$0x3]
    %v6635 = vld [vmem:[#allocation20] sm:$0x3]
    %v6636 = vadd.f32 %v6626, %v6628
    %6637 = vadd.xlane.f32.xlu0 %v6636
    %v6638 = vpop.xlane.xlu0 %6637
    %v6639 = vadd.f32 %v6630, %v6632
    %6640 = vadd.xlane.f32.xlu0 %v6639
    %v6641 = vpop.xlane.xlu0 %6640
    %v6642 = vmul.f32 %v6626, %v6626
    %v6643 = vmul.f32 %v6628, %v6628
    %v6644 = vmul.f32 %v6630, %v6630
    %v6645 = vmul.f32 %v6632, %v6632
    %v6646 = vadd.f32 %v6642, %v6643
    %6647 = vadd.xlane.f32.xlu0 %v6646
    %v6648 = vpop.xlane.xlu0 %6647
    %v6649 = vadd.f32 %v6644, %v6645
    %6650 = vadd.xlane.f32.xlu0 %v6649
    %v6651 = vpop.xlane.xlu0 %6650
    %v6652 = vmul.f32 %v6638, 0.0052083335
    %v6653 = vmul.f32 %v6641, 0.0052083335
    %v6654 = vmul.f32 %v6648, 0.0052083335
    %v6655 = vmul.f32 %v6651, 0.0052083335
    %v6656 = vmul.f32 %v6652, %v6652
    %v6657 = vmul.f32 %v6653, %v6653
    %v6658 = vsub.f32 %v6654, %v6656
    %v6659 = vsub.f32 %v6655, %v6657
    %v6660 = vmax.f32 %v6658, 0.0
    %v6661 = vmax.f32 %v6659, 0.0
    %v6662 = vsub.f32 %v6626, %v6652
    %v6663 = vsub.f32 %v6628, %v6652
    %v6664 = vsub.f32 %v6630, %v6653
    %v6665 = vsub.f32 %v6632, %v6653
    %v6666 = vadd.f32 %v6660, 1e-05
    %v6667 = vadd.f32 %v6661, 1e-05
    %v6668 = vrsqrt.pop %v6666
    %v6669 = vrsqrt.pop %v6667
    %v6670 = vmul.f32 %v6662, %v6668
    %v6671 = vmul.f32 %v6663, %v6668
    %v6672 = vmul.f32 %v6664, %v6669
    %v6673 = vmul.f32 %v6665, %v6669
    %v6675 = vlaneseq
    %v6676 = vshrl.u32 %v6675, 7
    %v6677 = vsub.s32 0, %v6676
    %v6678 = vrot.slane %v6634, %v6677
    %v6679 = vlaneseq
    %v6680 = vshrl.u32 %v6679, 7
    %v6681 = vsub.s32 1, %v6680
    %v6682 = vrot.slane %v6634, %v6681
    %v6685 = vmul.f32 %v6670, %v6678
    %v6686 = vmul.f32 %v6671, %v6682
    %v6687 = vmul.f32 %v6672, %v6678
    %v6688 = vmul.f32 %v6673, %v6682
    %v6690 = vlaneseq
    %v6691 = vshrl.u32 %v6690, 7
    %v6692 = vsub.s32 0, %v6691
    %v6693 = vrot.slane %v6635, %v6692
    %v6694 = vlaneseq
    %v6695 = vshrl.u32 %v6694, 7
    %v6696 = vsub.s32 1, %v6695
    %v6697 = vrot.slane %v6635, %v6696
    %v6700 = vadd.f32 %v6685, %v6693
    %v6701 = vadd.f32 %v6686, %v6697
    %v6702 = vadd.f32 %v6687, %v6693
    %v6703 = vadd.f32 %v6688, %v6697
    %v6704 = vmax.f32 %v6700, 0.0
    %v6705 = vmax.f32 %v6701, 0.0
    %v6706 = vmax.f32 %v6702, 0.0
    %v6707 = vmax.f32 %v6703, 0.0
    %v6708 = vpack.c.bf16 %v6706, %v6704
    %v6709 = vpack.c.bf16 %v6707, %v6705
    %v6710 = vld [vmem:[#allocation22] sm:$0xff]
    %v6711 = vld [vmem:[#allocation22 + $0x8] sm:$0xff]
    %v6712 = vld [vmem:[#allocation22 + $0x10] sm:$0xff]
    %v6713 = vld [vmem:[#allocation22 + $0x18] sm:$0xff]
    %v6714 = vld [vmem:[#allocation22 + $0x20] sm:$0xff]
    %v6715 = vld [vmem:[#allocation22 + $0x28] sm:$0xff]
    %v6716 = vld [vmem:[#allocation22 + $0x30] sm:$0xff]
    %v6717 = vld [vmem:[#allocation22 + $0x38] sm:$0xff]
    %v6718 = vld [vmem:[#allocation22 + $0x40] sm:$0xff]
    %v6719 = vld [vmem:[#allocation22 + $0x48] sm:$0xff]
    %v6720 = vld [vmem:[#allocation22 + $0x50] sm:$0xff]
    %v6721 = vld [vmem:[#allocation22 + $0x58] sm:$0xff]
    %v6722 = vld [vmem:[#allocation22 + $0x60] sm:$0xff]
    %v6723 = vld [vmem:[#allocation22 + $0x68] sm:$0xff]
    %v6724 = vld [vmem:[#allocation22 + $0x70] sm:$0xff]
    %v6725 = vld [vmem:[#allocation22 + $0x78] sm:$0xff]
    %v6726 = vld [vmem:[#allocation22 + $0x80] sm:$0xff]
    %v6727 = vld [vmem:[#allocation22 + $0x88] sm:$0xff]
    %v6728 = vld [vmem:[#allocation22 + $0x90] sm:$0xff]
    %v6729 = vld [vmem:[#allocation22 + $0x98] sm:$0xff]
    %v6730 = vld [vmem:[#allocation22 + $0xa0] sm:$0xff]
    %v6731 = vld [vmem:[#allocation22 + $0xa8] sm:$0xff]
    %v6732 = vld [vmem:[#allocation22 + $0xb0] sm:$0xff]
    %v6733 = vld [vmem:[#allocation22 + $0xb8] sm:$0xff]
    %v6734 = vld [vmem:[#allocation22 + $0xc0] sm:$0xff]
    %v6735 = vld [vmem:[#allocation22 + $0xc8] sm:$0xff]
    %v6736 = vld [vmem:[#allocation22 + $0xd0] sm:$0xff]
    %v6737 = vld [vmem:[#allocation22 + $0xd8] sm:$0xff]
    %v6738 = vld [vmem:[#allocation22 + $0xe0] sm:$0xff]
    %v6739 = vld [vmem:[#allocation22 + $0xe8] sm:$0xff]
    %v6740 = vld [vmem:[#allocation22 + $0xf0] sm:$0xff]
    %v6741 = vld [vmem:[#allocation22 + $0xf8] sm:$0xff]
    %v6742 = vld [vmem:[#allocation23] sm:$0xff]
    %v6743 = vld [vmem:[#allocation23 + $0x8] sm:$0xff]
    %v6744 = vld [vmem:[#allocation23 + $0x10] sm:$0xff]
    %v6745 = vld [vmem:[#allocation23 + $0x18] sm:$0xff]
    %v6746 = vld [vmem:[#allocation23 + $0x20] sm:$0xff]
    %v6747 = vld [vmem:[#allocation23 + $0x28] sm:$0xff]
    %v6748 = vld [vmem:[#allocation23 + $0x30] sm:$0xff]
    %v6749 = vld [vmem:[#allocation23 + $0x38] sm:$0xff]
    %v6750 = vld [vmem:[#allocation23 + $0x40] sm:$0xff]
    %v6751 = vld [vmem:[#allocation23 + $0x48] sm:$0xff]
    %v6752 = vld [vmem:[#allocation23 + $0x50] sm:$0xff]
    %v6753 = vld [vmem:[#allocation23 + $0x58] sm:$0xff]
    %v6754 = vld [vmem:[#allocation23 + $0x60] sm:$0xff]
    %v6755 = vld [vmem:[#allocation23 + $0x68] sm:$0xff]
    %v6756 = vld [vmem:[#allocation23 + $0x70] sm:$0xff]
    %v6757 = vld [vmem:[#allocation23 + $0x78] sm:$0xff]
    %v6758 = vld [vmem:[#allocation23 + $0x80] sm:$0xff]
    %v6759 = vld [vmem:[#allocation23 + $0x88] sm:$0xff]
    %v6760 = vld [vmem:[#allocation23 + $0x90] sm:$0xff]
    %v6761 = vld [vmem:[#allocation23 + $0x98] sm:$0xff]
    %v6762 = vld [vmem:[#allocation23 + $0xa0] sm:$0xff]
    %v6763 = vld [vmem:[#allocation23 + $0xa8] sm:$0xff]
    %v6764 = vld [vmem:[#allocation23 + $0xb0] sm:$0xff]
    %v6765 = vld [vmem:[#allocation23 + $0xb8] sm:$0xff]
    %v6766 = vld [vmem:[#allocation23 + $0xc0] sm:$0xff]
    %v6767 = vld [vmem:[#allocation23 + $0xc8] sm:$0xff]
    %v6768 = vld [vmem:[#allocation23 + $0xd0] sm:$0xff]
    %v6769 = vld [vmem:[#allocation23 + $0xd8] sm:$0xff]
    %v6770 = vld [vmem:[#allocation23 + $0xe0] sm:$0xff]
    %v6771 = vld [vmem:[#allocation23 + $0xe8] sm:$0xff]
    %v6772 = vld [vmem:[#allocation23 + $0xf0] sm:$0xff]
    %v6773 = vld [vmem:[#allocation23 + $0xf8] sm:$0xff]
    %v6776 = vrot.slane %v6708, 4
    %v6777 = vrot.slane %v6709, 4
    %v6812 = vunpack.c.l.b16 %v6742
    %v6813 = vunpack.c.h.b16 %v6742
    %v6814 = vunpack.c.l.b16 %v6743
    %v6815 = vunpack.c.h.b16 %v6743
    %v6816 = vunpack.c.l.b16 %v6744
    %v6817 = vunpack.c.h.b16 %v6744
    %v6818 = vunpack.c.l.b16 %v6745
    %v6819 = vunpack.c.h.b16 %v6745
    %v6820 = vunpack.c.l.b16 %v6746
    %v6821 = vunpack.c.h.b16 %v6746
    %v6822 = vunpack.c.l.b16 %v6747
    %v6823 = vunpack.c.h.b16 %v6747
    %v6824 = vunpack.c.l.b16 %v6748
    %v6825 = vunpack.c.h.b16 %v6748
    %v6826 = vunpack.c.l.b16 %v6749
    %v6827 = vunpack.c.h.b16 %v6749
    %v6828 = vunpack.c.l.b16 %v6750
    %v6829 = vunpack.c.h.b16 %v6750
    %v6830 = vunpack.c.l.b16 %v6751
    %v6831 = vunpack.c.h.b16 %v6751
    %v6832 = vunpack.c.l.b16 %v6752
    %v6833 = vunpack.c.h.b16 %v6752
    %v6834 = vunpack.c.l.b16 %v6753
    %v6835 = vunpack.c.h.b16 %v6753
    %v6836 = vunpack.c.l.b16 %v6754
    %v6837 = vunpack.c.h.b16 %v6754
    %v6838 = vunpack.c.l.b16 %v6755
    %v6839 = vunpack.c.h.b16 %v6755
    %v6840 = vunpack.c.l.b16 %v6756
    %v6841 = vunpack.c.h.b16 %v6756
    %v6842 = vunpack.c.l.b16 %v6757
    %v6843 = vunpack.c.h.b16 %v6757
    %v6844 = vunpack.c.l.b16 %v6758
    %v6845 = vunpack.c.h.b16 %v6758
    %v6846 = vunpack.c.l.b16 %v6759
    %v6847 = vunpack.c.h.b16 %v6759
    %v6848 = vunpack.c.l.b16 %v6760
    %v6849 = vunpack.c.h.b16 %v6760
    %v6850 = vunpack.c.l.b16 %v6761
    %v6851 = vunpack.c.h.b16 %v6761
    %v6852 = vunpack.c.l.b16 %v6762
    %v6853 = vunpack.c.h.b16 %v6762
    %v6854 = vunpack.c.l.b16 %v6763
    %v6855 = vunpack.c.h.b16 %v6763
    %v6856 = vunpack.c.l.b16 %v6764
    %v6857 = vunpack.c.h.b16 %v6764
    %v6858 = vunpack.c.l.b16 %v6765
    %v6859 = vunpack.c.h.b16 %v6765
    %v6860 = vunpack.c.l.b16 %v6766
    %v6861 = vunpack.c.h.b16 %v6766
    %v6862 = vunpack.c.l.b16 %v6767
    %v6863 = vunpack.c.h.b16 %v6767
    %v6864 = vunpack.c.l.b16 %v6768
    %v6865 = vunpack.c.h.b16 %v6768
    %v6866 = vunpack.c.l.b16 %v6769
    %v6867 = vunpack.c.h.b16 %v6769
    %v6868 = vunpack.c.l.b16 %v6770
    %v6869 = vunpack.c.h.b16 %v6770
    %v6870 = vunpack.c.l.b16 %v6771
    %v6871 = vunpack.c.h.b16 %v6771
    %v6872 = vunpack.c.l.b16 %v6772
    %v6873 = vunpack.c.h.b16 %v6772
    %v6874 = vunpack.c.l.b16 %v6773
    %v6875 = vunpack.c.h.b16 %v6773
    %v6876 = vpack.c.b16 %v6814, %v6812
    %v6877 = vpack.c.b16 %v6815, %v6813
    %v6878 = vpack.c.b16 %v6818, %v6816
    %v6879 = vpack.c.b16 %v6819, %v6817
    %v6880 = vpack.c.b16 %v6822, %v6820
    %v6881 = vpack.c.b16 %v6823, %v6821
    %v6882 = vpack.c.b16 %v6826, %v6824
    %v6883 = vpack.c.b16 %v6827, %v6825
    %v6884 = vpack.c.b16 %v6830, %v6828
    %v6885 = vpack.c.b16 %v6831, %v6829
    %v6886 = vpack.c.b16 %v6834, %v6832
    %v6887 = vpack.c.b16 %v6835, %v6833
    %v6888 = vpack.c.b16 %v6838, %v6836
    %v6889 = vpack.c.b16 %v6839, %v6837
    %v6890 = vpack.c.b16 %v6842, %v6840
    %v6891 = vpack.c.b16 %v6843, %v6841
    %v6892 = vpack.c.b16 %v6846, %v6844
    %v6893 = vpack.c.b16 %v6847, %v6845
    %v6894 = vpack.c.b16 %v6850, %v6848
    %v6895 = vpack.c.b16 %v6851, %v6849
    %v6896 = vpack.c.b16 %v6854, %v6852
    %v6897 = vpack.c.b16 %v6855, %v6853
    %v6898 = vpack.c.b16 %v6858, %v6856
    %v6899 = vpack.c.b16 %v6859, %v6857
    %v6900 = vpack.c.b16 %v6862, %v6860
    %v6901 = vpack.c.b16 %v6863, %v6861
    %v6902 = vpack.c.b16 %v6866, %v6864
    %v6903 = vpack.c.b16 %v6867, %v6865
    %v6904 = vpack.c.b16 %v6870, %v6868
    %v6905 = vpack.c.b16 %v6871, %v6869
    %v6906 = vpack.c.b16 %v6874, %v6872
    %v6907 = vpack.c.b16 %v6875, %v6873
    %6940 = vmatprep.subr.bf16.mxu0 %v6877
    %6941 = vmatpush1.bf16.msra.mxu0 %v6876
    %6942 = vmatprep.subr.bf16.mxu0 %v6879
    %6943 = vmatpush1.bf16.msra.mxu0 %v6878
    %6944 = vmatprep.subr.bf16.mxu0 %v6881
    %6945 = vmatpush1.bf16.msra.mxu0 %v6880
    %6946 = vmatprep.subr.bf16.mxu0 %v6883
    %6947 = vmatpush1.bf16.msra.mxu0 %v6882
    %6948 = vmatprep.subr.bf16.mxu0 %v6885
    %6949 = vmatpush1.bf16.msra.mxu0 %v6884
    %6950 = vmatprep.subr.bf16.mxu0 %v6887
    %6951 = vmatpush1.bf16.msra.mxu0 %v6886
    %6952 = vmatprep.subr.bf16.mxu0 %v6889
    %6953 = vmatpush1.bf16.msra.mxu0 %v6888
    %6954 = vmatprep.subr.bf16.mxu0 %v6891
    %6955 = vmatpush1.bf16.msra.mxu0 %v6890
    %6956 = vmatprep.subr.bf16.mxu0 %v6893
    %6957 = vmatpush1.bf16.msra.mxu0 %v6892
    %6958 = vmatprep.subr.bf16.mxu0 %v6895
    %6959 = vmatpush1.bf16.msra.mxu0 %v6894
    %6960 = vmatprep.subr.bf16.mxu0 %v6897
    %6961 = vmatpush1.bf16.msra.mxu0 %v6896
    %6962 = vmatprep.subr.bf16.mxu0 %v6899
    %6963 = vmatpush1.bf16.msra.mxu0 %v6898
    %6964 = vmatprep.subr.bf16.mxu0 %v6901
    %6965 = vmatpush1.bf16.msra.mxu0 %v6900
    %6966 = vmatprep.subr.bf16.mxu0 %v6903
    %6967 = vmatpush1.bf16.msra.mxu0 %v6902
    %6968 = vmatprep.subr.bf16.mxu0 %v6905
    %6969 = vmatpush1.bf16.msra.mxu0 %v6904
    %6970 = vmatprep.subr.bf16.mxu0 %v6907
    %6971 = vmatpush1.bf16.msra.mxu0 %v6906
    %6972 = vmatprep.mubr.bf16.mxu0 %v6777
    %6973 = vmatmul.mubr.bf16.gmra.mrb[0].mxu0 %v6776
    %v6974 = vpop.f32.mrb[0].mxu0
    %v6975 = vadd.f32 0.0, %v6974
    %v6976 = vpop.f32.mrb[0].mxu0
    %v6977 = vadd.f32 0.0, %v6976
    %v6978 = vpop.f32.mrb[0].mxu0
    %v6979 = vpop.f32.mrb[0].mxu0
    %6980 = vdwg.mxu0
    %v7013 = vunpack.c.l.b16 %v6710
    %v7014 = vunpack.c.h.b16 %v6710
    %v7015 = vunpack.c.l.b16 %v6711
    %v7016 = vunpack.c.h.b16 %v6711
    %v7017 = vunpack.c.l.b16 %v6712
    %v7018 = vunpack.c.h.b16 %v6712
    %v7019 = vunpack.c.l.b16 %v6713
    %v7020 = vunpack.c.h.b16 %v6713
    %v7021 = vunpack.c.l.b16 %v6714
    %v7022 = vunpack.c.h.b16 %v6714
    %v7023 = vunpack.c.l.b16 %v6715
    %v7024 = vunpack.c.h.b16 %v6715
    %v7025 = vunpack.c.l.b16 %v6716
    %v7026 = vunpack.c.h.b16 %v6716
    %v7027 = vunpack.c.l.b16 %v6717
    %v7028 = vunpack.c.h.b16 %v6717
    %v7029 = vunpack.c.l.b16 %v6718
    %v7030 = vunpack.c.h.b16 %v6718
    %v7031 = vunpack.c.l.b16 %v6719
    %v7032 = vunpack.c.h.b16 %v6719
    %v7033 = vunpack.c.l.b16 %v6720
    %v7034 = vunpack.c.h.b16 %v6720
    %v7035 = vunpack.c.l.b16 %v6721
    %v7036 = vunpack.c.h.b16 %v6721
    %v7037 = vunpack.c.l.b16 %v6722
    %v7038 = vunpack.c.h.b16 %v6722
    %v7039 = vunpack.c.l.b16 %v6723
    %v7040 = vunpack.c.h.b16 %v6723
    %v7041 = vunpack.c.l.b16 %v6724
    %v7042 = vunpack.c.h.b16 %v6724
    %v7043 = vunpack.c.l.b16 %v6725
    %v7044 = vunpack.c.h.b16 %v6725
    %v7045 = vunpack.c.l.b16 %v6726
    %v7046 = vunpack.c.h.b16 %v6726
    %v7047 = vunpack.c.l.b16 %v6727
    %v7048 = vunpack.c.h.b16 %v6727
    %v7049 = vunpack.c.l.b16 %v6728
    %v7050 = vunpack.c.h.b16 %v6728
    %v7051 = vunpack.c.l.b16 %v6729
    %v7052 = vunpack.c.h.b16 %v6729
    %v7053 = vunpack.c.l.b16 %v6730
    %v7054 = vunpack.c.h.b16 %v6730
    %v7055 = vunpack.c.l.b16 %v6731
    %v7056 = vunpack.c.h.b16 %v6731
    %v7057 = vunpack.c.l.b16 %v6732
    %v7058 = vunpack.c.h.b16 %v6732
    %v7059 = vunpack.c.l.b16 %v6733
    %v7060 = vunpack.c.h.b16 %v6733
    %v7061 = vunpack.c.l.b16 %v6734
    %v7062 = vunpack.c.h.b16 %v6734
    %v7063 = vunpack.c.l.b16 %v6735
    %v7064 = vunpack.c.h.b16 %v6735
    %v7065 = vunpack.c.l.b16 %v6736
    %v7066 = vunpack.c.h.b16 %v6736
    %v7067 = vunpack.c.l.b16 %v6737
    %v7068 = vunpack.c.h.b16 %v6737
    %v7069 = vunpack.c.l.b16 %v6738
    %v7070 = vunpack.c.h.b16 %v6738
    %v7071 = vunpack.c.l.b16 %v6739
    %v7072 = vunpack.c.h.b16 %v6739
    %v7073 = vunpack.c.l.b16 %v6740
    %v7074 = vunpack.c.h.b16 %v6740
    %v7075 = vunpack.c.l.b16 %v6741
    %v7076 = vunpack.c.h.b16 %v6741
    %v7077 = vpack.c.b16 %v7015, %v7013
    %v7078 = vpack.c.b16 %v7016, %v7014
    %v7079 = vpack.c.b16 %v7019, %v7017
    %v7080 = vpack.c.b16 %v7020, %v7018
    %v7081 = vpack.c.b16 %v7023, %v7021
    %v7082 = vpack.c.b16 %v7024, %v7022
    %v7083 = vpack.c.b16 %v7027, %v7025
    %v7084 = vpack.c.b16 %v7028, %v7026
    %v7085 = vpack.c.b16 %v7031, %v7029
    %v7086 = vpack.c.b16 %v7032, %v7030
    %v7087 = vpack.c.b16 %v7035, %v7033
    %v7088 = vpack.c.b16 %v7036, %v7034
    %v7089 = vpack.c.b16 %v7039, %v7037
    %v7090 = vpack.c.b16 %v7040, %v7038
    %v7091 = vpack.c.b16 %v7043, %v7041
    %v7092 = vpack.c.b16 %v7044, %v7042
    %v7093 = vpack.c.b16 %v7047, %v7045
    %v7094 = vpack.c.b16 %v7048, %v7046
    %v7095 = vpack.c.b16 %v7051, %v7049
    %v7096 = vpack.c.b16 %v7052, %v7050
    %v7097 = vpack.c.b16 %v7055, %v7053
    %v7098 = vpack.c.b16 %v7056, %v7054
    %v7099 = vpack.c.b16 %v7059, %v7057
    %v7100 = vpack.c.b16 %v7060, %v7058
    %v7101 = vpack.c.b16 %v7063, %v7061
    %v7102 = vpack.c.b16 %v7064, %v7062
    %v7103 = vpack.c.b16 %v7067, %v7065
    %v7104 = vpack.c.b16 %v7068, %v7066
    %v7105 = vpack.c.b16 %v7071, %v7069
    %v7106 = vpack.c.b16 %v7072, %v7070
    %v7107 = vpack.c.b16 %v7075, %v7073
    %v7108 = vpack.c.b16 %v7076, %v7074
    %7141 = vmatprep.subr.bf16.mxu0 %v7078
    %7142 = vmatpush1.bf16.msra.mxu0 %v7077
    %7143 = vmatprep.subr.bf16.mxu0 %v7080
    %7144 = vmatpush1.bf16.msra.mxu0 %v7079
    %7145 = vmatprep.subr.bf16.mxu0 %v7082
    %7146 = vmatpush1.bf16.msra.mxu0 %v7081
    %7147 = vmatprep.subr.bf16.mxu0 %v7084
    %7148 = vmatpush1.bf16.msra.mxu0 %v7083
    %7149 = vmatprep.subr.bf16.mxu0 %v7086
    %7150 = vmatpush1.bf16.msra.mxu0 %v7085
    %7151 = vmatprep.subr.bf16.mxu0 %v7088
    %7152 = vmatpush1.bf16.msra.mxu0 %v7087
    %7153 = vmatprep.subr.bf16.mxu0 %v7090
    %7154 = vmatpush1.bf16.msra.mxu0 %v7089
    %7155 = vmatprep.subr.bf16.mxu0 %v7092
    %7156 = vmatpush1.bf16.msra.mxu0 %v7091
    %7157 = vmatprep.subr.bf16.mxu0 %v7094
    %7158 = vmatpush1.bf16.msra.mxu0 %v7093
    %7159 = vmatprep.subr.bf16.mxu0 %v7096
    %7160 = vmatpush1.bf16.msra.mxu0 %v7095
    %7161 = vmatprep.subr.bf16.mxu0 %v7098
    %7162 = vmatpush1.bf16.msra.mxu0 %v7097
    %7163 = vmatprep.subr.bf16.mxu0 %v7100
    %7164 = vmatpush1.bf16.msra.mxu0 %v7099
    %7165 = vmatprep.subr.bf16.mxu0 %v7102
    %7166 = vmatpush1.bf16.msra.mxu0 %v7101
    %7167 = vmatprep.subr.bf16.mxu0 %v7104
    %7168 = vmatpush1.bf16.msra.mxu0 %v7103
    %7169 = vmatprep.subr.bf16.mxu0 %v7106
    %7170 = vmatpush1.bf16.msra.mxu0 %v7105
    %7171 = vmatprep.subr.bf16.mxu0 %v7108
    %7172 = vmatpush1.bf16.msra.mxu0 %v7107
    %7173 = vmatprep.mubr.bf16.mxu0 %v6709
    %7174 = vmatmul.mubr.bf16.gmra.mrb[0].mxu0 %v6708
    %v7175 = vpop.f32.mrb[0].mxu0
    %v7176 = vadd.f32 %v6975, %v7175
    %v7177 = vpop.f32.mrb[0].mxu0
    %v7178 = vadd.f32 %v6977, %v7177
    %v7179 = vpop.f32.mrb[0].mxu0
    %v7180 = vpop.f32.mrb[0].mxu0
    %7181 = vdwg.mxu0
    %v7182 = vld [vmem:[#allocation25] sm:$0x3]
    %v7184 = vlaneseq
    %v7185 = vshrl.u32 %v7184, 7
    %v7186 = vsub.s32 0, %v7185
    %v7187 = vrot.slane %v7182, %v7186
    %v7188 = vlaneseq
    %v7189 = vshrl.u32 %v7188, 7
    %v7190 = vsub.s32 1, %v7189
    %v7191 = vrot.slane %v7182, %v7190
    %v7194 = vadd.f32 %v7176, %v7187
    %v7195 = vadd.f32 %v7178, %v7191
    %v7196 = vld [vmem:[#allocation26] sm:$0x3]
    %v7197 = vld [vmem:[#allocation28] sm:$0x3]
    %v7198 = vadd.f32 %v7194, %v7195
    %7199 = vadd.xlane.f32.xlu0 %v7198
    %v7200 = vpop.xlane.xlu0 %7199
    %v7201 = vmul.f32 %v7194, %v7194
    %v7202 = vmul.f32 %v7195, %v7195
    %v7203 = vadd.f32 %v7201, %v7202
    %7204 = vadd.xlane.f32.xlu0 %v7203
    %v7205 = vpop.xlane.xlu0 %7204
    %v7206 = vmul.f32 %v7200, 0.0052083335
    %v7207 = vmul.f32 %v7205, 0.0052083335
    %v7208 = vmul.f32 %v7206, %v7206
    %v7209 = vsub.f32 %v7207, %v7208
    %v7210 = vmax.f32 %v7209, 0.0
    %v7211 = vsub.f32 %v7194, %v7206
    %v7212 = vsub.f32 %v7195, %v7206
    %v7213 = vadd.f32 %v7210, 1e-05
    %v7214 = vrsqrt.pop %v7213
    %v7215 = vmul.f32 %v7211, %v7214
    %v7216 = vmul.f32 %v7212, %v7214
    %v7218 = vlaneseq
    %v7219 = vshrl.u32 %v7218, 7
    %v7220 = vsub.s32 0, %v7219
    %v7221 = vrot.slane %v7196, %v7220
    %v7222 = vlaneseq
    %v7223 = vshrl.u32 %v7222, 7
    %v7224 = vsub.s32 1, %v7223
    %v7225 = vrot.slane %v7196, %v7224
    %v7228 = vmul.f32 %v7215, %v7221
    %v7229 = vmul.f32 %v7216, %v7225
    %v7231 = vlaneseq
    %v7232 = vshrl.u32 %v7231, 7
    %v7233 = vsub.s32 0, %v7232
    %v7234 = vrot.slane %v7197, %v7233
    %v7235 = vlaneseq
    %v7236 = vshrl.u32 %v7235, 7
    %v7237 = vsub.s32 1, %v7236
    %v7238 = vrot.slane %v7197, %v7237
    %v7241 = vadd.f32 %v7228, %v7234
    %v7242 = vadd.f32 %v7229, %v7238
    %v7243 = vmax.f32 %v7241, 0.0
    %v7244 = vmax.f32 %v7242, 0.0
    %v7245 = vpack.c.bf16 %v7243, %v7243
    %v7246 = vpack.c.bf16 %v7244, %v7244
    %v7247 = vld [vmem:[#allocation29] sm:$0xf]
    %v7248 = vld [vmem:[#allocation29 + $0x4] sm:$0xf]
    %v7249 = vld [vmem:[#allocation29 + $0x8] sm:$0xf]
    %v7250 = vld [vmem:[#allocation29 + $0xc] sm:$0xf]
    %v7251 = vld [vmem:[#allocation29 + $0x10] sm:$0xf]
    %v7252 = vld [vmem:[#allocation29 + $0x14] sm:$0xf]
    %v7253 = vld [vmem:[#allocation29 + $0x18] sm:$0xf]
    %v7254 = vld [vmem:[#allocation29 + $0x1c] sm:$0xf]
    %v7255 = vld [vmem:[#allocation29 + $0x20] sm:$0xf]
    %v7256 = vld [vmem:[#allocation29 + $0x24] sm:$0xf]
    %v7257 = vld [vmem:[#allocation29 + $0x28] sm:$0xf]
    %v7258 = vld [vmem:[#allocation29 + $0x2c] sm:$0xf]
    %v7259 = vld [vmem:[#allocation29 + $0x30] sm:$0xf]
    %v7260 = vld [vmem:[#allocation29 + $0x34] sm:$0xf]
    %v7261 = vld [vmem:[#allocation29 + $0x38] sm:$0xf]
    %v7262 = vld [vmem:[#allocation29 + $0x3c] sm:$0xf]
    %v7263 = vld [vmem:[#allocation29 + $0x40] sm:$0xf]
    %v7264 = vld [vmem:[#allocation29 + $0x44] sm:$0xf]
    %v7265 = vld [vmem:[#allocation29 + $0x48] sm:$0xf]
    %v7266 = vld [vmem:[#allocation29 + $0x4c] sm:$0xf]
    %v7267 = vld [vmem:[#allocation29 + $0x50] sm:$0xf]
    %v7268 = vld [vmem:[#allocation29 + $0x54] sm:$0xf]
    %v7269 = vld [vmem:[#allocation29 + $0x58] sm:$0xf]
    %v7270 = vld [vmem:[#allocation29 + $0x5c] sm:$0xf]
    %v7271 = vld [vmem:[#allocation29 + $0x60] sm:$0xf]
    %v7272 = vld [vmem:[#allocation29 + $0x64] sm:$0xf]
    %v7273 = vld [vmem:[#allocation29 + $0x68] sm:$0xf]
    %v7274 = vld [vmem:[#allocation29 + $0x6c] sm:$0xf]
    %v7275 = vld [vmem:[#allocation29 + $0x70] sm:$0xf]
    %v7276 = vld [vmem:[#allocation29 + $0x74] sm:$0xf]
    %v7277 = vld [vmem:[#allocation29 + $0x78] sm:$0xf]
    %v7278 = vld [vmem:[#allocation29 + $0x7c] sm:$0xf]
    %v7279 = vld [vmem:[#allocation31] sm:$0x1]
    %v7281 = vlaneseq
    %v7282 = vshrl.u32 %v7281, 7
    %v7283 = vsub.s32 0, %v7282
    %v7284 = vrot.slane %v7279, %v7283
    %v7318 = vunpack.c.l.b16 %v7247
    %v7319 = vunpack.c.l.b16 %v7248
    %v7320 = vunpack.c.l.b16 %v7249
    %v7321 = vunpack.c.l.b16 %v7250
    %v7322 = vunpack.c.l.b16 %v7251
    %v7323 = vunpack.c.l.b16 %v7252
    %v7324 = vunpack.c.l.b16 %v7253
    %v7325 = vunpack.c.l.b16 %v7254
    %v7326 = vunpack.c.l.b16 %v7255
    %v7327 = vunpack.c.l.b16 %v7256
    %v7328 = vunpack.c.l.b16 %v7257
    %v7329 = vunpack.c.l.b16 %v7258
    %v7330 = vunpack.c.l.b16 %v7259
    %v7331 = vunpack.c.l.b16 %v7260
    %v7332 = vunpack.c.l.b16 %v7261
    %v7333 = vunpack.c.l.b16 %v7262
    %v7334 = vunpack.c.l.b16 %v7263
    %v7335 = vunpack.c.l.b16 %v7264
    %v7336 = vunpack.c.l.b16 %v7265
    %v7337 = vunpack.c.l.b16 %v7266
    %v7338 = vunpack.c.l.b16 %v7267
    %v7339 = vunpack.c.l.b16 %v7268
    %v7340 = vunpack.c.l.b16 %v7269
    %v7341 = vunpack.c.l.b16 %v7270
    %v7342 = vunpack.c.l.b16 %v7271
    %v7343 = vunpack.c.l.b16 %v7272
    %v7344 = vunpack.c.l.b16 %v7273
    %v7345 = vunpack.c.l.b16 %v7274
    %v7346 = vunpack.c.l.b16 %v7275
    %v7347 = vunpack.c.l.b16 %v7276
    %v7348 = vunpack.c.l.b16 %v7277
    %v7349 = vunpack.c.l.b16 %v7278
    %v7350 = vpack.c.b16 %v7319, %v7318
    %v7351 = vpack.c.b16 %v7321, %v7320
    %v7352 = vpack.c.b16 %v7323, %v7322
    %v7353 = vpack.c.b16 %v7325, %v7324
    %v7354 = vpack.c.b16 %v7327, %v7326
    %v7355 = vpack.c.b16 %v7329, %v7328
    %v7356 = vpack.c.b16 %v7331, %v7330
    %v7357 = vpack.c.b16 %v7333, %v7332
    %v7358 = vpack.c.b16 %v7335, %v7334
    %v7359 = vpack.c.b16 %v7337, %v7336
    %v7360 = vpack.c.b16 %v7339, %v7338
    %v7361 = vpack.c.b16 %v7341, %v7340
    %v7362 = vpack.c.b16 %v7343, %v7342
    %v7363 = vpack.c.b16 %v7345, %v7344
    %v7364 = vpack.c.b16 %v7347, %v7346
    %v7365 = vpack.c.b16 %v7349, %v7348
    %7382 = vmatprep.subr.bf16.mxu0 0
    %7383 = vmatpush1.bf16.msra.mxu0 %v7350
    %7384 = vmatprep.subr.bf16.mxu0 0
    %7385 = vmatpush1.bf16.msra.mxu0 %v7351
    %7386 = vmatprep.subr.bf16.mxu0 0
    %7387 = vmatpush1.bf16.msra.mxu0 %v7352
    %7388 = vmatprep.subr.bf16.mxu0 0
    %7389 = vmatpush1.bf16.msra.mxu0 %v7353
    %7390 = vmatprep.subr.bf16.mxu0 0
    %7391 = vmatpush1.bf16.msra.mxu0 %v7354
    %7392 = vmatprep.subr.bf16.mxu0 0
    %7393 = vmatpush1.bf16.msra.mxu0 %v7355
    %7394 = vmatprep.subr.bf16.mxu0 0
    %7395 = vmatpush1.bf16.msra.mxu0 %v7356
    %7396 = vmatprep.subr.bf16.mxu0 0
    %7397 = vmatpush1.bf16.msra.mxu0 %v7357
    %7398 = vmatprep.subr.bf16.mxu0 0
    %7399 = vmatpush1.bf16.msra.mxu0 %v7358
    %7400 = vmatprep.subr.bf16.mxu0 0
    %7401 = vmatpush1.bf16.msra.mxu0 %v7359
    %7402 = vmatprep.subr.bf16.mxu0 0
    %7403 = vmatpush1.bf16.msra.mxu0 %v7360
    %7404 = vmatprep.subr.bf16.mxu0 0
    %7405 = vmatpush1.bf16.msra.mxu0 %v7361
    %7406 = vmatprep.subr.bf16.mxu0 0
    %7407 = vmatpush1.bf16.msra.mxu0 %v7362
    %7408 = vmatprep.subr.bf16.mxu0 0
    %7409 = vmatpush1.bf16.msra.mxu0 %v7363
    %7410 = vmatprep.subr.bf16.mxu0 0
    %7411 = vmatpush1.bf16.msra.mxu0 %v7364
    %7412 = vmatprep.subr.bf16.mxu0 0
    %7413 = vmatpush1.bf16.msra.mxu0 %v7365
    %7414 = vmatprep.mubr.bf16.mxu0 %v7246
    %7415 = vmatmul.mubr.bf16.gmra.mrb[0].mxu0 %v7245
    %v7416 = vpop.f32.mrb[0].mxu0
    %v7417 = vadd.f32 %v7284, %v7416
    %v7418 = vpop.f32.mrb[0].mxu0
    %v7419 = vpop.f32.mrb[0].mxu0
    %v7420 = vpop.f32.mrb[0].mxu0
    %7421 = vdwg.mxu0
    %v7422 = vld [vmem:[#allocation32] sm:$0x1]
    %v7423 = vld [vmem:[#allocation34] sm:$0x1]
    %7424 = vadd.xlane.f32.xlu0 %v7417
    %v7425 = vpop.xlane.xlu0 %7424
    %v7426 = vmul.f32 %v7417, %v7417
    %7427 = vadd.xlane.f32.xlu0 %v7426
    %v7428 = vpop.xlane.xlu0 %7427
    %v7429 = vmul.f32 %v7425, 0.015625
    %v7430 = vmul.f32 %v7428, 0.015625
    %v7431 = vmul.f32 %v7429, %v7429
    %v7432 = vsub.f32 %v7430, %v7431
    %v7433 = vmax.f32 %v7432, 0.0
    %v7434 = vsub.f32 %v7417, %v7429
    %v7435 = vadd.f32 %v7433, 1e-05
    %v7436 = vrsqrt.pop %v7435
    %v7437 = vmul.f32 %v7434, %v7436
    %v7439 = vlaneseq
    %v7440 = vshrl.u32 %v7439, 7
    %v7441 = vsub.s32 0, %v7440
    %v7442 = vrot.slane %v7422, %v7441
    %v7444 = vmul.f32 %v7437, %v7442
    %v7446 = vlaneseq
    %v7447 = vshrl.u32 %v7446, 7
    %v7448 = vsub.s32 0, %v7447
    %v7449 = vrot.slane %v7423, %v7448
    %v7451 = vadd.f32 %v7444, %v7449
    %v7452 = vmax.f32 %v7451, 0.0
    %v7453 = vld [vmem:[#allocation35] sm:$0x1]
    %v7455 = vlaneseq
    %v7456 = vshrl.u32 %v7455, 7
    %v7457 = vsub.s32 0, %v7456
    %v7458 = vrot.slane %v7453, %v7457
    %v7460 = vmul.f32 %v7452, %v7458
    %7461 = vadd.xlane.f32.xlu0 %v7460
    %v7462 = vpop.xlane.xlu0 %7461
    %v7463 = vld [vmem:[#allocation2] sm:$0x1]
    %v7465 = vlaneseq
    %v7466 = vshrl.u32 %v7465, 7
    %v7467 = vsub.s32 0, %v7466
    %v7468 = vrot.slane %v7463, %v7467
    %v7470 = vadd.f32 %v7462, %v7468
    %v7471 = vtanh.pop %v7470
    %vm7472 = vcmask 7168
    %7473 = vst.msk [vmem:[%s25] sm:$0xff] %vm7472, %v7471
    // Predicated region
    $region190: #{_predict_impl.1} parent=1 // pred_check
      _
    $region191: #{_predict_impl.1} parent=1 // pred_check_branch
      %7475 = sbr.rel (0) target = $region193
    $region192: #{_predict_impl.1} parent=1 // pred_region
      _
    $region193: #{_predict_impl.1} parent=1 // pred_fallthru
      _
    // Predicated region
    $region194: #{_predict_impl.1} parent=1 // pred_check
      _
    $region195: #{_predict_impl.1} parent=1 // pred_check_branch
      %7477 = sbr.rel (0) target = $region197
    $region196: #{_predict_impl.1} parent=1 // pred_region
      _
    $region197: #{_predict_impl.1} parent=1 // pred_fallthru
      _
    %7478 = vsyncpa [#allocation4], 1
    %7479 = vsyncpa [#allocation6], 1
    %7480 = vsyncpa [#allocation9], 1
    %7481 = vsyncpa [#allocation12], 1
    %7482 = vsyncpa [#allocation15], 1
    %7483 = vsyncpa [#allocation18], 1
    %7484 = vsyncpa [#allocation21], 1
    %7485 = vsyncpa [#allocation24], 1
    %7486 = vsyncpa [#allocation27], 1
    %7487 = vsyncpa [#allocation30], 1
    %7488 = vsyncpa [#allocation33], 1
    %7489 = vsyncpa [#allocation36], 1

</llo_original>
